<compile_context>
chip_gen: v6e
topology: v6e:2x2x1
jax: 0.10.0
libtpu: 0.0.40
codegen_flags: <defaults>
</compile_context>

<pallas_src>
import functools

import jax
import jax.numpy as jnp
from jax.experimental import pallas as pl
from jax.experimental.pallas import tpu as pltpu

BN_EPS = 1e-5
OUT_PAD = 128           # lane-dense width for the fc7 output slab
VEC_W = 1024            # lane width of the packed gamma/beta/bias slab

_vmem_spec = pl.BlockSpec(memory_space=pltpu.MemorySpace.VMEM)
_hbm_spec = pl.BlockSpec(memory_space=pl.ANY)


# ---------------------------------------------------------------- kernel ----

def _fused_mlp_kernel(dims, x_ref, vecs_ref, *refs):
    """Fused (Linear+BN+ReLU) x (len(dims)-1) followed by a final Linear.

    dims:     static tuple of (din, dout) per layer (fc7 already lane-padded).
    x_ref:    (B, Din0) bf16 activations in VMEM.
    vecs_ref: (2*num_bn + 1, VEC_W) f32 slab: [gamma_i, beta_i]*num_bn, b7.
    refs:     w_hbm[0..n-1] (HBM), out_ref, wbuf[0..n-1] (VMEM scratch), sem.
    """
    n = len(dims)
    w_hbm = refs[:n]
    out_ref = refs[n]
    wbufs = refs[n + 1: 2 * n + 1]
    sem = refs[2 * n + 1]

    # Issue every weight DMA immediately; the DMA engine streams them
    # back-to-back at full HBM bandwidth while the body computes earlier
    # layers.  Each layer waits only for its own weight.
    copies = []
    for i in range(n):
        cp = pltpu.make_async_copy(w_hbm[i], wbufs[i], sem.at[i])
        cp.start()
        copies.append(cp)

    num_bn = n - 1
    y = x_ref[...]                                  # bf16 entering layer 0
    for i in range(num_bn):
        dout = dims[i][1]
        copies[i].wait()
        # MXU: bf16 x bf16 -> f32 accumulate.  (Linear bias omitted: it is
        # exactly cancelled by the BN mean subtraction below.)
        y = jnp.dot(y.astype(jnp.bfloat16), wbufs[i][...],
                    preferred_element_type=jnp.float32)
        # Train-mode BatchNorm1d (biased batch variance), one-pass stats,
        # fused with the affine transform + ReLU into scale/shift/max.
        mean = jnp.mean(y, axis=0, keepdims=True)
        mean_sq = jnp.mean(y * y, axis=0, keepdims=True)
        var = jnp.maximum(mean_sq - mean * mean, 0.0)
        gamma = vecs_ref[2 * i: 2 * i + 1, :dout]
        beta = vecs_ref[2 * i + 1: 2 * i + 2, :dout]
        scale = gamma * jax.lax.rsqrt(var + BN_EPS)
        shift = beta - mean * scale
        y = jnp.maximum(y * scale + shift, 0.0)

    # fc7: plain Linear (weight columns pre-padded to OUT_PAD for a
    # lane-dense, unmasked store of the only HBM write).
    copies[n - 1].wait()
    b7 = vecs_ref[2 * num_bn: 2 * num_bn + 1, :OUT_PAD]
    out_ref[...] = jnp.dot(y.astype(jnp.bfloat16), wbufs[n - 1][...],
                           preferred_element_type=jnp.float32) + b7


# --------------------------------------------------------------- wrapper ----

def pack_params(params, use_fc1):
    """One-time repack (NOT per forward call): bf16 weights, fc7 padding,
    gamma/beta/b7 packed into a single lane-padded f32 slab."""
    layer_params = params if use_fc1 else params[1:]

    weights, vec_rows, dims = [], [], []
    for (w, _b, gamma, beta) in layer_params[:-1]:
        # Linear bias _b is intentionally dropped: train-mode BN mean
        # subtraction cancels a constant per-feature bias exactly.
        dout = w.shape[1]
        weights.append(w.astype(jnp.bfloat16))
        dims.append((w.shape[0], dout))
        vec_rows.append(jnp.pad(gamma.astype(jnp.float32),
                                ((0, 0), (0, VEC_W - dout))))
        vec_rows.append(jnp.pad(beta.astype(jnp.float32),
                                ((0, 0), (0, VEC_W - dout))))

    w7, b7 = layer_params[-1]
    out_dim = w7.shape[1]
    w7p = jnp.pad(w7.astype(jnp.bfloat16), ((0, 0), (0, OUT_PAD - out_dim)))
    b7p = jnp.pad(b7.astype(jnp.float32), ((0, 0), (0, VEC_W - out_dim)))
    weights.append(w7p)
    dims.append((w7p.shape[0], OUT_PAD))
    vec_rows.append(b7p)

    vecs = jnp.concatenate(vec_rows, axis=0)        # (2*num_bn+1, VEC_W) f32
    return weights, vecs, tuple(dims), out_dim


def mlp_forward(x, packed):
    """x: (B, C, L) matching PyTorch's (N, C, L); packed from pack_params()."""
    weights, vecs, dims, out_dim = packed
    B = x.shape[0]
    flat_x = x.reshape(B, -1).astype(jnp.bfloat16)
    assert flat_x.shape[1] == dims[0][0], "input length inconsistent with fc path"

    n_layers = len(weights)
    kernel = functools.partial(_fused_mlp_kernel, dims)

    out_padded = pl.pallas_call(
        kernel,
        out_shape=jax.ShapeDtypeStruct((B, OUT_PAD), jnp.float32),
        in_specs=[_vmem_spec, _vmem_spec] + [_hbm_spec] * n_layers,
        out_specs=_vmem_spec,
        scratch_shapes=[pltpu.VMEM(d, jnp.bfloat16) for d in dims]
                       + [pltpu.SemaphoreType.DMA((n_layers,))],
        compiler_params=pltpu.CompilerParams(
            vmem_limit_bytes=32 * 1024 * 1024),     # ~4.4 MiB weights + slack
    )(flat_x, vecs, *weights)

    return out_padded[:, :out_dim]


# ------------------------------------------------------------- reference ----

def mlp_reference(x, packed):
    """Pure-JAX reference with identical math (bf16 matmuls, f32 stats)."""
    weights, vecs, dims, out_dim = packed
    B = x.shape[0]
    y = x.reshape(B, -1).astype(jnp.bfloat16)
    num_bn = len(weights) - 1
    for i in range(num_bn):
        dout = dims[i][1]
        y = jnp.dot(y.astype(jnp.bfloat16), weights[i],
                    preferred_element_type=jnp.float32)
        mean = jnp.mean(y, axis=0, keepdims=True)
        var = jnp.maximum(jnp.mean(y * y, axis=0, keepdims=True) - mean * mean, 0.0)
        gamma = vecs[2 * i: 2 * i + 1, :dout]
        beta = vecs[2 * i + 1: 2 * i + 2, :dout]
        y = jnp.maximum((y - mean) * jax.lax.rsqrt(var + BN_EPS) * gamma + beta, 0.0)
    b7 = vecs[2 * num_bn: 2 * num_bn + 1, :OUT_PAD]
    out = jnp.dot(y.astype(jnp.bfloat16), weights[-1],
                  preferred_element_type=jnp.float32) + b7
    return out[:, :out_dim]


# ------------------------------------------------------------- parameters ---

def init_params(key, out_channel=4):
    """Deterministic synthetic parameters matching the module's shapes."""
    dims = [(512, 1024),     # fc1
            (1024, 1024),    # fc2
            (1024, 512),     # fc3
            (512, 256),      # fc4
            (256, 128),      # fc5
            (128, 64),       # fc6
            (64, out_channel)]   # fc7 (Linear only)
    params = []
    for i, (din, dout) in enumerate(dims):
        key, kw, kb = jax.random.split(key, 3)
        scale = 1.0 / jnp.sqrt(jnp.float32(din))
        w = jax.random.uniform(kw, (din, dout), jnp.float32, -scale, scale)
        b = jax.random.uniform(kb, (1, dout), jnp.float32, -scale, scale)
        if i < 6:  # layers followed by BatchNorm1d + ReLU
            gamma = jnp.ones((1, dout), jnp.float32)
            beta = jnp.zeros((1, dout), jnp.float32)
            params.append((w, b, gamma, beta))
        else:
            params.append((w, b))
    return params


# -------------------------------------------------------------------- main --

if __name__ == "__main__":
    key = jax.random.PRNGKey(0)
    k_param, k_x = jax.random.split(key)

    params = init_params(k_param, out_channel=4)

    # Small deterministic input: (batch=8, in_channel=1, length=512)
    x = jax.random.normal(k_x, (8, 1, 512), dtype=jnp.float32)

    # Static branch, as in the PyTorch forward: fc1 only runs for length 512.
    use_fc1 = (x.shape[2] == 512)
    packed = pack_params(params, use_fc1)

    # TODO(synk): BatchNorm1d here uses per-batch (train-mode) statistics, as
    # in the PyTorch module's default training state; eval-mode running stats
    # (and the module's global `inputflag` side effect) are not modeled.
    out = mlp_forward(x, packed)
    out = jax.block_until_ready(out)

    ref = jax.block_until_ready(mlp_reference(x, packed))

    assert out.shape == (8, 4), out.shape
    assert jnp.all(jnp.isfinite(out))
    assert jnp.allclose(out, ref, rtol=5e-2, atol=5e-2), (
        float(jnp.max(jnp.abs(out - ref))))
    print("KERNEL_OK")
</pallas_src>

<mosaic_0001>
module attributes {stable_mosaic.version = 11 : i64} {
  func.func @_fused_mlp_kernel(%arg0: memref<8x512xbf16, #tpu.memory_space<vmem>>, %arg1: memref<13x1024xf32, #tpu.memory_space<vmem>>, %arg2: memref<512x1024xbf16, #tpu.memory_space<any>>, %arg3: memref<1024x1024xbf16, #tpu.memory_space<any>>, %arg4: memref<1024x512xbf16, #tpu.memory_space<any>>, %arg5: memref<512x256xbf16, #tpu.memory_space<any>>, %arg6: memref<256x128xbf16, #tpu.memory_space<any>>, %arg7: memref<128x64xbf16, #tpu.memory_space<any>>, %arg8: memref<64x128xbf16, #tpu.memory_space<any>>, %arg9: memref<8x128xf32, #tpu.memory_space<vmem>>, %arg10: memref<512x1024xbf16, #tpu.memory_space<vmem>>, %arg11: memref<1024x1024xbf16, #tpu.memory_space<vmem>>, %arg12: memref<1024x512xbf16, #tpu.memory_space<vmem>>, %arg13: memref<512x256xbf16, #tpu.memory_space<vmem>>, %arg14: memref<256x128xbf16, #tpu.memory_space<vmem>>, %arg15: memref<128x64xbf16, #tpu.memory_space<vmem>>, %arg16: memref<64x128xbf16, #tpu.memory_space<vmem>>, %arg17: memref<7x!tpu.dma_semaphore, #tpu.memory_space<semaphore_mem>>) attributes {dimension_semantics = [], scalar_prefetch = 0 : i64, scratch_operands = 8 : i64, tpu.core_type = #tpu.core_type<tc>} {
    %c0_i32 = arith.constant 0 : i32
    %0 = tpu.memref_slice %arg17[%c0_i32] : memref<7x!tpu.dma_semaphore, #tpu.memory_space<semaphore_mem>> -> memref<1x!tpu.dma_semaphore, #tpu.memory_space<semaphore_mem>>
    %1 = tpu.memref_squeeze %0 : memref<1x!tpu.dma_semaphore, #tpu.memory_space<semaphore_mem>> -> memref<!tpu.dma_semaphore, #tpu.memory_space<semaphore_mem>>
    tpu.enqueue_dma source(%arg2 : memref<512x1024xbf16, #tpu.memory_space<any>>) target(%arg10 : memref<512x1024xbf16, #tpu.memory_space<vmem>>) target_semaphore(%1 : memref<!tpu.dma_semaphore, #tpu.memory_space<semaphore_mem>>)
    %c1_i32 = arith.constant 1 : i32
    %2 = tpu.memref_slice %arg17[%c1_i32] : memref<7x!tpu.dma_semaphore, #tpu.memory_space<semaphore_mem>> -> memref<1x!tpu.dma_semaphore, #tpu.memory_space<semaphore_mem>>
    %3 = tpu.memref_squeeze %2 : memref<1x!tpu.dma_semaphore, #tpu.memory_space<semaphore_mem>> -> memref<!tpu.dma_semaphore, #tpu.memory_space<semaphore_mem>>
    tpu.enqueue_dma source(%arg3 : memref<1024x1024xbf16, #tpu.memory_space<any>>) target(%arg11 : memref<1024x1024xbf16, #tpu.memory_space<vmem>>) target_semaphore(%3 : memref<!tpu.dma_semaphore, #tpu.memory_space<semaphore_mem>>)
    %c2_i32 = arith.constant 2 : i32
    %4 = tpu.memref_slice %arg17[%c2_i32] : memref<7x!tpu.dma_semaphore, #tpu.memory_space<semaphore_mem>> -> memref<1x!tpu.dma_semaphore, #tpu.memory_space<semaphore_mem>>
    %5 = tpu.memref_squeeze %4 : memref<1x!tpu.dma_semaphore, #tpu.memory_space<semaphore_mem>> -> memref<!tpu.dma_semaphore, #tpu.memory_space<semaphore_mem>>
    tpu.enqueue_dma source(%arg4 : memref<1024x512xbf16, #tpu.memory_space<any>>) target(%arg12 : memref<1024x512xbf16, #tpu.memory_space<vmem>>) target_semaphore(%5 : memref<!tpu.dma_semaphore, #tpu.memory_space<semaphore_mem>>)
    %c3_i32 = arith.constant 3 : i32
    %6 = tpu.memref_slice %arg17[%c3_i32] : memref<7x!tpu.dma_semaphore, #tpu.memory_space<semaphore_mem>> -> memref<1x!tpu.dma_semaphore, #tpu.memory_space<semaphore_mem>>
    %7 = tpu.memref_squeeze %6 : memref<1x!tpu.dma_semaphore, #tpu.memory_space<semaphore_mem>> -> memref<!tpu.dma_semaphore, #tpu.memory_space<semaphore_mem>>
    tpu.enqueue_dma source(%arg5 : memref<512x256xbf16, #tpu.memory_space<any>>) target(%arg13 : memref<512x256xbf16, #tpu.memory_space<vmem>>) target_semaphore(%7 : memref<!tpu.dma_semaphore, #tpu.memory_space<semaphore_mem>>)
    %c4_i32 = arith.constant 4 : i32
    %8 = tpu.memref_slice %arg17[%c4_i32] : memref<7x!tpu.dma_semaphore, #tpu.memory_space<semaphore_mem>> -> memref<1x!tpu.dma_semaphore, #tpu.memory_space<semaphore_mem>>
    %9 = tpu.memref_squeeze %8 : memref<1x!tpu.dma_semaphore, #tpu.memory_space<semaphore_mem>> -> memref<!tpu.dma_semaphore, #tpu.memory_space<semaphore_mem>>
    tpu.enqueue_dma source(%arg6 : memref<256x128xbf16, #tpu.memory_space<any>>) target(%arg14 : memref<256x128xbf16, #tpu.memory_space<vmem>>) target_semaphore(%9 : memref<!tpu.dma_semaphore, #tpu.memory_space<semaphore_mem>>)
    %c5_i32 = arith.constant 5 : i32
    %10 = tpu.memref_slice %arg17[%c5_i32] : memref<7x!tpu.dma_semaphore, #tpu.memory_space<semaphore_mem>> -> memref<1x!tpu.dma_semaphore, #tpu.memory_space<semaphore_mem>>
    %11 = tpu.memref_squeeze %10 : memref<1x!tpu.dma_semaphore, #tpu.memory_space<semaphore_mem>> -> memref<!tpu.dma_semaphore, #tpu.memory_space<semaphore_mem>>
    tpu.enqueue_dma source(%arg7 : memref<128x64xbf16, #tpu.memory_space<any>>) target(%arg15 : memref<128x64xbf16, #tpu.memory_space<vmem>>) target_semaphore(%11 : memref<!tpu.dma_semaphore, #tpu.memory_space<semaphore_mem>>)
    %c6_i32 = arith.constant 6 : i32
    %12 = tpu.memref_slice %arg17[%c6_i32] : memref<7x!tpu.dma_semaphore, #tpu.memory_space<semaphore_mem>> -> memref<1x!tpu.dma_semaphore, #tpu.memory_space<semaphore_mem>>
    %13 = tpu.memref_squeeze %12 : memref<1x!tpu.dma_semaphore, #tpu.memory_space<semaphore_mem>> -> memref<!tpu.dma_semaphore, #tpu.memory_space<semaphore_mem>>
    tpu.enqueue_dma source(%arg8 : memref<64x128xbf16, #tpu.memory_space<any>>) target(%arg16 : memref<64x128xbf16, #tpu.memory_space<vmem>>) target_semaphore(%13 : memref<!tpu.dma_semaphore, #tpu.memory_space<semaphore_mem>>)
    %c0 = arith.constant 0 : index
    %c0_0 = arith.constant 0 : index
    %14 = vector.load %arg0[%c0, %c0_0] : memref<8x512xbf16, #tpu.memory_space<vmem>>, vector<8x512xbf16>
    %c0_i32_1 = arith.constant 0 : i32
    %15 = tpu.memref_slice %arg17[%c0_i32_1] : memref<7x!tpu.dma_semaphore, #tpu.memory_space<semaphore_mem>> -> memref<1x!tpu.dma_semaphore, #tpu.memory_space<semaphore_mem>>
    %16 = tpu.memref_squeeze %15 : memref<1x!tpu.dma_semaphore, #tpu.memory_space<semaphore_mem>> -> memref<!tpu.dma_semaphore, #tpu.memory_space<semaphore_mem>>
    tpu.wait_dma2 semaphore(%16 : memref<!tpu.dma_semaphore, #tpu.memory_space<semaphore_mem>>) src(%arg2 : memref<512x1024xbf16, #tpu.memory_space<any>>) dst(%arg10 : memref<512x1024xbf16, #tpu.memory_space<vmem>>)
    %c0_2 = arith.constant 0 : index
    %c0_3 = arith.constant 0 : index
    %17 = vector.load %arg10[%c0_2, %c0_3] : memref<512x1024xbf16, #tpu.memory_space<vmem>>, vector<512x1024xbf16>
    %cst = arith.constant dense<0.000000e+00> : vector<8x1024xf32>
    %18 = tpu.matmul %14, %17, %cst {dimension_numbers = #tpu.dot_dimension_numbers<[1], [0], [0], [1], [0, 0, 1, 1], [], []>} : vector<8x512xbf16>, vector<512x1024xbf16>, vector<8x1024xf32> -> vector<8x1024xf32>
    %cst_4 = arith.constant dense<0.000000e+00> : vector<1024xf32>
    %19 = vector.multi_reduction <add>, %18, %cst_4 [0] : vector<8x1024xf32> to vector<1024xf32>
    %20 = vector.shape_cast %19 : vector<1024xf32> to vector<1x1024xf32>
    %cst_5 = arith.constant 8.000000e+00 : f32
    %21 = vector.broadcast %cst_5 : f32 to vector<1x1024xf32>
    %22 = arith.divf %20, %21 : vector<1x1024xf32>
    %23 = arith.mulf %18, %18 : vector<8x1024xf32>
    %cst_6 = arith.constant dense<0.000000e+00> : vector<1024xf32>
    %24 = vector.multi_reduction <add>, %23, %cst_6 [0] : vector<8x1024xf32> to vector<1024xf32>
    %25 = vector.shape_cast %24 : vector<1024xf32> to vector<1x1024xf32>
    %cst_7 = arith.constant 8.000000e+00 : f32
    %26 = vector.broadcast %cst_7 : f32 to vector<1x1024xf32>
    %27 = arith.divf %25, %26 : vector<1x1024xf32>
    %28 = arith.mulf %22, %22 : vector<1x1024xf32>
    %29 = arith.subf %27, %28 : vector<1x1024xf32>
    %cst_8 = arith.constant 0.000000e+00 : f32
    %30 = vector.broadcast %cst_8 : f32 to vector<1x1024xf32>
    %31 = arith.maximumf %29, %30 : vector<1x1024xf32>
    %c0_9 = arith.constant 0 : index
    %c0_10 = arith.constant 0 : index
    %32 = vector.load %arg1[%c0_9, %c0_10] : memref<13x1024xf32, #tpu.memory_space<vmem>>, vector<1x1024xf32>
    %c1 = arith.constant 1 : index
    %c0_11 = arith.constant 0 : index
    %33 = vector.load %arg1[%c1, %c0_11] : memref<13x1024xf32, #tpu.memory_space<vmem>>, vector<1x1024xf32>
    %cst_12 = arith.constant 9.99999974E-6 : f32
    %34 = vector.broadcast %cst_12 : f32 to vector<1x1024xf32>
    %35 = arith.addf %31, %34 : vector<1x1024xf32>
    %36 = math.rsqrt %35 : vector<1x1024xf32>
    %37 = arith.mulf %32, %36 : vector<1x1024xf32>
    %38 = arith.mulf %22, %37 : vector<1x1024xf32>
    %39 = arith.subf %33, %38 : vector<1x1024xf32>
    %40 = vector.broadcast %37 : vector<1x1024xf32> to vector<8x1024xf32>
    %41 = arith.mulf %18, %40 : vector<8x1024xf32>
    %42 = vector.broadcast %39 : vector<1x1024xf32> to vector<8x1024xf32>
    %43 = arith.addf %41, %42 : vector<8x1024xf32>
    %cst_13 = arith.constant 0.000000e+00 : f32
    %44 = vector.broadcast %cst_13 : f32 to vector<8x1024xf32>
    %45 = arith.maximumf %43, %44 : vector<8x1024xf32>
    %c1_i32_14 = arith.constant 1 : i32
    %46 = tpu.memref_slice %arg17[%c1_i32_14] : memref<7x!tpu.dma_semaphore, #tpu.memory_space<semaphore_mem>> -> memref<1x!tpu.dma_semaphore, #tpu.memory_space<semaphore_mem>>
    %47 = tpu.memref_squeeze %46 : memref<1x!tpu.dma_semaphore, #tpu.memory_space<semaphore_mem>> -> memref<!tpu.dma_semaphore, #tpu.memory_space<semaphore_mem>>
    tpu.wait_dma2 semaphore(%47 : memref<!tpu.dma_semaphore, #tpu.memory_space<semaphore_mem>>) src(%arg3 : memref<1024x1024xbf16, #tpu.memory_space<any>>) dst(%arg11 : memref<1024x1024xbf16, #tpu.memory_space<vmem>>)
    %48 = arith.truncf %45 : vector<8x1024xf32> to vector<8x1024xbf16>
    %c0_15 = arith.constant 0 : index
    %c0_16 = arith.constant 0 : index
    %49 = vector.load %arg11[%c0_15, %c0_16] : memref<1024x1024xbf16, #tpu.memory_space<vmem>>, vector<1024x1024xbf16>
    %cst_17 = arith.constant dense<0.000000e+00> : vector<8x1024xf32>
    %50 = tpu.matmul %48, %49, %cst_17 {dimension_numbers = #tpu.dot_dimension_numbers<[1], [0], [0], [1], [0, 0, 1, 1], [], []>} : vector<8x1024xbf16>, vector<1024x1024xbf16>, vector<8x1024xf32> -> vector<8x1024xf32>
    %cst_18 = arith.constant dense<0.000000e+00> : vector<1024xf32>
    %51 = vector.multi_reduction <add>, %50, %cst_18 [0] : vector<8x1024xf32> to vector<1024xf32>
    %52 = vector.shape_cast %51 : vector<1024xf32> to vector<1x1024xf32>
    %cst_19 = arith.constant 8.000000e+00 : f32
    %53 = vector.broadcast %cst_19 : f32 to vector<1x1024xf32>
    %54 = arith.divf %52, %53 : vector<1x1024xf32>
    %55 = arith.mulf %50, %50 : vector<8x1024xf32>
    %cst_20 = arith.constant dense<0.000000e+00> : vector<1024xf32>
    %56 = vector.multi_reduction <add>, %55, %cst_20 [0] : vector<8x1024xf32> to vector<1024xf32>
    %57 = vector.shape_cast %56 : vector<1024xf32> to vector<1x1024xf32>
    %cst_21 = arith.constant 8.000000e+00 : f32
    %58 = vector.broadcast %cst_21 : f32 to vector<1x1024xf32>
    %59 = arith.divf %57, %58 : vector<1x1024xf32>
    %60 = arith.mulf %54, %54 : vector<1x1024xf32>
    %61 = arith.subf %59, %60 : vector<1x1024xf32>
    %cst_22 = arith.constant 0.000000e+00 : f32
    %62 = vector.broadcast %cst_22 : f32 to vector<1x1024xf32>
    %63 = arith.maximumf %61, %62 : vector<1x1024xf32>
    %c2 = arith.constant 2 : index
    %c0_23 = arith.constant 0 : index
    %64 = vector.load %arg1[%c2, %c0_23] : memref<13x1024xf32, #tpu.memory_space<vmem>>, vector<1x1024xf32>
    %c3 = arith.constant 3 : index
    %c0_24 = arith.constant 0 : index
    %65 = vector.load %arg1[%c3, %c0_24] : memref<13x1024xf32, #tpu.memory_space<vmem>>, vector<1x1024xf32>
    %cst_25 = arith.constant 9.99999974E-6 : f32
    %66 = vector.broadcast %cst_25 : f32 to vector<1x1024xf32>
    %67 = arith.addf %63, %66 : vector<1x1024xf32>
    %68 = math.rsqrt %67 : vector<1x1024xf32>
    %69 = arith.mulf %64, %68 : vector<1x1024xf32>
    %70 = arith.mulf %54, %69 : vector<1x1024xf32>
    %71 = arith.subf %65, %70 : vector<1x1024xf32>
    %72 = vector.broadcast %69 : vector<1x1024xf32> to vector<8x1024xf32>
    %73 = arith.mulf %50, %72 : vector<8x1024xf32>
    %74 = vector.broadcast %71 : vector<1x1024xf32> to vector<8x1024xf32>
    %75 = arith.addf %73, %74 : vector<8x1024xf32>
    %cst_26 = arith.constant 0.000000e+00 : f32
    %76 = vector.broadcast %cst_26 : f32 to vector<8x1024xf32>
    %77 = arith.maximumf %75, %76 : vector<8x1024xf32>
    %c2_i32_27 = arith.constant 2 : i32
    %78 = tpu.memref_slice %arg17[%c2_i32_27] : memref<7x!tpu.dma_semaphore, #tpu.memory_space<semaphore_mem>> -> memref<1x!tpu.dma_semaphore, #tpu.memory_space<semaphore_mem>>
    %79 = tpu.memref_squeeze %78 : memref<1x!tpu.dma_semaphore, #tpu.memory_space<semaphore_mem>> -> memref<!tpu.dma_semaphore, #tpu.memory_space<semaphore_mem>>
    tpu.wait_dma2 semaphore(%79 : memref<!tpu.dma_semaphore, #tpu.memory_space<semaphore_mem>>) src(%arg4 : memref<1024x512xbf16, #tpu.memory_space<any>>) dst(%arg12 : memref<1024x512xbf16, #tpu.memory_space<vmem>>)
    %80 = arith.truncf %77 : vector<8x1024xf32> to vector<8x1024xbf16>
    %c0_28 = arith.constant 0 : index
    %c0_29 = arith.constant 0 : index
    %81 = vector.load %arg12[%c0_28, %c0_29] : memref<1024x512xbf16, #tpu.memory_space<vmem>>, vector<1024x512xbf16>
    %cst_30 = arith.constant dense<0.000000e+00> : vector<8x512xf32>
    %82 = tpu.matmul %80, %81, %cst_30 {dimension_numbers = #tpu.dot_dimension_numbers<[1], [0], [0], [1], [0, 0, 1, 1], [], []>} : vector<8x1024xbf16>, vector<1024x512xbf16>, vector<8x512xf32> -> vector<8x512xf32>
    %cst_31 = arith.constant dense<0.000000e+00> : vector<512xf32>
    %83 = vector.multi_reduction <add>, %82, %cst_31 [0] : vector<8x512xf32> to vector<512xf32>
    %84 = vector.shape_cast %83 : vector<512xf32> to vector<1x512xf32>
    %cst_32 = arith.constant 8.000000e+00 : f32
    %85 = vector.broadcast %cst_32 : f32 to vector<1x512xf32>
    %86 = arith.divf %84, %85 : vector<1x512xf32>
    %87 = arith.mulf %82, %82 : vector<8x512xf32>
    %cst_33 = arith.constant dense<0.000000e+00> : vector<512xf32>
    %88 = vector.multi_reduction <add>, %87, %cst_33 [0] : vector<8x512xf32> to vector<512xf32>
    %89 = vector.shape_cast %88 : vector<512xf32> to vector<1x512xf32>
    %cst_34 = arith.constant 8.000000e+00 : f32
    %90 = vector.broadcast %cst_34 : f32 to vector<1x512xf32>
    %91 = arith.divf %89, %90 : vector<1x512xf32>
    %92 = arith.mulf %86, %86 : vector<1x512xf32>
    %93 = arith.subf %91, %92 : vector<1x512xf32>
    %cst_35 = arith.constant 0.000000e+00 : f32
    %94 = vector.broadcast %cst_35 : f32 to vector<1x512xf32>
    %95 = arith.maximumf %93, %94 : vector<1x512xf32>
    %c4 = arith.constant 4 : index
    %c0_36 = arith.constant 0 : index
    %96 = vector.load %arg1[%c4, %c0_36] : memref<13x1024xf32, #tpu.memory_space<vmem>>, vector<1x512xf32>
    %c5 = arith.constant 5 : index
    %c0_37 = arith.constant 0 : index
    %97 = vector.load %arg1[%c5, %c0_37] : memref<13x1024xf32, #tpu.memory_space<vmem>>, vector<1x512xf32>
    %cst_38 = arith.constant 9.99999974E-6 : f32
    %98 = vector.broadcast %cst_38 : f32 to vector<1x512xf32>
    %99 = arith.addf %95, %98 : vector<1x512xf32>
    %100 = math.rsqrt %99 : vector<1x512xf32>
    %101 = arith.mulf %96, %100 : vector<1x512xf32>
    %102 = arith.mulf %86, %101 : vector<1x512xf32>
    %103 = arith.subf %97, %102 : vector<1x512xf32>
    %104 = vector.broadcast %101 : vector<1x512xf32> to vector<8x512xf32>
    %105 = arith.mulf %82, %104 : vector<8x512xf32>
    %106 = vector.broadcast %103 : vector<1x512xf32> to vector<8x512xf32>
    %107 = arith.addf %105, %106 : vector<8x512xf32>
    %cst_39 = arith.constant 0.000000e+00 : f32
    %108 = vector.broadcast %cst_39 : f32 to vector<8x512xf32>
    %109 = arith.maximumf %107, %108 : vector<8x512xf32>
    %c3_i32_40 = arith.constant 3 : i32
    %110 = tpu.memref_slice %arg17[%c3_i32_40] : memref<7x!tpu.dma_semaphore, #tpu.memory_space<semaphore_mem>> -> memref<1x!tpu.dma_semaphore, #tpu.memory_space<semaphore_mem>>
    %111 = tpu.memref_squeeze %110 : memref<1x!tpu.dma_semaphore, #tpu.memory_space<semaphore_mem>> -> memref<!tpu.dma_semaphore, #tpu.memory_space<semaphore_mem>>
    tpu.wait_dma2 semaphore(%111 : memref<!tpu.dma_semaphore, #tpu.memory_space<semaphore_mem>>) src(%arg5 : memref<512x256xbf16, #tpu.memory_space<any>>) dst(%arg13 : memref<512x256xbf16, #tpu.memory_space<vmem>>)
    %112 = arith.truncf %109 : vector<8x512xf32> to vector<8x512xbf16>
    %c0_41 = arith.constant 0 : index
    %c0_42 = arith.constant 0 : index
    %113 = vector.load %arg13[%c0_41, %c0_42] : memref<512x256xbf16, #tpu.memory_space<vmem>>, vector<512x256xbf16>
    %cst_43 = arith.constant dense<0.000000e+00> : vector<8x256xf32>
    %114 = tpu.matmul %112, %113, %cst_43 {dimension_numbers = #tpu.dot_dimension_numbers<[1], [0], [0], [1], [0, 0, 1, 1], [], []>} : vector<8x512xbf16>, vector<512x256xbf16>, vector<8x256xf32> -> vector<8x256xf32>
    %cst_44 = arith.constant dense<0.000000e+00> : vector<256xf32>
    %115 = vector.multi_reduction <add>, %114, %cst_44 [0] : vector<8x256xf32> to vector<256xf32>
    %116 = vector.shape_cast %115 : vector<256xf32> to vector<1x256xf32>
    %cst_45 = arith.constant 8.000000e+00 : f32
    %117 = vector.broadcast %cst_45 : f32 to vector<1x256xf32>
    %118 = arith.divf %116, %117 : vector<1x256xf32>
    %119 = arith.mulf %114, %114 : vector<8x256xf32>
    %cst_46 = arith.constant dense<0.000000e+00> : vector<256xf32>
    %120 = vector.multi_reduction <add>, %119, %cst_46 [0] : vector<8x256xf32> to vector<256xf32>
    %121 = vector.shape_cast %120 : vector<256xf32> to vector<1x256xf32>
    %cst_47 = arith.constant 8.000000e+00 : f32
    %122 = vector.broadcast %cst_47 : f32 to vector<1x256xf32>
    %123 = arith.divf %121, %122 : vector<1x256xf32>
    %124 = arith.mulf %118, %118 : vector<1x256xf32>
    %125 = arith.subf %123, %124 : vector<1x256xf32>
    %cst_48 = arith.constant 0.000000e+00 : f32
    %126 = vector.broadcast %cst_48 : f32 to vector<1x256xf32>
    %127 = arith.maximumf %125, %126 : vector<1x256xf32>
    %c6 = arith.constant 6 : index
    %c0_49 = arith.constant 0 : index
    %128 = vector.load %arg1[%c6, %c0_49] : memref<13x1024xf32, #tpu.memory_space<vmem>>, vector<1x256xf32>
    %c7 = arith.constant 7 : index
    %c0_50 = arith.constant 0 : index
    %129 = vector.load %arg1[%c7, %c0_50] : memref<13x1024xf32, #tpu.memory_space<vmem>>, vector<1x256xf32>
    %cst_51 = arith.constant 9.99999974E-6 : f32
    %130 = vector.broadcast %cst_51 : f32 to vector<1x256xf32>
    %131 = arith.addf %127, %130 : vector<1x256xf32>
    %132 = math.rsqrt %131 : vector<1x256xf32>
    %133 = arith.mulf %128, %132 : vector<1x256xf32>
    %134 = arith.mulf %118, %133 : vector<1x256xf32>
    %135 = arith.subf %129, %134 : vector<1x256xf32>
    %136 = vector.broadcast %133 : vector<1x256xf32> to vector<8x256xf32>
    %137 = arith.mulf %114, %136 : vector<8x256xf32>
    %138 = vector.broadcast %135 : vector<1x256xf32> to vector<8x256xf32>
    %139 = arith.addf %137, %138 : vector<8x256xf32>
    %cst_52 = arith.constant 0.000000e+00 : f32
    %140 = vector.broadcast %cst_52 : f32 to vector<8x256xf32>
    %141 = arith.maximumf %139, %140 : vector<8x256xf32>
    %c4_i32_53 = arith.constant 4 : i32
    %142 = tpu.memref_slice %arg17[%c4_i32_53] : memref<7x!tpu.dma_semaphore, #tpu.memory_space<semaphore_mem>> -> memref<1x!tpu.dma_semaphore, #tpu.memory_space<semaphore_mem>>
    %143 = tpu.memref_squeeze %142 : memref<1x!tpu.dma_semaphore, #tpu.memory_space<semaphore_mem>> -> memref<!tpu.dma_semaphore, #tpu.memory_space<semaphore_mem>>
    tpu.wait_dma2 semaphore(%143 : memref<!tpu.dma_semaphore, #tpu.memory_space<semaphore_mem>>) src(%arg6 : memref<256x128xbf16, #tpu.memory_space<any>>) dst(%arg14 : memref<256x128xbf16, #tpu.memory_space<vmem>>)
    %144 = arith.truncf %141 : vector<8x256xf32> to vector<8x256xbf16>
    %c0_54 = arith.constant 0 : index
    %c0_55 = arith.constant 0 : index
    %145 = vector.load %arg14[%c0_54, %c0_55] : memref<256x128xbf16, #tpu.memory_space<vmem>>, vector<256x128xbf16>
    %cst_56 = arith.constant dense<0.000000e+00> : vector<8x128xf32>
    %146 = tpu.matmul %144, %145, %cst_56 {dimension_numbers = #tpu.dot_dimension_numbers<[1], [0], [0], [1], [0, 0, 1, 1], [], []>} : vector<8x256xbf16>, vector<256x128xbf16>, vector<8x128xf32> -> vector<8x128xf32>
    %cst_57 = arith.constant dense<0.000000e+00> : vector<128xf32>
    %147 = vector.multi_reduction <add>, %146, %cst_57 [0] : vector<8x128xf32> to vector<128xf32>
    %148 = vector.shape_cast %147 : vector<128xf32> to vector<1x128xf32>
    %cst_58 = arith.constant 8.000000e+00 : f32
    %149 = vector.broadcast %cst_58 : f32 to vector<1x128xf32>
    %150 = arith.divf %148, %149 : vector<1x128xf32>
    %151 = arith.mulf %146, %146 : vector<8x128xf32>
    %cst_59 = arith.constant dense<0.000000e+00> : vector<128xf32>
    %152 = vector.multi_reduction <add>, %151, %cst_59 [0] : vector<8x128xf32> to vector<128xf32>
    %153 = vector.shape_cast %152 : vector<128xf32> to vector<1x128xf32>
    %cst_60 = arith.constant 8.000000e+00 : f32
    %154 = vector.broadcast %cst_60 : f32 to vector<1x128xf32>
    %155 = arith.divf %153, %154 : vector<1x128xf32>
    %156 = arith.mulf %150, %150 : vector<1x128xf32>
    %157 = arith.subf %155, %156 : vector<1x128xf32>
    %cst_61 = arith.constant 0.000000e+00 : f32
    %158 = vector.broadcast %cst_61 : f32 to vector<1x128xf32>
    %159 = arith.maximumf %157, %158 : vector<1x128xf32>
    %c8 = arith.constant 8 : index
    %c0_62 = arith.constant 0 : index
    %160 = vector.load %arg1[%c8, %c0_62] : memref<13x1024xf32, #tpu.memory_space<vmem>>, vector<1x128xf32>
    %c9 = arith.constant 9 : index
    %c0_63 = arith.constant 0 : index
    %161 = vector.load %arg1[%c9, %c0_63] : memref<13x1024xf32, #tpu.memory_space<vmem>>, vector<1x128xf32>
    %cst_64 = arith.constant 9.99999974E-6 : f32
    %162 = vector.broadcast %cst_64 : f32 to vector<1x128xf32>
    %163 = arith.addf %159, %162 : vector<1x128xf32>
    %164 = math.rsqrt %163 : vector<1x128xf32>
    %165 = arith.mulf %160, %164 : vector<1x128xf32>
    %166 = arith.mulf %150, %165 : vector<1x128xf32>
    %167 = arith.subf %161, %166 : vector<1x128xf32>
    %168 = vector.broadcast %165 : vector<1x128xf32> to vector<8x128xf32>
    %169 = arith.mulf %146, %168 : vector<8x128xf32>
    %170 = vector.broadcast %167 : vector<1x128xf32> to vector<8x128xf32>
    %171 = arith.addf %169, %170 : vector<8x128xf32>
    %cst_65 = arith.constant 0.000000e+00 : f32
    %172 = vector.broadcast %cst_65 : f32 to vector<8x128xf32>
    %173 = arith.maximumf %171, %172 : vector<8x128xf32>
    %c5_i32_66 = arith.constant 5 : i32
    %174 = tpu.memref_slice %arg17[%c5_i32_66] : memref<7x!tpu.dma_semaphore, #tpu.memory_space<semaphore_mem>> -> memref<1x!tpu.dma_semaphore, #tpu.memory_space<semaphore_mem>>
    %175 = tpu.memref_squeeze %174 : memref<1x!tpu.dma_semaphore, #tpu.memory_space<semaphore_mem>> -> memref<!tpu.dma_semaphore, #tpu.memory_space<semaphore_mem>>
    tpu.wait_dma2 semaphore(%175 : memref<!tpu.dma_semaphore, #tpu.memory_space<semaphore_mem>>) src(%arg7 : memref<128x64xbf16, #tpu.memory_space<any>>) dst(%arg15 : memref<128x64xbf16, #tpu.memory_space<vmem>>)
    %176 = arith.truncf %173 : vector<8x128xf32> to vector<8x128xbf16>
    %c0_67 = arith.constant 0 : index
    %c0_68 = arith.constant 0 : index
    %177 = vector.load %arg15[%c0_67, %c0_68] : memref<128x64xbf16, #tpu.memory_space<vmem>>, vector<128x64xbf16>
    %cst_69 = arith.constant dense<0.000000e+00> : vector<8x64xf32>
    %178 = tpu.matmul %176, %177, %cst_69 {dimension_numbers = #tpu.dot_dimension_numbers<[1], [0], [0], [1], [0, 0, 1, 1], [], []>} : vector<8x128xbf16>, vector<128x64xbf16>, vector<8x64xf32> -> vector<8x64xf32>
    %cst_70 = arith.constant dense<0.000000e+00> : vector<64xf32>
    %179 = vector.multi_reduction <add>, %178, %cst_70 [0] : vector<8x64xf32> to vector<64xf32>
    %180 = vector.shape_cast %179 : vector<64xf32> to vector<1x64xf32>
    %cst_71 = arith.constant 8.000000e+00 : f32
    %181 = vector.broadcast %cst_71 : f32 to vector<1x64xf32>
    %182 = arith.divf %180, %181 : vector<1x64xf32>
    %183 = arith.mulf %178, %178 : vector<8x64xf32>
    %cst_72 = arith.constant dense<0.000000e+00> : vector<64xf32>
    %184 = vector.multi_reduction <add>, %183, %cst_72 [0] : vector<8x64xf32> to vector<64xf32>
    %185 = vector.shape_cast %184 : vector<64xf32> to vector<1x64xf32>
    %cst_73 = arith.constant 8.000000e+00 : f32
    %186 = vector.broadcast %cst_73 : f32 to vector<1x64xf32>
    %187 = arith.divf %185, %186 : vector<1x64xf32>
    %188 = arith.mulf %182, %182 : vector<1x64xf32>
    %189 = arith.subf %187, %188 : vector<1x64xf32>
    %cst_74 = arith.constant 0.000000e+00 : f32
    %190 = vector.broadcast %cst_74 : f32 to vector<1x64xf32>
    %191 = arith.maximumf %189, %190 : vector<1x64xf32>
    %c10 = arith.constant 10 : index
    %c0_75 = arith.constant 0 : index
    %192 = vector.load %arg1[%c10, %c0_75] : memref<13x1024xf32, #tpu.memory_space<vmem>>, vector<1x64xf32>
    %c11 = arith.constant 11 : index
    %c0_76 = arith.constant 0 : index
    %193 = vector.load %arg1[%c11, %c0_76] : memref<13x1024xf32, #tpu.memory_space<vmem>>, vector<1x64xf32>
    %cst_77 = arith.constant 9.99999974E-6 : f32
    %194 = vector.broadcast %cst_77 : f32 to vector<1x64xf32>
    %195 = arith.addf %191, %194 : vector<1x64xf32>
    %196 = math.rsqrt %195 : vector<1x64xf32>
    %197 = arith.mulf %192, %196 : vector<1x64xf32>
    %198 = arith.mulf %182, %197 : vector<1x64xf32>
    %199 = arith.subf %193, %198 : vector<1x64xf32>
    %200 = vector.broadcast %197 : vector<1x64xf32> to vector<8x64xf32>
    %201 = arith.mulf %178, %200 : vector<8x64xf32>
    %202 = vector.broadcast %199 : vector<1x64xf32> to vector<8x64xf32>
    %203 = arith.addf %201, %202 : vector<8x64xf32>
    %cst_78 = arith.constant 0.000000e+00 : f32
    %204 = vector.broadcast %cst_78 : f32 to vector<8x64xf32>
    %205 = arith.maximumf %203, %204 : vector<8x64xf32>
    %c6_i32_79 = arith.constant 6 : i32
    %206 = tpu.memref_slice %arg17[%c6_i32_79] : memref<7x!tpu.dma_semaphore, #tpu.memory_space<semaphore_mem>> -> memref<1x!tpu.dma_semaphore, #tpu.memory_space<semaphore_mem>>
    %207 = tpu.memref_squeeze %206 : memref<1x!tpu.dma_semaphore, #tpu.memory_space<semaphore_mem>> -> memref<!tpu.dma_semaphore, #tpu.memory_space<semaphore_mem>>
    tpu.wait_dma2 semaphore(%207 : memref<!tpu.dma_semaphore, #tpu.memory_space<semaphore_mem>>) src(%arg8 : memref<64x128xbf16, #tpu.memory_space<any>>) dst(%arg16 : memref<64x128xbf16, #tpu.memory_space<vmem>>)
    %c12 = arith.constant 12 : index
    %c0_80 = arith.constant 0 : index
    %208 = vector.load %arg1[%c12, %c0_80] : memref<13x1024xf32, #tpu.memory_space<vmem>>, vector<1x128xf32>
    %209 = arith.truncf %205 : vector<8x64xf32> to vector<8x64xbf16>
    %c0_81 = arith.constant 0 : index
    %c0_82 = arith.constant 0 : index
    %210 = vector.load %arg16[%c0_81, %c0_82] : memref<64x128xbf16, #tpu.memory_space<vmem>>, vector<64x128xbf16>
    %cst_83 = arith.constant dense<0.000000e+00> : vector<8x128xf32>
    %211 = tpu.matmul %209, %210, %cst_83 {dimension_numbers = #tpu.dot_dimension_numbers<[1], [0], [0], [1], [0, 0, 1, 1], [], []>} : vector<8x64xbf16>, vector<64x128xbf16>, vector<8x128xf32> -> vector<8x128xf32>
    %212 = vector.broadcast %208 : vector<1x128xf32> to vector<8x128xf32>
    %213 = arith.addf %211, %212 : vector<8x128xf32>
    %c0_84 = arith.constant 0 : index
    %c0_85 = arith.constant 0 : index
    %214 = vector.load %arg9[%c0_84, %c0_85] : memref<8x128xf32, #tpu.memory_space<vmem>>, vector<8x128xf32>
    tpu.vector_store %arg9[%c0_84, %c0_85], %213 {strides = array<i32>} : memref<8x128xf32, #tpu.memory_space<vmem>>, vector<8x128xf32>,
    return
  }
}

</mosaic_0001>

<llo_original>
// kernel: tpu_custom_call.1
$region0: #{tpu_custom_call.1}
  #allocation0 [shape = 'u32[]', space=smem, size = 0x4, offset = 0x4, fixed_abs, tag = 'smem constant byte address 0x4 - core index']
  #allocation1 [shape = 'u32[144,128]{1,0:T(1,128)}', space=vmem, size = 0x12000, scoped, tag = 'internal scratch']
  #allocation2 [shape = 'bf16[512,1024]{1,0:T(8,128)(2,1)}', space=vmem, size = 0x100000, scoped, tag = 'scratch operand']
  #allocation3 [shape = 'bf16[1024,1024]{1,0:T(8,128)(2,1)}', space=vmem, size = 0x200000, scoped, tag = 'scratch operand']
  #allocation4 [shape = 'bf16[1024,512]{1,0:T(8,128)(2,1)}', space=vmem, size = 0x100000, scoped, tag = 'scratch operand']
  #allocation5 [shape = 'bf16[512,256]{1,0:T(8,128)(2,1)}', space=vmem, size = 0x40000, scoped, tag = 'scratch operand']
  #allocation6 [shape = 'bf16[256,128]{1,0:T(8,128)(2,1)}', space=vmem, size = 0x10000, scoped, tag = 'scratch operand']
  #allocation7 [shape = 'bf16[128,64]{1,0:T(8,128)(2,1)}', space=vmem, size = 0x8000, scoped, tag = 'scratch operand']
  #allocation8 [shape = 'bf16[64,128]{1,0:T(8,128)(2,1)}', space=vmem, size = 0x4000, scoped, tag = 'scratch operand']
  #allocation9 [shape = 's32[7]{0}', space=sflag, size = 0x1c, scoped, tag = 'scratch operand']
  #allocation16 [shape = 's32[]', space=sflag, size = 0x4, offset = 0, fixed_abs, tag = 'sflag constant byte address 0x0 - dummy sync flag']
  #allocation17 [shape = 's32[]', space=sflag, size = 0x4, offset = 0, fixed_abs, tag = 'sflag constant byte address 0x0 - dummy sync flag']
  #allocation18 [shape = 'u32[]', space=smem, size = 0x4, offset = 0x44, fixed_abs, tag = 'smem constant byte address 0x44 - assertion arg 0']
  #allocation19 [shape = 'u32[]', space=smem, size = 0x4, offset = 0x48, fixed_abs, tag = 'smem constant byte address 0x48 - assertion arg 1']
  #allocation20 [shape = 's32[]', space=sflag, size = 0x4, offset = 0, fixed_abs, tag = 'sflag constant byte address 0x0 - dummy sync flag']
  #allocation21 [shape = 's32[]', space=sflag, size = 0x4, offset = 0, fixed_abs, tag = 'sflag constant byte address 0x0 - dummy sync flag']
  #allocation22 [shape = 's32[]', space=sflag, size = 0x4, offset = 0, fixed_abs, tag = 'sflag constant byte address 0x0 - dummy sync flag']
  #allocation23 [shape = 's32[]', space=sflag, size = 0x4, offset = 0, fixed_abs, tag = 'sflag constant byte address 0x0 - dummy sync flag']
  #allocation24 [shape = 's32[]', space=sflag, size = 0x4, offset = 0, fixed_abs, tag = 'sflag constant byte address 0x0 - dummy sync flag']
  #allocation25 [shape = 's32[]', space=sflag, size = 0x4, offset = 0, fixed_abs, tag = 'sflag constant byte address 0x0 - dummy sync flag']
  #allocation26 [shape = 's32[]', space=sflag, size = 0x4, offset = 0, fixed_abs, tag = 'sflag constant byte address 0x0 - dummy sync flag']
  #allocation27 [shape = 's32[]', space=sflag, size = 0x4, offset = 0, fixed_abs, tag = 'sflag constant byte address 0x0 - dummy sync flag']
  #allocation28 [shape = 's32[]', space=sflag, size = 0x4, offset = 0, fixed_abs, tag = 'sflag constant byte address 0x0 - dummy sync flag']
  #allocation29 [shape = 's32[]', space=sflag, size = 0x4, offset = 0, fixed_abs, tag = 'sflag constant byte address 0x0 - dummy sync flag']
  #allocation30 [shape = 's32[]', space=sflag, size = 0x4, offset = 0, fixed_abs, tag = 'sflag constant byte address 0x0 - dummy sync flag']
  %s0 = inlined_call_operand.hbm [shape: bf16[8,512], index: 0, kind: input, shape index: {}]
  %s1 = inlined_call_operand.hbm [shape: f32[13,1024], index: 1, kind: input, shape index: {}]
  %s2 = inlined_call_operand.hbm [shape: bf16[512,1024], index: 2, kind: input, shape index: {}]
  %s3 = inlined_call_operand.hbm [shape: bf16[1024,1024], index: 3, kind: input, shape index: {}]
  %s4 = inlined_call_operand.hbm [shape: bf16[1024,512], index: 4, kind: input, shape index: {}]
  %s5 = inlined_call_operand.hbm [shape: bf16[512,256], index: 5, kind: input, shape index: {}]
  %s6 = inlined_call_operand.hbm [shape: bf16[256,128], index: 6, kind: input, shape index: {}]
  %s7 = inlined_call_operand.vmem [shape: bf16[128,64], index: 7, kind: input, shape index: {}]
  %s8 = inlined_call_operand.hbm [shape: bf16[64,128], index: 8, kind: input, shape index: {}]
  %s9 = inlined_call_operand.hbm [shape: f32[8,128], index: 9, kind: output, shape index: {}]
  %s10 = sld [smem:[#allocation0]]
  $region84: #{tpu_custom_call.1} parent=0
    _
  %s12 = ssub.s32 1, %s10
  %s13 = scalar_select 0, %s12, %s10
  $region1: #{tpu_custom_call.1} parent=0
    #allocation10 [shape = 'u8[8192]{0}', space=vmem, size = 0x2000, scoped, tag = 'input window, operand 0, single buffered']
    #allocation11 [shape = 's32[1]{0}', space=sflag, size = 0x4, scoped, tag = 'scoped memory for tpu_custom_call.1']
    #allocation12 [shape = 's32[1]{0}', space=sflag, size = 0x4, scoped, tag = 'scoped memory for tpu_custom_call.1']
    #allocation13 [shape = 'u8[65536]{0}', space=vmem, size = 0x10000, scoped, tag = 'input window, operand 1, single buffered']
    #allocation14 [shape = 's32[1]{0}', space=sflag, size = 0x4, scoped, tag = 'scoped memory for tpu_custom_call.1']
    #allocation15 [shape = 'u8[4096]{0}', space=vmem, size = 0x1000, scoped, tag = 'output window, operand 0, single buffered']
    %14 = vsyncpa [#allocation11], 0
    %15 = vsyncpa [#allocation14], 0
    %16 = vsyncpa [#allocation12], 0
    // Predicated region
    $region2: #{tpu_custom_call.1} parent=1 // pred_check
      _
    $region3: #{tpu_custom_call.1} parent=1 // pred_check_branch
      %18 = sbr.rel (0) target = $region5
    $region4: #{tpu_custom_call.1} parent=1 // pred_region
      %s20 = ssub.s32 256, 256
      %21 = vsyncadd [#allocation11], %s20
      %s23 = sshll.u32 [#allocation10], 4
      %s24 = int_to_ptr.vmem [resolvable:$true] %s23
      %26 = dma.hbm_to_vmem [thread:$0]  %s0, 256, %s24, [#allocation11]
    $region5: #{tpu_custom_call.1} parent=1 // pred_fallthru
      _
    // Predicated region
    $region6: #{tpu_custom_call.1} parent=1 // pred_check
      _
    $region7: #{tpu_custom_call.1} parent=1 // pred_check_branch
      %28 = sbr.rel (0) target = $region9
    $region8: #{tpu_custom_call.1} parent=1 // pred_region
      %s30 = ssub.s32 2048, 2048
      %31 = vsyncadd [#allocation14], %s30
      %s32 = sshll.u32 [#allocation13], 4
      %s33 = int_to_ptr.vmem [resolvable:$true] %s32
      %38 = dma.hbm_to_vmem [thread:$0]  %s1, 2048, %s33, [#allocation14], 1024, 1024, 64
    $region9: #{tpu_custom_call.1} parent=1 // pred_fallthru
      _
    // Predicated region
    $region10: #{tpu_custom_call.1} parent=1 // pred_check
      _
    $region11: #{tpu_custom_call.1} parent=1 // pred_check_branch
      %40 = sbr.rel (0) target = $region13
    $region12: #{tpu_custom_call.1} parent=1 // pred_region
      %41 = dma.done [#allocation11], 256
    $region13: #{tpu_custom_call.1} parent=1 // pred_fallthru
      _
    // Predicated region
    $region14: #{tpu_custom_call.1} parent=1 // pred_check
      _
    $region15: #{tpu_custom_call.1} parent=1 // pred_check_branch
      %43 = sbr.rel (0) target = $region17
    $region16: #{tpu_custom_call.1} parent=1 // pred_region
      %44 = dma.done [#allocation14], 2048
    $region17: #{tpu_custom_call.1} parent=1 // pred_fallthru
      _
    // Predicated region
    $region18: #{tpu_custom_call.1} parent=1 // pred_check
      _
    $region19: #{tpu_custom_call.1} parent=1 // pred_check_branch
      %47 = sbr.rel target = $region21
    $region20: #{tpu_custom_call.1} parent=1 // pred_region
      %48 = sst [smem:[#allocation18]] [#allocation17]
      %49 = sst [smem:[#allocation19]] [#allocation16]
    $region21: #{tpu_custom_call.1} parent=1 // pred_fallthru
      _
    %51 = shalt.err (0)
    %s53 = sshll.u32 [#allocation2], 4
    %s54 = int_to_ptr.vmem [resolvable:$true] %s53
    %56 = dma.hbm_to_vmem [thread:$0]  %s2, 32768, %s54, [#allocation9]
    %s57 = scalar_lea.sflag [#allocation9], 1
    // Predicated region
    $region22: #{tpu_custom_call.1} parent=1 // pred_check
      _
    $region23: #{tpu_custom_call.1} parent=1 // pred_check_branch
      %59 = sbr.rel target = $region25
    $region24: #{tpu_custom_call.1} parent=1 // pred_region
      %60 = sst [smem:[#allocation18]] [#allocation21]
      %61 = sst [smem:[#allocation19]] [#allocation20]
    $region25: #{tpu_custom_call.1} parent=1 // pred_fallthru
      _
    %63 = shalt.err (0)
    %s65 = sshll.u32 [#allocation3], 4
    %s66 = int_to_ptr.vmem [resolvable:$true] %s65
    %68 = dma.hbm_to_vmem [thread:$0]  %s3, 65536, %s66, %s57
    %s69 = scalar_lea.sflag [#allocation9], 2
    // Predicated region
    $region26: #{tpu_custom_call.1} parent=1 // pred_check
      _
    $region27: #{tpu_custom_call.1} parent=1 // pred_check_branch
      %71 = sbr.rel target = $region29
    $region28: #{tpu_custom_call.1} parent=1 // pred_region
      %72 = sst [smem:[#allocation18]] [#allocation23]
      %73 = sst [smem:[#allocation19]] [#allocation22]
    $region29: #{tpu_custom_call.1} parent=1 // pred_fallthru
      _
    %75 = shalt.err (0)
    %s77 = sshll.u32 [#allocation4], 4
    %s78 = int_to_ptr.vmem [resolvable:$true] %s77
    %80 = dma.hbm_to_vmem [thread:$0]  %s4, 32768, %s78, %s69
    %s81 = scalar_lea.sflag [#allocation9], 3
    // Predicated region
    $region30: #{tpu_custom_call.1} parent=1 // pred_check
      _
    $region31: #{tpu_custom_call.1} parent=1 // pred_check_branch
      %83 = sbr.rel target = $region33
    $region32: #{tpu_custom_call.1} parent=1 // pred_region
      %84 = sst [smem:[#allocation18]] [#allocation25]
      %85 = sst [smem:[#allocation19]] [#allocation24]
    $region33: #{tpu_custom_call.1} parent=1 // pred_fallthru
      _
    %87 = shalt.err (0)
    %s89 = sshll.u32 [#allocation5], 4
    %s90 = int_to_ptr.vmem [resolvable:$true] %s89
    %92 = dma.hbm_to_vmem [thread:$0]  %s5, 8192, %s90, %s81
    %s93 = scalar_lea.sflag [#allocation9], 4
    // Predicated region
    $region34: #{tpu_custom_call.1} parent=1 // pred_check
      _
    $region35: #{tpu_custom_call.1} parent=1 // pred_check_branch
      %95 = sbr.rel target = $region37
    $region36: #{tpu_custom_call.1} parent=1 // pred_region
      %96 = sst [smem:[#allocation18]] [#allocation27]
      %97 = sst [smem:[#allocation19]] [#allocation26]
    $region37: #{tpu_custom_call.1} parent=1 // pred_fallthru
      _
    %99 = shalt.err (0)
    %s101 = sshll.u32 [#allocation6], 4
    %s102 = int_to_ptr.vmem [resolvable:$true] %s101
    %104 = dma.hbm_to_vmem [thread:$0]  %s6, 2048, %s102, %s93
    %s105 = scalar_lea.sflag [#allocation9], 5
    %p107 = scmp.lt.u32.totalorder 64, 8
    %p108 = pneg %p107
    // Predicated region
    $region38: #{tpu_custom_call.1} parent=1 // pred_check
      _
    $region39: #{tpu_custom_call.1} parent=1 // pred_check_branch
      %110 = sbr.rel (%p107) target = $region41
    $region40: #{tpu_custom_call.1} parent=1 // pred_region
      %s126 = sand.u32 64, 7
      %p127 = scmp.eq.s32.totalorder %s126, 0
      // Predicated region
      $region53: #{tpu_custom_call.1} parent=40 // pred_check
        %p128 = pneg %p127
      $region54: #{tpu_custom_call.1} parent=40 // pred_check_branch
        %130 = sbr.rel (%p128) target = $region56
      $region55: #{tpu_custom_call.1} parent=40 // pred_region
        loop: start=0, step=1, limit=1
        $region57: #{tpu_custom_call.1} parent=55 // loop_pre_header
          _
        $region58: #{tpu_custom_call.1} parent=55 // loop_header
          %s132 = sphi 0, %s136
          %p133 = scmp.ge.s32.totalorder %s132, 1
          %s137 = sphi %s7, %s7
          %s138 = sphi [#allocation7], [#allocation7]
        $region59: #{tpu_custom_call.1} parent=55 // loop_header_branch
          %135 = sbr.rel (%p133) target = $region63
        $region60: #{tpu_custom_call.1} parent=55 // loop_body
          %v139 = vld [vmem:[%s137] sm:$0xff]
          %140 = vst [vmem:[%s138] sm:$0xff] %v139
          %v141 = vld [vmem:[%s137 + $0x8] sm:$0xff]
          %142 = vst [vmem:[%s138 + $0x8] sm:$0xff] %v141
          %v143 = vld [vmem:[%s137 + $0x10] sm:$0xff]
          %144 = vst [vmem:[%s138 + $0x10] sm:$0xff] %v143
          %v145 = vld [vmem:[%s137 + $0x18] sm:$0xff]
          %146 = vst [vmem:[%s138 + $0x18] sm:$0xff] %v145
          %v147 = vld [vmem:[%s137 + $0x20] sm:$0xff]
          %148 = vst [vmem:[%s138 + $0x20] sm:$0xff] %v147
          %v149 = vld [vmem:[%s137 + $0x28] sm:$0xff]
          %150 = vst [vmem:[%s138 + $0x28] sm:$0xff] %v149
          %v151 = vld [vmem:[%s137 + $0x30] sm:$0xff]
          %152 = vst [vmem:[%s138 + $0x30] sm:$0xff] %v151
          %v153 = vld [vmem:[%s137 + $0x38] sm:$0xff]
          %154 = vst [vmem:[%s138 + $0x38] sm:$0xff] %v153
        $region61: #{tpu_custom_call.1} parent=55 // loop_footer
          %s136 = sadd.s32 1, %s132
        $region62: #{tpu_custom_call.1} parent=55 // loop_footer_branch
          %131 = sbr.rel target = $region58
        $region63: #{tpu_custom_call.1} parent=55 // loop_exit
          _
      $region56: #{tpu_custom_call.1} parent=40 // pred_fallthru
        _
      %p155 = pneg %p127
      // Predicated region
      $region64: #{tpu_custom_call.1} parent=40 // pred_check
        _
      $region65: #{tpu_custom_call.1} parent=40 // pred_check_branch
        %157 = sbr.rel (%p127) target = $region67
      $region66: #{tpu_custom_call.1} parent=40 // pred_region
        %s158 = sand.u32 64, 7
      $region67: #{tpu_custom_call.1} parent=40 // pred_fallthru
        _
    $region41: #{tpu_custom_call.1} parent=1 // pred_fallthru
      _
    // Predicated region
    $region42: #{tpu_custom_call.1} parent=1 // pred_check
      %p111 = pneg %p107
    $region43: #{tpu_custom_call.1} parent=1 // pred_check_branch
      %113 = sbr.rel (%p111) target = $region45
    $region44: #{tpu_custom_call.1} parent=1 // pred_region
      %s114 = sshll.u32 1, 64
      %s115 = ssub.s32 %s114, 1
      loop: start=0, step=1, limit=1
      $region46: #{tpu_custom_call.1} parent=44 // loop_pre_header
        _
      $region47: #{tpu_custom_call.1} parent=44 // loop_header
        %s117 = sphi 0, %s121
        %p118 = scmp.ge.s32.totalorder %s117, 1
        %s122 = sphi %s7, %s7
        %s123 = sphi [#allocation7], [#allocation7]
      $region48: #{tpu_custom_call.1} parent=44 // loop_header_branch
        %120 = sbr.rel (%p118) target = $region52
      $region49: #{tpu_custom_call.1} parent=44 // loop_body
        %v124 = vld [vmem:[%s122] sm:%s115]
        %125 = vst [vmem:[%s123] sm:%s115] %v124
      $region50: #{tpu_custom_call.1} parent=44 // loop_footer
        %s121 = sadd.s32 1, %s117
      $region51: #{tpu_custom_call.1} parent=44 // loop_footer_branch
        %116 = sbr.rel target = $region47
      $region52: #{tpu_custom_call.1} parent=44 // loop_exit
        _
    $region45: #{tpu_custom_call.1} parent=1 // pred_fallthru
      _
    // Predicated region
    $region68: #{tpu_custom_call.1} parent=1 // pred_check
      _
    $region69: #{tpu_custom_call.1} parent=1 // pred_check_branch
      %161 = sbr.rel (0) target = $region71
    $region70: #{tpu_custom_call.1} parent=1 // pred_region
      %162 = vsyncadd %s105, 1024
    $region71: #{tpu_custom_call.1} parent=1 // pred_fallthru
      _
    %s163 = scalar_lea.sflag [#allocation9], 6
    // Predicated region
    $region72: #{tpu_custom_call.1} parent=1 // pred_check
      _
    $region73: #{tpu_custom_call.1} parent=1 // pred_check_branch
      %165 = sbr.rel target = $region75
    $region74: #{tpu_custom_call.1} parent=1 // pred_region
      %166 = sst [smem:[#allocation18]] [#allocation30]
      %167 = sst [smem:[#allocation19]] [#allocation29]
    $region75: #{tpu_custom_call.1} parent=1 // pred_fallthru
      _
    %169 = shalt.err (0)
    %s171 = sshll.u32 [#allocation8], 4
    %s172 = int_to_ptr.vmem [resolvable:$true] %s171
    %174 = dma.hbm_to_vmem [thread:$0]  %s8, 512, %s172, %s163
    %v175 = vld [vmem:[#allocation10] sm:$0xff]
    %v176 = vld [vmem:[#allocation10 + $0x8] sm:$0xff]
    %s177 = smul.u32 4, 64
    %s178 = smul.u32 %s177, 8
    %s179 = sshll.u32 %s178, 4
    %180 = dma.done [#allocation9], %s179
    %v181 = vld [vmem:[#allocation2] sm:$0xff]
    %v182 = vld [vmem:[#allocation2 + $0x8] sm:$0xff]
    %v183 = vld [vmem:[#allocation2 + $0x10] sm:$0xff]
    %v184 = vld [vmem:[#allocation2 + $0x18] sm:$0xff]
    %v185 = vld [vmem:[#allocation2 + $0x20] sm:$0xff]
    %v186 = vld [vmem:[#allocation2 + $0x28] sm:$0xff]
    %v187 = vld [vmem:[#allocation2 + $0x30] sm:$0xff]
    %v188 = vld [vmem:[#allocation2 + $0x38] sm:$0xff]
    %v189 = vld [vmem:[#allocation2 + $0x40] sm:$0xff]
    %v190 = vld [vmem:[#allocation2 + $0x48] sm:$0xff]
    %v191 = vld [vmem:[#allocation2 + $0x50] sm:$0xff]
    %v192 = vld [vmem:[#allocation2 + $0x58] sm:$0xff]
    %v193 = vld [vmem:[#allocation2 + $0x60] sm:$0xff]
    %v194 = vld [vmem:[#allocation2 + $0x68] sm:$0xff]
    %v195 = vld [vmem:[#allocation2 + $0x70] sm:$0xff]
    %v196 = vld [vmem:[#allocation2 + $0x78] sm:$0xff]
    %v197 = vld [vmem:[#allocation2 + $0x80] sm:$0xff]
    %v198 = vld [vmem:[#allocation2 + $0x88] sm:$0xff]
    %v199 = vld [vmem:[#allocation2 + $0x90] sm:$0xff]
    %v200 = vld [vmem:[#allocation2 + $0x98] sm:$0xff]
    %v201 = vld [vmem:[#allocation2 + $0xa0] sm:$0xff]
    %v202 = vld [vmem:[#allocation2 + $0xa8] sm:$0xff]
    %v203 = vld [vmem:[#allocation2 + $0xb0] sm:$0xff]
    %v204 = vld [vmem:[#allocation2 + $0xb8] sm:$0xff]
    %v205 = vld [vmem:[#allocation2 + $0xc0] sm:$0xff]
    %v206 = vld [vmem:[#allocation2 + $0xc8] sm:$0xff]
    %v207 = vld [vmem:[#allocation2 + $0xd0] sm:$0xff]
    %v208 = vld [vmem:[#allocation2 + $0xd8] sm:$0xff]
    %v209 = vld [vmem:[#allocation2 + $0xe0] sm:$0xff]
    %v210 = vld [vmem:[#allocation2 + $0xe8] sm:$0xff]
    %v211 = vld [vmem:[#allocation2 + $0xf0] sm:$0xff]
    %v212 = vld [vmem:[#allocation2 + $0xf8] sm:$0xff]
    %v213 = vld [vmem:[#allocation2 + $0x100] sm:$0xff]
    %v214 = vld [vmem:[#allocation2 + $0x108] sm:$0xff]
    %v215 = vld [vmem:[#allocation2 + $0x110] sm:$0xff]
    %v216 = vld [vmem:[#allocation2 + $0x118] sm:$0xff]
    %v217 = vld [vmem:[#allocation2 + $0x120] sm:$0xff]
    %v218 = vld [vmem:[#allocation2 + $0x128] sm:$0xff]
    %v219 = vld [vmem:[#allocation2 + $0x130] sm:$0xff]
    %v220 = vld [vmem:[#allocation2 + $0x138] sm:$0xff]
    %v221 = vld [vmem:[#allocation2 + $0x140] sm:$0xff]
    %v222 = vld [vmem:[#allocation2 + $0x148] sm:$0xff]
    %v223 = vld [vmem:[#allocation2 + $0x150] sm:$0xff]
    %v224 = vld [vmem:[#allocation2 + $0x158] sm:$0xff]
    %v225 = vld [vmem:[#allocation2 + $0x160] sm:$0xff]
    %v226 = vld [vmem:[#allocation2 + $0x168] sm:$0xff]
    %v227 = vld [vmem:[#allocation2 + $0x170] sm:$0xff]
    %v228 = vld [vmem:[#allocation2 + $0x178] sm:$0xff]
    %v229 = vld [vmem:[#allocation2 + $0x180] sm:$0xff]
    %v230 = vld [vmem:[#allocation2 + $0x188] sm:$0xff]
    %v231 = vld [vmem:[#allocation2 + $0x190] sm:$0xff]
    %v232 = vld [vmem:[#allocation2 + $0x198] sm:$0xff]
    %v233 = vld [vmem:[#allocation2 + $0x1a0] sm:$0xff]
    %v234 = vld [vmem:[#allocation2 + $0x1a8] sm:$0xff]
    %v235 = vld [vmem:[#allocation2 + $0x1b0] sm:$0xff]
    %v236 = vld [vmem:[#allocation2 + $0x1b8] sm:$0xff]
    %v237 = vld [vmem:[#allocation2 + $0x1c0] sm:$0xff]
    %v238 = vld [vmem:[#allocation2 + $0x1c8] sm:$0xff]
    %v239 = vld [vmem:[#allocation2 + $0x1d0] sm:$0xff]
    %v240 = vld [vmem:[#allocation2 + $0x1d8] sm:$0xff]
    %v241 = vld [vmem:[#allocation2 + $0x1e0] sm:$0xff]
    %v242 = vld [vmem:[#allocation2 + $0x1e8] sm:$0xff]
    %v243 = vld [vmem:[#allocation2 + $0x1f0] sm:$0xff]
    %v244 = vld [vmem:[#allocation2 + $0x1f8] sm:$0xff]
    %v245 = vld [vmem:[#allocation2 + $0x200] sm:$0xff]
    %v246 = vld [vmem:[#allocation2 + $0x208] sm:$0xff]
    %v247 = vld [vmem:[#allocation2 + $0x210] sm:$0xff]
    %v248 = vld [vmem:[#allocation2 + $0x218] sm:$0xff]
    %v249 = vld [vmem:[#allocation2 + $0x220] sm:$0xff]
    %v250 = vld [vmem:[#allocation2 + $0x228] sm:$0xff]
    %v251 = vld [vmem:[#allocation2 + $0x230] sm:$0xff]
    %v252 = vld [vmem:[#allocation2 + $0x238] sm:$0xff]
    %v253 = vld [vmem:[#allocation2 + $0x240] sm:$0xff]
    %v254 = vld [vmem:[#allocation2 + $0x248] sm:$0xff]
    %v255 = vld [vmem:[#allocation2 + $0x250] sm:$0xff]
    %v256 = vld [vmem:[#allocation2 + $0x258] sm:$0xff]
    %v257 = vld [vmem:[#allocation2 + $0x260] sm:$0xff]
    %v258 = vld [vmem:[#allocation2 + $0x268] sm:$0xff]
    %v259 = vld [vmem:[#allocation2 + $0x270] sm:$0xff]
    %v260 = vld [vmem:[#allocation2 + $0x278] sm:$0xff]
    %v261 = vld [vmem:[#allocation2 + $0x280] sm:$0xff]
    %v262 = vld [vmem:[#allocation2 + $0x288] sm:$0xff]
    %v263 = vld [vmem:[#allocation2 + $0x290] sm:$0xff]
    %v264 = vld [vmem:[#allocation2 + $0x298] sm:$0xff]
    %v265 = vld [vmem:[#allocation2 + $0x2a0] sm:$0xff]
    %v266 = vld [vmem:[#allocation2 + $0x2a8] sm:$0xff]
    %v267 = vld [vmem:[#allocation2 + $0x2b0] sm:$0xff]
    %v268 = vld [vmem:[#allocation2 + $0x2b8] sm:$0xff]
    %v269 = vld [vmem:[#allocation2 + $0x2c0] sm:$0xff]
    %v270 = vld [vmem:[#allocation2 + $0x2c8] sm:$0xff]
    %v271 = vld [vmem:[#allocation2 + $0x2d0] sm:$0xff]
    %v272 = vld [vmem:[#allocation2 + $0x2d8] sm:$0xff]
    %v273 = vld [vmem:[#allocation2 + $0x2e0] sm:$0xff]
    %v274 = vld [vmem:[#allocation2 + $0x2e8] sm:$0xff]
    %v275 = vld [vmem:[#allocation2 + $0x2f0] sm:$0xff]
    %v276 = vld [vmem:[#allocation2 + $0x2f8] sm:$0xff]
    %v277 = vld [vmem:[#allocation2 + $0x300] sm:$0xff]
    %v278 = vld [vmem:[#allocation2 + $0x308] sm:$0xff]
    %v279 = vld [vmem:[#allocation2 + $0x310] sm:$0xff]
    %v280 = vld [vmem:[#allocation2 + $0x318] sm:$0xff]
    %v281 = vld [vmem:[#allocation2 + $0x320] sm:$0xff]
    %v282 = vld [vmem:[#allocation2 + $0x328] sm:$0xff]
    %v283 = vld [vmem:[#allocation2 + $0x330] sm:$0xff]
    %v284 = vld [vmem:[#allocation2 + $0x338] sm:$0xff]
    %v285 = vld [vmem:[#allocation2 + $0x340] sm:$0xff]
    %v286 = vld [vmem:[#allocation2 + $0x348] sm:$0xff]
    %v287 = vld [vmem:[#allocation2 + $0x350] sm:$0xff]
    %v288 = vld [vmem:[#allocation2 + $0x358] sm:$0xff]
    %v289 = vld [vmem:[#allocation2 + $0x360] sm:$0xff]
    %v290 = vld [vmem:[#allocation2 + $0x368] sm:$0xff]
    %v291 = vld [vmem:[#allocation2 + $0x370] sm:$0xff]
    %v292 = vld [vmem:[#allocation2 + $0x378] sm:$0xff]
    %v293 = vld [vmem:[#allocation2 + $0x380] sm:$0xff]
    %v294 = vld [vmem:[#allocation2 + $0x388] sm:$0xff]
    %v295 = vld [vmem:[#allocation2 + $0x390] sm:$0xff]
    %v296 = vld [vmem:[#allocation2 + $0x398] sm:$0xff]
    %v297 = vld [vmem:[#allocation2 + $0x3a0] sm:$0xff]
    %v298 = vld [vmem:[#allocation2 + $0x3a8] sm:$0xff]
    %v299 = vld [vmem:[#allocation2 + $0x3b0] sm:$0xff]
    %v300 = vld [vmem:[#allocation2 + $0x3b8] sm:$0xff]
    %v301 = vld [vmem:[#allocation2 + $0x3c0] sm:$0xff]
    %v302 = vld [vmem:[#allocation2 + $0x3c8] sm:$0xff]
    %v303 = vld [vmem:[#allocation2 + $0x3d0] sm:$0xff]
    %v304 = vld [vmem:[#allocation2 + $0x3d8] sm:$0xff]
    %v305 = vld [vmem:[#allocation2 + $0x3e0] sm:$0xff]
    %v306 = vld [vmem:[#allocation2 + $0x3e8] sm:$0xff]
    %v307 = vld [vmem:[#allocation2 + $0x3f0] sm:$0xff]
    %v308 = vld [vmem:[#allocation2 + $0x3f8] sm:$0xff]
    %v309 = vld [vmem:[#allocation2 + $0x400] sm:$0xff]
    %v310 = vld [vmem:[#allocation2 + $0x408] sm:$0xff]
    %v311 = vld [vmem:[#allocation2 + $0x410] sm:$0xff]
    %v312 = vld [vmem:[#allocation2 + $0x418] sm:$0xff]
    %v313 = vld [vmem:[#allocation2 + $0x420] sm:$0xff]
    %v314 = vld [vmem:[#allocation2 + $0x428] sm:$0xff]
    %v315 = vld [vmem:[#allocation2 + $0x430] sm:$0xff]
    %v316 = vld [vmem:[#allocation2 + $0x438] sm:$0xff]
    %v317 = vld [vmem:[#allocation2 + $0x440] sm:$0xff]
    %v318 = vld [vmem:[#allocation2 + $0x448] sm:$0xff]
    %v319 = vld [vmem:[#allocation2 + $0x450] sm:$0xff]
    %v320 = vld [vmem:[#allocation2 + $0x458] sm:$0xff]
    %v321 = vld [vmem:[#allocation2 + $0x460] sm:$0xff]
    %v322 = vld [vmem:[#allocation2 + $0x468] sm:$0xff]
    %v323 = vld [vmem:[#allocation2 + $0x470] sm:$0xff]
    %v324 = vld [vmem:[#allocation2 + $0x478] sm:$0xff]
    %v325 = vld [vmem:[#allocation2 + $0x480] sm:$0xff]
    %v326 = vld [vmem:[#allocation2 + $0x488] sm:$0xff]
    %v327 = vld [vmem:[#allocation2 + $0x490] sm:$0xff]
    %v328 = vld [vmem:[#allocation2 + $0x498] sm:$0xff]
    %v329 = vld [vmem:[#allocation2 + $0x4a0] sm:$0xff]
    %v330 = vld [vmem:[#allocation2 + $0x4a8] sm:$0xff]
    %v331 = vld [vmem:[#allocation2 + $0x4b0] sm:$0xff]
    %v332 = vld [vmem:[#allocation2 + $0x4b8] sm:$0xff]
    %v333 = vld [vmem:[#allocation2 + $0x4c0] sm:$0xff]
    %v334 = vld [vmem:[#allocation2 + $0x4c8] sm:$0xff]
    %v335 = vld [vmem:[#allocation2 + $0x4d0] sm:$0xff]
    %v336 = vld [vmem:[#allocation2 + $0x4d8] sm:$0xff]
    %v337 = vld [vmem:[#allocation2 + $0x4e0] sm:$0xff]
    %v338 = vld [vmem:[#allocation2 + $0x4e8] sm:$0xff]
    %v339 = vld [vmem:[#allocation2 + $0x4f0] sm:$0xff]
    %v340 = vld [vmem:[#allocation2 + $0x4f8] sm:$0xff]
    %v341 = vld [vmem:[#allocation2 + $0x500] sm:$0xff]
    %v342 = vld [vmem:[#allocation2 + $0x508] sm:$0xff]
    %v343 = vld [vmem:[#allocation2 + $0x510] sm:$0xff]
    %v344 = vld [vmem:[#allocation2 + $0x518] sm:$0xff]
    %v345 = vld [vmem:[#allocation2 + $0x520] sm:$0xff]
    %v346 = vld [vmem:[#allocation2 + $0x528] sm:$0xff]
    %v347 = vld [vmem:[#allocation2 + $0x530] sm:$0xff]
    %v348 = vld [vmem:[#allocation2 + $0x538] sm:$0xff]
    %v349 = vld [vmem:[#allocation2 + $0x540] sm:$0xff]
    %v350 = vld [vmem:[#allocation2 + $0x548] sm:$0xff]
    %v351 = vld [vmem:[#allocation2 + $0x550] sm:$0xff]
    %v352 = vld [vmem:[#allocation2 + $0x558] sm:$0xff]
    %v353 = vld [vmem:[#allocation2 + $0x560] sm:$0xff]
    %v354 = vld [vmem:[#allocation2 + $0x568] sm:$0xff]
    %v355 = vld [vmem:[#allocation2 + $0x570] sm:$0xff]
    %v356 = vld [vmem:[#allocation2 + $0x578] sm:$0xff]
    %v357 = vld [vmem:[#allocation2 + $0x580] sm:$0xff]
    %v358 = vld [vmem:[#allocation2 + $0x588] sm:$0xff]
    %v359 = vld [vmem:[#allocation2 + $0x590] sm:$0xff]
    %v360 = vld [vmem:[#allocation2 + $0x598] sm:$0xff]
    %v361 = vld [vmem:[#allocation2 + $0x5a0] sm:$0xff]
    %v362 = vld [vmem:[#allocation2 + $0x5a8] sm:$0xff]
    %v363 = vld [vmem:[#allocation2 + $0x5b0] sm:$0xff]
    %v364 = vld [vmem:[#allocation2 + $0x5b8] sm:$0xff]
    %v365 = vld [vmem:[#allocation2 + $0x5c0] sm:$0xff]
    %v366 = vld [vmem:[#allocation2 + $0x5c8] sm:$0xff]
    %v367 = vld [vmem:[#allocation2 + $0x5d0] sm:$0xff]
    %v368 = vld [vmem:[#allocation2 + $0x5d8] sm:$0xff]
    %v369 = vld [vmem:[#allocation2 + $0x5e0] sm:$0xff]
    %v370 = vld [vmem:[#allocation2 + $0x5e8] sm:$0xff]
    %v371 = vld [vmem:[#allocation2 + $0x5f0] sm:$0xff]
    %v372 = vld [vmem:[#allocation2 + $0x5f8] sm:$0xff]
    %v373 = vld [vmem:[#allocation2 + $0x600] sm:$0xff]
    %v374 = vld [vmem:[#allocation2 + $0x608] sm:$0xff]
    %v375 = vld [vmem:[#allocation2 + $0x610] sm:$0xff]
    %v376 = vld [vmem:[#allocation2 + $0x618] sm:$0xff]
    %v377 = vld [vmem:[#allocation2 + $0x620] sm:$0xff]
    %v378 = vld [vmem:[#allocation2 + $0x628] sm:$0xff]
    %v379 = vld [vmem:[#allocation2 + $0x630] sm:$0xff]
    %v380 = vld [vmem:[#allocation2 + $0x638] sm:$0xff]
    %v381 = vld [vmem:[#allocation2 + $0x640] sm:$0xff]
    %v382 = vld [vmem:[#allocation2 + $0x648] sm:$0xff]
    %v383 = vld [vmem:[#allocation2 + $0x650] sm:$0xff]
    %v384 = vld [vmem:[#allocation2 + $0x658] sm:$0xff]
    %v385 = vld [vmem:[#allocation2 + $0x660] sm:$0xff]
    %v386 = vld [vmem:[#allocation2 + $0x668] sm:$0xff]
    %v387 = vld [vmem:[#allocation2 + $0x670] sm:$0xff]
    %v388 = vld [vmem:[#allocation2 + $0x678] sm:$0xff]
    %v389 = vld [vmem:[#allocation2 + $0x680] sm:$0xff]
    %v390 = vld [vmem:[#allocation2 + $0x688] sm:$0xff]
    %v391 = vld [vmem:[#allocation2 + $0x690] sm:$0xff]
    %v392 = vld [vmem:[#allocation2 + $0x698] sm:$0xff]
    %v393 = vld [vmem:[#allocation2 + $0x6a0] sm:$0xff]
    %v394 = vld [vmem:[#allocation2 + $0x6a8] sm:$0xff]
    %v395 = vld [vmem:[#allocation2 + $0x6b0] sm:$0xff]
    %v396 = vld [vmem:[#allocation2 + $0x6b8] sm:$0xff]
    %v397 = vld [vmem:[#allocation2 + $0x6c0] sm:$0xff]
    %v398 = vld [vmem:[#allocation2 + $0x6c8] sm:$0xff]
    %v399 = vld [vmem:[#allocation2 + $0x6d0] sm:$0xff]
    %v400 = vld [vmem:[#allocation2 + $0x6d8] sm:$0xff]
    %v401 = vld [vmem:[#allocation2 + $0x6e0] sm:$0xff]
    %v402 = vld [vmem:[#allocation2 + $0x6e8] sm:$0xff]
    %v403 = vld [vmem:[#allocation2 + $0x6f0] sm:$0xff]
    %v404 = vld [vmem:[#allocation2 + $0x6f8] sm:$0xff]
    %v405 = vld [vmem:[#allocation2 + $0x700] sm:$0xff]
    %v406 = vld [vmem:[#allocation2 + $0x708] sm:$0xff]
    %v407 = vld [vmem:[#allocation2 + $0x710] sm:$0xff]
    %v408 = vld [vmem:[#allocation2 + $0x718] sm:$0xff]
    %v409 = vld [vmem:[#allocation2 + $0x720] sm:$0xff]
    %v410 = vld [vmem:[#allocation2 + $0x728] sm:$0xff]
    %v411 = vld [vmem:[#allocation2 + $0x730] sm:$0xff]
    %v412 = vld [vmem:[#allocation2 + $0x738] sm:$0xff]
    %v413 = vld [vmem:[#allocation2 + $0x740] sm:$0xff]
    %v414 = vld [vmem:[#allocation2 + $0x748] sm:$0xff]
    %v415 = vld [vmem:[#allocation2 + $0x750] sm:$0xff]
    %v416 = vld [vmem:[#allocation2 + $0x758] sm:$0xff]
    %v417 = vld [vmem:[#allocation2 + $0x760] sm:$0xff]
    %v418 = vld [vmem:[#allocation2 + $0x768] sm:$0xff]
    %v419 = vld [vmem:[#allocation2 + $0x770] sm:$0xff]
    %v420 = vld [vmem:[#allocation2 + $0x778] sm:$0xff]
    %v421 = vld [vmem:[#allocation2 + $0x780] sm:$0xff]
    %v422 = vld [vmem:[#allocation2 + $0x788] sm:$0xff]
    %v423 = vld [vmem:[#allocation2 + $0x790] sm:$0xff]
    %v424 = vld [vmem:[#allocation2 + $0x798] sm:$0xff]
    %v425 = vld [vmem:[#allocation2 + $0x7a0] sm:$0xff]
    %v426 = vld [vmem:[#allocation2 + $0x7a8] sm:$0xff]
    %v427 = vld [vmem:[#allocation2 + $0x7b0] sm:$0xff]
    %v428 = vld [vmem:[#allocation2 + $0x7b8] sm:$0xff]
    %v429 = vld [vmem:[#allocation2 + $0x7c0] sm:$0xff]
    %v430 = vld [vmem:[#allocation2 + $0x7c8] sm:$0xff]
    %v431 = vld [vmem:[#allocation2 + $0x7d0] sm:$0xff]
    %v432 = vld [vmem:[#allocation2 + $0x7d8] sm:$0xff]
    %v433 = vld [vmem:[#allocation2 + $0x7e0] sm:$0xff]
    %v434 = vld [vmem:[#allocation2 + $0x7e8] sm:$0xff]
    %v435 = vld [vmem:[#allocation2 + $0x7f0] sm:$0xff]
    %v436 = vld [vmem:[#allocation2 + $0x7f8] sm:$0xff]
    %v439 = vunpack.c.l.b16 %v175
    %v440 = vunpack.c.h.b16 %v175
    %v441 = vunpack.c.l.b16 %v176
    %v442 = vunpack.c.h.b16 %v176
    %v443 = vpack.c.b16 %v439, %v439
    %v444 = vpack.c.b16 %v440, %v440
    %v445 = vpack.c.b16 %v441, %v441
    %v446 = vpack.c.b16 %v442, %v442
    %v707 = vunpack.c.l.b16 %v181
    %v708 = vunpack.c.h.b16 %v181
    %v709 = vunpack.c.l.b16 %v182
    %v710 = vunpack.c.h.b16 %v182
    %v711 = vunpack.c.l.b16 %v183
    %v712 = vunpack.c.h.b16 %v183
    %v713 = vunpack.c.l.b16 %v184
    %v714 = vunpack.c.h.b16 %v184
    %v715 = vunpack.c.l.b16 %v185
    %v716 = vunpack.c.h.b16 %v185
    %v717 = vunpack.c.l.b16 %v186
    %v718 = vunpack.c.h.b16 %v186
    %v719 = vunpack.c.l.b16 %v187
    %v720 = vunpack.c.h.b16 %v187
    %v721 = vunpack.c.l.b16 %v188
    %v722 = vunpack.c.h.b16 %v188
    %v723 = vunpack.c.l.b16 %v189
    %v724 = vunpack.c.h.b16 %v189
    %v725 = vunpack.c.l.b16 %v190
    %v726 = vunpack.c.h.b16 %v190
    %v727 = vunpack.c.l.b16 %v191
    %v728 = vunpack.c.h.b16 %v191
    %v729 = vunpack.c.l.b16 %v192
    %v730 = vunpack.c.h.b16 %v192
    %v731 = vunpack.c.l.b16 %v193
    %v732 = vunpack.c.h.b16 %v193
    %v733 = vunpack.c.l.b16 %v194
    %v734 = vunpack.c.h.b16 %v194
    %v735 = vunpack.c.l.b16 %v195
    %v736 = vunpack.c.h.b16 %v195
    %v737 = vunpack.c.l.b16 %v196
    %v738 = vunpack.c.h.b16 %v196
    %v739 = vunpack.c.l.b16 %v197
    %v740 = vunpack.c.h.b16 %v197
    %v741 = vunpack.c.l.b16 %v198
    %v742 = vunpack.c.h.b16 %v198
    %v743 = vunpack.c.l.b16 %v199
    %v744 = vunpack.c.h.b16 %v199
    %v745 = vunpack.c.l.b16 %v200
    %v746 = vunpack.c.h.b16 %v200
    %v747 = vunpack.c.l.b16 %v201
    %v748 = vunpack.c.h.b16 %v201
    %v749 = vunpack.c.l.b16 %v202
    %v750 = vunpack.c.h.b16 %v202
    %v751 = vunpack.c.l.b16 %v203
    %v752 = vunpack.c.h.b16 %v203
    %v753 = vunpack.c.l.b16 %v204
    %v754 = vunpack.c.h.b16 %v204
    %v755 = vunpack.c.l.b16 %v205
    %v756 = vunpack.c.h.b16 %v205
    %v757 = vunpack.c.l.b16 %v206
    %v758 = vunpack.c.h.b16 %v206
    %v759 = vunpack.c.l.b16 %v207
    %v760 = vunpack.c.h.b16 %v207
    %v761 = vunpack.c.l.b16 %v208
    %v762 = vunpack.c.h.b16 %v208
    %v763 = vunpack.c.l.b16 %v209
    %v764 = vunpack.c.h.b16 %v209
    %v765 = vunpack.c.l.b16 %v210
    %v766 = vunpack.c.h.b16 %v210
    %v767 = vunpack.c.l.b16 %v211
    %v768 = vunpack.c.h.b16 %v211
    %v769 = vunpack.c.l.b16 %v212
    %v770 = vunpack.c.h.b16 %v212
    %v771 = vunpack.c.l.b16 %v213
    %v772 = vunpack.c.h.b16 %v213
    %v773 = vunpack.c.l.b16 %v214
    %v774 = vunpack.c.h.b16 %v214
    %v775 = vunpack.c.l.b16 %v215
    %v776 = vunpack.c.h.b16 %v215
    %v777 = vunpack.c.l.b16 %v216
    %v778 = vunpack.c.h.b16 %v216
    %v779 = vunpack.c.l.b16 %v217
    %v780 = vunpack.c.h.b16 %v217
    %v781 = vunpack.c.l.b16 %v218
    %v782 = vunpack.c.h.b16 %v218
    %v783 = vunpack.c.l.b16 %v219
    %v784 = vunpack.c.h.b16 %v219
    %v785 = vunpack.c.l.b16 %v220
    %v786 = vunpack.c.h.b16 %v220
    %v787 = vunpack.c.l.b16 %v221
    %v788 = vunpack.c.h.b16 %v221
    %v789 = vunpack.c.l.b16 %v222
    %v790 = vunpack.c.h.b16 %v222
    %v791 = vunpack.c.l.b16 %v223
    %v792 = vunpack.c.h.b16 %v223
    %v793 = vunpack.c.l.b16 %v224
    %v794 = vunpack.c.h.b16 %v224
    %v795 = vunpack.c.l.b16 %v225
    %v796 = vunpack.c.h.b16 %v225
    %v797 = vunpack.c.l.b16 %v226
    %v798 = vunpack.c.h.b16 %v226
    %v799 = vunpack.c.l.b16 %v227
    %v800 = vunpack.c.h.b16 %v227
    %v801 = vunpack.c.l.b16 %v228
    %v802 = vunpack.c.h.b16 %v228
    %v803 = vunpack.c.l.b16 %v229
    %v804 = vunpack.c.h.b16 %v229
    %v805 = vunpack.c.l.b16 %v230
    %v806 = vunpack.c.h.b16 %v230
    %v807 = vunpack.c.l.b16 %v231
    %v808 = vunpack.c.h.b16 %v231
    %v809 = vunpack.c.l.b16 %v232
    %v810 = vunpack.c.h.b16 %v232
    %v811 = vunpack.c.l.b16 %v233
    %v812 = vunpack.c.h.b16 %v233
    %v813 = vunpack.c.l.b16 %v234
    %v814 = vunpack.c.h.b16 %v234
    %v815 = vunpack.c.l.b16 %v235
    %v816 = vunpack.c.h.b16 %v235
    %v817 = vunpack.c.l.b16 %v236
    %v818 = vunpack.c.h.b16 %v236
    %v819 = vunpack.c.l.b16 %v237
    %v820 = vunpack.c.h.b16 %v237
    %v821 = vunpack.c.l.b16 %v238
    %v822 = vunpack.c.h.b16 %v238
    %v823 = vunpack.c.l.b16 %v239
    %v824 = vunpack.c.h.b16 %v239
    %v825 = vunpack.c.l.b16 %v240
    %v826 = vunpack.c.h.b16 %v240
    %v827 = vunpack.c.l.b16 %v241
    %v828 = vunpack.c.h.b16 %v241
    %v829 = vunpack.c.l.b16 %v242
    %v830 = vunpack.c.h.b16 %v242
    %v831 = vunpack.c.l.b16 %v243
    %v832 = vunpack.c.h.b16 %v243
    %v833 = vunpack.c.l.b16 %v244
    %v834 = vunpack.c.h.b16 %v244
    %v835 = vunpack.c.l.b16 %v245
    %v836 = vunpack.c.h.b16 %v245
    %v837 = vunpack.c.l.b16 %v246
    %v838 = vunpack.c.h.b16 %v246
    %v839 = vunpack.c.l.b16 %v247
    %v840 = vunpack.c.h.b16 %v247
    %v841 = vunpack.c.l.b16 %v248
    %v842 = vunpack.c.h.b16 %v248
    %v843 = vunpack.c.l.b16 %v249
    %v844 = vunpack.c.h.b16 %v249
    %v845 = vunpack.c.l.b16 %v250
    %v846 = vunpack.c.h.b16 %v250
    %v847 = vunpack.c.l.b16 %v251
    %v848 = vunpack.c.h.b16 %v251
    %v849 = vunpack.c.l.b16 %v252
    %v850 = vunpack.c.h.b16 %v252
    %v851 = vunpack.c.l.b16 %v253
    %v852 = vunpack.c.h.b16 %v253
    %v853 = vunpack.c.l.b16 %v254
    %v854 = vunpack.c.h.b16 %v254
    %v855 = vunpack.c.l.b16 %v255
    %v856 = vunpack.c.h.b16 %v255
    %v857 = vunpack.c.l.b16 %v256
    %v858 = vunpack.c.h.b16 %v256
    %v859 = vunpack.c.l.b16 %v257
    %v860 = vunpack.c.h.b16 %v257
    %v861 = vunpack.c.l.b16 %v258
    %v862 = vunpack.c.h.b16 %v258
    %v863 = vunpack.c.l.b16 %v259
    %v864 = vunpack.c.h.b16 %v259
    %v865 = vunpack.c.l.b16 %v260
    %v866 = vunpack.c.h.b16 %v260
    %v867 = vunpack.c.l.b16 %v261
    %v868 = vunpack.c.h.b16 %v261
    %v869 = vunpack.c.l.b16 %v262
    %v870 = vunpack.c.h.b16 %v262
    %v871 = vunpack.c.l.b16 %v263
    %v872 = vunpack.c.h.b16 %v263
    %v873 = vunpack.c.l.b16 %v264
    %v874 = vunpack.c.h.b16 %v264
    %v875 = vunpack.c.l.b16 %v265
    %v876 = vunpack.c.h.b16 %v265
    %v877 = vunpack.c.l.b16 %v266
    %v878 = vunpack.c.h.b16 %v266
    %v879 = vunpack.c.l.b16 %v267
    %v880 = vunpack.c.h.b16 %v267
    %v881 = vunpack.c.l.b16 %v268
    %v882 = vunpack.c.h.b16 %v268
    %v883 = vunpack.c.l.b16 %v269
    %v884 = vunpack.c.h.b16 %v269
    %v885 = vunpack.c.l.b16 %v270
    %v886 = vunpack.c.h.b16 %v270
    %v887 = vunpack.c.l.b16 %v271
    %v888 = vunpack.c.h.b16 %v271
    %v889 = vunpack.c.l.b16 %v272
    %v890 = vunpack.c.h.b16 %v272
    %v891 = vunpack.c.l.b16 %v273
    %v892 = vunpack.c.h.b16 %v273
    %v893 = vunpack.c.l.b16 %v274
    %v894 = vunpack.c.h.b16 %v274
    %v895 = vunpack.c.l.b16 %v275
    %v896 = vunpack.c.h.b16 %v275
    %v897 = vunpack.c.l.b16 %v276
    %v898 = vunpack.c.h.b16 %v276
    %v899 = vunpack.c.l.b16 %v277
    %v900 = vunpack.c.h.b16 %v277
    %v901 = vunpack.c.l.b16 %v278
    %v902 = vunpack.c.h.b16 %v278
    %v903 = vunpack.c.l.b16 %v279
    %v904 = vunpack.c.h.b16 %v279
    %v905 = vunpack.c.l.b16 %v280
    %v906 = vunpack.c.h.b16 %v280
    %v907 = vunpack.c.l.b16 %v281
    %v908 = vunpack.c.h.b16 %v281
    %v909 = vunpack.c.l.b16 %v282
    %v910 = vunpack.c.h.b16 %v282
    %v911 = vunpack.c.l.b16 %v283
    %v912 = vunpack.c.h.b16 %v283
    %v913 = vunpack.c.l.b16 %v284
    %v914 = vunpack.c.h.b16 %v284
    %v915 = vunpack.c.l.b16 %v285
    %v916 = vunpack.c.h.b16 %v285
    %v917 = vunpack.c.l.b16 %v286
    %v918 = vunpack.c.h.b16 %v286
    %v919 = vunpack.c.l.b16 %v287
    %v920 = vunpack.c.h.b16 %v287
    %v921 = vunpack.c.l.b16 %v288
    %v922 = vunpack.c.h.b16 %v288
    %v923 = vunpack.c.l.b16 %v289
    %v924 = vunpack.c.h.b16 %v289
    %v925 = vunpack.c.l.b16 %v290
    %v926 = vunpack.c.h.b16 %v290
    %v927 = vunpack.c.l.b16 %v291
    %v928 = vunpack.c.h.b16 %v291
    %v929 = vunpack.c.l.b16 %v292
    %v930 = vunpack.c.h.b16 %v292
    %v931 = vunpack.c.l.b16 %v293
    %v932 = vunpack.c.h.b16 %v293
    %v933 = vunpack.c.l.b16 %v294
    %v934 = vunpack.c.h.b16 %v294
    %v935 = vunpack.c.l.b16 %v295
    %v936 = vunpack.c.h.b16 %v295
    %v937 = vunpack.c.l.b16 %v296
    %v938 = vunpack.c.h.b16 %v296
    %v939 = vunpack.c.l.b16 %v297
    %v940 = vunpack.c.h.b16 %v297
    %v941 = vunpack.c.l.b16 %v298
    %v942 = vunpack.c.h.b16 %v298
    %v943 = vunpack.c.l.b16 %v299
    %v944 = vunpack.c.h.b16 %v299
    %v945 = vunpack.c.l.b16 %v300
    %v946 = vunpack.c.h.b16 %v300
    %v947 = vunpack.c.l.b16 %v301
    %v948 = vunpack.c.h.b16 %v301
    %v949 = vunpack.c.l.b16 %v302
    %v950 = vunpack.c.h.b16 %v302
    %v951 = vunpack.c.l.b16 %v303
    %v952 = vunpack.c.h.b16 %v303
    %v953 = vunpack.c.l.b16 %v304
    %v954 = vunpack.c.h.b16 %v304
    %v955 = vunpack.c.l.b16 %v305
    %v956 = vunpack.c.h.b16 %v305
    %v957 = vunpack.c.l.b16 %v306
    %v958 = vunpack.c.h.b16 %v306
    %v959 = vunpack.c.l.b16 %v307
    %v960 = vunpack.c.h.b16 %v307
    %v961 = vunpack.c.l.b16 %v308
    %v962 = vunpack.c.h.b16 %v308
    %v963 = vunpack.c.l.b16 %v309
    %v964 = vunpack.c.h.b16 %v309
    %v965 = vunpack.c.l.b16 %v310
    %v966 = vunpack.c.h.b16 %v310
    %v967 = vunpack.c.l.b16 %v311
    %v968 = vunpack.c.h.b16 %v311
    %v969 = vunpack.c.l.b16 %v312
    %v970 = vunpack.c.h.b16 %v312
    %v971 = vunpack.c.l.b16 %v313
    %v972 = vunpack.c.h.b16 %v313
    %v973 = vunpack.c.l.b16 %v314
    %v974 = vunpack.c.h.b16 %v314
    %v975 = vunpack.c.l.b16 %v315
    %v976 = vunpack.c.h.b16 %v315
    %v977 = vunpack.c.l.b16 %v316
    %v978 = vunpack.c.h.b16 %v316
    %v979 = vunpack.c.l.b16 %v317
    %v980 = vunpack.c.h.b16 %v317
    %v981 = vunpack.c.l.b16 %v318
    %v982 = vunpack.c.h.b16 %v318
    %v983 = vunpack.c.l.b16 %v319
    %v984 = vunpack.c.h.b16 %v319
    %v985 = vunpack.c.l.b16 %v320
    %v986 = vunpack.c.h.b16 %v320
    %v987 = vunpack.c.l.b16 %v321
    %v988 = vunpack.c.h.b16 %v321
    %v989 = vunpack.c.l.b16 %v322
    %v990 = vunpack.c.h.b16 %v322
    %v991 = vunpack.c.l.b16 %v323
    %v992 = vunpack.c.h.b16 %v323
    %v993 = vunpack.c.l.b16 %v324
    %v994 = vunpack.c.h.b16 %v324
    %v995 = vunpack.c.l.b16 %v325
    %v996 = vunpack.c.h.b16 %v325
    %v997 = vunpack.c.l.b16 %v326
    %v998 = vunpack.c.h.b16 %v326
    %v999 = vunpack.c.l.b16 %v327
    %v1000 = vunpack.c.h.b16 %v327
    %v1001 = vunpack.c.l.b16 %v328
    %v1002 = vunpack.c.h.b16 %v328
    %v1003 = vunpack.c.l.b16 %v329
    %v1004 = vunpack.c.h.b16 %v329
    %v1005 = vunpack.c.l.b16 %v330
    %v1006 = vunpack.c.h.b16 %v330
    %v1007 = vunpack.c.l.b16 %v331
    %v1008 = vunpack.c.h.b16 %v331
    %v1009 = vunpack.c.l.b16 %v332
    %v1010 = vunpack.c.h.b16 %v332
    %v1011 = vunpack.c.l.b16 %v333
    %v1012 = vunpack.c.h.b16 %v333
    %v1013 = vunpack.c.l.b16 %v334
    %v1014 = vunpack.c.h.b16 %v334
    %v1015 = vunpack.c.l.b16 %v335
    %v1016 = vunpack.c.h.b16 %v335
    %v1017 = vunpack.c.l.b16 %v336
    %v1018 = vunpack.c.h.b16 %v336
    %v1019 = vunpack.c.l.b16 %v337
    %v1020 = vunpack.c.h.b16 %v337
    %v1021 = vunpack.c.l.b16 %v338
    %v1022 = vunpack.c.h.b16 %v338
    %v1023 = vunpack.c.l.b16 %v339
    %v1024 = vunpack.c.h.b16 %v339
    %v1025 = vunpack.c.l.b16 %v340
    %v1026 = vunpack.c.h.b16 %v340
    %v1027 = vunpack.c.l.b16 %v341
    %v1028 = vunpack.c.h.b16 %v341
    %v1029 = vunpack.c.l.b16 %v342
    %v1030 = vunpack.c.h.b16 %v342
    %v1031 = vunpack.c.l.b16 %v343
    %v1032 = vunpack.c.h.b16 %v343
    %v1033 = vunpack.c.l.b16 %v344
    %v1034 = vunpack.c.h.b16 %v344
    %v1035 = vunpack.c.l.b16 %v345
    %v1036 = vunpack.c.h.b16 %v345
    %v1037 = vunpack.c.l.b16 %v346
    %v1038 = vunpack.c.h.b16 %v346
    %v1039 = vunpack.c.l.b16 %v347
    %v1040 = vunpack.c.h.b16 %v347
    %v1041 = vunpack.c.l.b16 %v348
    %v1042 = vunpack.c.h.b16 %v348
    %v1043 = vunpack.c.l.b16 %v349
    %v1044 = vunpack.c.h.b16 %v349
    %v1045 = vunpack.c.l.b16 %v350
    %v1046 = vunpack.c.h.b16 %v350
    %v1047 = vunpack.c.l.b16 %v351
    %v1048 = vunpack.c.h.b16 %v351
    %v1049 = vunpack.c.l.b16 %v352
    %v1050 = vunpack.c.h.b16 %v352
    %v1051 = vunpack.c.l.b16 %v353
    %v1052 = vunpack.c.h.b16 %v353
    %v1053 = vunpack.c.l.b16 %v354
    %v1054 = vunpack.c.h.b16 %v354
    %v1055 = vunpack.c.l.b16 %v355
    %v1056 = vunpack.c.h.b16 %v355
    %v1057 = vunpack.c.l.b16 %v356
    %v1058 = vunpack.c.h.b16 %v356
    %v1059 = vunpack.c.l.b16 %v357
    %v1060 = vunpack.c.h.b16 %v357
    %v1061 = vunpack.c.l.b16 %v358
    %v1062 = vunpack.c.h.b16 %v358
    %v1063 = vunpack.c.l.b16 %v359
    %v1064 = vunpack.c.h.b16 %v359
    %v1065 = vunpack.c.l.b16 %v360
    %v1066 = vunpack.c.h.b16 %v360
    %v1067 = vunpack.c.l.b16 %v361
    %v1068 = vunpack.c.h.b16 %v361
    %v1069 = vunpack.c.l.b16 %v362
    %v1070 = vunpack.c.h.b16 %v362
    %v1071 = vunpack.c.l.b16 %v363
    %v1072 = vunpack.c.h.b16 %v363
    %v1073 = vunpack.c.l.b16 %v364
    %v1074 = vunpack.c.h.b16 %v364
    %v1075 = vunpack.c.l.b16 %v365
    %v1076 = vunpack.c.h.b16 %v365
    %v1077 = vunpack.c.l.b16 %v366
    %v1078 = vunpack.c.h.b16 %v366
    %v1079 = vunpack.c.l.b16 %v367
    %v1080 = vunpack.c.h.b16 %v367
    %v1081 = vunpack.c.l.b16 %v368
    %v1082 = vunpack.c.h.b16 %v368
    %v1083 = vunpack.c.l.b16 %v369
    %v1084 = vunpack.c.h.b16 %v369
    %v1085 = vunpack.c.l.b16 %v370
    %v1086 = vunpack.c.h.b16 %v370
    %v1087 = vunpack.c.l.b16 %v371
    %v1088 = vunpack.c.h.b16 %v371
    %v1089 = vunpack.c.l.b16 %v372
    %v1090 = vunpack.c.h.b16 %v372
    %v1091 = vunpack.c.l.b16 %v373
    %v1092 = vunpack.c.h.b16 %v373
    %v1093 = vunpack.c.l.b16 %v374
    %v1094 = vunpack.c.h.b16 %v374
    %v1095 = vunpack.c.l.b16 %v375
    %v1096 = vunpack.c.h.b16 %v375
    %v1097 = vunpack.c.l.b16 %v376
    %v1098 = vunpack.c.h.b16 %v376
    %v1099 = vunpack.c.l.b16 %v377
    %v1100 = vunpack.c.h.b16 %v377
    %v1101 = vunpack.c.l.b16 %v378
    %v1102 = vunpack.c.h.b16 %v378
    %v1103 = vunpack.c.l.b16 %v379
    %v1104 = vunpack.c.h.b16 %v379
    %v1105 = vunpack.c.l.b16 %v380
    %v1106 = vunpack.c.h.b16 %v380
    %v1107 = vunpack.c.l.b16 %v381
    %v1108 = vunpack.c.h.b16 %v381
    %v1109 = vunpack.c.l.b16 %v382
    %v1110 = vunpack.c.h.b16 %v382
    %v1111 = vunpack.c.l.b16 %v383
    %v1112 = vunpack.c.h.b16 %v383
    %v1113 = vunpack.c.l.b16 %v384
    %v1114 = vunpack.c.h.b16 %v384
    %v1115 = vunpack.c.l.b16 %v385
    %v1116 = vunpack.c.h.b16 %v385
    %v1117 = vunpack.c.l.b16 %v386
    %v1118 = vunpack.c.h.b16 %v386
    %v1119 = vunpack.c.l.b16 %v387
    %v1120 = vunpack.c.h.b16 %v387
    %v1121 = vunpack.c.l.b16 %v388
    %v1122 = vunpack.c.h.b16 %v388
    %v1123 = vunpack.c.l.b16 %v389
    %v1124 = vunpack.c.h.b16 %v389
    %v1125 = vunpack.c.l.b16 %v390
    %v1126 = vunpack.c.h.b16 %v390
    %v1127 = vunpack.c.l.b16 %v391
    %v1128 = vunpack.c.h.b16 %v391
    %v1129 = vunpack.c.l.b16 %v392
    %v1130 = vunpack.c.h.b16 %v392
    %v1131 = vunpack.c.l.b16 %v393
    %v1132 = vunpack.c.h.b16 %v393
    %v1133 = vunpack.c.l.b16 %v394
    %v1134 = vunpack.c.h.b16 %v394
    %v1135 = vunpack.c.l.b16 %v395
    %v1136 = vunpack.c.h.b16 %v395
    %v1137 = vunpack.c.l.b16 %v396
    %v1138 = vunpack.c.h.b16 %v396
    %v1139 = vunpack.c.l.b16 %v397
    %v1140 = vunpack.c.h.b16 %v397
    %v1141 = vunpack.c.l.b16 %v398
    %v1142 = vunpack.c.h.b16 %v398
    %v1143 = vunpack.c.l.b16 %v399
    %v1144 = vunpack.c.h.b16 %v399
    %v1145 = vunpack.c.l.b16 %v400
    %v1146 = vunpack.c.h.b16 %v400
    %v1147 = vunpack.c.l.b16 %v401
    %v1148 = vunpack.c.h.b16 %v401
    %v1149 = vunpack.c.l.b16 %v402
    %v1150 = vunpack.c.h.b16 %v402
    %v1151 = vunpack.c.l.b16 %v403
    %v1152 = vunpack.c.h.b16 %v403
    %v1153 = vunpack.c.l.b16 %v404
    %v1154 = vunpack.c.h.b16 %v404
    %v1155 = vunpack.c.l.b16 %v405
    %v1156 = vunpack.c.h.b16 %v405
    %v1157 = vunpack.c.l.b16 %v406
    %v1158 = vunpack.c.h.b16 %v406
    %v1159 = vunpack.c.l.b16 %v407
    %v1160 = vunpack.c.h.b16 %v407
    %v1161 = vunpack.c.l.b16 %v408
    %v1162 = vunpack.c.h.b16 %v408
    %v1163 = vunpack.c.l.b16 %v409
    %v1164 = vunpack.c.h.b16 %v409
    %v1165 = vunpack.c.l.b16 %v410
    %v1166 = vunpack.c.h.b16 %v410
    %v1167 = vunpack.c.l.b16 %v411
    %v1168 = vunpack.c.h.b16 %v411
    %v1169 = vunpack.c.l.b16 %v412
    %v1170 = vunpack.c.h.b16 %v412
    %v1171 = vunpack.c.l.b16 %v413
    %v1172 = vunpack.c.h.b16 %v413
    %v1173 = vunpack.c.l.b16 %v414
    %v1174 = vunpack.c.h.b16 %v414
    %v1175 = vunpack.c.l.b16 %v415
    %v1176 = vunpack.c.h.b16 %v415
    %v1177 = vunpack.c.l.b16 %v416
    %v1178 = vunpack.c.h.b16 %v416
    %v1179 = vunpack.c.l.b16 %v417
    %v1180 = vunpack.c.h.b16 %v417
    %v1181 = vunpack.c.l.b16 %v418
    %v1182 = vunpack.c.h.b16 %v418
    %v1183 = vunpack.c.l.b16 %v419
    %v1184 = vunpack.c.h.b16 %v419
    %v1185 = vunpack.c.l.b16 %v420
    %v1186 = vunpack.c.h.b16 %v420
    %v1187 = vunpack.c.l.b16 %v421
    %v1188 = vunpack.c.h.b16 %v421
    %v1189 = vunpack.c.l.b16 %v422
    %v1190 = vunpack.c.h.b16 %v422
    %v1191 = vunpack.c.l.b16 %v423
    %v1192 = vunpack.c.h.b16 %v423
    %v1193 = vunpack.c.l.b16 %v424
    %v1194 = vunpack.c.h.b16 %v424
    %v1195 = vunpack.c.l.b16 %v425
    %v1196 = vunpack.c.h.b16 %v425
    %v1197 = vunpack.c.l.b16 %v426
    %v1198 = vunpack.c.h.b16 %v426
    %v1199 = vunpack.c.l.b16 %v427
    %v1200 = vunpack.c.h.b16 %v427
    %v1201 = vunpack.c.l.b16 %v428
    %v1202 = vunpack.c.h.b16 %v428
    %v1203 = vunpack.c.l.b16 %v429
    %v1204 = vunpack.c.h.b16 %v429
    %v1205 = vunpack.c.l.b16 %v430
    %v1206 = vunpack.c.h.b16 %v430
    %v1207 = vunpack.c.l.b16 %v431
    %v1208 = vunpack.c.h.b16 %v431
    %v1209 = vunpack.c.l.b16 %v432
    %v1210 = vunpack.c.h.b16 %v432
    %v1211 = vunpack.c.l.b16 %v433
    %v1212 = vunpack.c.h.b16 %v433
    %v1213 = vunpack.c.l.b16 %v434
    %v1214 = vunpack.c.h.b16 %v434
    %v1215 = vunpack.c.l.b16 %v435
    %v1216 = vunpack.c.h.b16 %v435
    %v1217 = vunpack.c.l.b16 %v436
    %v1218 = vunpack.c.h.b16 %v436
    %v1219 = vpack.c.b16 %v715, %v707
    %v1220 = vpack.c.b16 %v716, %v708
    %v1221 = vpack.c.b16 %v717, %v709
    %v1222 = vpack.c.b16 %v718, %v710
    %v1223 = vpack.c.b16 %v719, %v711
    %v1224 = vpack.c.b16 %v720, %v712
    %v1225 = vpack.c.b16 %v721, %v713
    %v1226 = vpack.c.b16 %v722, %v714
    %v1227 = vpack.c.b16 %v731, %v723
    %v1228 = vpack.c.b16 %v732, %v724
    %v1229 = vpack.c.b16 %v733, %v725
    %v1230 = vpack.c.b16 %v734, %v726
    %v1231 = vpack.c.b16 %v735, %v727
    %v1232 = vpack.c.b16 %v736, %v728
    %v1233 = vpack.c.b16 %v737, %v729
    %v1234 = vpack.c.b16 %v738, %v730
    %v1235 = vpack.c.b16 %v747, %v739
    %v1236 = vpack.c.b16 %v748, %v740
    %v1237 = vpack.c.b16 %v749, %v741
    %v1238 = vpack.c.b16 %v750, %v742
    %v1239 = vpack.c.b16 %v751, %v743
    %v1240 = vpack.c.b16 %v752, %v744
    %v1241 = vpack.c.b16 %v753, %v745
    %v1242 = vpack.c.b16 %v754, %v746
    %v1243 = vpack.c.b16 %v763, %v755
    %v1244 = vpack.c.b16 %v764, %v756
    %v1245 = vpack.c.b16 %v765, %v757
    %v1246 = vpack.c.b16 %v766, %v758
    %v1247 = vpack.c.b16 %v767, %v759
    %v1248 = vpack.c.b16 %v768, %v760
    %v1249 = vpack.c.b16 %v769, %v761
    %v1250 = vpack.c.b16 %v770, %v762
    %v1251 = vpack.c.b16 %v779, %v771
    %v1252 = vpack.c.b16 %v780, %v772
    %v1253 = vpack.c.b16 %v781, %v773
    %v1254 = vpack.c.b16 %v782, %v774
    %v1255 = vpack.c.b16 %v783, %v775
    %v1256 = vpack.c.b16 %v784, %v776
    %v1257 = vpack.c.b16 %v785, %v777
    %v1258 = vpack.c.b16 %v786, %v778
    %v1259 = vpack.c.b16 %v795, %v787
    %v1260 = vpack.c.b16 %v796, %v788
    %v1261 = vpack.c.b16 %v797, %v789
    %v1262 = vpack.c.b16 %v798, %v790
    %v1263 = vpack.c.b16 %v799, %v791
    %v1264 = vpack.c.b16 %v800, %v792
    %v1265 = vpack.c.b16 %v801, %v793
    %v1266 = vpack.c.b16 %v802, %v794
    %v1267 = vpack.c.b16 %v811, %v803
    %v1268 = vpack.c.b16 %v812, %v804
    %v1269 = vpack.c.b16 %v813, %v805
    %v1270 = vpack.c.b16 %v814, %v806
    %v1271 = vpack.c.b16 %v815, %v807
    %v1272 = vpack.c.b16 %v816, %v808
    %v1273 = vpack.c.b16 %v817, %v809
    %v1274 = vpack.c.b16 %v818, %v810
    %v1275 = vpack.c.b16 %v827, %v819
    %v1276 = vpack.c.b16 %v828, %v820
    %v1277 = vpack.c.b16 %v829, %v821
    %v1278 = vpack.c.b16 %v830, %v822
    %v1279 = vpack.c.b16 %v831, %v823
    %v1280 = vpack.c.b16 %v832, %v824
    %v1281 = vpack.c.b16 %v833, %v825
    %v1282 = vpack.c.b16 %v834, %v826
    %v1283 = vpack.c.b16 %v843, %v835
    %v1284 = vpack.c.b16 %v844, %v836
    %v1285 = vpack.c.b16 %v845, %v837
    %v1286 = vpack.c.b16 %v846, %v838
    %v1287 = vpack.c.b16 %v847, %v839
    %v1288 = vpack.c.b16 %v848, %v840
    %v1289 = vpack.c.b16 %v849, %v841
    %v1290 = vpack.c.b16 %v850, %v842
    %v1291 = vpack.c.b16 %v859, %v851
    %v1292 = vpack.c.b16 %v860, %v852
    %v1293 = vpack.c.b16 %v861, %v853
    %v1294 = vpack.c.b16 %v862, %v854
    %v1295 = vpack.c.b16 %v863, %v855
    %v1296 = vpack.c.b16 %v864, %v856
    %v1297 = vpack.c.b16 %v865, %v857
    %v1298 = vpack.c.b16 %v866, %v858
    %v1299 = vpack.c.b16 %v875, %v867
    %v1300 = vpack.c.b16 %v876, %v868
    %v1301 = vpack.c.b16 %v877, %v869
    %v1302 = vpack.c.b16 %v878, %v870
    %v1303 = vpack.c.b16 %v879, %v871
    %v1304 = vpack.c.b16 %v880, %v872
    %v1305 = vpack.c.b16 %v881, %v873
    %v1306 = vpack.c.b16 %v882, %v874
    %v1307 = vpack.c.b16 %v891, %v883
    %v1308 = vpack.c.b16 %v892, %v884
    %v1309 = vpack.c.b16 %v893, %v885
    %v1310 = vpack.c.b16 %v894, %v886
    %v1311 = vpack.c.b16 %v895, %v887
    %v1312 = vpack.c.b16 %v896, %v888
    %v1313 = vpack.c.b16 %v897, %v889
    %v1314 = vpack.c.b16 %v898, %v890
    %v1315 = vpack.c.b16 %v907, %v899
    %v1316 = vpack.c.b16 %v908, %v900
    %v1317 = vpack.c.b16 %v909, %v901
    %v1318 = vpack.c.b16 %v910, %v902
    %v1319 = vpack.c.b16 %v911, %v903
    %v1320 = vpack.c.b16 %v912, %v904
    %v1321 = vpack.c.b16 %v913, %v905
    %v1322 = vpack.c.b16 %v914, %v906
    %v1323 = vpack.c.b16 %v923, %v915
    %v1324 = vpack.c.b16 %v924, %v916
    %v1325 = vpack.c.b16 %v925, %v917
    %v1326 = vpack.c.b16 %v926, %v918
    %v1327 = vpack.c.b16 %v927, %v919
    %v1328 = vpack.c.b16 %v928, %v920
    %v1329 = vpack.c.b16 %v929, %v921
    %v1330 = vpack.c.b16 %v930, %v922
    %v1331 = vpack.c.b16 %v939, %v931
    %v1332 = vpack.c.b16 %v940, %v932
    %v1333 = vpack.c.b16 %v941, %v933
    %v1334 = vpack.c.b16 %v942, %v934
    %v1335 = vpack.c.b16 %v943, %v935
    %v1336 = vpack.c.b16 %v944, %v936
    %v1337 = vpack.c.b16 %v945, %v937
    %v1338 = vpack.c.b16 %v946, %v938
    %v1339 = vpack.c.b16 %v955, %v947
    %v1340 = vpack.c.b16 %v956, %v948
    %v1341 = vpack.c.b16 %v957, %v949
    %v1342 = vpack.c.b16 %v958, %v950
    %v1343 = vpack.c.b16 %v959, %v951
    %v1344 = vpack.c.b16 %v960, %v952
    %v1345 = vpack.c.b16 %v961, %v953
    %v1346 = vpack.c.b16 %v962, %v954
    %v1347 = vpack.c.b16 %v971, %v963
    %v1348 = vpack.c.b16 %v972, %v964
    %v1349 = vpack.c.b16 %v973, %v965
    %v1350 = vpack.c.b16 %v974, %v966
    %v1351 = vpack.c.b16 %v975, %v967
    %v1352 = vpack.c.b16 %v976, %v968
    %v1353 = vpack.c.b16 %v977, %v969
    %v1354 = vpack.c.b16 %v978, %v970
    %v1355 = vpack.c.b16 %v987, %v979
    %v1356 = vpack.c.b16 %v988, %v980
    %v1357 = vpack.c.b16 %v989, %v981
    %v1358 = vpack.c.b16 %v990, %v982
    %v1359 = vpack.c.b16 %v991, %v983
    %v1360 = vpack.c.b16 %v992, %v984
    %v1361 = vpack.c.b16 %v993, %v985
    %v1362 = vpack.c.b16 %v994, %v986
    %v1363 = vpack.c.b16 %v1003, %v995
    %v1364 = vpack.c.b16 %v1004, %v996
    %v1365 = vpack.c.b16 %v1005, %v997
    %v1366 = vpack.c.b16 %v1006, %v998
    %v1367 = vpack.c.b16 %v1007, %v999
    %v1368 = vpack.c.b16 %v1008, %v1000
    %v1369 = vpack.c.b16 %v1009, %v1001
    %v1370 = vpack.c.b16 %v1010, %v1002
    %v1371 = vpack.c.b16 %v1019, %v1011
    %v1372 = vpack.c.b16 %v1020, %v1012
    %v1373 = vpack.c.b16 %v1021, %v1013
    %v1374 = vpack.c.b16 %v1022, %v1014
    %v1375 = vpack.c.b16 %v1023, %v1015
    %v1376 = vpack.c.b16 %v1024, %v1016
    %v1377 = vpack.c.b16 %v1025, %v1017
    %v1378 = vpack.c.b16 %v1026, %v1018
    %v1379 = vpack.c.b16 %v1035, %v1027
    %v1380 = vpack.c.b16 %v1036, %v1028
    %v1381 = vpack.c.b16 %v1037, %v1029
    %v1382 = vpack.c.b16 %v1038, %v1030
    %v1383 = vpack.c.b16 %v1039, %v1031
    %v1384 = vpack.c.b16 %v1040, %v1032
    %v1385 = vpack.c.b16 %v1041, %v1033
    %v1386 = vpack.c.b16 %v1042, %v1034
    %v1387 = vpack.c.b16 %v1051, %v1043
    %v1388 = vpack.c.b16 %v1052, %v1044
    %v1389 = vpack.c.b16 %v1053, %v1045
    %v1390 = vpack.c.b16 %v1054, %v1046
    %v1391 = vpack.c.b16 %v1055, %v1047
    %v1392 = vpack.c.b16 %v1056, %v1048
    %v1393 = vpack.c.b16 %v1057, %v1049
    %v1394 = vpack.c.b16 %v1058, %v1050
    %v1395 = vpack.c.b16 %v1067, %v1059
    %v1396 = vpack.c.b16 %v1068, %v1060
    %v1397 = vpack.c.b16 %v1069, %v1061
    %v1398 = vpack.c.b16 %v1070, %v1062
    %v1399 = vpack.c.b16 %v1071, %v1063
    %v1400 = vpack.c.b16 %v1072, %v1064
    %v1401 = vpack.c.b16 %v1073, %v1065
    %v1402 = vpack.c.b16 %v1074, %v1066
    %v1403 = vpack.c.b16 %v1083, %v1075
    %v1404 = vpack.c.b16 %v1084, %v1076
    %v1405 = vpack.c.b16 %v1085, %v1077
    %v1406 = vpack.c.b16 %v1086, %v1078
    %v1407 = vpack.c.b16 %v1087, %v1079
    %v1408 = vpack.c.b16 %v1088, %v1080
    %v1409 = vpack.c.b16 %v1089, %v1081
    %v1410 = vpack.c.b16 %v1090, %v1082
    %v1411 = vpack.c.b16 %v1099, %v1091
    %v1412 = vpack.c.b16 %v1100, %v1092
    %v1413 = vpack.c.b16 %v1101, %v1093
    %v1414 = vpack.c.b16 %v1102, %v1094
    %v1415 = vpack.c.b16 %v1103, %v1095
    %v1416 = vpack.c.b16 %v1104, %v1096
    %v1417 = vpack.c.b16 %v1105, %v1097
    %v1418 = vpack.c.b16 %v1106, %v1098
    %v1419 = vpack.c.b16 %v1115, %v1107
    %v1420 = vpack.c.b16 %v1116, %v1108
    %v1421 = vpack.c.b16 %v1117, %v1109
    %v1422 = vpack.c.b16 %v1118, %v1110
    %v1423 = vpack.c.b16 %v1119, %v1111
    %v1424 = vpack.c.b16 %v1120, %v1112
    %v1425 = vpack.c.b16 %v1121, %v1113
    %v1426 = vpack.c.b16 %v1122, %v1114
    %v1427 = vpack.c.b16 %v1131, %v1123
    %v1428 = vpack.c.b16 %v1132, %v1124
    %v1429 = vpack.c.b16 %v1133, %v1125
    %v1430 = vpack.c.b16 %v1134, %v1126
    %v1431 = vpack.c.b16 %v1135, %v1127
    %v1432 = vpack.c.b16 %v1136, %v1128
    %v1433 = vpack.c.b16 %v1137, %v1129
    %v1434 = vpack.c.b16 %v1138, %v1130
    %v1435 = vpack.c.b16 %v1147, %v1139
    %v1436 = vpack.c.b16 %v1148, %v1140
    %v1437 = vpack.c.b16 %v1149, %v1141
    %v1438 = vpack.c.b16 %v1150, %v1142
    %v1439 = vpack.c.b16 %v1151, %v1143
    %v1440 = vpack.c.b16 %v1152, %v1144
    %v1441 = vpack.c.b16 %v1153, %v1145
    %v1442 = vpack.c.b16 %v1154, %v1146
    %v1443 = vpack.c.b16 %v1163, %v1155
    %v1444 = vpack.c.b16 %v1164, %v1156
    %v1445 = vpack.c.b16 %v1165, %v1157
    %v1446 = vpack.c.b16 %v1166, %v1158
    %v1447 = vpack.c.b16 %v1167, %v1159
    %v1448 = vpack.c.b16 %v1168, %v1160
    %v1449 = vpack.c.b16 %v1169, %v1161
    %v1450 = vpack.c.b16 %v1170, %v1162
    %v1451 = vpack.c.b16 %v1179, %v1171
    %v1452 = vpack.c.b16 %v1180, %v1172
    %v1453 = vpack.c.b16 %v1181, %v1173
    %v1454 = vpack.c.b16 %v1182, %v1174
    %v1455 = vpack.c.b16 %v1183, %v1175
    %v1456 = vpack.c.b16 %v1184, %v1176
    %v1457 = vpack.c.b16 %v1185, %v1177
    %v1458 = vpack.c.b16 %v1186, %v1178
    %v1459 = vpack.c.b16 %v1195, %v1187
    %v1460 = vpack.c.b16 %v1196, %v1188
    %v1461 = vpack.c.b16 %v1197, %v1189
    %v1462 = vpack.c.b16 %v1198, %v1190
    %v1463 = vpack.c.b16 %v1199, %v1191
    %v1464 = vpack.c.b16 %v1200, %v1192
    %v1465 = vpack.c.b16 %v1201, %v1193
    %v1466 = vpack.c.b16 %v1202, %v1194
    %v1467 = vpack.c.b16 %v1211, %v1203
    %v1468 = vpack.c.b16 %v1212, %v1204
    %v1469 = vpack.c.b16 %v1213, %v1205
    %v1470 = vpack.c.b16 %v1214, %v1206
    %v1471 = vpack.c.b16 %v1215, %v1207
    %v1472 = vpack.c.b16 %v1216, %v1208
    %v1473 = vpack.c.b16 %v1217, %v1209
    %v1474 = vpack.c.b16 %v1218, %v1210
    %1731 = vmatprep.subr.bf16.mxu0 %v1276
    %1732 = vmatpush1.bf16.msra.mxu0 %v1275
    %1733 = vmatprep.subr.bf16.mxu0 %v1268
    %1734 = vmatpush1.bf16.msra.mxu0 %v1267
    %1735 = vmatprep.subr.bf16.mxu0 %v1260
    %1736 = vmatpush1.bf16.msra.mxu0 %v1259
    %1737 = vmatprep.subr.bf16.mxu0 %v1252
    %1738 = vmatpush1.bf16.msra.mxu0 %v1251
    %1739 = vmatprep.subr.bf16.mxu0 %v1244
    %1740 = vmatpush1.bf16.msra.mxu0 %v1243
    %1741 = vmatprep.subr.bf16.mxu0 %v1236
    %1742 = vmatpush1.bf16.msra.mxu0 %v1235
    %1743 = vmatprep.subr.bf16.mxu0 %v1228
    %1744 = vmatpush1.bf16.msra.mxu0 %v1227
    %1745 = vmatprep.subr.bf16.mxu0 %v1220
    %1746 = vmatpush1.bf16.msra.mxu0 %v1219
    %1747 = vmatprep.subr.bf16.mxu0 %v1340
    %1748 = vmatpush2.bf16.msra.mxu0 %v1339
    %1749 = vmatprep.subr.bf16.mxu0 %v1332
    %1750 = vmatpush2.bf16.msra.mxu0 %v1331
    %1751 = vmatprep.subr.bf16.mxu0 %v1324
    %1752 = vmatpush2.bf16.msra.mxu0 %v1323
    %1753 = vmatprep.subr.bf16.mxu0 %v1316
    %1754 = vmatpush2.bf16.msra.mxu0 %v1315
    %1755 = vmatprep.subr.bf16.mxu0 %v1308
    %1756 = vmatpush2.bf16.msra.mxu0 %v1307
    %1757 = vmatprep.subr.bf16.mxu0 %v1300
    %1758 = vmatpush2.bf16.msra.mxu0 %v1299
    %1759 = vmatprep.subr.bf16.mxu0 %v1292
    %1760 = vmatpush2.bf16.msra.mxu0 %v1291
    %1761 = vmatprep.subr.bf16.mxu0 %v1284
    %1762 = vmatpush2.bf16.msra.mxu0 %v1283
    %1763 = vmatprep.mubr.bf16.mxu0 %v444
    %1764 = vmatmul.mubr.bf16.gmra.mxu0 %v443
    %v1765 = vpop.f32.mrf.mxu0
    %v1766 = vadd.f32 0.0, %v1765
    %v1767 = vpop.f32.mrf.mxu0
    %v1768 = vadd.f32 0.0, %v1767
    %v1769 = vpop.f32.mrf.mxu0
    %v1770 = vpop.f32.mrf.mxu0
    %1771 = vdwg.mxu0
    %1772 = vmatprep.subr.bf16.mxu0 %v1404
    %1773 = vmatpush1.bf16.msra.mxu0 %v1403
    %1774 = vmatprep.subr.bf16.mxu0 %v1396
    %1775 = vmatpush1.bf16.msra.mxu0 %v1395
    %1776 = vmatprep.subr.bf16.mxu0 %v1388
    %1777 = vmatpush1.bf16.msra.mxu0 %v1387
    %1778 = vmatprep.subr.bf16.mxu0 %v1380
    %1779 = vmatpush1.bf16.msra.mxu0 %v1379
    %1780 = vmatprep.subr.bf16.mxu0 %v1372
    %1781 = vmatpush1.bf16.msra.mxu0 %v1371
    %1782 = vmatprep.subr.bf16.mxu0 %v1364
    %1783 = vmatpush1.bf16.msra.mxu0 %v1363
    %1784 = vmatprep.subr.bf16.mxu0 %v1356
    %1785 = vmatpush1.bf16.msra.mxu0 %v1355
    %1786 = vmatprep.subr.bf16.mxu0 %v1348
    %1787 = vmatpush1.bf16.msra.mxu0 %v1347
    %1788 = vmatprep.subr.bf16.mxu0 %v1468
    %1789 = vmatpush2.bf16.msra.mxu0 %v1467
    %1790 = vmatprep.subr.bf16.mxu0 %v1460
    %1791 = vmatpush2.bf16.msra.mxu0 %v1459
    %1792 = vmatprep.subr.bf16.mxu0 %v1452
    %1793 = vmatpush2.bf16.msra.mxu0 %v1451
    %1794 = vmatprep.subr.bf16.mxu0 %v1444
    %1795 = vmatpush2.bf16.msra.mxu0 %v1443
    %1796 = vmatprep.subr.bf16.mxu0 %v1436
    %1797 = vmatpush2.bf16.msra.mxu0 %v1435
    %1798 = vmatprep.subr.bf16.mxu0 %v1428
    %1799 = vmatpush2.bf16.msra.mxu0 %v1427
    %1800 = vmatprep.subr.bf16.mxu0 %v1420
    %1801 = vmatpush2.bf16.msra.mxu0 %v1419
    %1802 = vmatprep.subr.bf16.mxu0 %v1412
    %1803 = vmatpush2.bf16.msra.mxu0 %v1411
    %1804 = vmatprep.mubr.bf16.mxu0 %v446
    %1805 = vmatmul.mubr.bf16.gmra.mxu0 %v445
    %v1806 = vpop.f32.mrf.mxu0
    %v1807 = vadd.f32 %v1766, %v1806
    %v1808 = vpop.f32.mrf.mxu0
    %v1809 = vadd.f32 %v1768, %v1808
    %v1810 = vpop.f32.mrf.mxu0
    %v1811 = vpop.f32.mrf.mxu0
    %1812 = vdwg.mxu0
    %1813 = vmatprep.subr.bf16.mxu0 %v1278
    %1814 = vmatpush1.bf16.msra.mxu0 %v1277
    %1815 = vmatprep.subr.bf16.mxu0 %v1270
    %1816 = vmatpush1.bf16.msra.mxu0 %v1269
    %1817 = vmatprep.subr.bf16.mxu0 %v1262
    %1818 = vmatpush1.bf16.msra.mxu0 %v1261
    %1819 = vmatprep.subr.bf16.mxu0 %v1254
    %1820 = vmatpush1.bf16.msra.mxu0 %v1253
    %1821 = vmatprep.subr.bf16.mxu0 %v1246
    %1822 = vmatpush1.bf16.msra.mxu0 %v1245
    %1823 = vmatprep.subr.bf16.mxu0 %v1238
    %1824 = vmatpush1.bf16.msra.mxu0 %v1237
    %1825 = vmatprep.subr.bf16.mxu0 %v1230
    %1826 = vmatpush1.bf16.msra.mxu0 %v1229
    %1827 = vmatprep.subr.bf16.mxu0 %v1222
    %1828 = vmatpush1.bf16.msra.mxu0 %v1221
    %1829 = vmatprep.subr.bf16.mxu0 %v1342
    %1830 = vmatpush2.bf16.msra.mxu0 %v1341
    %1831 = vmatprep.subr.bf16.mxu0 %v1334
    %1832 = vmatpush2.bf16.msra.mxu0 %v1333
    %1833 = vmatprep.subr.bf16.mxu0 %v1326
    %1834 = vmatpush2.bf16.msra.mxu0 %v1325
    %1835 = vmatprep.subr.bf16.mxu0 %v1318
    %1836 = vmatpush2.bf16.msra.mxu0 %v1317
    %1837 = vmatprep.subr.bf16.mxu0 %v1310
    %1838 = vmatpush2.bf16.msra.mxu0 %v1309
    %1839 = vmatprep.subr.bf16.mxu0 %v1302
    %1840 = vmatpush2.bf16.msra.mxu0 %v1301
    %1841 = vmatprep.subr.bf16.mxu0 %v1294
    %1842 = vmatpush2.bf16.msra.mxu0 %v1293
    %1843 = vmatprep.subr.bf16.mxu0 %v1286
    %1844 = vmatpush2.bf16.msra.mxu0 %v1285
    %1845 = vmatprep.mubr.bf16.mxu0 %v444
    %1846 = vmatmul.mubr.bf16.gmra.mxu0 %v443
    %v1847 = vpop.f32.mrf.mxu0
    %v1848 = vadd.f32 0.0, %v1847
    %v1849 = vpop.f32.mrf.mxu0
    %v1850 = vadd.f32 0.0, %v1849
    %v1851 = vpop.f32.mrf.mxu0
    %v1852 = vpop.f32.mrf.mxu0
    %1853 = vdwg.mxu0
    %1854 = vmatprep.subr.bf16.mxu0 %v1406
    %1855 = vmatpush1.bf16.msra.mxu0 %v1405
    %1856 = vmatprep.subr.bf16.mxu0 %v1398
    %1857 = vmatpush1.bf16.msra.mxu0 %v1397
    %1858 = vmatprep.subr.bf16.mxu0 %v1390
    %1859 = vmatpush1.bf16.msra.mxu0 %v1389
    %1860 = vmatprep.subr.bf16.mxu0 %v1382
    %1861 = vmatpush1.bf16.msra.mxu0 %v1381
    %1862 = vmatprep.subr.bf16.mxu0 %v1374
    %1863 = vmatpush1.bf16.msra.mxu0 %v1373
    %1864 = vmatprep.subr.bf16.mxu0 %v1366
    %1865 = vmatpush1.bf16.msra.mxu0 %v1365
    %1866 = vmatprep.subr.bf16.mxu0 %v1358
    %1867 = vmatpush1.bf16.msra.mxu0 %v1357
    %1868 = vmatprep.subr.bf16.mxu0 %v1350
    %1869 = vmatpush1.bf16.msra.mxu0 %v1349
    %1870 = vmatprep.subr.bf16.mxu0 %v1470
    %1871 = vmatpush2.bf16.msra.mxu0 %v1469
    %1872 = vmatprep.subr.bf16.mxu0 %v1462
    %1873 = vmatpush2.bf16.msra.mxu0 %v1461
    %1874 = vmatprep.subr.bf16.mxu0 %v1454
    %1875 = vmatpush2.bf16.msra.mxu0 %v1453
    %1876 = vmatprep.subr.bf16.mxu0 %v1446
    %1877 = vmatpush2.bf16.msra.mxu0 %v1445
    %1878 = vmatprep.subr.bf16.mxu0 %v1438
    %1879 = vmatpush2.bf16.msra.mxu0 %v1437
    %1880 = vmatprep.subr.bf16.mxu0 %v1430
    %1881 = vmatpush2.bf16.msra.mxu0 %v1429
    %1882 = vmatprep.subr.bf16.mxu0 %v1422
    %1883 = vmatpush2.bf16.msra.mxu0 %v1421
    %1884 = vmatprep.subr.bf16.mxu0 %v1414
    %1885 = vmatpush2.bf16.msra.mxu0 %v1413
    %1886 = vmatprep.mubr.bf16.mxu0 %v446
    %1887 = vmatmul.mubr.bf16.gmra.mxu0 %v445
    %v1888 = vpop.f32.mrf.mxu0
    %v1889 = vadd.f32 %v1848, %v1888
    %v1890 = vpop.f32.mrf.mxu0
    %v1891 = vadd.f32 %v1850, %v1890
    %v1892 = vpop.f32.mrf.mxu0
    %v1893 = vpop.f32.mrf.mxu0
    %1894 = vdwg.mxu0
    %1895 = vmatprep.subr.bf16.mxu0 %v1280
    %1896 = vmatpush1.bf16.msra.mxu0 %v1279
    %1897 = vmatprep.subr.bf16.mxu0 %v1272
    %1898 = vmatpush1.bf16.msra.mxu0 %v1271
    %1899 = vmatprep.subr.bf16.mxu0 %v1264
    %1900 = vmatpush1.bf16.msra.mxu0 %v1263
    %1901 = vmatprep.subr.bf16.mxu0 %v1256
    %1902 = vmatpush1.bf16.msra.mxu0 %v1255
    %1903 = vmatprep.subr.bf16.mxu0 %v1248
    %1904 = vmatpush1.bf16.msra.mxu0 %v1247
    %1905 = vmatprep.subr.bf16.mxu0 %v1240
    %1906 = vmatpush1.bf16.msra.mxu0 %v1239
    %1907 = vmatprep.subr.bf16.mxu0 %v1232
    %1908 = vmatpush1.bf16.msra.mxu0 %v1231
    %1909 = vmatprep.subr.bf16.mxu0 %v1224
    %1910 = vmatpush1.bf16.msra.mxu0 %v1223
    %1911 = vmatprep.subr.bf16.mxu0 %v1344
    %1912 = vmatpush2.bf16.msra.mxu0 %v1343
    %1913 = vmatprep.subr.bf16.mxu0 %v1336
    %1914 = vmatpush2.bf16.msra.mxu0 %v1335
    %1915 = vmatprep.subr.bf16.mxu0 %v1328
    %1916 = vmatpush2.bf16.msra.mxu0 %v1327
    %1917 = vmatprep.subr.bf16.mxu0 %v1320
    %1918 = vmatpush2.bf16.msra.mxu0 %v1319
    %1919 = vmatprep.subr.bf16.mxu0 %v1312
    %1920 = vmatpush2.bf16.msra.mxu0 %v1311
    %1921 = vmatprep.subr.bf16.mxu0 %v1304
    %1922 = vmatpush2.bf16.msra.mxu0 %v1303
    %1923 = vmatprep.subr.bf16.mxu0 %v1296
    %1924 = vmatpush2.bf16.msra.mxu0 %v1295
    %1925 = vmatprep.subr.bf16.mxu0 %v1288
    %1926 = vmatpush2.bf16.msra.mxu0 %v1287
    %1927 = vmatprep.mubr.bf16.mxu0 %v444
    %1928 = vmatmul.mubr.bf16.gmra.mxu0 %v443
    %v1929 = vpop.f32.mrf.mxu0
    %v1930 = vadd.f32 0.0, %v1929
    %v1931 = vpop.f32.mrf.mxu0
    %v1932 = vadd.f32 0.0, %v1931
    %v1933 = vpop.f32.mrf.mxu0
    %v1934 = vpop.f32.mrf.mxu0
    %1935 = vdwg.mxu0
    %1936 = vmatprep.subr.bf16.mxu0 %v1408
    %1937 = vmatpush1.bf16.msra.mxu0 %v1407
    %1938 = vmatprep.subr.bf16.mxu0 %v1400
    %1939 = vmatpush1.bf16.msra.mxu0 %v1399
    %1940 = vmatprep.subr.bf16.mxu0 %v1392
    %1941 = vmatpush1.bf16.msra.mxu0 %v1391
    %1942 = vmatprep.subr.bf16.mxu0 %v1384
    %1943 = vmatpush1.bf16.msra.mxu0 %v1383
    %1944 = vmatprep.subr.bf16.mxu0 %v1376
    %1945 = vmatpush1.bf16.msra.mxu0 %v1375
    %1946 = vmatprep.subr.bf16.mxu0 %v1368
    %1947 = vmatpush1.bf16.msra.mxu0 %v1367
    %1948 = vmatprep.subr.bf16.mxu0 %v1360
    %1949 = vmatpush1.bf16.msra.mxu0 %v1359
    %1950 = vmatprep.subr.bf16.mxu0 %v1352
    %1951 = vmatpush1.bf16.msra.mxu0 %v1351
    %1952 = vmatprep.subr.bf16.mxu0 %v1472
    %1953 = vmatpush2.bf16.msra.mxu0 %v1471
    %1954 = vmatprep.subr.bf16.mxu0 %v1464
    %1955 = vmatpush2.bf16.msra.mxu0 %v1463
    %1956 = vmatprep.subr.bf16.mxu0 %v1456
    %1957 = vmatpush2.bf16.msra.mxu0 %v1455
    %1958 = vmatprep.subr.bf16.mxu0 %v1448
    %1959 = vmatpush2.bf16.msra.mxu0 %v1447
    %1960 = vmatprep.subr.bf16.mxu0 %v1440
    %1961 = vmatpush2.bf16.msra.mxu0 %v1439
    %1962 = vmatprep.subr.bf16.mxu0 %v1432
    %1963 = vmatpush2.bf16.msra.mxu0 %v1431
    %1964 = vmatprep.subr.bf16.mxu0 %v1424
    %1965 = vmatpush2.bf16.msra.mxu0 %v1423
    %1966 = vmatprep.subr.bf16.mxu0 %v1416
    %1967 = vmatpush2.bf16.msra.mxu0 %v1415
    %1968 = vmatprep.mubr.bf16.mxu0 %v446
    %1969 = vmatmul.mubr.bf16.gmra.mxu0 %v445
    %v1970 = vpop.f32.mrf.mxu0
    %v1971 = vadd.f32 %v1930, %v1970
    %v1972 = vpop.f32.mrf.mxu0
    %v1973 = vadd.f32 %v1932, %v1972
    %v1974 = vpop.f32.mrf.mxu0
    %v1975 = vpop.f32.mrf.mxu0
    %1976 = vdwg.mxu0
    %1977 = vmatprep.subr.bf16.mxu0 %v1282
    %1978 = vmatpush1.bf16.msra.mxu0 %v1281
    %1979 = vmatprep.subr.bf16.mxu0 %v1274
    %1980 = vmatpush1.bf16.msra.mxu0 %v1273
    %1981 = vmatprep.subr.bf16.mxu0 %v1266
    %1982 = vmatpush1.bf16.msra.mxu0 %v1265
    %1983 = vmatprep.subr.bf16.mxu0 %v1258
    %1984 = vmatpush1.bf16.msra.mxu0 %v1257
    %1985 = vmatprep.subr.bf16.mxu0 %v1250
    %1986 = vmatpush1.bf16.msra.mxu0 %v1249
    %1987 = vmatprep.subr.bf16.mxu0 %v1242
    %1988 = vmatpush1.bf16.msra.mxu0 %v1241
    %1989 = vmatprep.subr.bf16.mxu0 %v1234
    %1990 = vmatpush1.bf16.msra.mxu0 %v1233
    %1991 = vmatprep.subr.bf16.mxu0 %v1226
    %1992 = vmatpush1.bf16.msra.mxu0 %v1225
    %1993 = vmatprep.subr.bf16.mxu0 %v1346
    %1994 = vmatpush2.bf16.msra.mxu0 %v1345
    %1995 = vmatprep.subr.bf16.mxu0 %v1338
    %1996 = vmatpush2.bf16.msra.mxu0 %v1337
    %1997 = vmatprep.subr.bf16.mxu0 %v1330
    %1998 = vmatpush2.bf16.msra.mxu0 %v1329
    %1999 = vmatprep.subr.bf16.mxu0 %v1322
    %2000 = vmatpush2.bf16.msra.mxu0 %v1321
    %2001 = vmatprep.subr.bf16.mxu0 %v1314
    %2002 = vmatpush2.bf16.msra.mxu0 %v1313
    %2003 = vmatprep.subr.bf16.mxu0 %v1306
    %2004 = vmatpush2.bf16.msra.mxu0 %v1305
    %2005 = vmatprep.subr.bf16.mxu0 %v1298
    %2006 = vmatpush2.bf16.msra.mxu0 %v1297
    %2007 = vmatprep.subr.bf16.mxu0 %v1290
    %2008 = vmatpush2.bf16.msra.mxu0 %v1289
    %2009 = vmatprep.mubr.bf16.mxu0 %v444
    %2010 = vmatmul.mubr.bf16.gmra.mxu0 %v443
    %v2011 = vpop.f32.mrf.mxu0
    %v2012 = vadd.f32 0.0, %v2011
    %v2013 = vpop.f32.mrf.mxu0
    %v2014 = vadd.f32 0.0, %v2013
    %v2015 = vpop.f32.mrf.mxu0
    %v2016 = vpop.f32.mrf.mxu0
    %2017 = vdwg.mxu0
    %2018 = vmatprep.subr.bf16.mxu0 %v1410
    %2019 = vmatpush1.bf16.msra.mxu0 %v1409
    %2020 = vmatprep.subr.bf16.mxu0 %v1402
    %2021 = vmatpush1.bf16.msra.mxu0 %v1401
    %2022 = vmatprep.subr.bf16.mxu0 %v1394
    %2023 = vmatpush1.bf16.msra.mxu0 %v1393
    %2024 = vmatprep.subr.bf16.mxu0 %v1386
    %2025 = vmatpush1.bf16.msra.mxu0 %v1385
    %2026 = vmatprep.subr.bf16.mxu0 %v1378
    %2027 = vmatpush1.bf16.msra.mxu0 %v1377
    %2028 = vmatprep.subr.bf16.mxu0 %v1370
    %2029 = vmatpush1.bf16.msra.mxu0 %v1369
    %2030 = vmatprep.subr.bf16.mxu0 %v1362
    %2031 = vmatpush1.bf16.msra.mxu0 %v1361
    %2032 = vmatprep.subr.bf16.mxu0 %v1354
    %2033 = vmatpush1.bf16.msra.mxu0 %v1353
    %2034 = vmatprep.subr.bf16.mxu0 %v1474
    %2035 = vmatpush2.bf16.msra.mxu0 %v1473
    %2036 = vmatprep.subr.bf16.mxu0 %v1466
    %2037 = vmatpush2.bf16.msra.mxu0 %v1465
    %2038 = vmatprep.subr.bf16.mxu0 %v1458
    %2039 = vmatpush2.bf16.msra.mxu0 %v1457
    %2040 = vmatprep.subr.bf16.mxu0 %v1450
    %2041 = vmatpush2.bf16.msra.mxu0 %v1449
    %2042 = vmatprep.subr.bf16.mxu0 %v1442
    %2043 = vmatpush2.bf16.msra.mxu0 %v1441
    %2044 = vmatprep.subr.bf16.mxu0 %v1434
    %2045 = vmatpush2.bf16.msra.mxu0 %v1433
    %2046 = vmatprep.subr.bf16.mxu0 %v1426
    %2047 = vmatpush2.bf16.msra.mxu0 %v1425
    %2048 = vmatprep.subr.bf16.mxu0 %v1418
    %2049 = vmatpush2.bf16.msra.mxu0 %v1417
    %2050 = vmatprep.mubr.bf16.mxu0 %v446
    %2051 = vmatmul.mubr.bf16.gmra.mxu0 %v445
    %v2052 = vpop.f32.mrf.mxu0
    %v2053 = vadd.f32 %v2012, %v2052
    %v2054 = vpop.f32.mrf.mxu0
    %v2055 = vadd.f32 %v2014, %v2054
    %v2056 = vpop.f32.mrf.mxu0
    %v2057 = vpop.f32.mrf.mxu0
    %2058 = vdwg.mxu0
    %v2059 = vrot.slane %v1807, 4
    %v2060 = vadd.f32 %v1807, %v2059
    %v2061 = vrot.slane %v2060, 2
    %v2062 = vadd.f32 %v2060, %v2061
    %v2063 = vrot.slane %v2062, 1
    %v2064 = vadd.f32 %v2062, %v2063
    %v2065 = vrot.slane %v1809, 4
    %v2066 = vadd.f32 %v1809, %v2065
    %v2067 = vrot.slane %v2066, 2
    %v2068 = vadd.f32 %v2066, %v2067
    %v2069 = vrot.slane %v2068, 1
    %v2070 = vadd.f32 %v2068, %v2069
    %v2071 = vrot.slane %v1889, 4
    %v2072 = vadd.f32 %v1889, %v2071
    %v2073 = vrot.slane %v2072, 2
    %v2074 = vadd.f32 %v2072, %v2073
    %v2075 = vrot.slane %v2074, 1
    %v2076 = vadd.f32 %v2074, %v2075
    %v2077 = vrot.slane %v1891, 4
    %v2078 = vadd.f32 %v1891, %v2077
    %v2079 = vrot.slane %v2078, 2
    %v2080 = vadd.f32 %v2078, %v2079
    %v2081 = vrot.slane %v2080, 1
    %v2082 = vadd.f32 %v2080, %v2081
    %v2083 = vrot.slane %v1971, 4
    %v2084 = vadd.f32 %v1971, %v2083
    %v2085 = vrot.slane %v2084, 2
    %v2086 = vadd.f32 %v2084, %v2085
    %v2087 = vrot.slane %v2086, 1
    %v2088 = vadd.f32 %v2086, %v2087
    %v2089 = vrot.slane %v1973, 4
    %v2090 = vadd.f32 %v1973, %v2089
    %v2091 = vrot.slane %v2090, 2
    %v2092 = vadd.f32 %v2090, %v2091
    %v2093 = vrot.slane %v2092, 1
    %v2094 = vadd.f32 %v2092, %v2093
    %v2095 = vrot.slane %v2053, 4
    %v2096 = vadd.f32 %v2053, %v2095
    %v2097 = vrot.slane %v2096, 2
    %v2098 = vadd.f32 %v2096, %v2097
    %v2099 = vrot.slane %v2098, 1
    %v2100 = vadd.f32 %v2098, %v2099
    %v2101 = vrot.slane %v2055, 4
    %v2102 = vadd.f32 %v2055, %v2101
    %v2103 = vrot.slane %v2102, 2
    %v2104 = vadd.f32 %v2102, %v2103
    %v2105 = vrot.slane %v2104, 1
    %v2106 = vadd.f32 %v2104, %v2105
    %v2107 = vrcp.pop 8.0
    %v2108 = vmul.f32 %v2064, %v2107
    %v2109 = vmul.f32 %v2070, %v2107
    %v2110 = vmul.f32 %v2076, %v2107
    %v2111 = vmul.f32 %v2082, %v2107
    %v2112 = vmul.f32 %v2088, %v2107
    %v2113 = vmul.f32 %v2094, %v2107
    %v2114 = vmul.f32 %v2100, %v2107
    %v2115 = vmul.f32 %v2106, %v2107
    %v2116 = vmul.f32 %v1807, %v1807
    %v2117 = vmul.f32 %v1809, %v1809
    %v2118 = vmul.f32 %v1889, %v1889
    %v2119 = vmul.f32 %v1891, %v1891
    %v2120 = vmul.f32 %v1971, %v1971
    %v2121 = vmul.f32 %v1973, %v1973
    %v2122 = vmul.f32 %v2053, %v2053
    %v2123 = vmul.f32 %v2055, %v2055
    %v2124 = vrot.slane %v2116, 4
    %v2125 = vadd.f32 %v2116, %v2124
    %v2126 = vrot.slane %v2125, 2
    %v2127 = vadd.f32 %v2125, %v2126
    %v2128 = vrot.slane %v2127, 1
    %v2129 = vadd.f32 %v2127, %v2128
    %v2130 = vrot.slane %v2117, 4
    %v2131 = vadd.f32 %v2117, %v2130
    %v2132 = vrot.slane %v2131, 2
    %v2133 = vadd.f32 %v2131, %v2132
    %v2134 = vrot.slane %v2133, 1
    %v2135 = vadd.f32 %v2133, %v2134
    %v2136 = vrot.slane %v2118, 4
    %v2137 = vadd.f32 %v2118, %v2136
    %v2138 = vrot.slane %v2137, 2
    %v2139 = vadd.f32 %v2137, %v2138
    %v2140 = vrot.slane %v2139, 1
    %v2141 = vadd.f32 %v2139, %v2140
    %v2142 = vrot.slane %v2119, 4
    %v2143 = vadd.f32 %v2119, %v2142
    %v2144 = vrot.slane %v2143, 2
    %v2145 = vadd.f32 %v2143, %v2144
    %v2146 = vrot.slane %v2145, 1
    %v2147 = vadd.f32 %v2145, %v2146
    %v2148 = vrot.slane %v2120, 4
    %v2149 = vadd.f32 %v2120, %v2148
    %v2150 = vrot.slane %v2149, 2
    %v2151 = vadd.f32 %v2149, %v2150
    %v2152 = vrot.slane %v2151, 1
    %v2153 = vadd.f32 %v2151, %v2152
    %v2154 = vrot.slane %v2121, 4
    %v2155 = vadd.f32 %v2121, %v2154
    %v2156 = vrot.slane %v2155, 2
    %v2157 = vadd.f32 %v2155, %v2156
    %v2158 = vrot.slane %v2157, 1
    %v2159 = vadd.f32 %v2157, %v2158
    %v2160 = vrot.slane %v2122, 4
    %v2161 = vadd.f32 %v2122, %v2160
    %v2162 = vrot.slane %v2161, 2
    %v2163 = vadd.f32 %v2161, %v2162
    %v2164 = vrot.slane %v2163, 1
    %v2165 = vadd.f32 %v2163, %v2164
    %v2166 = vrot.slane %v2123, 4
    %v2167 = vadd.f32 %v2123, %v2166
    %v2168 = vrot.slane %v2167, 2
    %v2169 = vadd.f32 %v2167, %v2168
    %v2170 = vrot.slane %v2169, 1
    %v2171 = vadd.f32 %v2169, %v2170
    %v2172 = vmul.f32 %v2129, %v2107
    %v2173 = vmul.f32 %v2135, %v2107
    %v2174 = vmul.f32 %v2141, %v2107
    %v2175 = vmul.f32 %v2147, %v2107
    %v2176 = vmul.f32 %v2153, %v2107
    %v2177 = vmul.f32 %v2159, %v2107
    %v2178 = vmul.f32 %v2165, %v2107
    %v2179 = vmul.f32 %v2171, %v2107
    %v2180 = vmul.f32 %v2108, %v2108
    %v2181 = vmul.f32 %v2109, %v2109
    %v2182 = vmul.f32 %v2110, %v2110
    %v2183 = vmul.f32 %v2111, %v2111
    %v2184 = vmul.f32 %v2112, %v2112
    %v2185 = vmul.f32 %v2113, %v2113
    %v2186 = vmul.f32 %v2114, %v2114
    %v2187 = vmul.f32 %v2115, %v2115
    %v2188 = vsub.f32 %v2172, %v2180
    %v2189 = vsub.f32 %v2173, %v2181
    %v2190 = vsub.f32 %v2174, %v2182
    %v2191 = vsub.f32 %v2175, %v2183
    %v2192 = vsub.f32 %v2176, %v2184
    %v2193 = vsub.f32 %v2177, %v2185
    %v2194 = vsub.f32 %v2178, %v2186
    %v2195 = vsub.f32 %v2179, %v2187
    %v2196 = vmax.f32 %v2188, 0.0
    %v2197 = vmax.f32 %v2189, 0.0
    %v2198 = vmax.f32 %v2190, 0.0
    %v2199 = vmax.f32 %v2191, 0.0
    %v2200 = vmax.f32 %v2192, 0.0
    %v2201 = vmax.f32 %v2193, 0.0
    %v2202 = vmax.f32 %v2194, 0.0
    %v2203 = vmax.f32 %v2195, 0.0
    %v2204 = vld [vmem:[#allocation13] ss:$8 sm:$0xf]
    %v2205 = vld [vmem:[#allocation13] ss:$8 sm:$0xf0]
    %v2206 = vor.u32 %v2204, %v2205
    %s2207 = scalar_lea.vmem [#allocation13], 1
    %v2208 = vld [vmem:[%s2207] ss:$8 sm:$0xf]
    %v2209 = vld [vmem:[%s2207] ss:$8 sm:$0xf0]
    %v2210 = vor.u32 %v2208, %v2209
    %v2211 = vadd.f32 %v2196, 1e-05
    %v2212 = vadd.f32 %v2197, 1e-05
    %v2213 = vadd.f32 %v2198, 1e-05
    %v2214 = vadd.f32 %v2199, 1e-05
    %v2215 = vadd.f32 %v2200, 1e-05
    %v2216 = vadd.f32 %v2201, 1e-05
    %v2217 = vadd.f32 %v2202, 1e-05
    %v2218 = vadd.f32 %v2203, 1e-05
    %v2219 = vrsqrt.pop %v2211
    %v2220 = vrsqrt.pop %v2212
    %v2221 = vrsqrt.pop %v2213
    %v2222 = vrsqrt.pop %v2214
    %v2223 = vrsqrt.pop %v2215
    %v2224 = vrsqrt.pop %v2216
    %v2225 = vrsqrt.pop %v2217
    %v2226 = vrsqrt.pop %v2218
    %v2235 = vcombine.low %v2219, %v2220
    %v2236 = vcombine.low %v2221, %v2222
    %v2237 = vcombine.low %v2223, %v2224
    %v2238 = vcombine.low %v2225, %v2226
    %v2240 = vunpack.c.l.s4 1966171168
    %v2241 = vunpack.c.0.s8 %v2240
    %v2242 = vlaneseq
    %v2243 = vshrl.u32 %v2242, 7
    %v2244 = vsub.s32 %v2241, %v2243
    %v2245 = vrot.slane %v2235, %v2244
    %v2247 = vunpack.c.l.s4 1966171168
    %v2248 = vunpack.c.0.s8 %v2247
    %v2249 = vlaneseq
    %v2250 = vshrl.u32 %v2249, 7
    %v2251 = vsub.s32 %v2248, %v2250
    %v2252 = vrot.slane %v2236, %v2251
    %v2254 = vunpack.c.l.s4 1966171168
    %v2255 = vunpack.c.0.s8 %v2254
    %v2256 = vlaneseq
    %v2257 = vshrl.u32 %v2256, 7
    %v2258 = vsub.s32 %v2255, %v2257
    %v2259 = vrot.slane %v2237, %v2258
    %v2261 = vunpack.c.l.s4 1966171168
    %v2262 = vunpack.c.0.s8 %v2261
    %v2263 = vlaneseq
    %v2264 = vshrl.u32 %v2263, 7
    %v2265 = vsub.s32 %v2262, %v2264
    %v2266 = vrot.slane %v2238, %v2265
    %v2267 = vcombine.low %v2245, %v2252
    %v2268 = vcombine.low %v2259, %v2266
    %v2270 = vunpack.c.l.s4 1966171168
    %v2271 = vunpack.c.0.s8 %v2270
    %v2272 = vlaneseq
    %v2273 = vshrl.u32 %v2272, 7
    %v2274 = vsub.s32 %v2271, %v2273
    %v2275 = vrot.slane %v2267, %v2274
    %v2277 = vunpack.c.l.s4 1966171168
    %v2278 = vunpack.c.0.s8 %v2277
    %v2279 = vlaneseq
    %v2280 = vshrl.u32 %v2279, 7
    %v2281 = vsub.s32 %v2278, %v2280
    %v2282 = vrot.slane %v2268, %v2281
    %v2283 = vcombine.low %v2275, %v2282
    %v2285 = vmul.f32 %v2206, %v2283
    %v2287 = vlaneseq
    %v2288 = vshrl.u32 %v2287, 7
    %v2289 = vsub.s32 0, %v2288
    %v2290 = vrot.slane %v2285, %v2289
    %v2291 = vlaneseq
    %v2292 = vshrl.u32 %v2291, 7
    %v2293 = vsub.s32 1, %v2292
    %v2294 = vrot.slane %v2285, %v2293
    %v2295 = vlaneseq
    %v2296 = vshrl.u32 %v2295, 7
    %v2297 = vsub.s32 2, %v2296
    %v2298 = vrot.slane %v2285, %v2297
    %v2299 = vlaneseq
    %v2300 = vshrl.u32 %v2299, 7
    %v2301 = vsub.s32 3, %v2300
    %v2302 = vrot.slane %v2285, %v2301
    %v2303 = vlaneseq
    %v2304 = vshrl.u32 %v2303, 7
    %v2305 = vsub.s32 4, %v2304
    %v2306 = vrot.slane %v2285, %v2305
    %v2307 = vlaneseq
    %v2308 = vshrl.u32 %v2307, 7
    %v2309 = vsub.s32 5, %v2308
    %v2310 = vrot.slane %v2285, %v2309
    %v2311 = vlaneseq
    %v2312 = vshrl.u32 %v2311, 7
    %v2313 = vsub.s32 6, %v2312
    %v2314 = vrot.slane %v2285, %v2313
    %v2315 = vlaneseq
    %v2316 = vshrl.u32 %v2315, 7
    %v2317 = vsub.s32 7, %v2316
    %v2318 = vrot.slane %v2285, %v2317
    %v2327 = vmul.f32 %v2108, %v2290
    %v2328 = vmul.f32 %v2109, %v2294
    %v2329 = vmul.f32 %v2110, %v2298
    %v2330 = vmul.f32 %v2111, %v2302
    %v2331 = vmul.f32 %v2112, %v2306
    %v2332 = vmul.f32 %v2113, %v2310
    %v2333 = vmul.f32 %v2114, %v2314
    %v2334 = vmul.f32 %v2115, %v2318
    %v2343 = vcombine.low %v2327, %v2328
    %v2344 = vcombine.low %v2329, %v2330
    %v2345 = vcombine.low %v2331, %v2332
    %v2346 = vcombine.low %v2333, %v2334
    %v2348 = vunpack.c.l.s4 1966171168
    %v2349 = vunpack.c.0.s8 %v2348
    %v2350 = vlaneseq
    %v2351 = vshrl.u32 %v2350, 7
    %v2352 = vsub.s32 %v2349, %v2351
    %v2353 = vrot.slane %v2343, %v2352
    %v2355 = vunpack.c.l.s4 1966171168
    %v2356 = vunpack.c.0.s8 %v2355
    %v2357 = vlaneseq
    %v2358 = vshrl.u32 %v2357, 7
    %v2359 = vsub.s32 %v2356, %v2358
    %v2360 = vrot.slane %v2344, %v2359
    %v2362 = vunpack.c.l.s4 1966171168
    %v2363 = vunpack.c.0.s8 %v2362
    %v2364 = vlaneseq
    %v2365 = vshrl.u32 %v2364, 7
    %v2366 = vsub.s32 %v2363, %v2365
    %v2367 = vrot.slane %v2345, %v2366
    %v2369 = vunpack.c.l.s4 1966171168
    %v2370 = vunpack.c.0.s8 %v2369
    %v2371 = vlaneseq
    %v2372 = vshrl.u32 %v2371, 7
    %v2373 = vsub.s32 %v2370, %v2372
    %v2374 = vrot.slane %v2346, %v2373
    %v2375 = vcombine.low %v2353, %v2360
    %v2376 = vcombine.low %v2367, %v2374
    %v2378 = vunpack.c.l.s4 1966171168
    %v2379 = vunpack.c.0.s8 %v2378
    %v2380 = vlaneseq
    %v2381 = vshrl.u32 %v2380, 7
    %v2382 = vsub.s32 %v2379, %v2381
    %v2383 = vrot.slane %v2375, %v2382
    %v2385 = vunpack.c.l.s4 1966171168
    %v2386 = vunpack.c.0.s8 %v2385
    %v2387 = vlaneseq
    %v2388 = vshrl.u32 %v2387, 7
    %v2389 = vsub.s32 %v2386, %v2388
    %v2390 = vrot.slane %v2376, %v2389
    %v2391 = vcombine.low %v2383, %v2390
    %v2393 = vsub.f32 %v2210, %v2391
    %v2394 = vmul.f32 %v1807, %v2290
    %v2395 = vmul.f32 %v1809, %v2294
    %v2396 = vmul.f32 %v1889, %v2298
    %v2397 = vmul.f32 %v1891, %v2302
    %v2398 = vmul.f32 %v1971, %v2306
    %v2399 = vmul.f32 %v1973, %v2310
    %v2400 = vmul.f32 %v2053, %v2314
    %v2401 = vmul.f32 %v2055, %v2318
    %v2403 = vlaneseq
    %v2404 = vshrl.u32 %v2403, 7
    %v2405 = vsub.s32 0, %v2404
    %v2406 = vrot.slane %v2393, %v2405
    %v2407 = vlaneseq
    %v2408 = vshrl.u32 %v2407, 7
    %v2409 = vsub.s32 1, %v2408
    %v2410 = vrot.slane %v2393, %v2409
    %v2411 = vlaneseq
    %v2412 = vshrl.u32 %v2411, 7
    %v2413 = vsub.s32 2, %v2412
    %v2414 = vrot.slane %v2393, %v2413
    %v2415 = vlaneseq
    %v2416 = vshrl.u32 %v2415, 7
    %v2417 = vsub.s32 3, %v2416
    %v2418 = vrot.slane %v2393, %v2417
    %v2419 = vlaneseq
    %v2420 = vshrl.u32 %v2419, 7
    %v2421 = vsub.s32 4, %v2420
    %v2422 = vrot.slane %v2393, %v2421
    %v2423 = vlaneseq
    %v2424 = vshrl.u32 %v2423, 7
    %v2425 = vsub.s32 5, %v2424
    %v2426 = vrot.slane %v2393, %v2425
    %v2427 = vlaneseq
    %v2428 = vshrl.u32 %v2427, 7
    %v2429 = vsub.s32 6, %v2428
    %v2430 = vrot.slane %v2393, %v2429
    %v2431 = vlaneseq
    %v2432 = vshrl.u32 %v2431, 7
    %v2433 = vsub.s32 7, %v2432
    %v2434 = vrot.slane %v2393, %v2433
    %v2443 = vadd.f32 %v2394, %v2406
    %v2444 = vadd.f32 %v2395, %v2410
    %v2445 = vadd.f32 %v2396, %v2414
    %v2446 = vadd.f32 %v2397, %v2418
    %v2447 = vadd.f32 %v2398, %v2422
    %v2448 = vadd.f32 %v2399, %v2426
    %v2449 = vadd.f32 %v2400, %v2430
    %v2450 = vadd.f32 %v2401, %v2434
    %v2451 = vmax.f32 %v2443, 0.0
    %v2452 = vmax.f32 %v2444, 0.0
    %v2453 = vmax.f32 %v2445, 0.0
    %v2454 = vmax.f32 %v2446, 0.0
    %v2455 = vmax.f32 %v2447, 0.0
    %v2456 = vmax.f32 %v2448, 0.0
    %v2457 = vmax.f32 %v2449, 0.0
    %v2458 = vmax.f32 %v2450, 0.0
    %s2459 = smul.u32 4, 128
    %s2460 = smul.u32 %s2459, 8
    %s2461 = sshll.u32 %s2460, 4
    %2462 = dma.done %s57, %s2461
    %v2463 = vpack.c.bf16 %v2451, %v2451
    %v2464 = vpack.c.bf16 %v2452, %v2452
    %v2465 = vpack.c.bf16 %v2453, %v2453
    %v2466 = vpack.c.bf16 %v2454, %v2454
    %v2467 = vpack.c.bf16 %v2455, %v2455
    %v2468 = vpack.c.bf16 %v2456, %v2456
    %v2469 = vpack.c.bf16 %v2457, %v2457
    %v2470 = vpack.c.bf16 %v2458, %v2458
    %v2471 = vld [vmem:[#allocation3] sm:$0xff]
    %v2472 = vld [vmem:[#allocation3 + $0x8] sm:$0xff]
    %v2473 = vld [vmem:[#allocation3 + $0x10] sm:$0xff]
    %v2474 = vld [vmem:[#allocation3 + $0x18] sm:$0xff]
    %v2475 = vld [vmem:[#allocation3 + $0x20] sm:$0xff]
    %v2476 = vld [vmem:[#allocation3 + $0x28] sm:$0xff]
    %v2477 = vld [vmem:[#allocation3 + $0x30] sm:$0xff]
    %v2478 = vld [vmem:[#allocation3 + $0x38] sm:$0xff]
    %v2479 = vld [vmem:[#allocation3 + $0x40] sm:$0xff]
    %v2480 = vld [vmem:[#allocation3 + $0x48] sm:$0xff]
    %v2481 = vld [vmem:[#allocation3 + $0x50] sm:$0xff]
    %v2482 = vld [vmem:[#allocation3 + $0x58] sm:$0xff]
    %v2483 = vld [vmem:[#allocation3 + $0x60] sm:$0xff]
    %v2484 = vld [vmem:[#allocation3 + $0x68] sm:$0xff]
    %v2485 = vld [vmem:[#allocation3 + $0x70] sm:$0xff]
    %v2486 = vld [vmem:[#allocation3 + $0x78] sm:$0xff]
    %v2487 = vld [vmem:[#allocation3 + $0x80] sm:$0xff]
    %v2488 = vld [vmem:[#allocation3 + $0x88] sm:$0xff]
    %v2489 = vld [vmem:[#allocation3 + $0x90] sm:$0xff]
    %v2490 = vld [vmem:[#allocation3 + $0x98] sm:$0xff]
    %v2491 = vld [vmem:[#allocation3 + $0xa0] sm:$0xff]
    %v2492 = vld [vmem:[#allocation3 + $0xa8] sm:$0xff]
    %v2493 = vld [vmem:[#allocation3 + $0xb0] sm:$0xff]
    %v2494 = vld [vmem:[#allocation3 + $0xb8] sm:$0xff]
    %v2495 = vld [vmem:[#allocation3 + $0xc0] sm:$0xff]
    %v2496 = vld [vmem:[#allocation3 + $0xc8] sm:$0xff]
    %v2497 = vld [vmem:[#allocation3 + $0xd0] sm:$0xff]
    %v2498 = vld [vmem:[#allocation3 + $0xd8] sm:$0xff]
    %v2499 = vld [vmem:[#allocation3 + $0xe0] sm:$0xff]
    %v2500 = vld [vmem:[#allocation3 + $0xe8] sm:$0xff]
    %v2501 = vld [vmem:[#allocation3 + $0xf0] sm:$0xff]
    %v2502 = vld [vmem:[#allocation3 + $0xf8] sm:$0xff]
    %v2503 = vld [vmem:[#allocation3 + $0x100] sm:$0xff]
    %v2504 = vld [vmem:[#allocation3 + $0x108] sm:$0xff]
    %v2505 = vld [vmem:[#allocation3 + $0x110] sm:$0xff]
    %v2506 = vld [vmem:[#allocation3 + $0x118] sm:$0xff]
    %v2507 = vld [vmem:[#allocation3 + $0x120] sm:$0xff]
    %v2508 = vld [vmem:[#allocation3 + $0x128] sm:$0xff]
    %v2509 = vld [vmem:[#allocation3 + $0x130] sm:$0xff]
    %v2510 = vld [vmem:[#allocation3 + $0x138] sm:$0xff]
    %v2511 = vld [vmem:[#allocation3 + $0x140] sm:$0xff]
    %v2512 = vld [vmem:[#allocation3 + $0x148] sm:$0xff]
    %v2513 = vld [vmem:[#allocation3 + $0x150] sm:$0xff]
    %v2514 = vld [vmem:[#allocation3 + $0x158] sm:$0xff]
    %v2515 = vld [vmem:[#allocation3 + $0x160] sm:$0xff]
    %v2516 = vld [vmem:[#allocation3 + $0x168] sm:$0xff]
    %v2517 = vld [vmem:[#allocation3 + $0x170] sm:$0xff]
    %v2518 = vld [vmem:[#allocation3 + $0x178] sm:$0xff]
    %v2519 = vld [vmem:[#allocation3 + $0x180] sm:$0xff]
    %v2520 = vld [vmem:[#allocation3 + $0x188] sm:$0xff]
    %v2521 = vld [vmem:[#allocation3 + $0x190] sm:$0xff]
    %v2522 = vld [vmem:[#allocation3 + $0x198] sm:$0xff]
    %v2523 = vld [vmem:[#allocation3 + $0x1a0] sm:$0xff]
    %v2524 = vld [vmem:[#allocation3 + $0x1a8] sm:$0xff]
    %v2525 = vld [vmem:[#allocation3 + $0x1b0] sm:$0xff]
    %v2526 = vld [vmem:[#allocation3 + $0x1b8] sm:$0xff]
    %v2527 = vld [vmem:[#allocation3 + $0x1c0] sm:$0xff]
    %v2528 = vld [vmem:[#allocation3 + $0x1c8] sm:$0xff]
    %v2529 = vld [vmem:[#allocation3 + $0x1d0] sm:$0xff]
    %v2530 = vld [vmem:[#allocation3 + $0x1d8] sm:$0xff]
    %v2531 = vld [vmem:[#allocation3 + $0x1e0] sm:$0xff]
    %v2532 = vld [vmem:[#allocation3 + $0x1e8] sm:$0xff]
    %v2533 = vld [vmem:[#allocation3 + $0x1f0] sm:$0xff]
    %v2534 = vld [vmem:[#allocation3 + $0x1f8] sm:$0xff]
    %v2535 = vld [vmem:[#allocation3 + $0x200] sm:$0xff]
    %v2536 = vld [vmem:[#allocation3 + $0x208] sm:$0xff]
    %v2537 = vld [vmem:[#allocation3 + $0x210] sm:$0xff]
    %v2538 = vld [vmem:[#allocation3 + $0x218] sm:$0xff]
    %v2539 = vld [vmem:[#allocation3 + $0x220] sm:$0xff]
    %v2540 = vld [vmem:[#allocation3 + $0x228] sm:$0xff]
    %v2541 = vld [vmem:[#allocation3 + $0x230] sm:$0xff]
    %v2542 = vld [vmem:[#allocation3 + $0x238] sm:$0xff]
    %v2543 = vld [vmem:[#allocation3 + $0x240] sm:$0xff]
    %v2544 = vld [vmem:[#allocation3 + $0x248] sm:$0xff]
    %v2545 = vld [vmem:[#allocation3 + $0x250] sm:$0xff]
    %v2546 = vld [vmem:[#allocation3 + $0x258] sm:$0xff]
    %v2547 = vld [vmem:[#allocation3 + $0x260] sm:$0xff]
    %v2548 = vld [vmem:[#allocation3 + $0x268] sm:$0xff]
    %v2549 = vld [vmem:[#allocation3 + $0x270] sm:$0xff]
    %v2550 = vld [vmem:[#allocation3 + $0x278] sm:$0xff]
    %v2551 = vld [vmem:[#allocation3 + $0x280] sm:$0xff]
    %v2552 = vld [vmem:[#allocation3 + $0x288] sm:$0xff]
    %v2553 = vld [vmem:[#allocation3 + $0x290] sm:$0xff]
    %v2554 = vld [vmem:[#allocation3 + $0x298] sm:$0xff]
    %v2555 = vld [vmem:[#allocation3 + $0x2a0] sm:$0xff]
    %v2556 = vld [vmem:[#allocation3 + $0x2a8] sm:$0xff]
    %v2557 = vld [vmem:[#allocation3 + $0x2b0] sm:$0xff]
    %v2558 = vld [vmem:[#allocation3 + $0x2b8] sm:$0xff]
    %v2559 = vld [vmem:[#allocation3 + $0x2c0] sm:$0xff]
    %v2560 = vld [vmem:[#allocation3 + $0x2c8] sm:$0xff]
    %v2561 = vld [vmem:[#allocation3 + $0x2d0] sm:$0xff]
    %v2562 = vld [vmem:[#allocation3 + $0x2d8] sm:$0xff]
    %v2563 = vld [vmem:[#allocation3 + $0x2e0] sm:$0xff]
    %v2564 = vld [vmem:[#allocation3 + $0x2e8] sm:$0xff]
    %v2565 = vld [vmem:[#allocation3 + $0x2f0] sm:$0xff]
    %v2566 = vld [vmem:[#allocation3 + $0x2f8] sm:$0xff]
    %v2567 = vld [vmem:[#allocation3 + $0x300] sm:$0xff]
    %v2568 = vld [vmem:[#allocation3 + $0x308] sm:$0xff]
    %v2569 = vld [vmem:[#allocation3 + $0x310] sm:$0xff]
    %v2570 = vld [vmem:[#allocation3 + $0x318] sm:$0xff]
    %v2571 = vld [vmem:[#allocation3 + $0x320] sm:$0xff]
    %v2572 = vld [vmem:[#allocation3 + $0x328] sm:$0xff]
    %v2573 = vld [vmem:[#allocation3 + $0x330] sm:$0xff]
    %v2574 = vld [vmem:[#allocation3 + $0x338] sm:$0xff]
    %v2575 = vld [vmem:[#allocation3 + $0x340] sm:$0xff]
    %v2576 = vld [vmem:[#allocation3 + $0x348] sm:$0xff]
    %v2577 = vld [vmem:[#allocation3 + $0x350] sm:$0xff]
    %v2578 = vld [vmem:[#allocation3 + $0x358] sm:$0xff]
    %v2579 = vld [vmem:[#allocation3 + $0x360] sm:$0xff]
    %v2580 = vld [vmem:[#allocation3 + $0x368] sm:$0xff]
    %v2581 = vld [vmem:[#allocation3 + $0x370] sm:$0xff]
    %v2582 = vld [vmem:[#allocation3 + $0x378] sm:$0xff]
    %v2583 = vld [vmem:[#allocation3 + $0x380] sm:$0xff]
    %v2584 = vld [vmem:[#allocation3 + $0x388] sm:$0xff]
    %v2585 = vld [vmem:[#allocation3 + $0x390] sm:$0xff]
    %v2586 = vld [vmem:[#allocation3 + $0x398] sm:$0xff]
    %v2587 = vld [vmem:[#allocation3 + $0x3a0] sm:$0xff]
    %v2588 = vld [vmem:[#allocation3 + $0x3a8] sm:$0xff]
    %v2589 = vld [vmem:[#allocation3 + $0x3b0] sm:$0xff]
    %v2590 = vld [vmem:[#allocation3 + $0x3b8] sm:$0xff]
    %v2591 = vld [vmem:[#allocation3 + $0x3c0] sm:$0xff]
    %v2592 = vld [vmem:[#allocation3 + $0x3c8] sm:$0xff]
    %v2593 = vld [vmem:[#allocation3 + $0x3d0] sm:$0xff]
    %v2594 = vld [vmem:[#allocation3 + $0x3d8] sm:$0xff]
    %v2595 = vld [vmem:[#allocation3 + $0x3e0] sm:$0xff]
    %v2596 = vld [vmem:[#allocation3 + $0x3e8] sm:$0xff]
    %v2597 = vld [vmem:[#allocation3 + $0x3f0] sm:$0xff]
    %v2598 = vld [vmem:[#allocation3 + $0x3f8] sm:$0xff]
    %v2599 = vld [vmem:[#allocation3 + $0x400] sm:$0xff]
    %v2600 = vld [vmem:[#allocation3 + $0x408] sm:$0xff]
    %v2601 = vld [vmem:[#allocation3 + $0x410] sm:$0xff]
    %v2602 = vld [vmem:[#allocation3 + $0x418] sm:$0xff]
    %v2603 = vld [vmem:[#allocation3 + $0x420] sm:$0xff]
    %v2604 = vld [vmem:[#allocation3 + $0x428] sm:$0xff]
    %v2605 = vld [vmem:[#allocation3 + $0x430] sm:$0xff]
    %v2606 = vld [vmem:[#allocation3 + $0x438] sm:$0xff]
    %v2607 = vld [vmem:[#allocation3 + $0x440] sm:$0xff]
    %v2608 = vld [vmem:[#allocation3 + $0x448] sm:$0xff]
    %v2609 = vld [vmem:[#allocation3 + $0x450] sm:$0xff]
    %v2610 = vld [vmem:[#allocation3 + $0x458] sm:$0xff]
    %v2611 = vld [vmem:[#allocation3 + $0x460] sm:$0xff]
    %v2612 = vld [vmem:[#allocation3 + $0x468] sm:$0xff]
    %v2613 = vld [vmem:[#allocation3 + $0x470] sm:$0xff]
    %v2614 = vld [vmem:[#allocation3 + $0x478] sm:$0xff]
    %v2615 = vld [vmem:[#allocation3 + $0x480] sm:$0xff]
    %v2616 = vld [vmem:[#allocation3 + $0x488] sm:$0xff]
    %v2617 = vld [vmem:[#allocation3 + $0x490] sm:$0xff]
    %v2618 = vld [vmem:[#allocation3 + $0x498] sm:$0xff]
    %v2619 = vld [vmem:[#allocation3 + $0x4a0] sm:$0xff]
    %v2620 = vld [vmem:[#allocation3 + $0x4a8] sm:$0xff]
    %v2621 = vld [vmem:[#allocation3 + $0x4b0] sm:$0xff]
    %v2622 = vld [vmem:[#allocation3 + $0x4b8] sm:$0xff]
    %v2623 = vld [vmem:[#allocation3 + $0x4c0] sm:$0xff]
    %v2624 = vld [vmem:[#allocation3 + $0x4c8] sm:$0xff]
    %v2625 = vld [vmem:[#allocation3 + $0x4d0] sm:$0xff]
    %v2626 = vld [vmem:[#allocation3 + $0x4d8] sm:$0xff]
    %v2627 = vld [vmem:[#allocation3 + $0x4e0] sm:$0xff]
    %v2628 = vld [vmem:[#allocation3 + $0x4e8] sm:$0xff]
    %v2629 = vld [vmem:[#allocation3 + $0x4f0] sm:$0xff]
    %v2630 = vld [vmem:[#allocation3 + $0x4f8] sm:$0xff]
    %v2631 = vld [vmem:[#allocation3 + $0x500] sm:$0xff]
    %v2632 = vld [vmem:[#allocation3 + $0x508] sm:$0xff]
    %v2633 = vld [vmem:[#allocation3 + $0x510] sm:$0xff]
    %v2634 = vld [vmem:[#allocation3 + $0x518] sm:$0xff]
    %v2635 = vld [vmem:[#allocation3 + $0x520] sm:$0xff]
    %v2636 = vld [vmem:[#allocation3 + $0x528] sm:$0xff]
    %v2637 = vld [vmem:[#allocation3 + $0x530] sm:$0xff]
    %v2638 = vld [vmem:[#allocation3 + $0x538] sm:$0xff]
    %v2639 = vld [vmem:[#allocation3 + $0x540] sm:$0xff]
    %v2640 = vld [vmem:[#allocation3 + $0x548] sm:$0xff]
    %v2641 = vld [vmem:[#allocation3 + $0x550] sm:$0xff]
    %v2642 = vld [vmem:[#allocation3 + $0x558] sm:$0xff]
    %v2643 = vld [vmem:[#allocation3 + $0x560] sm:$0xff]
    %v2644 = vld [vmem:[#allocation3 + $0x568] sm:$0xff]
    %v2645 = vld [vmem:[#allocation3 + $0x570] sm:$0xff]
    %v2646 = vld [vmem:[#allocation3 + $0x578] sm:$0xff]
    %v2647 = vld [vmem:[#allocation3 + $0x580] sm:$0xff]
    %v2648 = vld [vmem:[#allocation3 + $0x588] sm:$0xff]
    %v2649 = vld [vmem:[#allocation3 + $0x590] sm:$0xff]
    %v2650 = vld [vmem:[#allocation3 + $0x598] sm:$0xff]
    %v2651 = vld [vmem:[#allocation3 + $0x5a0] sm:$0xff]
    %v2652 = vld [vmem:[#allocation3 + $0x5a8] sm:$0xff]
    %v2653 = vld [vmem:[#allocation3 + $0x5b0] sm:$0xff]
    %v2654 = vld [vmem:[#allocation3 + $0x5b8] sm:$0xff]
    %v2655 = vld [vmem:[#allocation3 + $0x5c0] sm:$0xff]
    %v2656 = vld [vmem:[#allocation3 + $0x5c8] sm:$0xff]
    %v2657 = vld [vmem:[#allocation3 + $0x5d0] sm:$0xff]
    %v2658 = vld [vmem:[#allocation3 + $0x5d8] sm:$0xff]
    %v2659 = vld [vmem:[#allocation3 + $0x5e0] sm:$0xff]
    %v2660 = vld [vmem:[#allocation3 + $0x5e8] sm:$0xff]
    %v2661 = vld [vmem:[#allocation3 + $0x5f0] sm:$0xff]
    %v2662 = vld [vmem:[#allocation3 + $0x5f8] sm:$0xff]
    %v2663 = vld [vmem:[#allocation3 + $0x600] sm:$0xff]
    %v2664 = vld [vmem:[#allocation3 + $0x608] sm:$0xff]
    %v2665 = vld [vmem:[#allocation3 + $0x610] sm:$0xff]
    %v2666 = vld [vmem:[#allocation3 + $0x618] sm:$0xff]
    %v2667 = vld [vmem:[#allocation3 + $0x620] sm:$0xff]
    %v2668 = vld [vmem:[#allocation3 + $0x628] sm:$0xff]
    %v2669 = vld [vmem:[#allocation3 + $0x630] sm:$0xff]
    %v2670 = vld [vmem:[#allocation3 + $0x638] sm:$0xff]
    %v2671 = vld [vmem:[#allocation3 + $0x640] sm:$0xff]
    %v2672 = vld [vmem:[#allocation3 + $0x648] sm:$0xff]
    %v2673 = vld [vmem:[#allocation3 + $0x650] sm:$0xff]
    %v2674 = vld [vmem:[#allocation3 + $0x658] sm:$0xff]
    %v2675 = vld [vmem:[#allocation3 + $0x660] sm:$0xff]
    %v2676 = vld [vmem:[#allocation3 + $0x668] sm:$0xff]
    %v2677 = vld [vmem:[#allocation3 + $0x670] sm:$0xff]
    %v2678 = vld [vmem:[#allocation3 + $0x678] sm:$0xff]
    %v2679 = vld [vmem:[#allocation3 + $0x680] sm:$0xff]
    %v2680 = vld [vmem:[#allocation3 + $0x688] sm:$0xff]
    %v2681 = vld [vmem:[#allocation3 + $0x690] sm:$0xff]
    %v2682 = vld [vmem:[#allocation3 + $0x698] sm:$0xff]
    %v2683 = vld [vmem:[#allocation3 + $0x6a0] sm:$0xff]
    %v2684 = vld [vmem:[#allocation3 + $0x6a8] sm:$0xff]
    %v2685 = vld [vmem:[#allocation3 + $0x6b0] sm:$0xff]
    %v2686 = vld [vmem:[#allocation3 + $0x6b8] sm:$0xff]
    %v2687 = vld [vmem:[#allocation3 + $0x6c0] sm:$0xff]
    %v2688 = vld [vmem:[#allocation3 + $0x6c8] sm:$0xff]
    %v2689 = vld [vmem:[#allocation3 + $0x6d0] sm:$0xff]
    %v2690 = vld [vmem:[#allocation3 + $0x6d8] sm:$0xff]
    %v2691 = vld [vmem:[#allocation3 + $0x6e0] sm:$0xff]
    %v2692 = vld [vmem:[#allocation3 + $0x6e8] sm:$0xff]
    %v2693 = vld [vmem:[#allocation3 + $0x6f0] sm:$0xff]
    %v2694 = vld [vmem:[#allocation3 + $0x6f8] sm:$0xff]
    %v2695 = vld [vmem:[#allocation3 + $0x700] sm:$0xff]
    %v2696 = vld [vmem:[#allocation3 + $0x708] sm:$0xff]
    %v2697 = vld [vmem:[#allocation3 + $0x710] sm:$0xff]
    %v2698 = vld [vmem:[#allocation3 + $0x718] sm:$0xff]
    %v2699 = vld [vmem:[#allocation3 + $0x720] sm:$0xff]
    %v2700 = vld [vmem:[#allocation3 + $0x728] sm:$0xff]
    %v2701 = vld [vmem:[#allocation3 + $0x730] sm:$0xff]
    %v2702 = vld [vmem:[#allocation3 + $0x738] sm:$0xff]
    %v2703 = vld [vmem:[#allocation3 + $0x740] sm:$0xff]
    %v2704 = vld [vmem:[#allocation3 + $0x748] sm:$0xff]
    %v2705 = vld [vmem:[#allocation3 + $0x750] sm:$0xff]
    %v2706 = vld [vmem:[#allocation3 + $0x758] sm:$0xff]
    %v2707 = vld [vmem:[#allocation3 + $0x760] sm:$0xff]
    %v2708 = vld [vmem:[#allocation3 + $0x768] sm:$0xff]
    %v2709 = vld [vmem:[#allocation3 + $0x770] sm:$0xff]
    %v2710 = vld [vmem:[#allocation3 + $0x778] sm:$0xff]
    %v2711 = vld [vmem:[#allocation3 + $0x780] sm:$0xff]
    %v2712 = vld [vmem:[#allocation3 + $0x788] sm:$0xff]
    %v2713 = vld [vmem:[#allocation3 + $0x790] sm:$0xff]
    %v2714 = vld [vmem:[#allocation3 + $0x798] sm:$0xff]
    %v2715 = vld [vmem:[#allocation3 + $0x7a0] sm:$0xff]
    %v2716 = vld [vmem:[#allocation3 + $0x7a8] sm:$0xff]
    %v2717 = vld [vmem:[#allocation3 + $0x7b0] sm:$0xff]
    %v2718 = vld [vmem:[#allocation3 + $0x7b8] sm:$0xff]
    %v2719 = vld [vmem:[#allocation3 + $0x7c0] sm:$0xff]
    %v2720 = vld [vmem:[#allocation3 + $0x7c8] sm:$0xff]
    %v2721 = vld [vmem:[#allocation3 + $0x7d0] sm:$0xff]
    %v2722 = vld [vmem:[#allocation3 + $0x7d8] sm:$0xff]
    %v2723 = vld [vmem:[#allocation3 + $0x7e0] sm:$0xff]
    %v2724 = vld [vmem:[#allocation3 + $0x7e8] sm:$0xff]
    %v2725 = vld [vmem:[#allocation3 + $0x7f0] sm:$0xff]
    %v2726 = vld [vmem:[#allocation3 + $0x7f8] sm:$0xff]
    %v2727 = vld [vmem:[#allocation3 + $0x800] sm:$0xff]
    %v2728 = vld [vmem:[#allocation3 + $0x808] sm:$0xff]
    %v2729 = vld [vmem:[#allocation3 + $0x810] sm:$0xff]
    %v2730 = vld [vmem:[#allocation3 + $0x818] sm:$0xff]
    %v2731 = vld [vmem:[#allocation3 + $0x820] sm:$0xff]
    %v2732 = vld [vmem:[#allocation3 + $0x828] sm:$0xff]
    %v2733 = vld [vmem:[#allocation3 + $0x830] sm:$0xff]
    %v2734 = vld [vmem:[#allocation3 + $0x838] sm:$0xff]
    %v2735 = vld [vmem:[#allocation3 + $0x840] sm:$0xff]
    %v2736 = vld [vmem:[#allocation3 + $0x848] sm:$0xff]
    %v2737 = vld [vmem:[#allocation3 + $0x850] sm:$0xff]
    %v2738 = vld [vmem:[#allocation3 + $0x858] sm:$0xff]
    %v2739 = vld [vmem:[#allocation3 + $0x860] sm:$0xff]
    %v2740 = vld [vmem:[#allocation3 + $0x868] sm:$0xff]
    %v2741 = vld [vmem:[#allocation3 + $0x870] sm:$0xff]
    %v2742 = vld [vmem:[#allocation3 + $0x878] sm:$0xff]
    %v2743 = vld [vmem:[#allocation3 + $0x880] sm:$0xff]
    %v2744 = vld [vmem:[#allocation3 + $0x888] sm:$0xff]
    %v2745 = vld [vmem:[#allocation3 + $0x890] sm:$0xff]
    %v2746 = vld [vmem:[#allocation3 + $0x898] sm:$0xff]
    %v2747 = vld [vmem:[#allocation3 + $0x8a0] sm:$0xff]
    %v2748 = vld [vmem:[#allocation3 + $0x8a8] sm:$0xff]
    %v2749 = vld [vmem:[#allocation3 + $0x8b0] sm:$0xff]
    %v2750 = vld [vmem:[#allocation3 + $0x8b8] sm:$0xff]
    %v2751 = vld [vmem:[#allocation3 + $0x8c0] sm:$0xff]
    %v2752 = vld [vmem:[#allocation3 + $0x8c8] sm:$0xff]
    %v2753 = vld [vmem:[#allocation3 + $0x8d0] sm:$0xff]
    %v2754 = vld [vmem:[#allocation3 + $0x8d8] sm:$0xff]
    %v2755 = vld [vmem:[#allocation3 + $0x8e0] sm:$0xff]
    %v2756 = vld [vmem:[#allocation3 + $0x8e8] sm:$0xff]
    %v2757 = vld [vmem:[#allocation3 + $0x8f0] sm:$0xff]
    %v2758 = vld [vmem:[#allocation3 + $0x8f8] sm:$0xff]
    %v2759 = vld [vmem:[#allocation3 + $0x900] sm:$0xff]
    %v2760 = vld [vmem:[#allocation3 + $0x908] sm:$0xff]
    %v2761 = vld [vmem:[#allocation3 + $0x910] sm:$0xff]
    %v2762 = vld [vmem:[#allocation3 + $0x918] sm:$0xff]
    %v2763 = vld [vmem:[#allocation3 + $0x920] sm:$0xff]
    %v2764 = vld [vmem:[#allocation3 + $0x928] sm:$0xff]
    %v2765 = vld [vmem:[#allocation3 + $0x930] sm:$0xff]
    %v2766 = vld [vmem:[#allocation3 + $0x938] sm:$0xff]
    %v2767 = vld [vmem:[#allocation3 + $0x940] sm:$0xff]
    %v2768 = vld [vmem:[#allocation3 + $0x948] sm:$0xff]
    %v2769 = vld [vmem:[#allocation3 + $0x950] sm:$0xff]
    %v2770 = vld [vmem:[#allocation3 + $0x958] sm:$0xff]
    %v2771 = vld [vmem:[#allocation3 + $0x960] sm:$0xff]
    %v2772 = vld [vmem:[#allocation3 + $0x968] sm:$0xff]
    %v2773 = vld [vmem:[#allocation3 + $0x970] sm:$0xff]
    %v2774 = vld [vmem:[#allocation3 + $0x978] sm:$0xff]
    %v2775 = vld [vmem:[#allocation3 + $0x980] sm:$0xff]
    %v2776 = vld [vmem:[#allocation3 + $0x988] sm:$0xff]
    %v2777 = vld [vmem:[#allocation3 + $0x990] sm:$0xff]
    %v2778 = vld [vmem:[#allocation3 + $0x998] sm:$0xff]
    %v2779 = vld [vmem:[#allocation3 + $0x9a0] sm:$0xff]
    %v2780 = vld [vmem:[#allocation3 + $0x9a8] sm:$0xff]
    %v2781 = vld [vmem:[#allocation3 + $0x9b0] sm:$0xff]
    %v2782 = vld [vmem:[#allocation3 + $0x9b8] sm:$0xff]
    %v2783 = vld [vmem:[#allocation3 + $0x9c0] sm:$0xff]
    %v2784 = vld [vmem:[#allocation3 + $0x9c8] sm:$0xff]
    %v2785 = vld [vmem:[#allocation3 + $0x9d0] sm:$0xff]
    %v2786 = vld [vmem:[#allocation3 + $0x9d8] sm:$0xff]
    %v2787 = vld [vmem:[#allocation3 + $0x9e0] sm:$0xff]
    %v2788 = vld [vmem:[#allocation3 + $0x9e8] sm:$0xff]
    %v2789 = vld [vmem:[#allocation3 + $0x9f0] sm:$0xff]
    %v2790 = vld [vmem:[#allocation3 + $0x9f8] sm:$0xff]
    %v2791 = vld [vmem:[#allocation3 + $0xa00] sm:$0xff]
    %v2792 = vld [vmem:[#allocation3 + $0xa08] sm:$0xff]
    %v2793 = vld [vmem:[#allocation3 + $0xa10] sm:$0xff]
    %v2794 = vld [vmem:[#allocation3 + $0xa18] sm:$0xff]
    %v2795 = vld [vmem:[#allocation3 + $0xa20] sm:$0xff]
    %v2796 = vld [vmem:[#allocation3 + $0xa28] sm:$0xff]
    %v2797 = vld [vmem:[#allocation3 + $0xa30] sm:$0xff]
    %v2798 = vld [vmem:[#allocation3 + $0xa38] sm:$0xff]
    %v2799 = vld [vmem:[#allocation3 + $0xa40] sm:$0xff]
    %v2800 = vld [vmem:[#allocation3 + $0xa48] sm:$0xff]
    %v2801 = vld [vmem:[#allocation3 + $0xa50] sm:$0xff]
    %v2802 = vld [vmem:[#allocation3 + $0xa58] sm:$0xff]
    %v2803 = vld [vmem:[#allocation3 + $0xa60] sm:$0xff]
    %v2804 = vld [vmem:[#allocation3 + $0xa68] sm:$0xff]
    %v2805 = vld [vmem:[#allocation3 + $0xa70] sm:$0xff]
    %v2806 = vld [vmem:[#allocation3 + $0xa78] sm:$0xff]
    %v2807 = vld [vmem:[#allocation3 + $0xa80] sm:$0xff]
    %v2808 = vld [vmem:[#allocation3 + $0xa88] sm:$0xff]
    %v2809 = vld [vmem:[#allocation3 + $0xa90] sm:$0xff]
    %v2810 = vld [vmem:[#allocation3 + $0xa98] sm:$0xff]
    %v2811 = vld [vmem:[#allocation3 + $0xaa0] sm:$0xff]
    %v2812 = vld [vmem:[#allocation3 + $0xaa8] sm:$0xff]
    %v2813 = vld [vmem:[#allocation3 + $0xab0] sm:$0xff]
    %v2814 = vld [vmem:[#allocation3 + $0xab8] sm:$0xff]
    %v2815 = vld [vmem:[#allocation3 + $0xac0] sm:$0xff]
    %v2816 = vld [vmem:[#allocation3 + $0xac8] sm:$0xff]
    %v2817 = vld [vmem:[#allocation3 + $0xad0] sm:$0xff]
    %v2818 = vld [vmem:[#allocation3 + $0xad8] sm:$0xff]
    %v2819 = vld [vmem:[#allocation3 + $0xae0] sm:$0xff]
    %v2820 = vld [vmem:[#allocation3 + $0xae8] sm:$0xff]
    %v2821 = vld [vmem:[#allocation3 + $0xaf0] sm:$0xff]
    %v2822 = vld [vmem:[#allocation3 + $0xaf8] sm:$0xff]
    %v2823 = vld [vmem:[#allocation3 + $0xb00] sm:$0xff]
    %v2824 = vld [vmem:[#allocation3 + $0xb08] sm:$0xff]
    %v2825 = vld [vmem:[#allocation3 + $0xb10] sm:$0xff]
    %v2826 = vld [vmem:[#allocation3 + $0xb18] sm:$0xff]
    %v2827 = vld [vmem:[#allocation3 + $0xb20] sm:$0xff]
    %v2828 = vld [vmem:[#allocation3 + $0xb28] sm:$0xff]
    %v2829 = vld [vmem:[#allocation3 + $0xb30] sm:$0xff]
    %v2830 = vld [vmem:[#allocation3 + $0xb38] sm:$0xff]
    %v2831 = vld [vmem:[#allocation3 + $0xb40] sm:$0xff]
    %v2832 = vld [vmem:[#allocation3 + $0xb48] sm:$0xff]
    %v2833 = vld [vmem:[#allocation3 + $0xb50] sm:$0xff]
    %v2834 = vld [vmem:[#allocation3 + $0xb58] sm:$0xff]
    %v2835 = vld [vmem:[#allocation3 + $0xb60] sm:$0xff]
    %v2836 = vld [vmem:[#allocation3 + $0xb68] sm:$0xff]
    %v2837 = vld [vmem:[#allocation3 + $0xb70] sm:$0xff]
    %v2838 = vld [vmem:[#allocation3 + $0xb78] sm:$0xff]
    %v2839 = vld [vmem:[#allocation3 + $0xb80] sm:$0xff]
    %v2840 = vld [vmem:[#allocation3 + $0xb88] sm:$0xff]
    %v2841 = vld [vmem:[#allocation3 + $0xb90] sm:$0xff]
    %v2842 = vld [vmem:[#allocation3 + $0xb98] sm:$0xff]
    %v2843 = vld [vmem:[#allocation3 + $0xba0] sm:$0xff]
    %v2844 = vld [vmem:[#allocation3 + $0xba8] sm:$0xff]
    %v2845 = vld [vmem:[#allocation3 + $0xbb0] sm:$0xff]
    %v2846 = vld [vmem:[#allocation3 + $0xbb8] sm:$0xff]
    %v2847 = vld [vmem:[#allocation3 + $0xbc0] sm:$0xff]
    %v2848 = vld [vmem:[#allocation3 + $0xbc8] sm:$0xff]
    %v2849 = vld [vmem:[#allocation3 + $0xbd0] sm:$0xff]
    %v2850 = vld [vmem:[#allocation3 + $0xbd8] sm:$0xff]
    %v2851 = vld [vmem:[#allocation3 + $0xbe0] sm:$0xff]
    %v2852 = vld [vmem:[#allocation3 + $0xbe8] sm:$0xff]
    %v2853 = vld [vmem:[#allocation3 + $0xbf0] sm:$0xff]
    %v2854 = vld [vmem:[#allocation3 + $0xbf8] sm:$0xff]
    %v2855 = vld [vmem:[#allocation3 + $0xc00] sm:$0xff]
    %v2856 = vld [vmem:[#allocation3 + $0xc08] sm:$0xff]
    %v2857 = vld [vmem:[#allocation3 + $0xc10] sm:$0xff]
    %v2858 = vld [vmem:[#allocation3 + $0xc18] sm:$0xff]
    %v2859 = vld [vmem:[#allocation3 + $0xc20] sm:$0xff]
    %v2860 = vld [vmem:[#allocation3 + $0xc28] sm:$0xff]
    %v2861 = vld [vmem:[#allocation3 + $0xc30] sm:$0xff]
    %v2862 = vld [vmem:[#allocation3 + $0xc38] sm:$0xff]
    %v2863 = vld [vmem:[#allocation3 + $0xc40] sm:$0xff]
    %v2864 = vld [vmem:[#allocation3 + $0xc48] sm:$0xff]
    %v2865 = vld [vmem:[#allocation3 + $0xc50] sm:$0xff]
    %v2866 = vld [vmem:[#allocation3 + $0xc58] sm:$0xff]
    %v2867 = vld [vmem:[#allocation3 + $0xc60] sm:$0xff]
    %v2868 = vld [vmem:[#allocation3 + $0xc68] sm:$0xff]
    %v2869 = vld [vmem:[#allocation3 + $0xc70] sm:$0xff]
    %v2870 = vld [vmem:[#allocation3 + $0xc78] sm:$0xff]
    %v2871 = vld [vmem:[#allocation3 + $0xc80] sm:$0xff]
    %v2872 = vld [vmem:[#allocation3 + $0xc88] sm:$0xff]
    %v2873 = vld [vmem:[#allocation3 + $0xc90] sm:$0xff]
    %v2874 = vld [vmem:[#allocation3 + $0xc98] sm:$0xff]
    %v2875 = vld [vmem:[#allocation3 + $0xca0] sm:$0xff]
    %v2876 = vld [vmem:[#allocation3 + $0xca8] sm:$0xff]
    %v2877 = vld [vmem:[#allocation3 + $0xcb0] sm:$0xff]
    %v2878 = vld [vmem:[#allocation3 + $0xcb8] sm:$0xff]
    %v2879 = vld [vmem:[#allocation3 + $0xcc0] sm:$0xff]
    %v2880 = vld [vmem:[#allocation3 + $0xcc8] sm:$0xff]
    %v2881 = vld [vmem:[#allocation3 + $0xcd0] sm:$0xff]
    %v2882 = vld [vmem:[#allocation3 + $0xcd8] sm:$0xff]
    %v2883 = vld [vmem:[#allocation3 + $0xce0] sm:$0xff]
    %v2884 = vld [vmem:[#allocation3 + $0xce8] sm:$0xff]
    %v2885 = vld [vmem:[#allocation3 + $0xcf0] sm:$0xff]
    %v2886 = vld [vmem:[#allocation3 + $0xcf8] sm:$0xff]
    %v2887 = vld [vmem:[#allocation3 + $0xd00] sm:$0xff]
    %v2888 = vld [vmem:[#allocation3 + $0xd08] sm:$0xff]
    %v2889 = vld [vmem:[#allocation3 + $0xd10] sm:$0xff]
    %v2890 = vld [vmem:[#allocation3 + $0xd18] sm:$0xff]
    %v2891 = vld [vmem:[#allocation3 + $0xd20] sm:$0xff]
    %v2892 = vld [vmem:[#allocation3 + $0xd28] sm:$0xff]
    %v2893 = vld [vmem:[#allocation3 + $0xd30] sm:$0xff]
    %v2894 = vld [vmem:[#allocation3 + $0xd38] sm:$0xff]
    %v2895 = vld [vmem:[#allocation3 + $0xd40] sm:$0xff]
    %v2896 = vld [vmem:[#allocation3 + $0xd48] sm:$0xff]
    %v2897 = vld [vmem:[#allocation3 + $0xd50] sm:$0xff]
    %v2898 = vld [vmem:[#allocation3 + $0xd58] sm:$0xff]
    %v2899 = vld [vmem:[#allocation3 + $0xd60] sm:$0xff]
    %v2900 = vld [vmem:[#allocation3 + $0xd68] sm:$0xff]
    %v2901 = vld [vmem:[#allocation3 + $0xd70] sm:$0xff]
    %v2902 = vld [vmem:[#allocation3 + $0xd78] sm:$0xff]
    %v2903 = vld [vmem:[#allocation3 + $0xd80] sm:$0xff]
    %v2904 = vld [vmem:[#allocation3 + $0xd88] sm:$0xff]
    %v2905 = vld [vmem:[#allocation3 + $0xd90] sm:$0xff]
    %v2906 = vld [vmem:[#allocation3 + $0xd98] sm:$0xff]
    %v2907 = vld [vmem:[#allocation3 + $0xda0] sm:$0xff]
    %v2908 = vld [vmem:[#allocation3 + $0xda8] sm:$0xff]
    %v2909 = vld [vmem:[#allocation3 + $0xdb0] sm:$0xff]
    %v2910 = vld [vmem:[#allocation3 + $0xdb8] sm:$0xff]
    %v2911 = vld [vmem:[#allocation3 + $0xdc0] sm:$0xff]
    %v2912 = vld [vmem:[#allocation3 + $0xdc8] sm:$0xff]
    %v2913 = vld [vmem:[#allocation3 + $0xdd0] sm:$0xff]
    %v2914 = vld [vmem:[#allocation3 + $0xdd8] sm:$0xff]
    %v2915 = vld [vmem:[#allocation3 + $0xde0] sm:$0xff]
    %v2916 = vld [vmem:[#allocation3 + $0xde8] sm:$0xff]
    %v2917 = vld [vmem:[#allocation3 + $0xdf0] sm:$0xff]
    %v2918 = vld [vmem:[#allocation3 + $0xdf8] sm:$0xff]
    %v2919 = vld [vmem:[#allocation3 + $0xe00] sm:$0xff]
    %v2920 = vld [vmem:[#allocation3 + $0xe08] sm:$0xff]
    %v2921 = vld [vmem:[#allocation3 + $0xe10] sm:$0xff]
    %v2922 = vld [vmem:[#allocation3 + $0xe18] sm:$0xff]
    %v2923 = vld [vmem:[#allocation3 + $0xe20] sm:$0xff]
    %v2924 = vld [vmem:[#allocation3 + $0xe28] sm:$0xff]
    %v2925 = vld [vmem:[#allocation3 + $0xe30] sm:$0xff]
    %v2926 = vld [vmem:[#allocation3 + $0xe38] sm:$0xff]
    %v2927 = vld [vmem:[#allocation3 + $0xe40] sm:$0xff]
    %v2928 = vld [vmem:[#allocation3 + $0xe48] sm:$0xff]
    %v2929 = vld [vmem:[#allocation3 + $0xe50] sm:$0xff]
    %v2930 = vld [vmem:[#allocation3 + $0xe58] sm:$0xff]
    %v2931 = vld [vmem:[#allocation3 + $0xe60] sm:$0xff]
    %v2932 = vld [vmem:[#allocation3 + $0xe68] sm:$0xff]
    %v2933 = vld [vmem:[#allocation3 + $0xe70] sm:$0xff]
    %v2934 = vld [vmem:[#allocation3 + $0xe78] sm:$0xff]
    %v2935 = vld [vmem:[#allocation3 + $0xe80] sm:$0xff]
    %v2936 = vld [vmem:[#allocation3 + $0xe88] sm:$0xff]
    %v2937 = vld [vmem:[#allocation3 + $0xe90] sm:$0xff]
    %v2938 = vld [vmem:[#allocation3 + $0xe98] sm:$0xff]
    %v2939 = vld [vmem:[#allocation3 + $0xea0] sm:$0xff]
    %v2940 = vld [vmem:[#allocation3 + $0xea8] sm:$0xff]
    %v2941 = vld [vmem:[#allocation3 + $0xeb0] sm:$0xff]
    %v2942 = vld [vmem:[#allocation3 + $0xeb8] sm:$0xff]
    %v2943 = vld [vmem:[#allocation3 + $0xec0] sm:$0xff]
    %v2944 = vld [vmem:[#allocation3 + $0xec8] sm:$0xff]
    %v2945 = vld [vmem:[#allocation3 + $0xed0] sm:$0xff]
    %v2946 = vld [vmem:[#allocation3 + $0xed8] sm:$0xff]
    %v2947 = vld [vmem:[#allocation3 + $0xee0] sm:$0xff]
    %v2948 = vld [vmem:[#allocation3 + $0xee8] sm:$0xff]
    %v2949 = vld [vmem:[#allocation3 + $0xef0] sm:$0xff]
    %v2950 = vld [vmem:[#allocation3 + $0xef8] sm:$0xff]
    %v2951 = vld [vmem:[#allocation3 + $0xf00] sm:$0xff]
    %v2952 = vld [vmem:[#allocation3 + $0xf08] sm:$0xff]
    %v2953 = vld [vmem:[#allocation3 + $0xf10] sm:$0xff]
    %v2954 = vld [vmem:[#allocation3 + $0xf18] sm:$0xff]
    %v2955 = vld [vmem:[#allocation3 + $0xf20] sm:$0xff]
    %v2956 = vld [vmem:[#allocation3 + $0xf28] sm:$0xff]
    %v2957 = vld [vmem:[#allocation3 + $0xf30] sm:$0xff]
    %v2958 = vld [vmem:[#allocation3 + $0xf38] sm:$0xff]
    %v2959 = vld [vmem:[#allocation3 + $0xf40] sm:$0xff]
    %v2960 = vld [vmem:[#allocation3 + $0xf48] sm:$0xff]
    %v2961 = vld [vmem:[#allocation3 + $0xf50] sm:$0xff]
    %v2962 = vld [vmem:[#allocation3 + $0xf58] sm:$0xff]
    %v2963 = vld [vmem:[#allocation3 + $0xf60] sm:$0xff]
    %v2964 = vld [vmem:[#allocation3 + $0xf68] sm:$0xff]
    %v2965 = vld [vmem:[#allocation3 + $0xf70] sm:$0xff]
    %v2966 = vld [vmem:[#allocation3 + $0xf78] sm:$0xff]
    %v2967 = vld [vmem:[#allocation3 + $0xf80] sm:$0xff]
    %v2968 = vld [vmem:[#allocation3 + $0xf88] sm:$0xff]
    %v2969 = vld [vmem:[#allocation3 + $0xf90] sm:$0xff]
    %v2970 = vld [vmem:[#allocation3 + $0xf98] sm:$0xff]
    %v2971 = vld [vmem:[#allocation3 + $0xfa0] sm:$0xff]
    %v2972 = vld [vmem:[#allocation3 + $0xfa8] sm:$0xff]
    %v2973 = vld [vmem:[#allocation3 + $0xfb0] sm:$0xff]
    %v2974 = vld [vmem:[#allocation3 + $0xfb8] sm:$0xff]
    %v2975 = vld [vmem:[#allocation3 + $0xfc0] sm:$0xff]
    %v2976 = vld [vmem:[#allocation3 + $0xfc8] sm:$0xff]
    %v2977 = vld [vmem:[#allocation3 + $0xfd0] sm:$0xff]
    %v2978 = vld [vmem:[#allocation3 + $0xfd8] sm:$0xff]
    %v2979 = vld [vmem:[#allocation3 + $0xfe0] sm:$0xff]
    %v2980 = vld [vmem:[#allocation3 + $0xfe8] sm:$0xff]
    %v2981 = vld [vmem:[#allocation3 + $0xff0] sm:$0xff]
    %v2982 = vld [vmem:[#allocation3 + $0xff8] sm:$0xff]
    %v3495 = vunpack.c.l.b16 %v2471
    %v3496 = vunpack.c.h.b16 %v2471
    %v3497 = vunpack.c.l.b16 %v2472
    %v3498 = vunpack.c.h.b16 %v2472
    %v3499 = vunpack.c.l.b16 %v2473
    %v3500 = vunpack.c.h.b16 %v2473
    %v3501 = vunpack.c.l.b16 %v2474
    %v3502 = vunpack.c.h.b16 %v2474
    %v3503 = vunpack.c.l.b16 %v2475
    %v3504 = vunpack.c.h.b16 %v2475
    %v3505 = vunpack.c.l.b16 %v2476
    %v3506 = vunpack.c.h.b16 %v2476
    %v3507 = vunpack.c.l.b16 %v2477
    %v3508 = vunpack.c.h.b16 %v2477
    %v3509 = vunpack.c.l.b16 %v2478
    %v3510 = vunpack.c.h.b16 %v2478
    %v3511 = vunpack.c.l.b16 %v2479
    %v3512 = vunpack.c.h.b16 %v2479
    %v3513 = vunpack.c.l.b16 %v2480
    %v3514 = vunpack.c.h.b16 %v2480
    %v3515 = vunpack.c.l.b16 %v2481
    %v3516 = vunpack.c.h.b16 %v2481
    %v3517 = vunpack.c.l.b16 %v2482
    %v3518 = vunpack.c.h.b16 %v2482
    %v3519 = vunpack.c.l.b16 %v2483
    %v3520 = vunpack.c.h.b16 %v2483
    %v3521 = vunpack.c.l.b16 %v2484
    %v3522 = vunpack.c.h.b16 %v2484
    %v3523 = vunpack.c.l.b16 %v2485
    %v3524 = vunpack.c.h.b16 %v2485
    %v3525 = vunpack.c.l.b16 %v2486
    %v3526 = vunpack.c.h.b16 %v2486
    %v3527 = vunpack.c.l.b16 %v2487
    %v3528 = vunpack.c.h.b16 %v2487
    %v3529 = vunpack.c.l.b16 %v2488
    %v3530 = vunpack.c.h.b16 %v2488
    %v3531 = vunpack.c.l.b16 %v2489
    %v3532 = vunpack.c.h.b16 %v2489
    %v3533 = vunpack.c.l.b16 %v2490
    %v3534 = vunpack.c.h.b16 %v2490
    %v3535 = vunpack.c.l.b16 %v2491
    %v3536 = vunpack.c.h.b16 %v2491
    %v3537 = vunpack.c.l.b16 %v2492
    %v3538 = vunpack.c.h.b16 %v2492
    %v3539 = vunpack.c.l.b16 %v2493
    %v3540 = vunpack.c.h.b16 %v2493
    %v3541 = vunpack.c.l.b16 %v2494
    %v3542 = vunpack.c.h.b16 %v2494
    %v3543 = vunpack.c.l.b16 %v2495
    %v3544 = vunpack.c.h.b16 %v2495
    %v3545 = vunpack.c.l.b16 %v2496
    %v3546 = vunpack.c.h.b16 %v2496
    %v3547 = vunpack.c.l.b16 %v2497
    %v3548 = vunpack.c.h.b16 %v2497
    %v3549 = vunpack.c.l.b16 %v2498
    %v3550 = vunpack.c.h.b16 %v2498
    %v3551 = vunpack.c.l.b16 %v2499
    %v3552 = vunpack.c.h.b16 %v2499
    %v3553 = vunpack.c.l.b16 %v2500
    %v3554 = vunpack.c.h.b16 %v2500
    %v3555 = vunpack.c.l.b16 %v2501
    %v3556 = vunpack.c.h.b16 %v2501
    %v3557 = vunpack.c.l.b16 %v2502
    %v3558 = vunpack.c.h.b16 %v2502
    %v3559 = vunpack.c.l.b16 %v2503
    %v3560 = vunpack.c.h.b16 %v2503
    %v3561 = vunpack.c.l.b16 %v2504
    %v3562 = vunpack.c.h.b16 %v2504
    %v3563 = vunpack.c.l.b16 %v2505
    %v3564 = vunpack.c.h.b16 %v2505
    %v3565 = vunpack.c.l.b16 %v2506
    %v3566 = vunpack.c.h.b16 %v2506
    %v3567 = vunpack.c.l.b16 %v2507
    %v3568 = vunpack.c.h.b16 %v2507
    %v3569 = vunpack.c.l.b16 %v2508
    %v3570 = vunpack.c.h.b16 %v2508
    %v3571 = vunpack.c.l.b16 %v2509
    %v3572 = vunpack.c.h.b16 %v2509
    %v3573 = vunpack.c.l.b16 %v2510
    %v3574 = vunpack.c.h.b16 %v2510
    %v3575 = vunpack.c.l.b16 %v2511
    %v3576 = vunpack.c.h.b16 %v2511
    %v3577 = vunpack.c.l.b16 %v2512
    %v3578 = vunpack.c.h.b16 %v2512
    %v3579 = vunpack.c.l.b16 %v2513
    %v3580 = vunpack.c.h.b16 %v2513
    %v3581 = vunpack.c.l.b16 %v2514
    %v3582 = vunpack.c.h.b16 %v2514
    %v3583 = vunpack.c.l.b16 %v2515
    %v3584 = vunpack.c.h.b16 %v2515
    %v3585 = vunpack.c.l.b16 %v2516
    %v3586 = vunpack.c.h.b16 %v2516
    %v3587 = vunpack.c.l.b16 %v2517
    %v3588 = vunpack.c.h.b16 %v2517
    %v3589 = vunpack.c.l.b16 %v2518
    %v3590 = vunpack.c.h.b16 %v2518
    %v3591 = vunpack.c.l.b16 %v2519
    %v3592 = vunpack.c.h.b16 %v2519
    %v3593 = vunpack.c.l.b16 %v2520
    %v3594 = vunpack.c.h.b16 %v2520
    %v3595 = vunpack.c.l.b16 %v2521
    %v3596 = vunpack.c.h.b16 %v2521
    %v3597 = vunpack.c.l.b16 %v2522
    %v3598 = vunpack.c.h.b16 %v2522
    %v3599 = vunpack.c.l.b16 %v2523
    %v3600 = vunpack.c.h.b16 %v2523
    %v3601 = vunpack.c.l.b16 %v2524
    %v3602 = vunpack.c.h.b16 %v2524
    %v3603 = vunpack.c.l.b16 %v2525
    %v3604 = vunpack.c.h.b16 %v2525
    %v3605 = vunpack.c.l.b16 %v2526
    %v3606 = vunpack.c.h.b16 %v2526
    %v3607 = vunpack.c.l.b16 %v2527
    %v3608 = vunpack.c.h.b16 %v2527
    %v3609 = vunpack.c.l.b16 %v2528
    %v3610 = vunpack.c.h.b16 %v2528
    %v3611 = vunpack.c.l.b16 %v2529
    %v3612 = vunpack.c.h.b16 %v2529
    %v3613 = vunpack.c.l.b16 %v2530
    %v3614 = vunpack.c.h.b16 %v2530
    %v3615 = vunpack.c.l.b16 %v2531
    %v3616 = vunpack.c.h.b16 %v2531
    %v3617 = vunpack.c.l.b16 %v2532
    %v3618 = vunpack.c.h.b16 %v2532
    %v3619 = vunpack.c.l.b16 %v2533
    %v3620 = vunpack.c.h.b16 %v2533
    %v3621 = vunpack.c.l.b16 %v2534
    %v3622 = vunpack.c.h.b16 %v2534
    %v3623 = vunpack.c.l.b16 %v2535
    %v3624 = vunpack.c.h.b16 %v2535
    %v3625 = vunpack.c.l.b16 %v2536
    %v3626 = vunpack.c.h.b16 %v2536
    %v3627 = vunpack.c.l.b16 %v2537
    %v3628 = vunpack.c.h.b16 %v2537
    %v3629 = vunpack.c.l.b16 %v2538
    %v3630 = vunpack.c.h.b16 %v2538
    %v3631 = vunpack.c.l.b16 %v2539
    %v3632 = vunpack.c.h.b16 %v2539
    %v3633 = vunpack.c.l.b16 %v2540
    %v3634 = vunpack.c.h.b16 %v2540
    %v3635 = vunpack.c.l.b16 %v2541
    %v3636 = vunpack.c.h.b16 %v2541
    %v3637 = vunpack.c.l.b16 %v2542
    %v3638 = vunpack.c.h.b16 %v2542
    %v3639 = vunpack.c.l.b16 %v2543
    %v3640 = vunpack.c.h.b16 %v2543
    %v3641 = vunpack.c.l.b16 %v2544
    %v3642 = vunpack.c.h.b16 %v2544
    %v3643 = vunpack.c.l.b16 %v2545
    %v3644 = vunpack.c.h.b16 %v2545
    %v3645 = vunpack.c.l.b16 %v2546
    %v3646 = vunpack.c.h.b16 %v2546
    %v3647 = vunpack.c.l.b16 %v2547
    %v3648 = vunpack.c.h.b16 %v2547
    %v3649 = vunpack.c.l.b16 %v2548
    %v3650 = vunpack.c.h.b16 %v2548
    %v3651 = vunpack.c.l.b16 %v2549
    %v3652 = vunpack.c.h.b16 %v2549
    %v3653 = vunpack.c.l.b16 %v2550
    %v3654 = vunpack.c.h.b16 %v2550
    %v3655 = vunpack.c.l.b16 %v2551
    %v3656 = vunpack.c.h.b16 %v2551
    %v3657 = vunpack.c.l.b16 %v2552
    %v3658 = vunpack.c.h.b16 %v2552
    %v3659 = vunpack.c.l.b16 %v2553
    %v3660 = vunpack.c.h.b16 %v2553
    %v3661 = vunpack.c.l.b16 %v2554
    %v3662 = vunpack.c.h.b16 %v2554
    %v3663 = vunpack.c.l.b16 %v2555
    %v3664 = vunpack.c.h.b16 %v2555
    %v3665 = vunpack.c.l.b16 %v2556
    %v3666 = vunpack.c.h.b16 %v2556
    %v3667 = vunpack.c.l.b16 %v2557
    %v3668 = vunpack.c.h.b16 %v2557
    %v3669 = vunpack.c.l.b16 %v2558
    %v3670 = vunpack.c.h.b16 %v2558
    %v3671 = vunpack.c.l.b16 %v2559
    %v3672 = vunpack.c.h.b16 %v2559
    %v3673 = vunpack.c.l.b16 %v2560
    %v3674 = vunpack.c.h.b16 %v2560
    %v3675 = vunpack.c.l.b16 %v2561
    %v3676 = vunpack.c.h.b16 %v2561
    %v3677 = vunpack.c.l.b16 %v2562
    %v3678 = vunpack.c.h.b16 %v2562
    %v3679 = vunpack.c.l.b16 %v2563
    %v3680 = vunpack.c.h.b16 %v2563
    %v3681 = vunpack.c.l.b16 %v2564
    %v3682 = vunpack.c.h.b16 %v2564
    %v3683 = vunpack.c.l.b16 %v2565
    %v3684 = vunpack.c.h.b16 %v2565
    %v3685 = vunpack.c.l.b16 %v2566
    %v3686 = vunpack.c.h.b16 %v2566
    %v3687 = vunpack.c.l.b16 %v2567
    %v3688 = vunpack.c.h.b16 %v2567
    %v3689 = vunpack.c.l.b16 %v2568
    %v3690 = vunpack.c.h.b16 %v2568
    %v3691 = vunpack.c.l.b16 %v2569
    %v3692 = vunpack.c.h.b16 %v2569
    %v3693 = vunpack.c.l.b16 %v2570
    %v3694 = vunpack.c.h.b16 %v2570
    %v3695 = vunpack.c.l.b16 %v2571
    %v3696 = vunpack.c.h.b16 %v2571
    %v3697 = vunpack.c.l.b16 %v2572
    %v3698 = vunpack.c.h.b16 %v2572
    %v3699 = vunpack.c.l.b16 %v2573
    %v3700 = vunpack.c.h.b16 %v2573
    %v3701 = vunpack.c.l.b16 %v2574
    %v3702 = vunpack.c.h.b16 %v2574
    %v3703 = vunpack.c.l.b16 %v2575
    %v3704 = vunpack.c.h.b16 %v2575
    %v3705 = vunpack.c.l.b16 %v2576
    %v3706 = vunpack.c.h.b16 %v2576
    %v3707 = vunpack.c.l.b16 %v2577
    %v3708 = vunpack.c.h.b16 %v2577
    %v3709 = vunpack.c.l.b16 %v2578
    %v3710 = vunpack.c.h.b16 %v2578
    %v3711 = vunpack.c.l.b16 %v2579
    %v3712 = vunpack.c.h.b16 %v2579
    %v3713 = vunpack.c.l.b16 %v2580
    %v3714 = vunpack.c.h.b16 %v2580
    %v3715 = vunpack.c.l.b16 %v2581
    %v3716 = vunpack.c.h.b16 %v2581
    %v3717 = vunpack.c.l.b16 %v2582
    %v3718 = vunpack.c.h.b16 %v2582
    %v3719 = vunpack.c.l.b16 %v2583
    %v3720 = vunpack.c.h.b16 %v2583
    %v3721 = vunpack.c.l.b16 %v2584
    %v3722 = vunpack.c.h.b16 %v2584
    %v3723 = vunpack.c.l.b16 %v2585
    %v3724 = vunpack.c.h.b16 %v2585
    %v3725 = vunpack.c.l.b16 %v2586
    %v3726 = vunpack.c.h.b16 %v2586
    %v3727 = vunpack.c.l.b16 %v2587
    %v3728 = vunpack.c.h.b16 %v2587
    %v3729 = vunpack.c.l.b16 %v2588
    %v3730 = vunpack.c.h.b16 %v2588
    %v3731 = vunpack.c.l.b16 %v2589
    %v3732 = vunpack.c.h.b16 %v2589
    %v3733 = vunpack.c.l.b16 %v2590
    %v3734 = vunpack.c.h.b16 %v2590
    %v3735 = vunpack.c.l.b16 %v2591
    %v3736 = vunpack.c.h.b16 %v2591
    %v3737 = vunpack.c.l.b16 %v2592
    %v3738 = vunpack.c.h.b16 %v2592
    %v3739 = vunpack.c.l.b16 %v2593
    %v3740 = vunpack.c.h.b16 %v2593
    %v3741 = vunpack.c.l.b16 %v2594
    %v3742 = vunpack.c.h.b16 %v2594
    %v3743 = vunpack.c.l.b16 %v2595
    %v3744 = vunpack.c.h.b16 %v2595
    %v3745 = vunpack.c.l.b16 %v2596
    %v3746 = vunpack.c.h.b16 %v2596
    %v3747 = vunpack.c.l.b16 %v2597
    %v3748 = vunpack.c.h.b16 %v2597
    %v3749 = vunpack.c.l.b16 %v2598
    %v3750 = vunpack.c.h.b16 %v2598
    %v3751 = vunpack.c.l.b16 %v2599
    %v3752 = vunpack.c.h.b16 %v2599
    %v3753 = vunpack.c.l.b16 %v2600
    %v3754 = vunpack.c.h.b16 %v2600
    %v3755 = vunpack.c.l.b16 %v2601
    %v3756 = vunpack.c.h.b16 %v2601
    %v3757 = vunpack.c.l.b16 %v2602
    %v3758 = vunpack.c.h.b16 %v2602
    %v3759 = vunpack.c.l.b16 %v2603
    %v3760 = vunpack.c.h.b16 %v2603
    %v3761 = vunpack.c.l.b16 %v2604
    %v3762 = vunpack.c.h.b16 %v2604
    %v3763 = vunpack.c.l.b16 %v2605
    %v3764 = vunpack.c.h.b16 %v2605
    %v3765 = vunpack.c.l.b16 %v2606
    %v3766 = vunpack.c.h.b16 %v2606
    %v3767 = vunpack.c.l.b16 %v2607
    %v3768 = vunpack.c.h.b16 %v2607
    %v3769 = vunpack.c.l.b16 %v2608
    %v3770 = vunpack.c.h.b16 %v2608
    %v3771 = vunpack.c.l.b16 %v2609
    %v3772 = vunpack.c.h.b16 %v2609
    %v3773 = vunpack.c.l.b16 %v2610
    %v3774 = vunpack.c.h.b16 %v2610
    %v3775 = vunpack.c.l.b16 %v2611
    %v3776 = vunpack.c.h.b16 %v2611
    %v3777 = vunpack.c.l.b16 %v2612
    %v3778 = vunpack.c.h.b16 %v2612
    %v3779 = vunpack.c.l.b16 %v2613
    %v3780 = vunpack.c.h.b16 %v2613
    %v3781 = vunpack.c.l.b16 %v2614
    %v3782 = vunpack.c.h.b16 %v2614
    %v3783 = vunpack.c.l.b16 %v2615
    %v3784 = vunpack.c.h.b16 %v2615
    %v3785 = vunpack.c.l.b16 %v2616
    %v3786 = vunpack.c.h.b16 %v2616
    %v3787 = vunpack.c.l.b16 %v2617
    %v3788 = vunpack.c.h.b16 %v2617
    %v3789 = vunpack.c.l.b16 %v2618
    %v3790 = vunpack.c.h.b16 %v2618
    %v3791 = vunpack.c.l.b16 %v2619
    %v3792 = vunpack.c.h.b16 %v2619
    %v3793 = vunpack.c.l.b16 %v2620
    %v3794 = vunpack.c.h.b16 %v2620
    %v3795 = vunpack.c.l.b16 %v2621
    %v3796 = vunpack.c.h.b16 %v2621
    %v3797 = vunpack.c.l.b16 %v2622
    %v3798 = vunpack.c.h.b16 %v2622
    %v3799 = vunpack.c.l.b16 %v2623
    %v3800 = vunpack.c.h.b16 %v2623
    %v3801 = vunpack.c.l.b16 %v2624
    %v3802 = vunpack.c.h.b16 %v2624
    %v3803 = vunpack.c.l.b16 %v2625
    %v3804 = vunpack.c.h.b16 %v2625
    %v3805 = vunpack.c.l.b16 %v2626
    %v3806 = vunpack.c.h.b16 %v2626
    %v3807 = vunpack.c.l.b16 %v2627
    %v3808 = vunpack.c.h.b16 %v2627
    %v3809 = vunpack.c.l.b16 %v2628
    %v3810 = vunpack.c.h.b16 %v2628
    %v3811 = vunpack.c.l.b16 %v2629
    %v3812 = vunpack.c.h.b16 %v2629
    %v3813 = vunpack.c.l.b16 %v2630
    %v3814 = vunpack.c.h.b16 %v2630
    %v3815 = vunpack.c.l.b16 %v2631
    %v3816 = vunpack.c.h.b16 %v2631
    %v3817 = vunpack.c.l.b16 %v2632
    %v3818 = vunpack.c.h.b16 %v2632
    %v3819 = vunpack.c.l.b16 %v2633
    %v3820 = vunpack.c.h.b16 %v2633
    %v3821 = vunpack.c.l.b16 %v2634
    %v3822 = vunpack.c.h.b16 %v2634
    %v3823 = vunpack.c.l.b16 %v2635
    %v3824 = vunpack.c.h.b16 %v2635
    %v3825 = vunpack.c.l.b16 %v2636
    %v3826 = vunpack.c.h.b16 %v2636
    %v3827 = vunpack.c.l.b16 %v2637
    %v3828 = vunpack.c.h.b16 %v2637
    %v3829 = vunpack.c.l.b16 %v2638
    %v3830 = vunpack.c.h.b16 %v2638
    %v3831 = vunpack.c.l.b16 %v2639
    %v3832 = vunpack.c.h.b16 %v2639
    %v3833 = vunpack.c.l.b16 %v2640
    %v3834 = vunpack.c.h.b16 %v2640
    %v3835 = vunpack.c.l.b16 %v2641
    %v3836 = vunpack.c.h.b16 %v2641
    %v3837 = vunpack.c.l.b16 %v2642
    %v3838 = vunpack.c.h.b16 %v2642
    %v3839 = vunpack.c.l.b16 %v2643
    %v3840 = vunpack.c.h.b16 %v2643
    %v3841 = vunpack.c.l.b16 %v2644
    %v3842 = vunpack.c.h.b16 %v2644
    %v3843 = vunpack.c.l.b16 %v2645
    %v3844 = vunpack.c.h.b16 %v2645
    %v3845 = vunpack.c.l.b16 %v2646
    %v3846 = vunpack.c.h.b16 %v2646
    %v3847 = vunpack.c.l.b16 %v2647
    %v3848 = vunpack.c.h.b16 %v2647
    %v3849 = vunpack.c.l.b16 %v2648
    %v3850 = vunpack.c.h.b16 %v2648
    %v3851 = vunpack.c.l.b16 %v2649
    %v3852 = vunpack.c.h.b16 %v2649
    %v3853 = vunpack.c.l.b16 %v2650
    %v3854 = vunpack.c.h.b16 %v2650
    %v3855 = vunpack.c.l.b16 %v2651
    %v3856 = vunpack.c.h.b16 %v2651
    %v3857 = vunpack.c.l.b16 %v2652
    %v3858 = vunpack.c.h.b16 %v2652
    %v3859 = vunpack.c.l.b16 %v2653
    %v3860 = vunpack.c.h.b16 %v2653
    %v3861 = vunpack.c.l.b16 %v2654
    %v3862 = vunpack.c.h.b16 %v2654
    %v3863 = vunpack.c.l.b16 %v2655
    %v3864 = vunpack.c.h.b16 %v2655
    %v3865 = vunpack.c.l.b16 %v2656
    %v3866 = vunpack.c.h.b16 %v2656
    %v3867 = vunpack.c.l.b16 %v2657
    %v3868 = vunpack.c.h.b16 %v2657
    %v3869 = vunpack.c.l.b16 %v2658
    %v3870 = vunpack.c.h.b16 %v2658
    %v3871 = vunpack.c.l.b16 %v2659
    %v3872 = vunpack.c.h.b16 %v2659
    %v3873 = vunpack.c.l.b16 %v2660
    %v3874 = vunpack.c.h.b16 %v2660
    %v3875 = vunpack.c.l.b16 %v2661
    %v3876 = vunpack.c.h.b16 %v2661
    %v3877 = vunpack.c.l.b16 %v2662
    %v3878 = vunpack.c.h.b16 %v2662
    %v3879 = vunpack.c.l.b16 %v2663
    %v3880 = vunpack.c.h.b16 %v2663
    %v3881 = vunpack.c.l.b16 %v2664
    %v3882 = vunpack.c.h.b16 %v2664
    %v3883 = vunpack.c.l.b16 %v2665
    %v3884 = vunpack.c.h.b16 %v2665
    %v3885 = vunpack.c.l.b16 %v2666
    %v3886 = vunpack.c.h.b16 %v2666
    %v3887 = vunpack.c.l.b16 %v2667
    %v3888 = vunpack.c.h.b16 %v2667
    %v3889 = vunpack.c.l.b16 %v2668
    %v3890 = vunpack.c.h.b16 %v2668
    %v3891 = vunpack.c.l.b16 %v2669
    %v3892 = vunpack.c.h.b16 %v2669
    %v3893 = vunpack.c.l.b16 %v2670
    %v3894 = vunpack.c.h.b16 %v2670
    %v3895 = vunpack.c.l.b16 %v2671
    %v3896 = vunpack.c.h.b16 %v2671
    %v3897 = vunpack.c.l.b16 %v2672
    %v3898 = vunpack.c.h.b16 %v2672
    %v3899 = vunpack.c.l.b16 %v2673
    %v3900 = vunpack.c.h.b16 %v2673
    %v3901 = vunpack.c.l.b16 %v2674
    %v3902 = vunpack.c.h.b16 %v2674
    %v3903 = vunpack.c.l.b16 %v2675
    %v3904 = vunpack.c.h.b16 %v2675
    %v3905 = vunpack.c.l.b16 %v2676
    %v3906 = vunpack.c.h.b16 %v2676
    %v3907 = vunpack.c.l.b16 %v2677
    %v3908 = vunpack.c.h.b16 %v2677
    %v3909 = vunpack.c.l.b16 %v2678
    %v3910 = vunpack.c.h.b16 %v2678
    %v3911 = vunpack.c.l.b16 %v2679
    %v3912 = vunpack.c.h.b16 %v2679
    %v3913 = vunpack.c.l.b16 %v2680
    %v3914 = vunpack.c.h.b16 %v2680
    %v3915 = vunpack.c.l.b16 %v2681
    %v3916 = vunpack.c.h.b16 %v2681
    %v3917 = vunpack.c.l.b16 %v2682
    %v3918 = vunpack.c.h.b16 %v2682
    %v3919 = vunpack.c.l.b16 %v2683
    %v3920 = vunpack.c.h.b16 %v2683
    %v3921 = vunpack.c.l.b16 %v2684
    %v3922 = vunpack.c.h.b16 %v2684
    %v3923 = vunpack.c.l.b16 %v2685
    %v3924 = vunpack.c.h.b16 %v2685
    %v3925 = vunpack.c.l.b16 %v2686
    %v3926 = vunpack.c.h.b16 %v2686
    %v3927 = vunpack.c.l.b16 %v2687
    %v3928 = vunpack.c.h.b16 %v2687
    %v3929 = vunpack.c.l.b16 %v2688
    %v3930 = vunpack.c.h.b16 %v2688
    %v3931 = vunpack.c.l.b16 %v2689
    %v3932 = vunpack.c.h.b16 %v2689
    %v3933 = vunpack.c.l.b16 %v2690
    %v3934 = vunpack.c.h.b16 %v2690
    %v3935 = vunpack.c.l.b16 %v2691
    %v3936 = vunpack.c.h.b16 %v2691
    %v3937 = vunpack.c.l.b16 %v2692
    %v3938 = vunpack.c.h.b16 %v2692
    %v3939 = vunpack.c.l.b16 %v2693
    %v3940 = vunpack.c.h.b16 %v2693
    %v3941 = vunpack.c.l.b16 %v2694
    %v3942 = vunpack.c.h.b16 %v2694
    %v3943 = vunpack.c.l.b16 %v2695
    %v3944 = vunpack.c.h.b16 %v2695
    %v3945 = vunpack.c.l.b16 %v2696
    %v3946 = vunpack.c.h.b16 %v2696
    %v3947 = vunpack.c.l.b16 %v2697
    %v3948 = vunpack.c.h.b16 %v2697
    %v3949 = vunpack.c.l.b16 %v2698
    %v3950 = vunpack.c.h.b16 %v2698
    %v3951 = vunpack.c.l.b16 %v2699
    %v3952 = vunpack.c.h.b16 %v2699
    %v3953 = vunpack.c.l.b16 %v2700
    %v3954 = vunpack.c.h.b16 %v2700
    %v3955 = vunpack.c.l.b16 %v2701
    %v3956 = vunpack.c.h.b16 %v2701
    %v3957 = vunpack.c.l.b16 %v2702
    %v3958 = vunpack.c.h.b16 %v2702
    %v3959 = vunpack.c.l.b16 %v2703
    %v3960 = vunpack.c.h.b16 %v2703
    %v3961 = vunpack.c.l.b16 %v2704
    %v3962 = vunpack.c.h.b16 %v2704
    %v3963 = vunpack.c.l.b16 %v2705
    %v3964 = vunpack.c.h.b16 %v2705
    %v3965 = vunpack.c.l.b16 %v2706
    %v3966 = vunpack.c.h.b16 %v2706
    %v3967 = vunpack.c.l.b16 %v2707
    %v3968 = vunpack.c.h.b16 %v2707
    %v3969 = vunpack.c.l.b16 %v2708
    %v3970 = vunpack.c.h.b16 %v2708
    %v3971 = vunpack.c.l.b16 %v2709
    %v3972 = vunpack.c.h.b16 %v2709
    %v3973 = vunpack.c.l.b16 %v2710
    %v3974 = vunpack.c.h.b16 %v2710
    %v3975 = vunpack.c.l.b16 %v2711
    %v3976 = vunpack.c.h.b16 %v2711
    %v3977 = vunpack.c.l.b16 %v2712
    %v3978 = vunpack.c.h.b16 %v2712
    %v3979 = vunpack.c.l.b16 %v2713
    %v3980 = vunpack.c.h.b16 %v2713
    %v3981 = vunpack.c.l.b16 %v2714
    %v3982 = vunpack.c.h.b16 %v2714
    %v3983 = vunpack.c.l.b16 %v2715
    %v3984 = vunpack.c.h.b16 %v2715
    %v3985 = vunpack.c.l.b16 %v2716
    %v3986 = vunpack.c.h.b16 %v2716
    %v3987 = vunpack.c.l.b16 %v2717
    %v3988 = vunpack.c.h.b16 %v2717
    %v3989 = vunpack.c.l.b16 %v2718
    %v3990 = vunpack.c.h.b16 %v2718
    %v3991 = vunpack.c.l.b16 %v2719
    %v3992 = vunpack.c.h.b16 %v2719
    %v3993 = vunpack.c.l.b16 %v2720
    %v3994 = vunpack.c.h.b16 %v2720
    %v3995 = vunpack.c.l.b16 %v2721
    %v3996 = vunpack.c.h.b16 %v2721
    %v3997 = vunpack.c.l.b16 %v2722
    %v3998 = vunpack.c.h.b16 %v2722
    %v3999 = vunpack.c.l.b16 %v2723
    %v4000 = vunpack.c.h.b16 %v2723
    %v4001 = vunpack.c.l.b16 %v2724
    %v4002 = vunpack.c.h.b16 %v2724
    %v4003 = vunpack.c.l.b16 %v2725
    %v4004 = vunpack.c.h.b16 %v2725
    %v4005 = vunpack.c.l.b16 %v2726
    %v4006 = vunpack.c.h.b16 %v2726
    %v4007 = vunpack.c.l.b16 %v2727
    %v4008 = vunpack.c.h.b16 %v2727
    %v4009 = vunpack.c.l.b16 %v2728
    %v4010 = vunpack.c.h.b16 %v2728
    %v4011 = vunpack.c.l.b16 %v2729
    %v4012 = vunpack.c.h.b16 %v2729
    %v4013 = vunpack.c.l.b16 %v2730
    %v4014 = vunpack.c.h.b16 %v2730
    %v4015 = vunpack.c.l.b16 %v2731
    %v4016 = vunpack.c.h.b16 %v2731
    %v4017 = vunpack.c.l.b16 %v2732
    %v4018 = vunpack.c.h.b16 %v2732
    %v4019 = vunpack.c.l.b16 %v2733
    %v4020 = vunpack.c.h.b16 %v2733
    %v4021 = vunpack.c.l.b16 %v2734
    %v4022 = vunpack.c.h.b16 %v2734
    %v4023 = vunpack.c.l.b16 %v2735
    %v4024 = vunpack.c.h.b16 %v2735
    %v4025 = vunpack.c.l.b16 %v2736
    %v4026 = vunpack.c.h.b16 %v2736
    %v4027 = vunpack.c.l.b16 %v2737
    %v4028 = vunpack.c.h.b16 %v2737
    %v4029 = vunpack.c.l.b16 %v2738
    %v4030 = vunpack.c.h.b16 %v2738
    %v4031 = vunpack.c.l.b16 %v2739
    %v4032 = vunpack.c.h.b16 %v2739
    %v4033 = vunpack.c.l.b16 %v2740
    %v4034 = vunpack.c.h.b16 %v2740
    %v4035 = vunpack.c.l.b16 %v2741
    %v4036 = vunpack.c.h.b16 %v2741
    %v4037 = vunpack.c.l.b16 %v2742
    %v4038 = vunpack.c.h.b16 %v2742
    %v4039 = vunpack.c.l.b16 %v2743
    %v4040 = vunpack.c.h.b16 %v2743
    %v4041 = vunpack.c.l.b16 %v2744
    %v4042 = vunpack.c.h.b16 %v2744
    %v4043 = vunpack.c.l.b16 %v2745
    %v4044 = vunpack.c.h.b16 %v2745
    %v4045 = vunpack.c.l.b16 %v2746
    %v4046 = vunpack.c.h.b16 %v2746
    %v4047 = vunpack.c.l.b16 %v2747
    %v4048 = vunpack.c.h.b16 %v2747
    %v4049 = vunpack.c.l.b16 %v2748
    %v4050 = vunpack.c.h.b16 %v2748
    %v4051 = vunpack.c.l.b16 %v2749
    %v4052 = vunpack.c.h.b16 %v2749
    %v4053 = vunpack.c.l.b16 %v2750
    %v4054 = vunpack.c.h.b16 %v2750
    %v4055 = vunpack.c.l.b16 %v2751
    %v4056 = vunpack.c.h.b16 %v2751
    %v4057 = vunpack.c.l.b16 %v2752
    %v4058 = vunpack.c.h.b16 %v2752
    %v4059 = vunpack.c.l.b16 %v2753
    %v4060 = vunpack.c.h.b16 %v2753
    %v4061 = vunpack.c.l.b16 %v2754
    %v4062 = vunpack.c.h.b16 %v2754
    %v4063 = vunpack.c.l.b16 %v2755
    %v4064 = vunpack.c.h.b16 %v2755
    %v4065 = vunpack.c.l.b16 %v2756
    %v4066 = vunpack.c.h.b16 %v2756
    %v4067 = vunpack.c.l.b16 %v2757
    %v4068 = vunpack.c.h.b16 %v2757
    %v4069 = vunpack.c.l.b16 %v2758
    %v4070 = vunpack.c.h.b16 %v2758
    %v4071 = vunpack.c.l.b16 %v2759
    %v4072 = vunpack.c.h.b16 %v2759
    %v4073 = vunpack.c.l.b16 %v2760
    %v4074 = vunpack.c.h.b16 %v2760
    %v4075 = vunpack.c.l.b16 %v2761
    %v4076 = vunpack.c.h.b16 %v2761
    %v4077 = vunpack.c.l.b16 %v2762
    %v4078 = vunpack.c.h.b16 %v2762
    %v4079 = vunpack.c.l.b16 %v2763
    %v4080 = vunpack.c.h.b16 %v2763
    %v4081 = vunpack.c.l.b16 %v2764
    %v4082 = vunpack.c.h.b16 %v2764
    %v4083 = vunpack.c.l.b16 %v2765
    %v4084 = vunpack.c.h.b16 %v2765
    %v4085 = vunpack.c.l.b16 %v2766
    %v4086 = vunpack.c.h.b16 %v2766
    %v4087 = vunpack.c.l.b16 %v2767
    %v4088 = vunpack.c.h.b16 %v2767
    %v4089 = vunpack.c.l.b16 %v2768
    %v4090 = vunpack.c.h.b16 %v2768
    %v4091 = vunpack.c.l.b16 %v2769
    %v4092 = vunpack.c.h.b16 %v2769
    %v4093 = vunpack.c.l.b16 %v2770
    %v4094 = vunpack.c.h.b16 %v2770
    %v4095 = vunpack.c.l.b16 %v2771
    %v4096 = vunpack.c.h.b16 %v2771
    %v4097 = vunpack.c.l.b16 %v2772
    %v4098 = vunpack.c.h.b16 %v2772
    %v4099 = vunpack.c.l.b16 %v2773
    %v4100 = vunpack.c.h.b16 %v2773
    %v4101 = vunpack.c.l.b16 %v2774
    %v4102 = vunpack.c.h.b16 %v2774
    %v4103 = vunpack.c.l.b16 %v2775
    %v4104 = vunpack.c.h.b16 %v2775
    %v4105 = vunpack.c.l.b16 %v2776
    %v4106 = vunpack.c.h.b16 %v2776
    %v4107 = vunpack.c.l.b16 %v2777
    %v4108 = vunpack.c.h.b16 %v2777
    %v4109 = vunpack.c.l.b16 %v2778
    %v4110 = vunpack.c.h.b16 %v2778
    %v4111 = vunpack.c.l.b16 %v2779
    %v4112 = vunpack.c.h.b16 %v2779
    %v4113 = vunpack.c.l.b16 %v2780
    %v4114 = vunpack.c.h.b16 %v2780
    %v4115 = vunpack.c.l.b16 %v2781
    %v4116 = vunpack.c.h.b16 %v2781
    %v4117 = vunpack.c.l.b16 %v2782
    %v4118 = vunpack.c.h.b16 %v2782
    %v4119 = vunpack.c.l.b16 %v2783
    %v4120 = vunpack.c.h.b16 %v2783
    %v4121 = vunpack.c.l.b16 %v2784
    %v4122 = vunpack.c.h.b16 %v2784
    %v4123 = vunpack.c.l.b16 %v2785
    %v4124 = vunpack.c.h.b16 %v2785
    %v4125 = vunpack.c.l.b16 %v2786
    %v4126 = vunpack.c.h.b16 %v2786
    %v4127 = vunpack.c.l.b16 %v2787
    %v4128 = vunpack.c.h.b16 %v2787
    %v4129 = vunpack.c.l.b16 %v2788
    %v4130 = vunpack.c.h.b16 %v2788
    %v4131 = vunpack.c.l.b16 %v2789
    %v4132 = vunpack.c.h.b16 %v2789
    %v4133 = vunpack.c.l.b16 %v2790
    %v4134 = vunpack.c.h.b16 %v2790
    %v4135 = vunpack.c.l.b16 %v2791
    %v4136 = vunpack.c.h.b16 %v2791
    %v4137 = vunpack.c.l.b16 %v2792
    %v4138 = vunpack.c.h.b16 %v2792
    %v4139 = vunpack.c.l.b16 %v2793
    %v4140 = vunpack.c.h.b16 %v2793
    %v4141 = vunpack.c.l.b16 %v2794
    %v4142 = vunpack.c.h.b16 %v2794
    %v4143 = vunpack.c.l.b16 %v2795
    %v4144 = vunpack.c.h.b16 %v2795
    %v4145 = vunpack.c.l.b16 %v2796
    %v4146 = vunpack.c.h.b16 %v2796
    %v4147 = vunpack.c.l.b16 %v2797
    %v4148 = vunpack.c.h.b16 %v2797
    %v4149 = vunpack.c.l.b16 %v2798
    %v4150 = vunpack.c.h.b16 %v2798
    %v4151 = vunpack.c.l.b16 %v2799
    %v4152 = vunpack.c.h.b16 %v2799
    %v4153 = vunpack.c.l.b16 %v2800
    %v4154 = vunpack.c.h.b16 %v2800
    %v4155 = vunpack.c.l.b16 %v2801
    %v4156 = vunpack.c.h.b16 %v2801
    %v4157 = vunpack.c.l.b16 %v2802
    %v4158 = vunpack.c.h.b16 %v2802
    %v4159 = vunpack.c.l.b16 %v2803
    %v4160 = vunpack.c.h.b16 %v2803
    %v4161 = vunpack.c.l.b16 %v2804
    %v4162 = vunpack.c.h.b16 %v2804
    %v4163 = vunpack.c.l.b16 %v2805
    %v4164 = vunpack.c.h.b16 %v2805
    %v4165 = vunpack.c.l.b16 %v2806
    %v4166 = vunpack.c.h.b16 %v2806
    %v4167 = vunpack.c.l.b16 %v2807
    %v4168 = vunpack.c.h.b16 %v2807
    %v4169 = vunpack.c.l.b16 %v2808
    %v4170 = vunpack.c.h.b16 %v2808
    %v4171 = vunpack.c.l.b16 %v2809
    %v4172 = vunpack.c.h.b16 %v2809
    %v4173 = vunpack.c.l.b16 %v2810
    %v4174 = vunpack.c.h.b16 %v2810
    %v4175 = vunpack.c.l.b16 %v2811
    %v4176 = vunpack.c.h.b16 %v2811
    %v4177 = vunpack.c.l.b16 %v2812
    %v4178 = vunpack.c.h.b16 %v2812
    %v4179 = vunpack.c.l.b16 %v2813
    %v4180 = vunpack.c.h.b16 %v2813
    %v4181 = vunpack.c.l.b16 %v2814
    %v4182 = vunpack.c.h.b16 %v2814
    %v4183 = vunpack.c.l.b16 %v2815
    %v4184 = vunpack.c.h.b16 %v2815
    %v4185 = vunpack.c.l.b16 %v2816
    %v4186 = vunpack.c.h.b16 %v2816
    %v4187 = vunpack.c.l.b16 %v2817
    %v4188 = vunpack.c.h.b16 %v2817
    %v4189 = vunpack.c.l.b16 %v2818
    %v4190 = vunpack.c.h.b16 %v2818
    %v4191 = vunpack.c.l.b16 %v2819
    %v4192 = vunpack.c.h.b16 %v2819
    %v4193 = vunpack.c.l.b16 %v2820
    %v4194 = vunpack.c.h.b16 %v2820
    %v4195 = vunpack.c.l.b16 %v2821
    %v4196 = vunpack.c.h.b16 %v2821
    %v4197 = vunpack.c.l.b16 %v2822
    %v4198 = vunpack.c.h.b16 %v2822
    %v4199 = vunpack.c.l.b16 %v2823
    %v4200 = vunpack.c.h.b16 %v2823
    %v4201 = vunpack.c.l.b16 %v2824
    %v4202 = vunpack.c.h.b16 %v2824
    %v4203 = vunpack.c.l.b16 %v2825
    %v4204 = vunpack.c.h.b16 %v2825
    %v4205 = vunpack.c.l.b16 %v2826
    %v4206 = vunpack.c.h.b16 %v2826
    %v4207 = vunpack.c.l.b16 %v2827
    %v4208 = vunpack.c.h.b16 %v2827
    %v4209 = vunpack.c.l.b16 %v2828
    %v4210 = vunpack.c.h.b16 %v2828
    %v4211 = vunpack.c.l.b16 %v2829
    %v4212 = vunpack.c.h.b16 %v2829
    %v4213 = vunpack.c.l.b16 %v2830
    %v4214 = vunpack.c.h.b16 %v2830
    %v4215 = vunpack.c.l.b16 %v2831
    %v4216 = vunpack.c.h.b16 %v2831
    %v4217 = vunpack.c.l.b16 %v2832
    %v4218 = vunpack.c.h.b16 %v2832
    %v4219 = vunpack.c.l.b16 %v2833
    %v4220 = vunpack.c.h.b16 %v2833
    %v4221 = vunpack.c.l.b16 %v2834
    %v4222 = vunpack.c.h.b16 %v2834
    %v4223 = vunpack.c.l.b16 %v2835
    %v4224 = vunpack.c.h.b16 %v2835
    %v4225 = vunpack.c.l.b16 %v2836
    %v4226 = vunpack.c.h.b16 %v2836
    %v4227 = vunpack.c.l.b16 %v2837
    %v4228 = vunpack.c.h.b16 %v2837
    %v4229 = vunpack.c.l.b16 %v2838
    %v4230 = vunpack.c.h.b16 %v2838
    %v4231 = vunpack.c.l.b16 %v2839
    %v4232 = vunpack.c.h.b16 %v2839
    %v4233 = vunpack.c.l.b16 %v2840
    %v4234 = vunpack.c.h.b16 %v2840
    %v4235 = vunpack.c.l.b16 %v2841
    %v4236 = vunpack.c.h.b16 %v2841
    %v4237 = vunpack.c.l.b16 %v2842
    %v4238 = vunpack.c.h.b16 %v2842
    %v4239 = vunpack.c.l.b16 %v2843
    %v4240 = vunpack.c.h.b16 %v2843
    %v4241 = vunpack.c.l.b16 %v2844
    %v4242 = vunpack.c.h.b16 %v2844
    %v4243 = vunpack.c.l.b16 %v2845
    %v4244 = vunpack.c.h.b16 %v2845
    %v4245 = vunpack.c.l.b16 %v2846
    %v4246 = vunpack.c.h.b16 %v2846
    %v4247 = vunpack.c.l.b16 %v2847
    %v4248 = vunpack.c.h.b16 %v2847
    %v4249 = vunpack.c.l.b16 %v2848
    %v4250 = vunpack.c.h.b16 %v2848
    %v4251 = vunpack.c.l.b16 %v2849
    %v4252 = vunpack.c.h.b16 %v2849
    %v4253 = vunpack.c.l.b16 %v2850
    %v4254 = vunpack.c.h.b16 %v2850
    %v4255 = vunpack.c.l.b16 %v2851
    %v4256 = vunpack.c.h.b16 %v2851
    %v4257 = vunpack.c.l.b16 %v2852
    %v4258 = vunpack.c.h.b16 %v2852
    %v4259 = vunpack.c.l.b16 %v2853
    %v4260 = vunpack.c.h.b16 %v2853
    %v4261 = vunpack.c.l.b16 %v2854
    %v4262 = vunpack.c.h.b16 %v2854
    %v4263 = vunpack.c.l.b16 %v2855
    %v4264 = vunpack.c.h.b16 %v2855
    %v4265 = vunpack.c.l.b16 %v2856
    %v4266 = vunpack.c.h.b16 %v2856
    %v4267 = vunpack.c.l.b16 %v2857
    %v4268 = vunpack.c.h.b16 %v2857
    %v4269 = vunpack.c.l.b16 %v2858
    %v4270 = vunpack.c.h.b16 %v2858
    %v4271 = vunpack.c.l.b16 %v2859
    %v4272 = vunpack.c.h.b16 %v2859
    %v4273 = vunpack.c.l.b16 %v2860
    %v4274 = vunpack.c.h.b16 %v2860
    %v4275 = vunpack.c.l.b16 %v2861
    %v4276 = vunpack.c.h.b16 %v2861
    %v4277 = vunpack.c.l.b16 %v2862
    %v4278 = vunpack.c.h.b16 %v2862
    %v4279 = vunpack.c.l.b16 %v2863
    %v4280 = vunpack.c.h.b16 %v2863
    %v4281 = vunpack.c.l.b16 %v2864
    %v4282 = vunpack.c.h.b16 %v2864
    %v4283 = vunpack.c.l.b16 %v2865
    %v4284 = vunpack.c.h.b16 %v2865
    %v4285 = vunpack.c.l.b16 %v2866
    %v4286 = vunpack.c.h.b16 %v2866
    %v4287 = vunpack.c.l.b16 %v2867
    %v4288 = vunpack.c.h.b16 %v2867
    %v4289 = vunpack.c.l.b16 %v2868
    %v4290 = vunpack.c.h.b16 %v2868
    %v4291 = vunpack.c.l.b16 %v2869
    %v4292 = vunpack.c.h.b16 %v2869
    %v4293 = vunpack.c.l.b16 %v2870
    %v4294 = vunpack.c.h.b16 %v2870
    %v4295 = vunpack.c.l.b16 %v2871
    %v4296 = vunpack.c.h.b16 %v2871
    %v4297 = vunpack.c.l.b16 %v2872
    %v4298 = vunpack.c.h.b16 %v2872
    %v4299 = vunpack.c.l.b16 %v2873
    %v4300 = vunpack.c.h.b16 %v2873
    %v4301 = vunpack.c.l.b16 %v2874
    %v4302 = vunpack.c.h.b16 %v2874
    %v4303 = vunpack.c.l.b16 %v2875
    %v4304 = vunpack.c.h.b16 %v2875
    %v4305 = vunpack.c.l.b16 %v2876
    %v4306 = vunpack.c.h.b16 %v2876
    %v4307 = vunpack.c.l.b16 %v2877
    %v4308 = vunpack.c.h.b16 %v2877
    %v4309 = vunpack.c.l.b16 %v2878
    %v4310 = vunpack.c.h.b16 %v2878
    %v4311 = vunpack.c.l.b16 %v2879
    %v4312 = vunpack.c.h.b16 %v2879
    %v4313 = vunpack.c.l.b16 %v2880
    %v4314 = vunpack.c.h.b16 %v2880
    %v4315 = vunpack.c.l.b16 %v2881
    %v4316 = vunpack.c.h.b16 %v2881
    %v4317 = vunpack.c.l.b16 %v2882
    %v4318 = vunpack.c.h.b16 %v2882
    %v4319 = vunpack.c.l.b16 %v2883
    %v4320 = vunpack.c.h.b16 %v2883
    %v4321 = vunpack.c.l.b16 %v2884
    %v4322 = vunpack.c.h.b16 %v2884
    %v4323 = vunpack.c.l.b16 %v2885
    %v4324 = vunpack.c.h.b16 %v2885
    %v4325 = vunpack.c.l.b16 %v2886
    %v4326 = vunpack.c.h.b16 %v2886
    %v4327 = vunpack.c.l.b16 %v2887
    %v4328 = vunpack.c.h.b16 %v2887
    %v4329 = vunpack.c.l.b16 %v2888
    %v4330 = vunpack.c.h.b16 %v2888
    %v4331 = vunpack.c.l.b16 %v2889
    %v4332 = vunpack.c.h.b16 %v2889
    %v4333 = vunpack.c.l.b16 %v2890
    %v4334 = vunpack.c.h.b16 %v2890
    %v4335 = vunpack.c.l.b16 %v2891
    %v4336 = vunpack.c.h.b16 %v2891
    %v4337 = vunpack.c.l.b16 %v2892
    %v4338 = vunpack.c.h.b16 %v2892
    %v4339 = vunpack.c.l.b16 %v2893
    %v4340 = vunpack.c.h.b16 %v2893
    %v4341 = vunpack.c.l.b16 %v2894
    %v4342 = vunpack.c.h.b16 %v2894
    %v4343 = vunpack.c.l.b16 %v2895
    %v4344 = vunpack.c.h.b16 %v2895
    %v4345 = vunpack.c.l.b16 %v2896
    %v4346 = vunpack.c.h.b16 %v2896
    %v4347 = vunpack.c.l.b16 %v2897
    %v4348 = vunpack.c.h.b16 %v2897
    %v4349 = vunpack.c.l.b16 %v2898
    %v4350 = vunpack.c.h.b16 %v2898
    %v4351 = vunpack.c.l.b16 %v2899
    %v4352 = vunpack.c.h.b16 %v2899
    %v4353 = vunpack.c.l.b16 %v2900
    %v4354 = vunpack.c.h.b16 %v2900
    %v4355 = vunpack.c.l.b16 %v2901
    %v4356 = vunpack.c.h.b16 %v2901
    %v4357 = vunpack.c.l.b16 %v2902
    %v4358 = vunpack.c.h.b16 %v2902
    %v4359 = vunpack.c.l.b16 %v2903
    %v4360 = vunpack.c.h.b16 %v2903
    %v4361 = vunpack.c.l.b16 %v2904
    %v4362 = vunpack.c.h.b16 %v2904
    %v4363 = vunpack.c.l.b16 %v2905
    %v4364 = vunpack.c.h.b16 %v2905
    %v4365 = vunpack.c.l.b16 %v2906
    %v4366 = vunpack.c.h.b16 %v2906
    %v4367 = vunpack.c.l.b16 %v2907
    %v4368 = vunpack.c.h.b16 %v2907
    %v4369 = vunpack.c.l.b16 %v2908
    %v4370 = vunpack.c.h.b16 %v2908
    %v4371 = vunpack.c.l.b16 %v2909
    %v4372 = vunpack.c.h.b16 %v2909
    %v4373 = vunpack.c.l.b16 %v2910
    %v4374 = vunpack.c.h.b16 %v2910
    %v4375 = vunpack.c.l.b16 %v2911
    %v4376 = vunpack.c.h.b16 %v2911
    %v4377 = vunpack.c.l.b16 %v2912
    %v4378 = vunpack.c.h.b16 %v2912
    %v4379 = vunpack.c.l.b16 %v2913
    %v4380 = vunpack.c.h.b16 %v2913
    %v4381 = vunpack.c.l.b16 %v2914
    %v4382 = vunpack.c.h.b16 %v2914
    %v4383 = vunpack.c.l.b16 %v2915
    %v4384 = vunpack.c.h.b16 %v2915
    %v4385 = vunpack.c.l.b16 %v2916
    %v4386 = vunpack.c.h.b16 %v2916
    %v4387 = vunpack.c.l.b16 %v2917
    %v4388 = vunpack.c.h.b16 %v2917
    %v4389 = vunpack.c.l.b16 %v2918
    %v4390 = vunpack.c.h.b16 %v2918
    %v4391 = vunpack.c.l.b16 %v2919
    %v4392 = vunpack.c.h.b16 %v2919
    %v4393 = vunpack.c.l.b16 %v2920
    %v4394 = vunpack.c.h.b16 %v2920
    %v4395 = vunpack.c.l.b16 %v2921
    %v4396 = vunpack.c.h.b16 %v2921
    %v4397 = vunpack.c.l.b16 %v2922
    %v4398 = vunpack.c.h.b16 %v2922
    %v4399 = vunpack.c.l.b16 %v2923
    %v4400 = vunpack.c.h.b16 %v2923
    %v4401 = vunpack.c.l.b16 %v2924
    %v4402 = vunpack.c.h.b16 %v2924
    %v4403 = vunpack.c.l.b16 %v2925
    %v4404 = vunpack.c.h.b16 %v2925
    %v4405 = vunpack.c.l.b16 %v2926
    %v4406 = vunpack.c.h.b16 %v2926
    %v4407 = vunpack.c.l.b16 %v2927
    %v4408 = vunpack.c.h.b16 %v2927
    %v4409 = vunpack.c.l.b16 %v2928
    %v4410 = vunpack.c.h.b16 %v2928
    %v4411 = vunpack.c.l.b16 %v2929
    %v4412 = vunpack.c.h.b16 %v2929
    %v4413 = vunpack.c.l.b16 %v2930
    %v4414 = vunpack.c.h.b16 %v2930
    %v4415 = vunpack.c.l.b16 %v2931
    %v4416 = vunpack.c.h.b16 %v2931
    %v4417 = vunpack.c.l.b16 %v2932
    %v4418 = vunpack.c.h.b16 %v2932
    %v4419 = vunpack.c.l.b16 %v2933
    %v4420 = vunpack.c.h.b16 %v2933
    %v4421 = vunpack.c.l.b16 %v2934
    %v4422 = vunpack.c.h.b16 %v2934
    %v4423 = vunpack.c.l.b16 %v2935
    %v4424 = vunpack.c.h.b16 %v2935
    %v4425 = vunpack.c.l.b16 %v2936
    %v4426 = vunpack.c.h.b16 %v2936
    %v4427 = vunpack.c.l.b16 %v2937
    %v4428 = vunpack.c.h.b16 %v2937
    %v4429 = vunpack.c.l.b16 %v2938
    %v4430 = vunpack.c.h.b16 %v2938
    %v4431 = vunpack.c.l.b16 %v2939
    %v4432 = vunpack.c.h.b16 %v2939
    %v4433 = vunpack.c.l.b16 %v2940
    %v4434 = vunpack.c.h.b16 %v2940
    %v4435 = vunpack.c.l.b16 %v2941
    %v4436 = vunpack.c.h.b16 %v2941
    %v4437 = vunpack.c.l.b16 %v2942
    %v4438 = vunpack.c.h.b16 %v2942
    %v4439 = vunpack.c.l.b16 %v2943
    %v4440 = vunpack.c.h.b16 %v2943
    %v4441 = vunpack.c.l.b16 %v2944
    %v4442 = vunpack.c.h.b16 %v2944
    %v4443 = vunpack.c.l.b16 %v2945
    %v4444 = vunpack.c.h.b16 %v2945
    %v4445 = vunpack.c.l.b16 %v2946
    %v4446 = vunpack.c.h.b16 %v2946
    %v4447 = vunpack.c.l.b16 %v2947
    %v4448 = vunpack.c.h.b16 %v2947
    %v4449 = vunpack.c.l.b16 %v2948
    %v4450 = vunpack.c.h.b16 %v2948
    %v4451 = vunpack.c.l.b16 %v2949
    %v4452 = vunpack.c.h.b16 %v2949
    %v4453 = vunpack.c.l.b16 %v2950
    %v4454 = vunpack.c.h.b16 %v2950
    %v4455 = vunpack.c.l.b16 %v2951
    %v4456 = vunpack.c.h.b16 %v2951
    %v4457 = vunpack.c.l.b16 %v2952
    %v4458 = vunpack.c.h.b16 %v2952
    %v4459 = vunpack.c.l.b16 %v2953
    %v4460 = vunpack.c.h.b16 %v2953
    %v4461 = vunpack.c.l.b16 %v2954
    %v4462 = vunpack.c.h.b16 %v2954
    %v4463 = vunpack.c.l.b16 %v2955
    %v4464 = vunpack.c.h.b16 %v2955
    %v4465 = vunpack.c.l.b16 %v2956
    %v4466 = vunpack.c.h.b16 %v2956
    %v4467 = vunpack.c.l.b16 %v2957
    %v4468 = vunpack.c.h.b16 %v2957
    %v4469 = vunpack.c.l.b16 %v2958
    %v4470 = vunpack.c.h.b16 %v2958
    %v4471 = vunpack.c.l.b16 %v2959
    %v4472 = vunpack.c.h.b16 %v2959
    %v4473 = vunpack.c.l.b16 %v2960
    %v4474 = vunpack.c.h.b16 %v2960
    %v4475 = vunpack.c.l.b16 %v2961
    %v4476 = vunpack.c.h.b16 %v2961
    %v4477 = vunpack.c.l.b16 %v2962
    %v4478 = vunpack.c.h.b16 %v2962
    %v4479 = vunpack.c.l.b16 %v2963
    %v4480 = vunpack.c.h.b16 %v2963
    %v4481 = vunpack.c.l.b16 %v2964
    %v4482 = vunpack.c.h.b16 %v2964
    %v4483 = vunpack.c.l.b16 %v2965
    %v4484 = vunpack.c.h.b16 %v2965
    %v4485 = vunpack.c.l.b16 %v2966
    %v4486 = vunpack.c.h.b16 %v2966
    %v4487 = vunpack.c.l.b16 %v2967
    %v4488 = vunpack.c.h.b16 %v2967
    %v4489 = vunpack.c.l.b16 %v2968
    %v4490 = vunpack.c.h.b16 %v2968
    %v4491 = vunpack.c.l.b16 %v2969
    %v4492 = vunpack.c.h.b16 %v2969
    %v4493 = vunpack.c.l.b16 %v2970
    %v4494 = vunpack.c.h.b16 %v2970
    %v4495 = vunpack.c.l.b16 %v2971
    %v4496 = vunpack.c.h.b16 %v2971
    %v4497 = vunpack.c.l.b16 %v2972
    %v4498 = vunpack.c.h.b16 %v2972
    %v4499 = vunpack.c.l.b16 %v2973
    %v4500 = vunpack.c.h.b16 %v2973
    %v4501 = vunpack.c.l.b16 %v2974
    %v4502 = vunpack.c.h.b16 %v2974
    %v4503 = vunpack.c.l.b16 %v2975
    %v4504 = vunpack.c.h.b16 %v2975
    %v4505 = vunpack.c.l.b16 %v2976
    %v4506 = vunpack.c.h.b16 %v2976
    %v4507 = vunpack.c.l.b16 %v2977
    %v4508 = vunpack.c.h.b16 %v2977
    %v4509 = vunpack.c.l.b16 %v2978
    %v4510 = vunpack.c.h.b16 %v2978
    %v4511 = vunpack.c.l.b16 %v2979
    %v4512 = vunpack.c.h.b16 %v2979
    %v4513 = vunpack.c.l.b16 %v2980
    %v4514 = vunpack.c.h.b16 %v2980
    %v4515 = vunpack.c.l.b16 %v2981
    %v4516 = vunpack.c.h.b16 %v2981
    %v4517 = vunpack.c.l.b16 %v2982
    %v4518 = vunpack.c.h.b16 %v2982
    %v4519 = vpack.c.b16 %v3503, %v3495
    %v4520 = vpack.c.b16 %v3504, %v3496
    %v4521 = vpack.c.b16 %v3505, %v3497
    %v4522 = vpack.c.b16 %v3506, %v3498
    %v4523 = vpack.c.b16 %v3507, %v3499
    %v4524 = vpack.c.b16 %v3508, %v3500
    %v4525 = vpack.c.b16 %v3509, %v3501
    %v4526 = vpack.c.b16 %v3510, %v3502
    %v4527 = vpack.c.b16 %v3519, %v3511
    %v4528 = vpack.c.b16 %v3520, %v3512
    %v4529 = vpack.c.b16 %v3521, %v3513
    %v4530 = vpack.c.b16 %v3522, %v3514
    %v4531 = vpack.c.b16 %v3523, %v3515
    %v4532 = vpack.c.b16 %v3524, %v3516
    %v4533 = vpack.c.b16 %v3525, %v3517
    %v4534 = vpack.c.b16 %v3526, %v3518
    %v4535 = vpack.c.b16 %v3535, %v3527
    %v4536 = vpack.c.b16 %v3536, %v3528
    %v4537 = vpack.c.b16 %v3537, %v3529
    %v4538 = vpack.c.b16 %v3538, %v3530
    %v4539 = vpack.c.b16 %v3539, %v3531
    %v4540 = vpack.c.b16 %v3540, %v3532
    %v4541 = vpack.c.b16 %v3541, %v3533
    %v4542 = vpack.c.b16 %v3542, %v3534
    %v4543 = vpack.c.b16 %v3551, %v3543
    %v4544 = vpack.c.b16 %v3552, %v3544
    %v4545 = vpack.c.b16 %v3553, %v3545
    %v4546 = vpack.c.b16 %v3554, %v3546
    %v4547 = vpack.c.b16 %v3555, %v3547
    %v4548 = vpack.c.b16 %v3556, %v3548
    %v4549 = vpack.c.b16 %v3557, %v3549
    %v4550 = vpack.c.b16 %v3558, %v3550
    %v4551 = vpack.c.b16 %v3567, %v3559
    %v4552 = vpack.c.b16 %v3568, %v3560
    %v4553 = vpack.c.b16 %v3569, %v3561
    %v4554 = vpack.c.b16 %v3570, %v3562
    %v4555 = vpack.c.b16 %v3571, %v3563
    %v4556 = vpack.c.b16 %v3572, %v3564
    %v4557 = vpack.c.b16 %v3573, %v3565
    %v4558 = vpack.c.b16 %v3574, %v3566
    %v4559 = vpack.c.b16 %v3583, %v3575
    %v4560 = vpack.c.b16 %v3584, %v3576
    %v4561 = vpack.c.b16 %v3585, %v3577
    %v4562 = vpack.c.b16 %v3586, %v3578
    %v4563 = vpack.c.b16 %v3587, %v3579
    %v4564 = vpack.c.b16 %v3588, %v3580
    %v4565 = vpack.c.b16 %v3589, %v3581
    %v4566 = vpack.c.b16 %v3590, %v3582
    %v4567 = vpack.c.b16 %v3599, %v3591
    %v4568 = vpack.c.b16 %v3600, %v3592
    %v4569 = vpack.c.b16 %v3601, %v3593
    %v4570 = vpack.c.b16 %v3602, %v3594
    %v4571 = vpack.c.b16 %v3603, %v3595
    %v4572 = vpack.c.b16 %v3604, %v3596
    %v4573 = vpack.c.b16 %v3605, %v3597
    %v4574 = vpack.c.b16 %v3606, %v3598
    %v4575 = vpack.c.b16 %v3615, %v3607
    %v4576 = vpack.c.b16 %v3616, %v3608
    %v4577 = vpack.c.b16 %v3617, %v3609
    %v4578 = vpack.c.b16 %v3618, %v3610
    %v4579 = vpack.c.b16 %v3619, %v3611
    %v4580 = vpack.c.b16 %v3620, %v3612
    %v4581 = vpack.c.b16 %v3621, %v3613
    %v4582 = vpack.c.b16 %v3622, %v3614
    %v4583 = vpack.c.b16 %v3631, %v3623
    %v4584 = vpack.c.b16 %v3632, %v3624
    %v4585 = vpack.c.b16 %v3633, %v3625
    %v4586 = vpack.c.b16 %v3634, %v3626
    %v4587 = vpack.c.b16 %v3635, %v3627
    %v4588 = vpack.c.b16 %v3636, %v3628
    %v4589 = vpack.c.b16 %v3637, %v3629
    %v4590 = vpack.c.b16 %v3638, %v3630
    %v4591 = vpack.c.b16 %v3647, %v3639
    %v4592 = vpack.c.b16 %v3648, %v3640
    %v4593 = vpack.c.b16 %v3649, %v3641
    %v4594 = vpack.c.b16 %v3650, %v3642
    %v4595 = vpack.c.b16 %v3651, %v3643
    %v4596 = vpack.c.b16 %v3652, %v3644
    %v4597 = vpack.c.b16 %v3653, %v3645
    %v4598 = vpack.c.b16 %v3654, %v3646
    %v4599 = vpack.c.b16 %v3663, %v3655
    %v4600 = vpack.c.b16 %v3664, %v3656
    %v4601 = vpack.c.b16 %v3665, %v3657
    %v4602 = vpack.c.b16 %v3666, %v3658
    %v4603 = vpack.c.b16 %v3667, %v3659
    %v4604 = vpack.c.b16 %v3668, %v3660
    %v4605 = vpack.c.b16 %v3669, %v3661
    %v4606 = vpack.c.b16 %v3670, %v3662
    %v4607 = vpack.c.b16 %v3679, %v3671
    %v4608 = vpack.c.b16 %v3680, %v3672
    %v4609 = vpack.c.b16 %v3681, %v3673
    %v4610 = vpack.c.b16 %v3682, %v3674
    %v4611 = vpack.c.b16 %v3683, %v3675
    %v4612 = vpack.c.b16 %v3684, %v3676
    %v4613 = vpack.c.b16 %v3685, %v3677
    %v4614 = vpack.c.b16 %v3686, %v3678
    %v4615 = vpack.c.b16 %v3695, %v3687
    %v4616 = vpack.c.b16 %v3696, %v3688
    %v4617 = vpack.c.b16 %v3697, %v3689
    %v4618 = vpack.c.b16 %v3698, %v3690
    %v4619 = vpack.c.b16 %v3699, %v3691
    %v4620 = vpack.c.b16 %v3700, %v3692
    %v4621 = vpack.c.b16 %v3701, %v3693
    %v4622 = vpack.c.b16 %v3702, %v3694
    %v4623 = vpack.c.b16 %v3711, %v3703
    %v4624 = vpack.c.b16 %v3712, %v3704
    %v4625 = vpack.c.b16 %v3713, %v3705
    %v4626 = vpack.c.b16 %v3714, %v3706
    %v4627 = vpack.c.b16 %v3715, %v3707
    %v4628 = vpack.c.b16 %v3716, %v3708
    %v4629 = vpack.c.b16 %v3717, %v3709
    %v4630 = vpack.c.b16 %v3718, %v3710
    %v4631 = vpack.c.b16 %v3727, %v3719
    %v4632 = vpack.c.b16 %v3728, %v3720
    %v4633 = vpack.c.b16 %v3729, %v3721
    %v4634 = vpack.c.b16 %v3730, %v3722
    %v4635 = vpack.c.b16 %v3731, %v3723
    %v4636 = vpack.c.b16 %v3732, %v3724
    %v4637 = vpack.c.b16 %v3733, %v3725
    %v4638 = vpack.c.b16 %v3734, %v3726
    %v4639 = vpack.c.b16 %v3743, %v3735
    %v4640 = vpack.c.b16 %v3744, %v3736
    %v4641 = vpack.c.b16 %v3745, %v3737
    %v4642 = vpack.c.b16 %v3746, %v3738
    %v4643 = vpack.c.b16 %v3747, %v3739
    %v4644 = vpack.c.b16 %v3748, %v3740
    %v4645 = vpack.c.b16 %v3749, %v3741
    %v4646 = vpack.c.b16 %v3750, %v3742
    %v4647 = vpack.c.b16 %v3759, %v3751
    %v4648 = vpack.c.b16 %v3760, %v3752
    %v4649 = vpack.c.b16 %v3761, %v3753
    %v4650 = vpack.c.b16 %v3762, %v3754
    %v4651 = vpack.c.b16 %v3763, %v3755
    %v4652 = vpack.c.b16 %v3764, %v3756
    %v4653 = vpack.c.b16 %v3765, %v3757
    %v4654 = vpack.c.b16 %v3766, %v3758
    %v4655 = vpack.c.b16 %v3775, %v3767
    %v4656 = vpack.c.b16 %v3776, %v3768
    %v4657 = vpack.c.b16 %v3777, %v3769
    %v4658 = vpack.c.b16 %v3778, %v3770
    %v4659 = vpack.c.b16 %v3779, %v3771
    %v4660 = vpack.c.b16 %v3780, %v3772
    %v4661 = vpack.c.b16 %v3781, %v3773
    %v4662 = vpack.c.b16 %v3782, %v3774
    %v4663 = vpack.c.b16 %v3791, %v3783
    %v4664 = vpack.c.b16 %v3792, %v3784
    %v4665 = vpack.c.b16 %v3793, %v3785
    %v4666 = vpack.c.b16 %v3794, %v3786
    %v4667 = vpack.c.b16 %v3795, %v3787
    %v4668 = vpack.c.b16 %v3796, %v3788
    %v4669 = vpack.c.b16 %v3797, %v3789
    %v4670 = vpack.c.b16 %v3798, %v3790
    %v4671 = vpack.c.b16 %v3807, %v3799
    %v4672 = vpack.c.b16 %v3808, %v3800
    %v4673 = vpack.c.b16 %v3809, %v3801
    %v4674 = vpack.c.b16 %v3810, %v3802
    %v4675 = vpack.c.b16 %v3811, %v3803
    %v4676 = vpack.c.b16 %v3812, %v3804
    %v4677 = vpack.c.b16 %v3813, %v3805
    %v4678 = vpack.c.b16 %v3814, %v3806
    %v4679 = vpack.c.b16 %v3823, %v3815
    %v4680 = vpack.c.b16 %v3824, %v3816
    %v4681 = vpack.c.b16 %v3825, %v3817
    %v4682 = vpack.c.b16 %v3826, %v3818
    %v4683 = vpack.c.b16 %v3827, %v3819
    %v4684 = vpack.c.b16 %v3828, %v3820
    %v4685 = vpack.c.b16 %v3829, %v3821
    %v4686 = vpack.c.b16 %v3830, %v3822
    %v4687 = vpack.c.b16 %v3839, %v3831
    %v4688 = vpack.c.b16 %v3840, %v3832
    %v4689 = vpack.c.b16 %v3841, %v3833
    %v4690 = vpack.c.b16 %v3842, %v3834
    %v4691 = vpack.c.b16 %v3843, %v3835
    %v4692 = vpack.c.b16 %v3844, %v3836
    %v4693 = vpack.c.b16 %v3845, %v3837
    %v4694 = vpack.c.b16 %v3846, %v3838
    %v4695 = vpack.c.b16 %v3855, %v3847
    %v4696 = vpack.c.b16 %v3856, %v3848
    %v4697 = vpack.c.b16 %v3857, %v3849
    %v4698 = vpack.c.b16 %v3858, %v3850
    %v4699 = vpack.c.b16 %v3859, %v3851
    %v4700 = vpack.c.b16 %v3860, %v3852
    %v4701 = vpack.c.b16 %v3861, %v3853
    %v4702 = vpack.c.b16 %v3862, %v3854
    %v4703 = vpack.c.b16 %v3871, %v3863
    %v4704 = vpack.c.b16 %v3872, %v3864
    %v4705 = vpack.c.b16 %v3873, %v3865
    %v4706 = vpack.c.b16 %v3874, %v3866
    %v4707 = vpack.c.b16 %v3875, %v3867
    %v4708 = vpack.c.b16 %v3876, %v3868
    %v4709 = vpack.c.b16 %v3877, %v3869
    %v4710 = vpack.c.b16 %v3878, %v3870
    %v4711 = vpack.c.b16 %v3887, %v3879
    %v4712 = vpack.c.b16 %v3888, %v3880
    %v4713 = vpack.c.b16 %v3889, %v3881
    %v4714 = vpack.c.b16 %v3890, %v3882
    %v4715 = vpack.c.b16 %v3891, %v3883
    %v4716 = vpack.c.b16 %v3892, %v3884
    %v4717 = vpack.c.b16 %v3893, %v3885
    %v4718 = vpack.c.b16 %v3894, %v3886
    %v4719 = vpack.c.b16 %v3903, %v3895
    %v4720 = vpack.c.b16 %v3904, %v3896
    %v4721 = vpack.c.b16 %v3905, %v3897
    %v4722 = vpack.c.b16 %v3906, %v3898
    %v4723 = vpack.c.b16 %v3907, %v3899
    %v4724 = vpack.c.b16 %v3908, %v3900
    %v4725 = vpack.c.b16 %v3909, %v3901
    %v4726 = vpack.c.b16 %v3910, %v3902
    %v4727 = vpack.c.b16 %v3919, %v3911
    %v4728 = vpack.c.b16 %v3920, %v3912
    %v4729 = vpack.c.b16 %v3921, %v3913
    %v4730 = vpack.c.b16 %v3922, %v3914
    %v4731 = vpack.c.b16 %v3923, %v3915
    %v4732 = vpack.c.b16 %v3924, %v3916
    %v4733 = vpack.c.b16 %v3925, %v3917
    %v4734 = vpack.c.b16 %v3926, %v3918
    %v4735 = vpack.c.b16 %v3935, %v3927
    %v4736 = vpack.c.b16 %v3936, %v3928
    %v4737 = vpack.c.b16 %v3937, %v3929
    %v4738 = vpack.c.b16 %v3938, %v3930
    %v4739 = vpack.c.b16 %v3939, %v3931
    %v4740 = vpack.c.b16 %v3940, %v3932
    %v4741 = vpack.c.b16 %v3941, %v3933
    %v4742 = vpack.c.b16 %v3942, %v3934
    %v4743 = vpack.c.b16 %v3951, %v3943
    %v4744 = vpack.c.b16 %v3952, %v3944
    %v4745 = vpack.c.b16 %v3953, %v3945
    %v4746 = vpack.c.b16 %v3954, %v3946
    %v4747 = vpack.c.b16 %v3955, %v3947
    %v4748 = vpack.c.b16 %v3956, %v3948
    %v4749 = vpack.c.b16 %v3957, %v3949
    %v4750 = vpack.c.b16 %v3958, %v3950
    %v4751 = vpack.c.b16 %v3967, %v3959
    %v4752 = vpack.c.b16 %v3968, %v3960
    %v4753 = vpack.c.b16 %v3969, %v3961
    %v4754 = vpack.c.b16 %v3970, %v3962
    %v4755 = vpack.c.b16 %v3971, %v3963
    %v4756 = vpack.c.b16 %v3972, %v3964
    %v4757 = vpack.c.b16 %v3973, %v3965
    %v4758 = vpack.c.b16 %v3974, %v3966
    %v4759 = vpack.c.b16 %v3983, %v3975
    %v4760 = vpack.c.b16 %v3984, %v3976
    %v4761 = vpack.c.b16 %v3985, %v3977
    %v4762 = vpack.c.b16 %v3986, %v3978
    %v4763 = vpack.c.b16 %v3987, %v3979
    %v4764 = vpack.c.b16 %v3988, %v3980
    %v4765 = vpack.c.b16 %v3989, %v3981
    %v4766 = vpack.c.b16 %v3990, %v3982
    %v4767 = vpack.c.b16 %v3999, %v3991
    %v4768 = vpack.c.b16 %v4000, %v3992
    %v4769 = vpack.c.b16 %v4001, %v3993
    %v4770 = vpack.c.b16 %v4002, %v3994
    %v4771 = vpack.c.b16 %v4003, %v3995
    %v4772 = vpack.c.b16 %v4004, %v3996
    %v4773 = vpack.c.b16 %v4005, %v3997
    %v4774 = vpack.c.b16 %v4006, %v3998
    %v4775 = vpack.c.b16 %v4015, %v4007
    %v4776 = vpack.c.b16 %v4016, %v4008
    %v4777 = vpack.c.b16 %v4017, %v4009
    %v4778 = vpack.c.b16 %v4018, %v4010
    %v4779 = vpack.c.b16 %v4019, %v4011
    %v4780 = vpack.c.b16 %v4020, %v4012
    %v4781 = vpack.c.b16 %v4021, %v4013
    %v4782 = vpack.c.b16 %v4022, %v4014
    %v4783 = vpack.c.b16 %v4031, %v4023
    %v4784 = vpack.c.b16 %v4032, %v4024
    %v4785 = vpack.c.b16 %v4033, %v4025
    %v4786 = vpack.c.b16 %v4034, %v4026
    %v4787 = vpack.c.b16 %v4035, %v4027
    %v4788 = vpack.c.b16 %v4036, %v4028
    %v4789 = vpack.c.b16 %v4037, %v4029
    %v4790 = vpack.c.b16 %v4038, %v4030
    %v4791 = vpack.c.b16 %v4047, %v4039
    %v4792 = vpack.c.b16 %v4048, %v4040
    %v4793 = vpack.c.b16 %v4049, %v4041
    %v4794 = vpack.c.b16 %v4050, %v4042
    %v4795 = vpack.c.b16 %v4051, %v4043
    %v4796 = vpack.c.b16 %v4052, %v4044
    %v4797 = vpack.c.b16 %v4053, %v4045
    %v4798 = vpack.c.b16 %v4054, %v4046
    %v4799 = vpack.c.b16 %v4063, %v4055
    %v4800 = vpack.c.b16 %v4064, %v4056
    %v4801 = vpack.c.b16 %v4065, %v4057
    %v4802 = vpack.c.b16 %v4066, %v4058
    %v4803 = vpack.c.b16 %v4067, %v4059
    %v4804 = vpack.c.b16 %v4068, %v4060
    %v4805 = vpack.c.b16 %v4069, %v4061
    %v4806 = vpack.c.b16 %v4070, %v4062
    %v4807 = vpack.c.b16 %v4079, %v4071
    %v4808 = vpack.c.b16 %v4080, %v4072
    %v4809 = vpack.c.b16 %v4081, %v4073
    %v4810 = vpack.c.b16 %v4082, %v4074
    %v4811 = vpack.c.b16 %v4083, %v4075
    %v4812 = vpack.c.b16 %v4084, %v4076
    %v4813 = vpack.c.b16 %v4085, %v4077
    %v4814 = vpack.c.b16 %v4086, %v4078
    %v4815 = vpack.c.b16 %v4095, %v4087
    %v4816 = vpack.c.b16 %v4096, %v4088
    %v4817 = vpack.c.b16 %v4097, %v4089
    %v4818 = vpack.c.b16 %v4098, %v4090
    %v4819 = vpack.c.b16 %v4099, %v4091
    %v4820 = vpack.c.b16 %v4100, %v4092
    %v4821 = vpack.c.b16 %v4101, %v4093
    %v4822 = vpack.c.b16 %v4102, %v4094
    %v4823 = vpack.c.b16 %v4111, %v4103
    %v4824 = vpack.c.b16 %v4112, %v4104
    %v4825 = vpack.c.b16 %v4113, %v4105
    %v4826 = vpack.c.b16 %v4114, %v4106
    %v4827 = vpack.c.b16 %v4115, %v4107
    %v4828 = vpack.c.b16 %v4116, %v4108
    %v4829 = vpack.c.b16 %v4117, %v4109
    %v4830 = vpack.c.b16 %v4118, %v4110
    %v4831 = vpack.c.b16 %v4127, %v4119
    %v4832 = vpack.c.b16 %v4128, %v4120
    %v4833 = vpack.c.b16 %v4129, %v4121
    %v4834 = vpack.c.b16 %v4130, %v4122
    %v4835 = vpack.c.b16 %v4131, %v4123
    %v4836 = vpack.c.b16 %v4132, %v4124
    %v4837 = vpack.c.b16 %v4133, %v4125
    %v4838 = vpack.c.b16 %v4134, %v4126
    %v4839 = vpack.c.b16 %v4143, %v4135
    %v4840 = vpack.c.b16 %v4144, %v4136
    %v4841 = vpack.c.b16 %v4145, %v4137
    %v4842 = vpack.c.b16 %v4146, %v4138
    %v4843 = vpack.c.b16 %v4147, %v4139
    %v4844 = vpack.c.b16 %v4148, %v4140
    %v4845 = vpack.c.b16 %v4149, %v4141
    %v4846 = vpack.c.b16 %v4150, %v4142
    %v4847 = vpack.c.b16 %v4159, %v4151
    %v4848 = vpack.c.b16 %v4160, %v4152
    %v4849 = vpack.c.b16 %v4161, %v4153
    %v4850 = vpack.c.b16 %v4162, %v4154
    %v4851 = vpack.c.b16 %v4163, %v4155
    %v4852 = vpack.c.b16 %v4164, %v4156
    %v4853 = vpack.c.b16 %v4165, %v4157
    %v4854 = vpack.c.b16 %v4166, %v4158
    %v4855 = vpack.c.b16 %v4175, %v4167
    %v4856 = vpack.c.b16 %v4176, %v4168
    %v4857 = vpack.c.b16 %v4177, %v4169
    %v4858 = vpack.c.b16 %v4178, %v4170
    %v4859 = vpack.c.b16 %v4179, %v4171
    %v4860 = vpack.c.b16 %v4180, %v4172
    %v4861 = vpack.c.b16 %v4181, %v4173
    %v4862 = vpack.c.b16 %v4182, %v4174
    %v4863 = vpack.c.b16 %v4191, %v4183
    %v4864 = vpack.c.b16 %v4192, %v4184
    %v4865 = vpack.c.b16 %v4193, %v4185
    %v4866 = vpack.c.b16 %v4194, %v4186
    %v4867 = vpack.c.b16 %v4195, %v4187
    %v4868 = vpack.c.b16 %v4196, %v4188
    %v4869 = vpack.c.b16 %v4197, %v4189
    %v4870 = vpack.c.b16 %v4198, %v4190
    %v4871 = vpack.c.b16 %v4207, %v4199
    %v4872 = vpack.c.b16 %v4208, %v4200
    %v4873 = vpack.c.b16 %v4209, %v4201
    %v4874 = vpack.c.b16 %v4210, %v4202
    %v4875 = vpack.c.b16 %v4211, %v4203
    %v4876 = vpack.c.b16 %v4212, %v4204
    %v4877 = vpack.c.b16 %v4213, %v4205
    %v4878 = vpack.c.b16 %v4214, %v4206
    %v4879 = vpack.c.b16 %v4223, %v4215
    %v4880 = vpack.c.b16 %v4224, %v4216
    %v4881 = vpack.c.b16 %v4225, %v4217
    %v4882 = vpack.c.b16 %v4226, %v4218
    %v4883 = vpack.c.b16 %v4227, %v4219
    %v4884 = vpack.c.b16 %v4228, %v4220
    %v4885 = vpack.c.b16 %v4229, %v4221
    %v4886 = vpack.c.b16 %v4230, %v4222
    %v4887 = vpack.c.b16 %v4239, %v4231
    %v4888 = vpack.c.b16 %v4240, %v4232
    %v4889 = vpack.c.b16 %v4241, %v4233
    %v4890 = vpack.c.b16 %v4242, %v4234
    %v4891 = vpack.c.b16 %v4243, %v4235
    %v4892 = vpack.c.b16 %v4244, %v4236
    %v4893 = vpack.c.b16 %v4245, %v4237
    %v4894 = vpack.c.b16 %v4246, %v4238
    %v4895 = vpack.c.b16 %v4255, %v4247
    %v4896 = vpack.c.b16 %v4256, %v4248
    %v4897 = vpack.c.b16 %v4257, %v4249
    %v4898 = vpack.c.b16 %v4258, %v4250
    %v4899 = vpack.c.b16 %v4259, %v4251
    %v4900 = vpack.c.b16 %v4260, %v4252
    %v4901 = vpack.c.b16 %v4261, %v4253
    %v4902 = vpack.c.b16 %v4262, %v4254
    %v4903 = vpack.c.b16 %v4271, %v4263
    %v4904 = vpack.c.b16 %v4272, %v4264
    %v4905 = vpack.c.b16 %v4273, %v4265
    %v4906 = vpack.c.b16 %v4274, %v4266
    %v4907 = vpack.c.b16 %v4275, %v4267
    %v4908 = vpack.c.b16 %v4276, %v4268
    %v4909 = vpack.c.b16 %v4277, %v4269
    %v4910 = vpack.c.b16 %v4278, %v4270
    %v4911 = vpack.c.b16 %v4287, %v4279
    %v4912 = vpack.c.b16 %v4288, %v4280
    %v4913 = vpack.c.b16 %v4289, %v4281
    %v4914 = vpack.c.b16 %v4290, %v4282
    %v4915 = vpack.c.b16 %v4291, %v4283
    %v4916 = vpack.c.b16 %v4292, %v4284
    %v4917 = vpack.c.b16 %v4293, %v4285
    %v4918 = vpack.c.b16 %v4294, %v4286
    %v4919 = vpack.c.b16 %v4303, %v4295
    %v4920 = vpack.c.b16 %v4304, %v4296
    %v4921 = vpack.c.b16 %v4305, %v4297
    %v4922 = vpack.c.b16 %v4306, %v4298
    %v4923 = vpack.c.b16 %v4307, %v4299
    %v4924 = vpack.c.b16 %v4308, %v4300
    %v4925 = vpack.c.b16 %v4309, %v4301
    %v4926 = vpack.c.b16 %v4310, %v4302
    %v4927 = vpack.c.b16 %v4319, %v4311
    %v4928 = vpack.c.b16 %v4320, %v4312
    %v4929 = vpack.c.b16 %v4321, %v4313
    %v4930 = vpack.c.b16 %v4322, %v4314
    %v4931 = vpack.c.b16 %v4323, %v4315
    %v4932 = vpack.c.b16 %v4324, %v4316
    %v4933 = vpack.c.b16 %v4325, %v4317
    %v4934 = vpack.c.b16 %v4326, %v4318
    %v4935 = vpack.c.b16 %v4335, %v4327
    %v4936 = vpack.c.b16 %v4336, %v4328
    %v4937 = vpack.c.b16 %v4337, %v4329
    %v4938 = vpack.c.b16 %v4338, %v4330
    %v4939 = vpack.c.b16 %v4339, %v4331
    %v4940 = vpack.c.b16 %v4340, %v4332
    %v4941 = vpack.c.b16 %v4341, %v4333
    %v4942 = vpack.c.b16 %v4342, %v4334
    %v4943 = vpack.c.b16 %v4351, %v4343
    %v4944 = vpack.c.b16 %v4352, %v4344
    %v4945 = vpack.c.b16 %v4353, %v4345
    %v4946 = vpack.c.b16 %v4354, %v4346
    %v4947 = vpack.c.b16 %v4355, %v4347
    %v4948 = vpack.c.b16 %v4356, %v4348
    %v4949 = vpack.c.b16 %v4357, %v4349
    %v4950 = vpack.c.b16 %v4358, %v4350
    %v4951 = vpack.c.b16 %v4367, %v4359
    %v4952 = vpack.c.b16 %v4368, %v4360
    %v4953 = vpack.c.b16 %v4369, %v4361
    %v4954 = vpack.c.b16 %v4370, %v4362
    %v4955 = vpack.c.b16 %v4371, %v4363
    %v4956 = vpack.c.b16 %v4372, %v4364
    %v4957 = vpack.c.b16 %v4373, %v4365
    %v4958 = vpack.c.b16 %v4374, %v4366
    %v4959 = vpack.c.b16 %v4383, %v4375
    %v4960 = vpack.c.b16 %v4384, %v4376
    %v4961 = vpack.c.b16 %v4385, %v4377
    %v4962 = vpack.c.b16 %v4386, %v4378
    %v4963 = vpack.c.b16 %v4387, %v4379
    %v4964 = vpack.c.b16 %v4388, %v4380
    %v4965 = vpack.c.b16 %v4389, %v4381
    %v4966 = vpack.c.b16 %v4390, %v4382
    %v4967 = vpack.c.b16 %v4399, %v4391
    %v4968 = vpack.c.b16 %v4400, %v4392
    %v4969 = vpack.c.b16 %v4401, %v4393
    %v4970 = vpack.c.b16 %v4402, %v4394
    %v4971 = vpack.c.b16 %v4403, %v4395
    %v4972 = vpack.c.b16 %v4404, %v4396
    %v4973 = vpack.c.b16 %v4405, %v4397
    %v4974 = vpack.c.b16 %v4406, %v4398
    %v4975 = vpack.c.b16 %v4415, %v4407
    %v4976 = vpack.c.b16 %v4416, %v4408
    %v4977 = vpack.c.b16 %v4417, %v4409
    %v4978 = vpack.c.b16 %v4418, %v4410
    %v4979 = vpack.c.b16 %v4419, %v4411
    %v4980 = vpack.c.b16 %v4420, %v4412
    %v4981 = vpack.c.b16 %v4421, %v4413
    %v4982 = vpack.c.b16 %v4422, %v4414
    %v4983 = vpack.c.b16 %v4431, %v4423
    %v4984 = vpack.c.b16 %v4432, %v4424
    %v4985 = vpack.c.b16 %v4433, %v4425
    %v4986 = vpack.c.b16 %v4434, %v4426
    %v4987 = vpack.c.b16 %v4435, %v4427
    %v4988 = vpack.c.b16 %v4436, %v4428
    %v4989 = vpack.c.b16 %v4437, %v4429
    %v4990 = vpack.c.b16 %v4438, %v4430
    %v4991 = vpack.c.b16 %v4447, %v4439
    %v4992 = vpack.c.b16 %v4448, %v4440
    %v4993 = vpack.c.b16 %v4449, %v4441
    %v4994 = vpack.c.b16 %v4450, %v4442
    %v4995 = vpack.c.b16 %v4451, %v4443
    %v4996 = vpack.c.b16 %v4452, %v4444
    %v4997 = vpack.c.b16 %v4453, %v4445
    %v4998 = vpack.c.b16 %v4454, %v4446
    %v4999 = vpack.c.b16 %v4463, %v4455
    %v5000 = vpack.c.b16 %v4464, %v4456
    %v5001 = vpack.c.b16 %v4465, %v4457
    %v5002 = vpack.c.b16 %v4466, %v4458
    %v5003 = vpack.c.b16 %v4467, %v4459
    %v5004 = vpack.c.b16 %v4468, %v4460
    %v5005 = vpack.c.b16 %v4469, %v4461
    %v5006 = vpack.c.b16 %v4470, %v4462
    %v5007 = vpack.c.b16 %v4479, %v4471
    %v5008 = vpack.c.b16 %v4480, %v4472
    %v5009 = vpack.c.b16 %v4481, %v4473
    %v5010 = vpack.c.b16 %v4482, %v4474
    %v5011 = vpack.c.b16 %v4483, %v4475
    %v5012 = vpack.c.b16 %v4484, %v4476
    %v5013 = vpack.c.b16 %v4485, %v4477
    %v5014 = vpack.c.b16 %v4486, %v4478
    %v5015 = vpack.c.b16 %v4495, %v4487
    %v5016 = vpack.c.b16 %v4496, %v4488
    %v5017 = vpack.c.b16 %v4497, %v4489
    %v5018 = vpack.c.b16 %v4498, %v4490
    %v5019 = vpack.c.b16 %v4499, %v4491
    %v5020 = vpack.c.b16 %v4500, %v4492
    %v5021 = vpack.c.b16 %v4501, %v4493
    %v5022 = vpack.c.b16 %v4502, %v4494
    %v5023 = vpack.c.b16 %v4511, %v4503
    %v5024 = vpack.c.b16 %v4512, %v4504
    %v5025 = vpack.c.b16 %v4513, %v4505
    %v5026 = vpack.c.b16 %v4514, %v4506
    %v5027 = vpack.c.b16 %v4515, %v4507
    %v5028 = vpack.c.b16 %v4516, %v4508
    %v5029 = vpack.c.b16 %v4517, %v4509
    %v5030 = vpack.c.b16 %v4518, %v4510
    %5543 = vmatprep.subr.bf16.mxu0 %v4576
    %5544 = vmatpush1.bf16.msra.mxu0 %v4575
    %5545 = vmatprep.subr.bf16.mxu0 %v4568
    %5546 = vmatpush1.bf16.msra.mxu0 %v4567
    %5547 = vmatprep.subr.bf16.mxu0 %v4560
    %5548 = vmatpush1.bf16.msra.mxu0 %v4559
    %5549 = vmatprep.subr.bf16.mxu0 %v4552
    %5550 = vmatpush1.bf16.msra.mxu0 %v4551
    %5551 = vmatprep.subr.bf16.mxu0 %v4544
    %5552 = vmatpush1.bf16.msra.mxu0 %v4543
    %5553 = vmatprep.subr.bf16.mxu0 %v4536
    %5554 = vmatpush1.bf16.msra.mxu0 %v4535
    %5555 = vmatprep.subr.bf16.mxu0 %v4528
    %5556 = vmatpush1.bf16.msra.mxu0 %v4527
    %5557 = vmatprep.subr.bf16.mxu0 %v4520
    %5558 = vmatpush1.bf16.msra.mxu0 %v4519
    %5559 = vmatprep.subr.bf16.mxu0 %v4640
    %5560 = vmatpush2.bf16.msra.mxu0 %v4639
    %5561 = vmatprep.subr.bf16.mxu0 %v4632
    %5562 = vmatpush2.bf16.msra.mxu0 %v4631
    %5563 = vmatprep.subr.bf16.mxu0 %v4624
    %5564 = vmatpush2.bf16.msra.mxu0 %v4623
    %5565 = vmatprep.subr.bf16.mxu0 %v4616
    %5566 = vmatpush2.bf16.msra.mxu0 %v4615
    %5567 = vmatprep.subr.bf16.mxu0 %v4608
    %5568 = vmatpush2.bf16.msra.mxu0 %v4607
    %5569 = vmatprep.subr.bf16.mxu0 %v4600
    %5570 = vmatpush2.bf16.msra.mxu0 %v4599
    %5571 = vmatprep.subr.bf16.mxu0 %v4592
    %5572 = vmatpush2.bf16.msra.mxu0 %v4591
    %5573 = vmatprep.subr.bf16.mxu0 %v4584
    %5574 = vmatpush2.bf16.msra.mxu0 %v4583
    %5575 = vmatprep.mubr.bf16.mxu0 %v2464
    %5576 = vmatmul.mubr.bf16.gmra.mxu0 %v2463
    %v5577 = vpop.f32.mrf.mxu0
    %v5578 = vadd.f32 0.0, %v5577
    %v5579 = vpop.f32.mrf.mxu0
    %v5580 = vadd.f32 0.0, %v5579
    %v5581 = vpop.f32.mrf.mxu0
    %v5582 = vpop.f32.mrf.mxu0
    %5583 = vdwg.mxu0
    %5584 = vmatprep.subr.bf16.mxu0 %v4704
    %5585 = vmatpush1.bf16.msra.mxu0 %v4703
    %5586 = vmatprep.subr.bf16.mxu0 %v4696
    %5587 = vmatpush1.bf16.msra.mxu0 %v4695
    %5588 = vmatprep.subr.bf16.mxu0 %v4688
    %5589 = vmatpush1.bf16.msra.mxu0 %v4687
    %5590 = vmatprep.subr.bf16.mxu0 %v4680
    %5591 = vmatpush1.bf16.msra.mxu0 %v4679
    %5592 = vmatprep.subr.bf16.mxu0 %v4672
    %5593 = vmatpush1.bf16.msra.mxu0 %v4671
    %5594 = vmatprep.subr.bf16.mxu0 %v4664
    %5595 = vmatpush1.bf16.msra.mxu0 %v4663
    %5596 = vmatprep.subr.bf16.mxu0 %v4656
    %5597 = vmatpush1.bf16.msra.mxu0 %v4655
    %5598 = vmatprep.subr.bf16.mxu0 %v4648
    %5599 = vmatpush1.bf16.msra.mxu0 %v4647
    %5600 = vmatprep.subr.bf16.mxu0 %v4768
    %5601 = vmatpush2.bf16.msra.mxu0 %v4767
    %5602 = vmatprep.subr.bf16.mxu0 %v4760
    %5603 = vmatpush2.bf16.msra.mxu0 %v4759
    %5604 = vmatprep.subr.bf16.mxu0 %v4752
    %5605 = vmatpush2.bf16.msra.mxu0 %v4751
    %5606 = vmatprep.subr.bf16.mxu0 %v4744
    %5607 = vmatpush2.bf16.msra.mxu0 %v4743
    %5608 = vmatprep.subr.bf16.mxu0 %v4736
    %5609 = vmatpush2.bf16.msra.mxu0 %v4735
    %5610 = vmatprep.subr.bf16.mxu0 %v4728
    %5611 = vmatpush2.bf16.msra.mxu0 %v4727
    %5612 = vmatprep.subr.bf16.mxu0 %v4720
    %5613 = vmatpush2.bf16.msra.mxu0 %v4719
    %5614 = vmatprep.subr.bf16.mxu0 %v4712
    %5615 = vmatpush2.bf16.msra.mxu0 %v4711
    %5616 = vmatprep.mubr.bf16.mxu0 %v2466
    %5617 = vmatmul.mubr.bf16.gmra.mxu0 %v2465
    %v5618 = vpop.f32.mrf.mxu0
    %v5619 = vadd.f32 %v5578, %v5618
    %v5620 = vpop.f32.mrf.mxu0
    %v5621 = vadd.f32 %v5580, %v5620
    %v5622 = vpop.f32.mrf.mxu0
    %v5623 = vpop.f32.mrf.mxu0
    %5624 = vdwg.mxu0
    %5625 = vmatprep.subr.bf16.mxu0 %v4832
    %5626 = vmatpush1.bf16.msra.mxu0 %v4831
    %5627 = vmatprep.subr.bf16.mxu0 %v4824
    %5628 = vmatpush1.bf16.msra.mxu0 %v4823
    %5629 = vmatprep.subr.bf16.mxu0 %v4816
    %5630 = vmatpush1.bf16.msra.mxu0 %v4815
    %5631 = vmatprep.subr.bf16.mxu0 %v4808
    %5632 = vmatpush1.bf16.msra.mxu0 %v4807
    %5633 = vmatprep.subr.bf16.mxu0 %v4800
    %5634 = vmatpush1.bf16.msra.mxu0 %v4799
    %5635 = vmatprep.subr.bf16.mxu0 %v4792
    %5636 = vmatpush1.bf16.msra.mxu0 %v4791
    %5637 = vmatprep.subr.bf16.mxu0 %v4784
    %5638 = vmatpush1.bf16.msra.mxu0 %v4783
    %5639 = vmatprep.subr.bf16.mxu0 %v4776
    %5640 = vmatpush1.bf16.msra.mxu0 %v4775
    %5641 = vmatprep.subr.bf16.mxu0 %v4896
    %5642 = vmatpush2.bf16.msra.mxu0 %v4895
    %5643 = vmatprep.subr.bf16.mxu0 %v4888
    %5644 = vmatpush2.bf16.msra.mxu0 %v4887
    %5645 = vmatprep.subr.bf16.mxu0 %v4880
    %5646 = vmatpush2.bf16.msra.mxu0 %v4879
    %5647 = vmatprep.subr.bf16.mxu0 %v4872
    %5648 = vmatpush2.bf16.msra.mxu0 %v4871
    %5649 = vmatprep.subr.bf16.mxu0 %v4864
    %5650 = vmatpush2.bf16.msra.mxu0 %v4863
    %5651 = vmatprep.subr.bf16.mxu0 %v4856
    %5652 = vmatpush2.bf16.msra.mxu0 %v4855
    %5653 = vmatprep.subr.bf16.mxu0 %v4848
    %5654 = vmatpush2.bf16.msra.mxu0 %v4847
    %5655 = vmatprep.subr.bf16.mxu0 %v4840
    %5656 = vmatpush2.bf16.msra.mxu0 %v4839
    %5657 = vmatprep.mubr.bf16.mxu0 %v2468
    %5658 = vmatmul.mubr.bf16.gmra.mxu0 %v2467
    %v5659 = vpop.f32.mrf.mxu0
    %v5660 = vadd.f32 %v5619, %v5659
    %v5661 = vpop.f32.mrf.mxu0
    %v5662 = vadd.f32 %v5621, %v5661
    %v5663 = vpop.f32.mrf.mxu0
    %v5664 = vpop.f32.mrf.mxu0
    %5665 = vdwg.mxu0
    %5666 = vmatprep.subr.bf16.mxu0 %v4960
    %5667 = vmatpush1.bf16.msra.mxu0 %v4959
    %5668 = vmatprep.subr.bf16.mxu0 %v4952
    %5669 = vmatpush1.bf16.msra.mxu0 %v4951
    %5670 = vmatprep.subr.bf16.mxu0 %v4944
    %5671 = vmatpush1.bf16.msra.mxu0 %v4943
    %5672 = vmatprep.subr.bf16.mxu0 %v4936
    %5673 = vmatpush1.bf16.msra.mxu0 %v4935
    %5674 = vmatprep.subr.bf16.mxu0 %v4928
    %5675 = vmatpush1.bf16.msra.mxu0 %v4927
    %5676 = vmatprep.subr.bf16.mxu0 %v4920
    %5677 = vmatpush1.bf16.msra.mxu0 %v4919
    %5678 = vmatprep.subr.bf16.mxu0 %v4912
    %5679 = vmatpush1.bf16.msra.mxu0 %v4911
    %5680 = vmatprep.subr.bf16.mxu0 %v4904
    %5681 = vmatpush1.bf16.msra.mxu0 %v4903
    %5682 = vmatprep.subr.bf16.mxu0 %v5024
    %5683 = vmatpush2.bf16.msra.mxu0 %v5023
    %5684 = vmatprep.subr.bf16.mxu0 %v5016
    %5685 = vmatpush2.bf16.msra.mxu0 %v5015
    %5686 = vmatprep.subr.bf16.mxu0 %v5008
    %5687 = vmatpush2.bf16.msra.mxu0 %v5007
    %5688 = vmatprep.subr.bf16.mxu0 %v5000
    %5689 = vmatpush2.bf16.msra.mxu0 %v4999
    %5690 = vmatprep.subr.bf16.mxu0 %v4992
    %5691 = vmatpush2.bf16.msra.mxu0 %v4991
    %5692 = vmatprep.subr.bf16.mxu0 %v4984
    %5693 = vmatpush2.bf16.msra.mxu0 %v4983
    %5694 = vmatprep.subr.bf16.mxu0 %v4976
    %5695 = vmatpush2.bf16.msra.mxu0 %v4975
    %5696 = vmatprep.subr.bf16.mxu0 %v4968
    %5697 = vmatpush2.bf16.msra.mxu0 %v4967
    %5698 = vmatprep.mubr.bf16.mxu0 %v2470
    %5699 = vmatmul.mubr.bf16.gmra.mxu0 %v2469
    %v5700 = vpop.f32.mrf.mxu0
    %v5701 = vadd.f32 %v5660, %v5700
    %v5702 = vpop.f32.mrf.mxu0
    %v5703 = vadd.f32 %v5662, %v5702
    %v5704 = vpop.f32.mrf.mxu0
    %v5705 = vpop.f32.mrf.mxu0
    %5706 = vdwg.mxu0
    %5707 = vmatprep.subr.bf16.mxu0 %v4578
    %5708 = vmatpush1.bf16.msra.mxu0 %v4577
    %5709 = vmatprep.subr.bf16.mxu0 %v4570
    %5710 = vmatpush1.bf16.msra.mxu0 %v4569
    %5711 = vmatprep.subr.bf16.mxu0 %v4562
    %5712 = vmatpush1.bf16.msra.mxu0 %v4561
    %5713 = vmatprep.subr.bf16.mxu0 %v4554
    %5714 = vmatpush1.bf16.msra.mxu0 %v4553
    %5715 = vmatprep.subr.bf16.mxu0 %v4546
    %5716 = vmatpush1.bf16.msra.mxu0 %v4545
    %5717 = vmatprep.subr.bf16.mxu0 %v4538
    %5718 = vmatpush1.bf16.msra.mxu0 %v4537
    %5719 = vmatprep.subr.bf16.mxu0 %v4530
    %5720 = vmatpush1.bf16.msra.mxu0 %v4529
    %5721 = vmatprep.subr.bf16.mxu0 %v4522
    %5722 = vmatpush1.bf16.msra.mxu0 %v4521
    %5723 = vmatprep.subr.bf16.mxu0 %v4642
    %5724 = vmatpush2.bf16.msra.mxu0 %v4641
    %5725 = vmatprep.subr.bf16.mxu0 %v4634
    %5726 = vmatpush2.bf16.msra.mxu0 %v4633
    %5727 = vmatprep.subr.bf16.mxu0 %v4626
    %5728 = vmatpush2.bf16.msra.mxu0 %v4625
    %5729 = vmatprep.subr.bf16.mxu0 %v4618
    %5730 = vmatpush2.bf16.msra.mxu0 %v4617
    %5731 = vmatprep.subr.bf16.mxu0 %v4610
    %5732 = vmatpush2.bf16.msra.mxu0 %v4609
    %5733 = vmatprep.subr.bf16.mxu0 %v4602
    %5734 = vmatpush2.bf16.msra.mxu0 %v4601
    %5735 = vmatprep.subr.bf16.mxu0 %v4594
    %5736 = vmatpush2.bf16.msra.mxu0 %v4593
    %5737 = vmatprep.subr.bf16.mxu0 %v4586
    %5738 = vmatpush2.bf16.msra.mxu0 %v4585
    %5739 = vmatprep.mubr.bf16.mxu0 %v2464
    %5740 = vmatmul.mubr.bf16.gmra.mxu0 %v2463
    %v5741 = vpop.f32.mrf.mxu0
    %v5742 = vadd.f32 0.0, %v5741
    %v5743 = vpop.f32.mrf.mxu0
    %v5744 = vadd.f32 0.0, %v5743
    %v5745 = vpop.f32.mrf.mxu0
    %v5746 = vpop.f32.mrf.mxu0
    %5747 = vdwg.mxu0
    %5748 = vmatprep.subr.bf16.mxu0 %v4706
    %5749 = vmatpush1.bf16.msra.mxu0 %v4705
    %5750 = vmatprep.subr.bf16.mxu0 %v4698
    %5751 = vmatpush1.bf16.msra.mxu0 %v4697
    %5752 = vmatprep.subr.bf16.mxu0 %v4690
    %5753 = vmatpush1.bf16.msra.mxu0 %v4689
    %5754 = vmatprep.subr.bf16.mxu0 %v4682
    %5755 = vmatpush1.bf16.msra.mxu0 %v4681
    %5756 = vmatprep.subr.bf16.mxu0 %v4674
    %5757 = vmatpush1.bf16.msra.mxu0 %v4673
    %5758 = vmatprep.subr.bf16.mxu0 %v4666
    %5759 = vmatpush1.bf16.msra.mxu0 %v4665
    %5760 = vmatprep.subr.bf16.mxu0 %v4658
    %5761 = vmatpush1.bf16.msra.mxu0 %v4657
    %5762 = vmatprep.subr.bf16.mxu0 %v4650
    %5763 = vmatpush1.bf16.msra.mxu0 %v4649
    %5764 = vmatprep.subr.bf16.mxu0 %v4770
    %5765 = vmatpush2.bf16.msra.mxu0 %v4769
    %5766 = vmatprep.subr.bf16.mxu0 %v4762
    %5767 = vmatpush2.bf16.msra.mxu0 %v4761
    %5768 = vmatprep.subr.bf16.mxu0 %v4754
    %5769 = vmatpush2.bf16.msra.mxu0 %v4753
    %5770 = vmatprep.subr.bf16.mxu0 %v4746
    %5771 = vmatpush2.bf16.msra.mxu0 %v4745
    %5772 = vmatprep.subr.bf16.mxu0 %v4738
    %5773 = vmatpush2.bf16.msra.mxu0 %v4737
    %5774 = vmatprep.subr.bf16.mxu0 %v4730
    %5775 = vmatpush2.bf16.msra.mxu0 %v4729
    %5776 = vmatprep.subr.bf16.mxu0 %v4722
    %5777 = vmatpush2.bf16.msra.mxu0 %v4721
    %5778 = vmatprep.subr.bf16.mxu0 %v4714
    %5779 = vmatpush2.bf16.msra.mxu0 %v4713
    %5780 = vmatprep.mubr.bf16.mxu0 %v2466
    %5781 = vmatmul.mubr.bf16.gmra.mxu0 %v2465
    %v5782 = vpop.f32.mrf.mxu0
    %v5783 = vadd.f32 %v5742, %v5782
    %v5784 = vpop.f32.mrf.mxu0
    %v5785 = vadd.f32 %v5744, %v5784
    %v5786 = vpop.f32.mrf.mxu0
    %v5787 = vpop.f32.mrf.mxu0
    %5788 = vdwg.mxu0
    %5789 = vmatprep.subr.bf16.mxu0 %v4834
    %5790 = vmatpush1.bf16.msra.mxu0 %v4833
    %5791 = vmatprep.subr.bf16.mxu0 %v4826
    %5792 = vmatpush1.bf16.msra.mxu0 %v4825
    %5793 = vmatprep.subr.bf16.mxu0 %v4818
    %5794 = vmatpush1.bf16.msra.mxu0 %v4817
    %5795 = vmatprep.subr.bf16.mxu0 %v4810
    %5796 = vmatpush1.bf16.msra.mxu0 %v4809
    %5797 = vmatprep.subr.bf16.mxu0 %v4802
    %5798 = vmatpush1.bf16.msra.mxu0 %v4801
    %5799 = vmatprep.subr.bf16.mxu0 %v4794
    %5800 = vmatpush1.bf16.msra.mxu0 %v4793
    %5801 = vmatprep.subr.bf16.mxu0 %v4786
    %5802 = vmatpush1.bf16.msra.mxu0 %v4785
    %5803 = vmatprep.subr.bf16.mxu0 %v4778
    %5804 = vmatpush1.bf16.msra.mxu0 %v4777
    %5805 = vmatprep.subr.bf16.mxu0 %v4898
    %5806 = vmatpush2.bf16.msra.mxu0 %v4897
    %5807 = vmatprep.subr.bf16.mxu0 %v4890
    %5808 = vmatpush2.bf16.msra.mxu0 %v4889
    %5809 = vmatprep.subr.bf16.mxu0 %v4882
    %5810 = vmatpush2.bf16.msra.mxu0 %v4881
    %5811 = vmatprep.subr.bf16.mxu0 %v4874
    %5812 = vmatpush2.bf16.msra.mxu0 %v4873
    %5813 = vmatprep.subr.bf16.mxu0 %v4866
    %5814 = vmatpush2.bf16.msra.mxu0 %v4865
    %5815 = vmatprep.subr.bf16.mxu0 %v4858
    %5816 = vmatpush2.bf16.msra.mxu0 %v4857
    %5817 = vmatprep.subr.bf16.mxu0 %v4850
    %5818 = vmatpush2.bf16.msra.mxu0 %v4849
    %5819 = vmatprep.subr.bf16.mxu0 %v4842
    %5820 = vmatpush2.bf16.msra.mxu0 %v4841
    %5821 = vmatprep.mubr.bf16.mxu0 %v2468
    %5822 = vmatmul.mubr.bf16.gmra.mxu0 %v2467
    %v5823 = vpop.f32.mrf.mxu0
    %v5824 = vadd.f32 %v5783, %v5823
    %v5825 = vpop.f32.mrf.mxu0
    %v5826 = vadd.f32 %v5785, %v5825
    %v5827 = vpop.f32.mrf.mxu0
    %v5828 = vpop.f32.mrf.mxu0
    %5829 = vdwg.mxu0
    %5830 = vmatprep.subr.bf16.mxu0 %v4962
    %5831 = vmatpush1.bf16.msra.mxu0 %v4961
    %5832 = vmatprep.subr.bf16.mxu0 %v4954
    %5833 = vmatpush1.bf16.msra.mxu0 %v4953
    %5834 = vmatprep.subr.bf16.mxu0 %v4946
    %5835 = vmatpush1.bf16.msra.mxu0 %v4945
    %5836 = vmatprep.subr.bf16.mxu0 %v4938
    %5837 = vmatpush1.bf16.msra.mxu0 %v4937
    %5838 = vmatprep.subr.bf16.mxu0 %v4930
    %5839 = vmatpush1.bf16.msra.mxu0 %v4929
    %5840 = vmatprep.subr.bf16.mxu0 %v4922
    %5841 = vmatpush1.bf16.msra.mxu0 %v4921
    %5842 = vmatprep.subr.bf16.mxu0 %v4914
    %5843 = vmatpush1.bf16.msra.mxu0 %v4913
    %5844 = vmatprep.subr.bf16.mxu0 %v4906
    %5845 = vmatpush1.bf16.msra.mxu0 %v4905
    %5846 = vmatprep.subr.bf16.mxu0 %v5026
    %5847 = vmatpush2.bf16.msra.mxu0 %v5025
    %5848 = vmatprep.subr.bf16.mxu0 %v5018
    %5849 = vmatpush2.bf16.msra.mxu0 %v5017
    %5850 = vmatprep.subr.bf16.mxu0 %v5010
    %5851 = vmatpush2.bf16.msra.mxu0 %v5009
    %5852 = vmatprep.subr.bf16.mxu0 %v5002
    %5853 = vmatpush2.bf16.msra.mxu0 %v5001
    %5854 = vmatprep.subr.bf16.mxu0 %v4994
    %5855 = vmatpush2.bf16.msra.mxu0 %v4993
    %5856 = vmatprep.subr.bf16.mxu0 %v4986
    %5857 = vmatpush2.bf16.msra.mxu0 %v4985
    %5858 = vmatprep.subr.bf16.mxu0 %v4978
    %5859 = vmatpush2.bf16.msra.mxu0 %v4977
    %5860 = vmatprep.subr.bf16.mxu0 %v4970
    %5861 = vmatpush2.bf16.msra.mxu0 %v4969
    %5862 = vmatprep.mubr.bf16.mxu0 %v2470
    %5863 = vmatmul.mubr.bf16.gmra.mxu0 %v2469
    %v5864 = vpop.f32.mrf.mxu0
    %v5865 = vadd.f32 %v5824, %v5864
    %v5866 = vpop.f32.mrf.mxu0
    %v5867 = vadd.f32 %v5826, %v5866
    %v5868 = vpop.f32.mrf.mxu0
    %v5869 = vpop.f32.mrf.mxu0
    %5870 = vdwg.mxu0
    %5871 = vmatprep.subr.bf16.mxu0 %v4580
    %5872 = vmatpush1.bf16.msra.mxu0 %v4579
    %5873 = vmatprep.subr.bf16.mxu0 %v4572
    %5874 = vmatpush1.bf16.msra.mxu0 %v4571
    %5875 = vmatprep.subr.bf16.mxu0 %v4564
    %5876 = vmatpush1.bf16.msra.mxu0 %v4563
    %5877 = vmatprep.subr.bf16.mxu0 %v4556
    %5878 = vmatpush1.bf16.msra.mxu0 %v4555
    %5879 = vmatprep.subr.bf16.mxu0 %v4548
    %5880 = vmatpush1.bf16.msra.mxu0 %v4547
    %5881 = vmatprep.subr.bf16.mxu0 %v4540
    %5882 = vmatpush1.bf16.msra.mxu0 %v4539
    %5883 = vmatprep.subr.bf16.mxu0 %v4532
    %5884 = vmatpush1.bf16.msra.mxu0 %v4531
    %5885 = vmatprep.subr.bf16.mxu0 %v4524
    %5886 = vmatpush1.bf16.msra.mxu0 %v4523
    %5887 = vmatprep.subr.bf16.mxu0 %v4644
    %5888 = vmatpush2.bf16.msra.mxu0 %v4643
    %5889 = vmatprep.subr.bf16.mxu0 %v4636
    %5890 = vmatpush2.bf16.msra.mxu0 %v4635
    %5891 = vmatprep.subr.bf16.mxu0 %v4628
    %5892 = vmatpush2.bf16.msra.mxu0 %v4627
    %5893 = vmatprep.subr.bf16.mxu0 %v4620
    %5894 = vmatpush2.bf16.msra.mxu0 %v4619
    %5895 = vmatprep.subr.bf16.mxu0 %v4612
    %5896 = vmatpush2.bf16.msra.mxu0 %v4611
    %5897 = vmatprep.subr.bf16.mxu0 %v4604
    %5898 = vmatpush2.bf16.msra.mxu0 %v4603
    %5899 = vmatprep.subr.bf16.mxu0 %v4596
    %5900 = vmatpush2.bf16.msra.mxu0 %v4595
    %5901 = vmatprep.subr.bf16.mxu0 %v4588
    %5902 = vmatpush2.bf16.msra.mxu0 %v4587
    %5903 = vmatprep.mubr.bf16.mxu0 %v2464
    %5904 = vmatmul.mubr.bf16.gmra.mxu0 %v2463
    %v5905 = vpop.f32.mrf.mxu0
    %v5906 = vadd.f32 0.0, %v5905
    %v5907 = vpop.f32.mrf.mxu0
    %v5908 = vadd.f32 0.0, %v5907
    %v5909 = vpop.f32.mrf.mxu0
    %v5910 = vpop.f32.mrf.mxu0
    %5911 = vdwg.mxu0
    %5912 = vmatprep.subr.bf16.mxu0 %v4708
    %5913 = vmatpush1.bf16.msra.mxu0 %v4707
    %5914 = vmatprep.subr.bf16.mxu0 %v4700
    %5915 = vmatpush1.bf16.msra.mxu0 %v4699
    %5916 = vmatprep.subr.bf16.mxu0 %v4692
    %5917 = vmatpush1.bf16.msra.mxu0 %v4691
    %5918 = vmatprep.subr.bf16.mxu0 %v4684
    %5919 = vmatpush1.bf16.msra.mxu0 %v4683
    %5920 = vmatprep.subr.bf16.mxu0 %v4676
    %5921 = vmatpush1.bf16.msra.mxu0 %v4675
    %5922 = vmatprep.subr.bf16.mxu0 %v4668
    %5923 = vmatpush1.bf16.msra.mxu0 %v4667
    %5924 = vmatprep.subr.bf16.mxu0 %v4660
    %5925 = vmatpush1.bf16.msra.mxu0 %v4659
    %5926 = vmatprep.subr.bf16.mxu0 %v4652
    %5927 = vmatpush1.bf16.msra.mxu0 %v4651
    %5928 = vmatprep.subr.bf16.mxu0 %v4772
    %5929 = vmatpush2.bf16.msra.mxu0 %v4771
    %5930 = vmatprep.subr.bf16.mxu0 %v4764
    %5931 = vmatpush2.bf16.msra.mxu0 %v4763
    %5932 = vmatprep.subr.bf16.mxu0 %v4756
    %5933 = vmatpush2.bf16.msra.mxu0 %v4755
    %5934 = vmatprep.subr.bf16.mxu0 %v4748
    %5935 = vmatpush2.bf16.msra.mxu0 %v4747
    %5936 = vmatprep.subr.bf16.mxu0 %v4740
    %5937 = vmatpush2.bf16.msra.mxu0 %v4739
    %5938 = vmatprep.subr.bf16.mxu0 %v4732
    %5939 = vmatpush2.bf16.msra.mxu0 %v4731
    %5940 = vmatprep.subr.bf16.mxu0 %v4724
    %5941 = vmatpush2.bf16.msra.mxu0 %v4723
    %5942 = vmatprep.subr.bf16.mxu0 %v4716
    %5943 = vmatpush2.bf16.msra.mxu0 %v4715
    %5944 = vmatprep.mubr.bf16.mxu0 %v2466
    %5945 = vmatmul.mubr.bf16.gmra.mxu0 %v2465
    %v5946 = vpop.f32.mrf.mxu0
    %v5947 = vadd.f32 %v5906, %v5946
    %v5948 = vpop.f32.mrf.mxu0
    %v5949 = vadd.f32 %v5908, %v5948
    %v5950 = vpop.f32.mrf.mxu0
    %v5951 = vpop.f32.mrf.mxu0
    %5952 = vdwg.mxu0
    %5953 = vmatprep.subr.bf16.mxu0 %v4836
    %5954 = vmatpush1.bf16.msra.mxu0 %v4835
    %5955 = vmatprep.subr.bf16.mxu0 %v4828
    %5956 = vmatpush1.bf16.msra.mxu0 %v4827
    %5957 = vmatprep.subr.bf16.mxu0 %v4820
    %5958 = vmatpush1.bf16.msra.mxu0 %v4819
    %5959 = vmatprep.subr.bf16.mxu0 %v4812
    %5960 = vmatpush1.bf16.msra.mxu0 %v4811
    %5961 = vmatprep.subr.bf16.mxu0 %v4804
    %5962 = vmatpush1.bf16.msra.mxu0 %v4803
    %5963 = vmatprep.subr.bf16.mxu0 %v4796
    %5964 = vmatpush1.bf16.msra.mxu0 %v4795
    %5965 = vmatprep.subr.bf16.mxu0 %v4788
    %5966 = vmatpush1.bf16.msra.mxu0 %v4787
    %5967 = vmatprep.subr.bf16.mxu0 %v4780
    %5968 = vmatpush1.bf16.msra.mxu0 %v4779
    %5969 = vmatprep.subr.bf16.mxu0 %v4900
    %5970 = vmatpush2.bf16.msra.mxu0 %v4899
    %5971 = vmatprep.subr.bf16.mxu0 %v4892
    %5972 = vmatpush2.bf16.msra.mxu0 %v4891
    %5973 = vmatprep.subr.bf16.mxu0 %v4884
    %5974 = vmatpush2.bf16.msra.mxu0 %v4883
    %5975 = vmatprep.subr.bf16.mxu0 %v4876
    %5976 = vmatpush2.bf16.msra.mxu0 %v4875
    %5977 = vmatprep.subr.bf16.mxu0 %v4868
    %5978 = vmatpush2.bf16.msra.mxu0 %v4867
    %5979 = vmatprep.subr.bf16.mxu0 %v4860
    %5980 = vmatpush2.bf16.msra.mxu0 %v4859
    %5981 = vmatprep.subr.bf16.mxu0 %v4852
    %5982 = vmatpush2.bf16.msra.mxu0 %v4851
    %5983 = vmatprep.subr.bf16.mxu0 %v4844
    %5984 = vmatpush2.bf16.msra.mxu0 %v4843
    %5985 = vmatprep.mubr.bf16.mxu0 %v2468
    %5986 = vmatmul.mubr.bf16.gmra.mxu0 %v2467
    %v5987 = vpop.f32.mrf.mxu0
    %v5988 = vadd.f32 %v5947, %v5987
    %v5989 = vpop.f32.mrf.mxu0
    %v5990 = vadd.f32 %v5949, %v5989
    %v5991 = vpop.f32.mrf.mxu0
    %v5992 = vpop.f32.mrf.mxu0
    %5993 = vdwg.mxu0
    %5994 = vmatprep.subr.bf16.mxu0 %v4964
    %5995 = vmatpush1.bf16.msra.mxu0 %v4963
    %5996 = vmatprep.subr.bf16.mxu0 %v4956
    %5997 = vmatpush1.bf16.msra.mxu0 %v4955
    %5998 = vmatprep.subr.bf16.mxu0 %v4948
    %5999 = vmatpush1.bf16.msra.mxu0 %v4947
    %6000 = vmatprep.subr.bf16.mxu0 %v4940
    %6001 = vmatpush1.bf16.msra.mxu0 %v4939
    %6002 = vmatprep.subr.bf16.mxu0 %v4932
    %6003 = vmatpush1.bf16.msra.mxu0 %v4931
    %6004 = vmatprep.subr.bf16.mxu0 %v4924
    %6005 = vmatpush1.bf16.msra.mxu0 %v4923
    %6006 = vmatprep.subr.bf16.mxu0 %v4916
    %6007 = vmatpush1.bf16.msra.mxu0 %v4915
    %6008 = vmatprep.subr.bf16.mxu0 %v4908
    %6009 = vmatpush1.bf16.msra.mxu0 %v4907
    %6010 = vmatprep.subr.bf16.mxu0 %v5028
    %6011 = vmatpush2.bf16.msra.mxu0 %v5027
    %6012 = vmatprep.subr.bf16.mxu0 %v5020
    %6013 = vmatpush2.bf16.msra.mxu0 %v5019
    %6014 = vmatprep.subr.bf16.mxu0 %v5012
    %6015 = vmatpush2.bf16.msra.mxu0 %v5011
    %6016 = vmatprep.subr.bf16.mxu0 %v5004
    %6017 = vmatpush2.bf16.msra.mxu0 %v5003
    %6018 = vmatprep.subr.bf16.mxu0 %v4996
    %6019 = vmatpush2.bf16.msra.mxu0 %v4995
    %6020 = vmatprep.subr.bf16.mxu0 %v4988
    %6021 = vmatpush2.bf16.msra.mxu0 %v4987
    %6022 = vmatprep.subr.bf16.mxu0 %v4980
    %6023 = vmatpush2.bf16.msra.mxu0 %v4979
    %6024 = vmatprep.subr.bf16.mxu0 %v4972
    %6025 = vmatpush2.bf16.msra.mxu0 %v4971
    %6026 = vmatprep.mubr.bf16.mxu0 %v2470
    %6027 = vmatmul.mubr.bf16.gmra.mxu0 %v2469
    %v6028 = vpop.f32.mrf.mxu0
    %v6029 = vadd.f32 %v5988, %v6028
    %v6030 = vpop.f32.mrf.mxu0
    %v6031 = vadd.f32 %v5990, %v6030
    %v6032 = vpop.f32.mrf.mxu0
    %v6033 = vpop.f32.mrf.mxu0
    %6034 = vdwg.mxu0
    %6035 = vmatprep.subr.bf16.mxu0 %v4582
    %6036 = vmatpush1.bf16.msra.mxu0 %v4581
    %6037 = vmatprep.subr.bf16.mxu0 %v4574
    %6038 = vmatpush1.bf16.msra.mxu0 %v4573
    %6039 = vmatprep.subr.bf16.mxu0 %v4566
    %6040 = vmatpush1.bf16.msra.mxu0 %v4565
    %6041 = vmatprep.subr.bf16.mxu0 %v4558
    %6042 = vmatpush1.bf16.msra.mxu0 %v4557
    %6043 = vmatprep.subr.bf16.mxu0 %v4550
    %6044 = vmatpush1.bf16.msra.mxu0 %v4549
    %6045 = vmatprep.subr.bf16.mxu0 %v4542
    %6046 = vmatpush1.bf16.msra.mxu0 %v4541
    %6047 = vmatprep.subr.bf16.mxu0 %v4534
    %6048 = vmatpush1.bf16.msra.mxu0 %v4533
    %6049 = vmatprep.subr.bf16.mxu0 %v4526
    %6050 = vmatpush1.bf16.msra.mxu0 %v4525
    %6051 = vmatprep.subr.bf16.mxu0 %v4646
    %6052 = vmatpush2.bf16.msra.mxu0 %v4645
    %6053 = vmatprep.subr.bf16.mxu0 %v4638
    %6054 = vmatpush2.bf16.msra.mxu0 %v4637
    %6055 = vmatprep.subr.bf16.mxu0 %v4630
    %6056 = vmatpush2.bf16.msra.mxu0 %v4629
    %6057 = vmatprep.subr.bf16.mxu0 %v4622
    %6058 = vmatpush2.bf16.msra.mxu0 %v4621
    %6059 = vmatprep.subr.bf16.mxu0 %v4614
    %6060 = vmatpush2.bf16.msra.mxu0 %v4613
    %6061 = vmatprep.subr.bf16.mxu0 %v4606
    %6062 = vmatpush2.bf16.msra.mxu0 %v4605
    %6063 = vmatprep.subr.bf16.mxu0 %v4598
    %6064 = vmatpush2.bf16.msra.mxu0 %v4597
    %6065 = vmatprep.subr.bf16.mxu0 %v4590
    %6066 = vmatpush2.bf16.msra.mxu0 %v4589
    %6067 = vmatprep.mubr.bf16.mxu0 %v2464
    %6068 = vmatmul.mubr.bf16.gmra.mxu0 %v2463
    %v6069 = vpop.f32.mrf.mxu0
    %v6070 = vadd.f32 0.0, %v6069
    %v6071 = vpop.f32.mrf.mxu0
    %v6072 = vadd.f32 0.0, %v6071
    %v6073 = vpop.f32.mrf.mxu0
    %v6074 = vpop.f32.mrf.mxu0
    %6075 = vdwg.mxu0
    %6076 = vmatprep.subr.bf16.mxu0 %v4710
    %6077 = vmatpush1.bf16.msra.mxu0 %v4709
    %6078 = vmatprep.subr.bf16.mxu0 %v4702
    %6079 = vmatpush1.bf16.msra.mxu0 %v4701
    %6080 = vmatprep.subr.bf16.mxu0 %v4694
    %6081 = vmatpush1.bf16.msra.mxu0 %v4693
    %6082 = vmatprep.subr.bf16.mxu0 %v4686
    %6083 = vmatpush1.bf16.msra.mxu0 %v4685
    %6084 = vmatprep.subr.bf16.mxu0 %v4678
    %6085 = vmatpush1.bf16.msra.mxu0 %v4677
    %6086 = vmatprep.subr.bf16.mxu0 %v4670
    %6087 = vmatpush1.bf16.msra.mxu0 %v4669
    %6088 = vmatprep.subr.bf16.mxu0 %v4662
    %6089 = vmatpush1.bf16.msra.mxu0 %v4661
    %6090 = vmatprep.subr.bf16.mxu0 %v4654
    %6091 = vmatpush1.bf16.msra.mxu0 %v4653
    %6092 = vmatprep.subr.bf16.mxu0 %v4774
    %6093 = vmatpush2.bf16.msra.mxu0 %v4773
    %6094 = vmatprep.subr.bf16.mxu0 %v4766
    %6095 = vmatpush2.bf16.msra.mxu0 %v4765
    %6096 = vmatprep.subr.bf16.mxu0 %v4758
    %6097 = vmatpush2.bf16.msra.mxu0 %v4757
    %6098 = vmatprep.subr.bf16.mxu0 %v4750
    %6099 = vmatpush2.bf16.msra.mxu0 %v4749
    %6100 = vmatprep.subr.bf16.mxu0 %v4742
    %6101 = vmatpush2.bf16.msra.mxu0 %v4741
    %6102 = vmatprep.subr.bf16.mxu0 %v4734
    %6103 = vmatpush2.bf16.msra.mxu0 %v4733
    %6104 = vmatprep.subr.bf16.mxu0 %v4726
    %6105 = vmatpush2.bf16.msra.mxu0 %v4725
    %6106 = vmatprep.subr.bf16.mxu0 %v4718
    %6107 = vmatpush2.bf16.msra.mxu0 %v4717
    %6108 = vmatprep.mubr.bf16.mxu0 %v2466
    %6109 = vmatmul.mubr.bf16.gmra.mxu0 %v2465
    %v6110 = vpop.f32.mrf.mxu0
    %v6111 = vadd.f32 %v6070, %v6110
    %v6112 = vpop.f32.mrf.mxu0
    %v6113 = vadd.f32 %v6072, %v6112
    %v6114 = vpop.f32.mrf.mxu0
    %v6115 = vpop.f32.mrf.mxu0
    %6116 = vdwg.mxu0
    %6117 = vmatprep.subr.bf16.mxu0 %v4838
    %6118 = vmatpush1.bf16.msra.mxu0 %v4837
    %6119 = vmatprep.subr.bf16.mxu0 %v4830
    %6120 = vmatpush1.bf16.msra.mxu0 %v4829
    %6121 = vmatprep.subr.bf16.mxu0 %v4822
    %6122 = vmatpush1.bf16.msra.mxu0 %v4821
    %6123 = vmatprep.subr.bf16.mxu0 %v4814
    %6124 = vmatpush1.bf16.msra.mxu0 %v4813
    %6125 = vmatprep.subr.bf16.mxu0 %v4806
    %6126 = vmatpush1.bf16.msra.mxu0 %v4805
    %6127 = vmatprep.subr.bf16.mxu0 %v4798
    %6128 = vmatpush1.bf16.msra.mxu0 %v4797
    %6129 = vmatprep.subr.bf16.mxu0 %v4790
    %6130 = vmatpush1.bf16.msra.mxu0 %v4789
    %6131 = vmatprep.subr.bf16.mxu0 %v4782
    %6132 = vmatpush1.bf16.msra.mxu0 %v4781
    %6133 = vmatprep.subr.bf16.mxu0 %v4902
    %6134 = vmatpush2.bf16.msra.mxu0 %v4901
    %6135 = vmatprep.subr.bf16.mxu0 %v4894
    %6136 = vmatpush2.bf16.msra.mxu0 %v4893
    %6137 = vmatprep.subr.bf16.mxu0 %v4886
    %6138 = vmatpush2.bf16.msra.mxu0 %v4885
    %6139 = vmatprep.subr.bf16.mxu0 %v4878
    %6140 = vmatpush2.bf16.msra.mxu0 %v4877
    %6141 = vmatprep.subr.bf16.mxu0 %v4870
    %6142 = vmatpush2.bf16.msra.mxu0 %v4869
    %6143 = vmatprep.subr.bf16.mxu0 %v4862
    %6144 = vmatpush2.bf16.msra.mxu0 %v4861
    %6145 = vmatprep.subr.bf16.mxu0 %v4854
    %6146 = vmatpush2.bf16.msra.mxu0 %v4853
    %6147 = vmatprep.subr.bf16.mxu0 %v4846
    %6148 = vmatpush2.bf16.msra.mxu0 %v4845
    %6149 = vmatprep.mubr.bf16.mxu0 %v2468
    %6150 = vmatmul.mubr.bf16.gmra.mxu0 %v2467
    %v6151 = vpop.f32.mrf.mxu0
    %v6152 = vadd.f32 %v6111, %v6151
    %v6153 = vpop.f32.mrf.mxu0
    %v6154 = vadd.f32 %v6113, %v6153
    %v6155 = vpop.f32.mrf.mxu0
    %v6156 = vpop.f32.mrf.mxu0
    %6157 = vdwg.mxu0
    %6158 = vmatprep.subr.bf16.mxu0 %v4966
    %6159 = vmatpush1.bf16.msra.mxu0 %v4965
    %6160 = vmatprep.subr.bf16.mxu0 %v4958
    %6161 = vmatpush1.bf16.msra.mxu0 %v4957
    %6162 = vmatprep.subr.bf16.mxu0 %v4950
    %6163 = vmatpush1.bf16.msra.mxu0 %v4949
    %6164 = vmatprep.subr.bf16.mxu0 %v4942
    %6165 = vmatpush1.bf16.msra.mxu0 %v4941
    %6166 = vmatprep.subr.bf16.mxu0 %v4934
    %6167 = vmatpush1.bf16.msra.mxu0 %v4933
    %6168 = vmatprep.subr.bf16.mxu0 %v4926
    %6169 = vmatpush1.bf16.msra.mxu0 %v4925
    %6170 = vmatprep.subr.bf16.mxu0 %v4918
    %6171 = vmatpush1.bf16.msra.mxu0 %v4917
    %6172 = vmatprep.subr.bf16.mxu0 %v4910
    %6173 = vmatpush1.bf16.msra.mxu0 %v4909
    %6174 = vmatprep.subr.bf16.mxu0 %v5030
    %6175 = vmatpush2.bf16.msra.mxu0 %v5029
    %6176 = vmatprep.subr.bf16.mxu0 %v5022
    %6177 = vmatpush2.bf16.msra.mxu0 %v5021
    %6178 = vmatprep.subr.bf16.mxu0 %v5014
    %6179 = vmatpush2.bf16.msra.mxu0 %v5013
    %6180 = vmatprep.subr.bf16.mxu0 %v5006
    %6181 = vmatpush2.bf16.msra.mxu0 %v5005
    %6182 = vmatprep.subr.bf16.mxu0 %v4998
    %6183 = vmatpush2.bf16.msra.mxu0 %v4997
    %6184 = vmatprep.subr.bf16.mxu0 %v4990
    %6185 = vmatpush2.bf16.msra.mxu0 %v4989
    %6186 = vmatprep.subr.bf16.mxu0 %v4982
    %6187 = vmatpush2.bf16.msra.mxu0 %v4981
    %6188 = vmatprep.subr.bf16.mxu0 %v4974
    %6189 = vmatpush2.bf16.msra.mxu0 %v4973
    %6190 = vmatprep.mubr.bf16.mxu0 %v2470
    %6191 = vmatmul.mubr.bf16.gmra.mxu0 %v2469
    %v6192 = vpop.f32.mrf.mxu0
    %v6193 = vadd.f32 %v6152, %v6192
    %v6194 = vpop.f32.mrf.mxu0
    %v6195 = vadd.f32 %v6154, %v6194
    %v6196 = vpop.f32.mrf.mxu0
    %v6197 = vpop.f32.mrf.mxu0
    %6198 = vdwg.mxu0
    %v6199 = vrot.slane %v5701, 4
    %v6200 = vadd.f32 %v5701, %v6199
    %v6201 = vrot.slane %v6200, 2
    %v6202 = vadd.f32 %v6200, %v6201
    %v6203 = vrot.slane %v6202, 1
    %v6204 = vadd.f32 %v6202, %v6203
    %v6205 = vrot.slane %v5703, 4
    %v6206 = vadd.f32 %v5703, %v6205
    %v6207 = vrot.slane %v6206, 2
    %v6208 = vadd.f32 %v6206, %v6207
    %v6209 = vrot.slane %v6208, 1
    %v6210 = vadd.f32 %v6208, %v6209
    %v6211 = vrot.slane %v5865, 4
    %v6212 = vadd.f32 %v5865, %v6211
    %v6213 = vrot.slane %v6212, 2
    %v6214 = vadd.f32 %v6212, %v6213
    %v6215 = vrot.slane %v6214, 1
    %v6216 = vadd.f32 %v6214, %v6215
    %v6217 = vrot.slane %v5867, 4
    %v6218 = vadd.f32 %v5867, %v6217
    %v6219 = vrot.slane %v6218, 2
    %v6220 = vadd.f32 %v6218, %v6219
    %v6221 = vrot.slane %v6220, 1
    %v6222 = vadd.f32 %v6220, %v6221
    %v6223 = vrot.slane %v6029, 4
    %v6224 = vadd.f32 %v6029, %v6223
    %v6225 = vrot.slane %v6224, 2
    %v6226 = vadd.f32 %v6224, %v6225
    %v6227 = vrot.slane %v6226, 1
    %v6228 = vadd.f32 %v6226, %v6227
    %v6229 = vrot.slane %v6031, 4
    %v6230 = vadd.f32 %v6031, %v6229
    %v6231 = vrot.slane %v6230, 2
    %v6232 = vadd.f32 %v6230, %v6231
    %v6233 = vrot.slane %v6232, 1
    %v6234 = vadd.f32 %v6232, %v6233
    %v6235 = vrot.slane %v6193, 4
    %v6236 = vadd.f32 %v6193, %v6235
    %v6237 = vrot.slane %v6236, 2
    %v6238 = vadd.f32 %v6236, %v6237
    %v6239 = vrot.slane %v6238, 1
    %v6240 = vadd.f32 %v6238, %v6239
    %v6241 = vrot.slane %v6195, 4
    %v6242 = vadd.f32 %v6195, %v6241
    %v6243 = vrot.slane %v6242, 2
    %v6244 = vadd.f32 %v6242, %v6243
    %v6245 = vrot.slane %v6244, 1
    %v6246 = vadd.f32 %v6244, %v6245
    %v6247 = vmul.f32 %v6204, %v2107
    %v6248 = vmul.f32 %v6210, %v2107
    %v6249 = vmul.f32 %v6216, %v2107
    %v6250 = vmul.f32 %v6222, %v2107
    %v6251 = vmul.f32 %v6228, %v2107
    %v6252 = vmul.f32 %v6234, %v2107
    %v6253 = vmul.f32 %v6240, %v2107
    %v6254 = vmul.f32 %v6246, %v2107
    %v6255 = vmul.f32 %v5701, %v5701
    %v6256 = vmul.f32 %v5703, %v5703
    %v6257 = vmul.f32 %v5865, %v5865
    %v6258 = vmul.f32 %v5867, %v5867
    %v6259 = vmul.f32 %v6029, %v6029
    %v6260 = vmul.f32 %v6031, %v6031
    %v6261 = vmul.f32 %v6193, %v6193
    %v6262 = vmul.f32 %v6195, %v6195
    %v6263 = vrot.slane %v6255, 4
    %v6264 = vadd.f32 %v6255, %v6263
    %v6265 = vrot.slane %v6264, 2
    %v6266 = vadd.f32 %v6264, %v6265
    %v6267 = vrot.slane %v6266, 1
    %v6268 = vadd.f32 %v6266, %v6267
    %v6269 = vrot.slane %v6256, 4
    %v6270 = vadd.f32 %v6256, %v6269
    %v6271 = vrot.slane %v6270, 2
    %v6272 = vadd.f32 %v6270, %v6271
    %v6273 = vrot.slane %v6272, 1
    %v6274 = vadd.f32 %v6272, %v6273
    %v6275 = vrot.slane %v6257, 4
    %v6276 = vadd.f32 %v6257, %v6275
    %v6277 = vrot.slane %v6276, 2
    %v6278 = vadd.f32 %v6276, %v6277
    %v6279 = vrot.slane %v6278, 1
    %v6280 = vadd.f32 %v6278, %v6279
    %v6281 = vrot.slane %v6258, 4
    %v6282 = vadd.f32 %v6258, %v6281
    %v6283 = vrot.slane %v6282, 2
    %v6284 = vadd.f32 %v6282, %v6283
    %v6285 = vrot.slane %v6284, 1
    %v6286 = vadd.f32 %v6284, %v6285
    %v6287 = vrot.slane %v6259, 4
    %v6288 = vadd.f32 %v6259, %v6287
    %v6289 = vrot.slane %v6288, 2
    %v6290 = vadd.f32 %v6288, %v6289
    %v6291 = vrot.slane %v6290, 1
    %v6292 = vadd.f32 %v6290, %v6291
    %v6293 = vrot.slane %v6260, 4
    %v6294 = vadd.f32 %v6260, %v6293
    %v6295 = vrot.slane %v6294, 2
    %v6296 = vadd.f32 %v6294, %v6295
    %v6297 = vrot.slane %v6296, 1
    %v6298 = vadd.f32 %v6296, %v6297
    %v6299 = vrot.slane %v6261, 4
    %v6300 = vadd.f32 %v6261, %v6299
    %v6301 = vrot.slane %v6300, 2
    %v6302 = vadd.f32 %v6300, %v6301
    %v6303 = vrot.slane %v6302, 1
    %v6304 = vadd.f32 %v6302, %v6303
    %v6305 = vrot.slane %v6262, 4
    %v6306 = vadd.f32 %v6262, %v6305
    %v6307 = vrot.slane %v6306, 2
    %v6308 = vadd.f32 %v6306, %v6307
    %v6309 = vrot.slane %v6308, 1
    %v6310 = vadd.f32 %v6308, %v6309
    %v6311 = vmul.f32 %v6268, %v2107
    %v6312 = vmul.f32 %v6274, %v2107
    %v6313 = vmul.f32 %v6280, %v2107
    %v6314 = vmul.f32 %v6286, %v2107
    %v6315 = vmul.f32 %v6292, %v2107
    %v6316 = vmul.f32 %v6298, %v2107
    %v6317 = vmul.f32 %v6304, %v2107
    %v6318 = vmul.f32 %v6310, %v2107
    %v6319 = vmul.f32 %v6247, %v6247
    %v6320 = vmul.f32 %v6248, %v6248
    %v6321 = vmul.f32 %v6249, %v6249
    %v6322 = vmul.f32 %v6250, %v6250
    %v6323 = vmul.f32 %v6251, %v6251
    %v6324 = vmul.f32 %v6252, %v6252
    %v6325 = vmul.f32 %v6253, %v6253
    %v6326 = vmul.f32 %v6254, %v6254
    %v6327 = vsub.f32 %v6311, %v6319
    %v6328 = vsub.f32 %v6312, %v6320
    %v6329 = vsub.f32 %v6313, %v6321
    %v6330 = vsub.f32 %v6314, %v6322
    %v6331 = vsub.f32 %v6315, %v6323
    %v6332 = vsub.f32 %v6316, %v6324
    %v6333 = vsub.f32 %v6317, %v6325
    %v6334 = vsub.f32 %v6318, %v6326
    %v6335 = vmax.f32 %v6327, 0.0
    %v6336 = vmax.f32 %v6328, 0.0
    %v6337 = vmax.f32 %v6329, 0.0
    %v6338 = vmax.f32 %v6330, 0.0
    %v6339 = vmax.f32 %v6331, 0.0
    %v6340 = vmax.f32 %v6332, 0.0
    %v6341 = vmax.f32 %v6333, 0.0
    %v6342 = vmax.f32 %v6334, 0.0
    %s6343 = scalar_lea.vmem [#allocation13], 2
    %v6344 = vld [vmem:[%s6343] ss:$8 sm:$0xf]
    %v6345 = vld [vmem:[%s6343] ss:$8 sm:$0xf0]
    %v6346 = vor.u32 %v6344, %v6345
    %s6347 = scalar_lea.vmem [#allocation13], 3
    %v6348 = vld [vmem:[%s6347] ss:$8 sm:$0xf]
    %v6349 = vld [vmem:[%s6347] ss:$8 sm:$0xf0]
    %v6350 = vor.u32 %v6348, %v6349
    %v6351 = vadd.f32 %v6335, 1e-05
    %v6352 = vadd.f32 %v6336, 1e-05
    %v6353 = vadd.f32 %v6337, 1e-05
    %v6354 = vadd.f32 %v6338, 1e-05
    %v6355 = vadd.f32 %v6339, 1e-05
    %v6356 = vadd.f32 %v6340, 1e-05
    %v6357 = vadd.f32 %v6341, 1e-05
    %v6358 = vadd.f32 %v6342, 1e-05
    %v6359 = vrsqrt.pop %v6351
    %v6360 = vrsqrt.pop %v6352
    %v6361 = vrsqrt.pop %v6353
    %v6362 = vrsqrt.pop %v6354
    %v6363 = vrsqrt.pop %v6355
    %v6364 = vrsqrt.pop %v6356
    %v6365 = vrsqrt.pop %v6357
    %v6366 = vrsqrt.pop %v6358
    %v6375 = vcombine.low %v6359, %v6360
    %v6376 = vcombine.low %v6361, %v6362
    %v6377 = vcombine.low %v6363, %v6364
    %v6378 = vcombine.low %v6365, %v6366
    %v6380 = vunpack.c.l.s4 1966171168
    %v6381 = vunpack.c.0.s8 %v6380
    %v6382 = vlaneseq
    %v6383 = vshrl.u32 %v6382, 7
    %v6384 = vsub.s32 %v6381, %v6383
    %v6385 = vrot.slane %v6375, %v6384
    %v6387 = vunpack.c.l.s4 1966171168
    %v6388 = vunpack.c.0.s8 %v6387
    %v6389 = vlaneseq
    %v6390 = vshrl.u32 %v6389, 7
    %v6391 = vsub.s32 %v6388, %v6390
    %v6392 = vrot.slane %v6376, %v6391
    %v6394 = vunpack.c.l.s4 1966171168
    %v6395 = vunpack.c.0.s8 %v6394
    %v6396 = vlaneseq
    %v6397 = vshrl.u32 %v6396, 7
    %v6398 = vsub.s32 %v6395, %v6397
    %v6399 = vrot.slane %v6377, %v6398
    %v6401 = vunpack.c.l.s4 1966171168
    %v6402 = vunpack.c.0.s8 %v6401
    %v6403 = vlaneseq
    %v6404 = vshrl.u32 %v6403, 7
    %v6405 = vsub.s32 %v6402, %v6404
    %v6406 = vrot.slane %v6378, %v6405
    %v6407 = vcombine.low %v6385, %v6392
    %v6408 = vcombine.low %v6399, %v6406
    %v6410 = vunpack.c.l.s4 1966171168
    %v6411 = vunpack.c.0.s8 %v6410
    %v6412 = vlaneseq
    %v6413 = vshrl.u32 %v6412, 7
    %v6414 = vsub.s32 %v6411, %v6413
    %v6415 = vrot.slane %v6407, %v6414
    %v6417 = vunpack.c.l.s4 1966171168
    %v6418 = vunpack.c.0.s8 %v6417
    %v6419 = vlaneseq
    %v6420 = vshrl.u32 %v6419, 7
    %v6421 = vsub.s32 %v6418, %v6420
    %v6422 = vrot.slane %v6408, %v6421
    %v6423 = vcombine.low %v6415, %v6422
    %v6425 = vmul.f32 %v6346, %v6423
    %v6427 = vlaneseq
    %v6428 = vshrl.u32 %v6427, 7
    %v6429 = vsub.s32 0, %v6428
    %v6430 = vrot.slane %v6425, %v6429
    %v6431 = vlaneseq
    %v6432 = vshrl.u32 %v6431, 7
    %v6433 = vsub.s32 1, %v6432
    %v6434 = vrot.slane %v6425, %v6433
    %v6435 = vlaneseq
    %v6436 = vshrl.u32 %v6435, 7
    %v6437 = vsub.s32 2, %v6436
    %v6438 = vrot.slane %v6425, %v6437
    %v6439 = vlaneseq
    %v6440 = vshrl.u32 %v6439, 7
    %v6441 = vsub.s32 3, %v6440
    %v6442 = vrot.slane %v6425, %v6441
    %v6443 = vlaneseq
    %v6444 = vshrl.u32 %v6443, 7
    %v6445 = vsub.s32 4, %v6444
    %v6446 = vrot.slane %v6425, %v6445
    %v6447 = vlaneseq
    %v6448 = vshrl.u32 %v6447, 7
    %v6449 = vsub.s32 5, %v6448
    %v6450 = vrot.slane %v6425, %v6449
    %v6451 = vlaneseq
    %v6452 = vshrl.u32 %v6451, 7
    %v6453 = vsub.s32 6, %v6452
    %v6454 = vrot.slane %v6425, %v6453
    %v6455 = vlaneseq
    %v6456 = vshrl.u32 %v6455, 7
    %v6457 = vsub.s32 7, %v6456
    %v6458 = vrot.slane %v6425, %v6457
    %v6467 = vmul.f32 %v6247, %v6430
    %v6468 = vmul.f32 %v6248, %v6434
    %v6469 = vmul.f32 %v6249, %v6438
    %v6470 = vmul.f32 %v6250, %v6442
    %v6471 = vmul.f32 %v6251, %v6446
    %v6472 = vmul.f32 %v6252, %v6450
    %v6473 = vmul.f32 %v6253, %v6454
    %v6474 = vmul.f32 %v6254, %v6458
    %v6483 = vcombine.low %v6467, %v6468
    %v6484 = vcombine.low %v6469, %v6470
    %v6485 = vcombine.low %v6471, %v6472
    %v6486 = vcombine.low %v6473, %v6474
    %v6488 = vunpack.c.l.s4 1966171168
    %v6489 = vunpack.c.0.s8 %v6488
    %v6490 = vlaneseq
    %v6491 = vshrl.u32 %v6490, 7
    %v6492 = vsub.s32 %v6489, %v6491
    %v6493 = vrot.slane %v6483, %v6492
    %v6495 = vunpack.c.l.s4 1966171168
    %v6496 = vunpack.c.0.s8 %v6495
    %v6497 = vlaneseq
    %v6498 = vshrl.u32 %v6497, 7
    %v6499 = vsub.s32 %v6496, %v6498
    %v6500 = vrot.slane %v6484, %v6499
    %v6502 = vunpack.c.l.s4 1966171168
    %v6503 = vunpack.c.0.s8 %v6502
    %v6504 = vlaneseq
    %v6505 = vshrl.u32 %v6504, 7
    %v6506 = vsub.s32 %v6503, %v6505
    %v6507 = vrot.slane %v6485, %v6506
    %v6509 = vunpack.c.l.s4 1966171168
    %v6510 = vunpack.c.0.s8 %v6509
    %v6511 = vlaneseq
    %v6512 = vshrl.u32 %v6511, 7
    %v6513 = vsub.s32 %v6510, %v6512
    %v6514 = vrot.slane %v6486, %v6513
    %v6515 = vcombine.low %v6493, %v6500
    %v6516 = vcombine.low %v6507, %v6514
    %v6518 = vunpack.c.l.s4 1966171168
    %v6519 = vunpack.c.0.s8 %v6518
    %v6520 = vlaneseq
    %v6521 = vshrl.u32 %v6520, 7
    %v6522 = vsub.s32 %v6519, %v6521
    %v6523 = vrot.slane %v6515, %v6522
    %v6525 = vunpack.c.l.s4 1966171168
    %v6526 = vunpack.c.0.s8 %v6525
    %v6527 = vlaneseq
    %v6528 = vshrl.u32 %v6527, 7
    %v6529 = vsub.s32 %v6526, %v6528
    %v6530 = vrot.slane %v6516, %v6529
    %v6531 = vcombine.low %v6523, %v6530
    %v6533 = vsub.f32 %v6350, %v6531
    %v6534 = vmul.f32 %v5701, %v6430
    %v6535 = vmul.f32 %v5703, %v6434
    %v6536 = vmul.f32 %v5865, %v6438
    %v6537 = vmul.f32 %v5867, %v6442
    %v6538 = vmul.f32 %v6029, %v6446
    %v6539 = vmul.f32 %v6031, %v6450
    %v6540 = vmul.f32 %v6193, %v6454
    %v6541 = vmul.f32 %v6195, %v6458
    %v6543 = vlaneseq
    %v6544 = vshrl.u32 %v6543, 7
    %v6545 = vsub.s32 0, %v6544
    %v6546 = vrot.slane %v6533, %v6545
    %v6547 = vlaneseq
    %v6548 = vshrl.u32 %v6547, 7
    %v6549 = vsub.s32 1, %v6548
    %v6550 = vrot.slane %v6533, %v6549
    %v6551 = vlaneseq
    %v6552 = vshrl.u32 %v6551, 7
    %v6553 = vsub.s32 2, %v6552
    %v6554 = vrot.slane %v6533, %v6553
    %v6555 = vlaneseq
    %v6556 = vshrl.u32 %v6555, 7
    %v6557 = vsub.s32 3, %v6556
    %v6558 = vrot.slane %v6533, %v6557
    %v6559 = vlaneseq
    %v6560 = vshrl.u32 %v6559, 7
    %v6561 = vsub.s32 4, %v6560
    %v6562 = vrot.slane %v6533, %v6561
    %v6563 = vlaneseq
    %v6564 = vshrl.u32 %v6563, 7
    %v6565 = vsub.s32 5, %v6564
    %v6566 = vrot.slane %v6533, %v6565
    %v6567 = vlaneseq
    %v6568 = vshrl.u32 %v6567, 7
    %v6569 = vsub.s32 6, %v6568
    %v6570 = vrot.slane %v6533, %v6569
    %v6571 = vlaneseq
    %v6572 = vshrl.u32 %v6571, 7
    %v6573 = vsub.s32 7, %v6572
    %v6574 = vrot.slane %v6533, %v6573
    %v6583 = vadd.f32 %v6534, %v6546
    %v6584 = vadd.f32 %v6535, %v6550
    %v6585 = vadd.f32 %v6536, %v6554
    %v6586 = vadd.f32 %v6537, %v6558
    %v6587 = vadd.f32 %v6538, %v6562
    %v6588 = vadd.f32 %v6539, %v6566
    %v6589 = vadd.f32 %v6540, %v6570
    %v6590 = vadd.f32 %v6541, %v6574
    %v6591 = vmax.f32 %v6583, 0.0
    %v6592 = vmax.f32 %v6584, 0.0
    %v6593 = vmax.f32 %v6585, 0.0
    %v6594 = vmax.f32 %v6586, 0.0
    %v6595 = vmax.f32 %v6587, 0.0
    %v6596 = vmax.f32 %v6588, 0.0
    %v6597 = vmax.f32 %v6589, 0.0
    %v6598 = vmax.f32 %v6590, 0.0
    %s6599 = smul.u32 %s2459, 4
    %s6600 = sshll.u32 %s6599, 4
    %6601 = dma.done %s69, %s6600
    %v6602 = vpack.c.bf16 %v6591, %v6591
    %v6603 = vpack.c.bf16 %v6592, %v6592
    %v6604 = vpack.c.bf16 %v6593, %v6593
    %v6605 = vpack.c.bf16 %v6594, %v6594
    %v6606 = vpack.c.bf16 %v6595, %v6595
    %v6607 = vpack.c.bf16 %v6596, %v6596
    %v6608 = vpack.c.bf16 %v6597, %v6597
    %v6609 = vpack.c.bf16 %v6598, %v6598
    %v6610 = vld [vmem:[#allocation4] sm:$0xff]
    %v6611 = vld [vmem:[#allocation4 + $0x8] sm:$0xff]
    %v6612 = vld [vmem:[#allocation4 + $0x10] sm:$0xff]
    %v6613 = vld [vmem:[#allocation4 + $0x18] sm:$0xff]
    %v6614 = vld [vmem:[#allocation4 + $0x20] sm:$0xff]
    %v6615 = vld [vmem:[#allocation4 + $0x28] sm:$0xff]
    %v6616 = vld [vmem:[#allocation4 + $0x30] sm:$0xff]
    %v6617 = vld [vmem:[#allocation4 + $0x38] sm:$0xff]
    %v6618 = vld [vmem:[#allocation4 + $0x40] sm:$0xff]
    %v6619 = vld [vmem:[#allocation4 + $0x48] sm:$0xff]
    %v6620 = vld [vmem:[#allocation4 + $0x50] sm:$0xff]
    %v6621 = vld [vmem:[#allocation4 + $0x58] sm:$0xff]
    %v6622 = vld [vmem:[#allocation4 + $0x60] sm:$0xff]
    %v6623 = vld [vmem:[#allocation4 + $0x68] sm:$0xff]
    %v6624 = vld [vmem:[#allocation4 + $0x70] sm:$0xff]
    %v6625 = vld [vmem:[#allocation4 + $0x78] sm:$0xff]
    %v6626 = vld [vmem:[#allocation4 + $0x80] sm:$0xff]
    %v6627 = vld [vmem:[#allocation4 + $0x88] sm:$0xff]
    %v6628 = vld [vmem:[#allocation4 + $0x90] sm:$0xff]
    %v6629 = vld [vmem:[#allocation4 + $0x98] sm:$0xff]
    %v6630 = vld [vmem:[#allocation4 + $0xa0] sm:$0xff]
    %v6631 = vld [vmem:[#allocation4 + $0xa8] sm:$0xff]
    %v6632 = vld [vmem:[#allocation4 + $0xb0] sm:$0xff]
    %v6633 = vld [vmem:[#allocation4 + $0xb8] sm:$0xff]
    %v6634 = vld [vmem:[#allocation4 + $0xc0] sm:$0xff]
    %v6635 = vld [vmem:[#allocation4 + $0xc8] sm:$0xff]
    %v6636 = vld [vmem:[#allocation4 + $0xd0] sm:$0xff]
    %v6637 = vld [vmem:[#allocation4 + $0xd8] sm:$0xff]
    %v6638 = vld [vmem:[#allocation4 + $0xe0] sm:$0xff]
    %v6639 = vld [vmem:[#allocation4 + $0xe8] sm:$0xff]
    %v6640 = vld [vmem:[#allocation4 + $0xf0] sm:$0xff]
    %v6641 = vld [vmem:[#allocation4 + $0xf8] sm:$0xff]
    %v6642 = vld [vmem:[#allocation4 + $0x100] sm:$0xff]
    %v6643 = vld [vmem:[#allocation4 + $0x108] sm:$0xff]
    %v6644 = vld [vmem:[#allocation4 + $0x110] sm:$0xff]
    %v6645 = vld [vmem:[#allocation4 + $0x118] sm:$0xff]
    %v6646 = vld [vmem:[#allocation4 + $0x120] sm:$0xff]
    %v6647 = vld [vmem:[#allocation4 + $0x128] sm:$0xff]
    %v6648 = vld [vmem:[#allocation4 + $0x130] sm:$0xff]
    %v6649 = vld [vmem:[#allocation4 + $0x138] sm:$0xff]
    %v6650 = vld [vmem:[#allocation4 + $0x140] sm:$0xff]
    %v6651 = vld [vmem:[#allocation4 + $0x148] sm:$0xff]
    %v6652 = vld [vmem:[#allocation4 + $0x150] sm:$0xff]
    %v6653 = vld [vmem:[#allocation4 + $0x158] sm:$0xff]
    %v6654 = vld [vmem:[#allocation4 + $0x160] sm:$0xff]
    %v6655 = vld [vmem:[#allocation4 + $0x168] sm:$0xff]
    %v6656 = vld [vmem:[#allocation4 + $0x170] sm:$0xff]
    %v6657 = vld [vmem:[#allocation4 + $0x178] sm:$0xff]
    %v6658 = vld [vmem:[#allocation4 + $0x180] sm:$0xff]
    %v6659 = vld [vmem:[#allocation4 + $0x188] sm:$0xff]
    %v6660 = vld [vmem:[#allocation4 + $0x190] sm:$0xff]
    %v6661 = vld [vmem:[#allocation4 + $0x198] sm:$0xff]
    %v6662 = vld [vmem:[#allocation4 + $0x1a0] sm:$0xff]
    %v6663 = vld [vmem:[#allocation4 + $0x1a8] sm:$0xff]
    %v6664 = vld [vmem:[#allocation4 + $0x1b0] sm:$0xff]
    %v6665 = vld [vmem:[#allocation4 + $0x1b8] sm:$0xff]
    %v6666 = vld [vmem:[#allocation4 + $0x1c0] sm:$0xff]
    %v6667 = vld [vmem:[#allocation4 + $0x1c8] sm:$0xff]
    %v6668 = vld [vmem:[#allocation4 + $0x1d0] sm:$0xff]
    %v6669 = vld [vmem:[#allocation4 + $0x1d8] sm:$0xff]
    %v6670 = vld [vmem:[#allocation4 + $0x1e0] sm:$0xff]
    %v6671 = vld [vmem:[#allocation4 + $0x1e8] sm:$0xff]
    %v6672 = vld [vmem:[#allocation4 + $0x1f0] sm:$0xff]
    %v6673 = vld [vmem:[#allocation4 + $0x1f8] sm:$0xff]
    %v6674 = vld [vmem:[#allocation4 + $0x200] sm:$0xff]
    %v6675 = vld [vmem:[#allocation4 + $0x208] sm:$0xff]
    %v6676 = vld [vmem:[#allocation4 + $0x210] sm:$0xff]
    %v6677 = vld [vmem:[#allocation4 + $0x218] sm:$0xff]
    %v6678 = vld [vmem:[#allocation4 + $0x220] sm:$0xff]
    %v6679 = vld [vmem:[#allocation4 + $0x228] sm:$0xff]
    %v6680 = vld [vmem:[#allocation4 + $0x230] sm:$0xff]
    %v6681 = vld [vmem:[#allocation4 + $0x238] sm:$0xff]
    %v6682 = vld [vmem:[#allocation4 + $0x240] sm:$0xff]
    %v6683 = vld [vmem:[#allocation4 + $0x248] sm:$0xff]
    %v6684 = vld [vmem:[#allocation4 + $0x250] sm:$0xff]
    %v6685 = vld [vmem:[#allocation4 + $0x258] sm:$0xff]
    %v6686 = vld [vmem:[#allocation4 + $0x260] sm:$0xff]
    %v6687 = vld [vmem:[#allocation4 + $0x268] sm:$0xff]
    %v6688 = vld [vmem:[#allocation4 + $0x270] sm:$0xff]
    %v6689 = vld [vmem:[#allocation4 + $0x278] sm:$0xff]
    %v6690 = vld [vmem:[#allocation4 + $0x280] sm:$0xff]
    %v6691 = vld [vmem:[#allocation4 + $0x288] sm:$0xff]
    %v6692 = vld [vmem:[#allocation4 + $0x290] sm:$0xff]
    %v6693 = vld [vmem:[#allocation4 + $0x298] sm:$0xff]
    %v6694 = vld [vmem:[#allocation4 + $0x2a0] sm:$0xff]
    %v6695 = vld [vmem:[#allocation4 + $0x2a8] sm:$0xff]
    %v6696 = vld [vmem:[#allocation4 + $0x2b0] sm:$0xff]
    %v6697 = vld [vmem:[#allocation4 + $0x2b8] sm:$0xff]
    %v6698 = vld [vmem:[#allocation4 + $0x2c0] sm:$0xff]
    %v6699 = vld [vmem:[#allocation4 + $0x2c8] sm:$0xff]
    %v6700 = vld [vmem:[#allocation4 + $0x2d0] sm:$0xff]
    %v6701 = vld [vmem:[#allocation4 + $0x2d8] sm:$0xff]
    %v6702 = vld [vmem:[#allocation4 + $0x2e0] sm:$0xff]
    %v6703 = vld [vmem:[#allocation4 + $0x2e8] sm:$0xff]
    %v6704 = vld [vmem:[#allocation4 + $0x2f0] sm:$0xff]
    %v6705 = vld [vmem:[#allocation4 + $0x2f8] sm:$0xff]
    %v6706 = vld [vmem:[#allocation4 + $0x300] sm:$0xff]
    %v6707 = vld [vmem:[#allocation4 + $0x308] sm:$0xff]
    %v6708 = vld [vmem:[#allocation4 + $0x310] sm:$0xff]
    %v6709 = vld [vmem:[#allocation4 + $0x318] sm:$0xff]
    %v6710 = vld [vmem:[#allocation4 + $0x320] sm:$0xff]
    %v6711 = vld [vmem:[#allocation4 + $0x328] sm:$0xff]
    %v6712 = vld [vmem:[#allocation4 + $0x330] sm:$0xff]
    %v6713 = vld [vmem:[#allocation4 + $0x338] sm:$0xff]
    %v6714 = vld [vmem:[#allocation4 + $0x340] sm:$0xff]
    %v6715 = vld [vmem:[#allocation4 + $0x348] sm:$0xff]
    %v6716 = vld [vmem:[#allocation4 + $0x350] sm:$0xff]
    %v6717 = vld [vmem:[#allocation4 + $0x358] sm:$0xff]
    %v6718 = vld [vmem:[#allocation4 + $0x360] sm:$0xff]
    %v6719 = vld [vmem:[#allocation4 + $0x368] sm:$0xff]
    %v6720 = vld [vmem:[#allocation4 + $0x370] sm:$0xff]
    %v6721 = vld [vmem:[#allocation4 + $0x378] sm:$0xff]
    %v6722 = vld [vmem:[#allocation4 + $0x380] sm:$0xff]
    %v6723 = vld [vmem:[#allocation4 + $0x388] sm:$0xff]
    %v6724 = vld [vmem:[#allocation4 + $0x390] sm:$0xff]
    %v6725 = vld [vmem:[#allocation4 + $0x398] sm:$0xff]
    %v6726 = vld [vmem:[#allocation4 + $0x3a0] sm:$0xff]
    %v6727 = vld [vmem:[#allocation4 + $0x3a8] sm:$0xff]
    %v6728 = vld [vmem:[#allocation4 + $0x3b0] sm:$0xff]
    %v6729 = vld [vmem:[#allocation4 + $0x3b8] sm:$0xff]
    %v6730 = vld [vmem:[#allocation4 + $0x3c0] sm:$0xff]
    %v6731 = vld [vmem:[#allocation4 + $0x3c8] sm:$0xff]
    %v6732 = vld [vmem:[#allocation4 + $0x3d0] sm:$0xff]
    %v6733 = vld [vmem:[#allocation4 + $0x3d8] sm:$0xff]
    %v6734 = vld [vmem:[#allocation4 + $0x3e0] sm:$0xff]
    %v6735 = vld [vmem:[#allocation4 + $0x3e8] sm:$0xff]
    %v6736 = vld [vmem:[#allocation4 + $0x3f0] sm:$0xff]
    %v6737 = vld [vmem:[#allocation4 + $0x3f8] sm:$0xff]
    %v6738 = vld [vmem:[#allocation4 + $0x400] sm:$0xff]
    %v6739 = vld [vmem:[#allocation4 + $0x408] sm:$0xff]
    %v6740 = vld [vmem:[#allocation4 + $0x410] sm:$0xff]
    %v6741 = vld [vmem:[#allocation4 + $0x418] sm:$0xff]
    %v6742 = vld [vmem:[#allocation4 + $0x420] sm:$0xff]
    %v6743 = vld [vmem:[#allocation4 + $0x428] sm:$0xff]
    %v6744 = vld [vmem:[#allocation4 + $0x430] sm:$0xff]
    %v6745 = vld [vmem:[#allocation4 + $0x438] sm:$0xff]
    %v6746 = vld [vmem:[#allocation4 + $0x440] sm:$0xff]
    %v6747 = vld [vmem:[#allocation4 + $0x448] sm:$0xff]
    %v6748 = vld [vmem:[#allocation4 + $0x450] sm:$0xff]
    %v6749 = vld [vmem:[#allocation4 + $0x458] sm:$0xff]
    %v6750 = vld [vmem:[#allocation4 + $0x460] sm:$0xff]
    %v6751 = vld [vmem:[#allocation4 + $0x468] sm:$0xff]
    %v6752 = vld [vmem:[#allocation4 + $0x470] sm:$0xff]
    %v6753 = vld [vmem:[#allocation4 + $0x478] sm:$0xff]
    %v6754 = vld [vmem:[#allocation4 + $0x480] sm:$0xff]
    %v6755 = vld [vmem:[#allocation4 + $0x488] sm:$0xff]
    %v6756 = vld [vmem:[#allocation4 + $0x490] sm:$0xff]
    %v6757 = vld [vmem:[#allocation4 + $0x498] sm:$0xff]
    %v6758 = vld [vmem:[#allocation4 + $0x4a0] sm:$0xff]
    %v6759 = vld [vmem:[#allocation4 + $0x4a8] sm:$0xff]
    %v6760 = vld [vmem:[#allocation4 + $0x4b0] sm:$0xff]
    %v6761 = vld [vmem:[#allocation4 + $0x4b8] sm:$0xff]
    %v6762 = vld [vmem:[#allocation4 + $0x4c0] sm:$0xff]
    %v6763 = vld [vmem:[#allocation4 + $0x4c8] sm:$0xff]
    %v6764 = vld [vmem:[#allocation4 + $0x4d0] sm:$0xff]
    %v6765 = vld [vmem:[#allocation4 + $0x4d8] sm:$0xff]
    %v6766 = vld [vmem:[#allocation4 + $0x4e0] sm:$0xff]
    %v6767 = vld [vmem:[#allocation4 + $0x4e8] sm:$0xff]
    %v6768 = vld [vmem:[#allocation4 + $0x4f0] sm:$0xff]
    %v6769 = vld [vmem:[#allocation4 + $0x4f8] sm:$0xff]
    %v6770 = vld [vmem:[#allocation4 + $0x500] sm:$0xff]
    %v6771 = vld [vmem:[#allocation4 + $0x508] sm:$0xff]
    %v6772 = vld [vmem:[#allocation4 + $0x510] sm:$0xff]
    %v6773 = vld [vmem:[#allocation4 + $0x518] sm:$0xff]
    %v6774 = vld [vmem:[#allocation4 + $0x520] sm:$0xff]
    %v6775 = vld [vmem:[#allocation4 + $0x528] sm:$0xff]
    %v6776 = vld [vmem:[#allocation4 + $0x530] sm:$0xff]
    %v6777 = vld [vmem:[#allocation4 + $0x538] sm:$0xff]
    %v6778 = vld [vmem:[#allocation4 + $0x540] sm:$0xff]
    %v6779 = vld [vmem:[#allocation4 + $0x548] sm:$0xff]
    %v6780 = vld [vmem:[#allocation4 + $0x550] sm:$0xff]
    %v6781 = vld [vmem:[#allocation4 + $0x558] sm:$0xff]
    %v6782 = vld [vmem:[#allocation4 + $0x560] sm:$0xff]
    %v6783 = vld [vmem:[#allocation4 + $0x568] sm:$0xff]
    %v6784 = vld [vmem:[#allocation4 + $0x570] sm:$0xff]
    %v6785 = vld [vmem:[#allocation4 + $0x578] sm:$0xff]
    %v6786 = vld [vmem:[#allocation4 + $0x580] sm:$0xff]
    %v6787 = vld [vmem:[#allocation4 + $0x588] sm:$0xff]
    %v6788 = vld [vmem:[#allocation4 + $0x590] sm:$0xff]
    %v6789 = vld [vmem:[#allocation4 + $0x598] sm:$0xff]
    %v6790 = vld [vmem:[#allocation4 + $0x5a0] sm:$0xff]
    %v6791 = vld [vmem:[#allocation4 + $0x5a8] sm:$0xff]
    %v6792 = vld [vmem:[#allocation4 + $0x5b0] sm:$0xff]
    %v6793 = vld [vmem:[#allocation4 + $0x5b8] sm:$0xff]
    %v6794 = vld [vmem:[#allocation4 + $0x5c0] sm:$0xff]
    %v6795 = vld [vmem:[#allocation4 + $0x5c8] sm:$0xff]
    %v6796 = vld [vmem:[#allocation4 + $0x5d0] sm:$0xff]
    %v6797 = vld [vmem:[#allocation4 + $0x5d8] sm:$0xff]
    %v6798 = vld [vmem:[#allocation4 + $0x5e0] sm:$0xff]
    %v6799 = vld [vmem:[#allocation4 + $0x5e8] sm:$0xff]
    %v6800 = vld [vmem:[#allocation4 + $0x5f0] sm:$0xff]
    %v6801 = vld [vmem:[#allocation4 + $0x5f8] sm:$0xff]
    %v6802 = vld [vmem:[#allocation4 + $0x600] sm:$0xff]
    %v6803 = vld [vmem:[#allocation4 + $0x608] sm:$0xff]
    %v6804 = vld [vmem:[#allocation4 + $0x610] sm:$0xff]
    %v6805 = vld [vmem:[#allocation4 + $0x618] sm:$0xff]
    %v6806 = vld [vmem:[#allocation4 + $0x620] sm:$0xff]
    %v6807 = vld [vmem:[#allocation4 + $0x628] sm:$0xff]
    %v6808 = vld [vmem:[#allocation4 + $0x630] sm:$0xff]
    %v6809 = vld [vmem:[#allocation4 + $0x638] sm:$0xff]
    %v6810 = vld [vmem:[#allocation4 + $0x640] sm:$0xff]
    %v6811 = vld [vmem:[#allocation4 + $0x648] sm:$0xff]
    %v6812 = vld [vmem:[#allocation4 + $0x650] sm:$0xff]
    %v6813 = vld [vmem:[#allocation4 + $0x658] sm:$0xff]
    %v6814 = vld [vmem:[#allocation4 + $0x660] sm:$0xff]
    %v6815 = vld [vmem:[#allocation4 + $0x668] sm:$0xff]
    %v6816 = vld [vmem:[#allocation4 + $0x670] sm:$0xff]
    %v6817 = vld [vmem:[#allocation4 + $0x678] sm:$0xff]
    %v6818 = vld [vmem:[#allocation4 + $0x680] sm:$0xff]
    %v6819 = vld [vmem:[#allocation4 + $0x688] sm:$0xff]
    %v6820 = vld [vmem:[#allocation4 + $0x690] sm:$0xff]
    %v6821 = vld [vmem:[#allocation4 + $0x698] sm:$0xff]
    %v6822 = vld [vmem:[#allocation4 + $0x6a0] sm:$0xff]
    %v6823 = vld [vmem:[#allocation4 + $0x6a8] sm:$0xff]
    %v6824 = vld [vmem:[#allocation4 + $0x6b0] sm:$0xff]
    %v6825 = vld [vmem:[#allocation4 + $0x6b8] sm:$0xff]
    %v6826 = vld [vmem:[#allocation4 + $0x6c0] sm:$0xff]
    %v6827 = vld [vmem:[#allocation4 + $0x6c8] sm:$0xff]
    %v6828 = vld [vmem:[#allocation4 + $0x6d0] sm:$0xff]
    %v6829 = vld [vmem:[#allocation4 + $0x6d8] sm:$0xff]
    %v6830 = vld [vmem:[#allocation4 + $0x6e0] sm:$0xff]
    %v6831 = vld [vmem:[#allocation4 + $0x6e8] sm:$0xff]
    %v6832 = vld [vmem:[#allocation4 + $0x6f0] sm:$0xff]
    %v6833 = vld [vmem:[#allocation4 + $0x6f8] sm:$0xff]
    %v6834 = vld [vmem:[#allocation4 + $0x700] sm:$0xff]
    %v6835 = vld [vmem:[#allocation4 + $0x708] sm:$0xff]
    %v6836 = vld [vmem:[#allocation4 + $0x710] sm:$0xff]
    %v6837 = vld [vmem:[#allocation4 + $0x718] sm:$0xff]
    %v6838 = vld [vmem:[#allocation4 + $0x720] sm:$0xff]
    %v6839 = vld [vmem:[#allocation4 + $0x728] sm:$0xff]
    %v6840 = vld [vmem:[#allocation4 + $0x730] sm:$0xff]
    %v6841 = vld [vmem:[#allocation4 + $0x738] sm:$0xff]
    %v6842 = vld [vmem:[#allocation4 + $0x740] sm:$0xff]
    %v6843 = vld [vmem:[#allocation4 + $0x748] sm:$0xff]
    %v6844 = vld [vmem:[#allocation4 + $0x750] sm:$0xff]
    %v6845 = vld [vmem:[#allocation4 + $0x758] sm:$0xff]
    %v6846 = vld [vmem:[#allocation4 + $0x760] sm:$0xff]
    %v6847 = vld [vmem:[#allocation4 + $0x768] sm:$0xff]
    %v6848 = vld [vmem:[#allocation4 + $0x770] sm:$0xff]
    %v6849 = vld [vmem:[#allocation4 + $0x778] sm:$0xff]
    %v6850 = vld [vmem:[#allocation4 + $0x780] sm:$0xff]
    %v6851 = vld [vmem:[#allocation4 + $0x788] sm:$0xff]
    %v6852 = vld [vmem:[#allocation4 + $0x790] sm:$0xff]
    %v6853 = vld [vmem:[#allocation4 + $0x798] sm:$0xff]
    %v6854 = vld [vmem:[#allocation4 + $0x7a0] sm:$0xff]
    %v6855 = vld [vmem:[#allocation4 + $0x7a8] sm:$0xff]
    %v6856 = vld [vmem:[#allocation4 + $0x7b0] sm:$0xff]
    %v6857 = vld [vmem:[#allocation4 + $0x7b8] sm:$0xff]
    %v6858 = vld [vmem:[#allocation4 + $0x7c0] sm:$0xff]
    %v6859 = vld [vmem:[#allocation4 + $0x7c8] sm:$0xff]
    %v6860 = vld [vmem:[#allocation4 + $0x7d0] sm:$0xff]
    %v6861 = vld [vmem:[#allocation4 + $0x7d8] sm:$0xff]
    %v6862 = vld [vmem:[#allocation4 + $0x7e0] sm:$0xff]
    %v6863 = vld [vmem:[#allocation4 + $0x7e8] sm:$0xff]
    %v6864 = vld [vmem:[#allocation4 + $0x7f0] sm:$0xff]
    %v6865 = vld [vmem:[#allocation4 + $0x7f8] sm:$0xff]
    %v7122 = vunpack.c.l.b16 %v6610
    %v7123 = vunpack.c.h.b16 %v6610
    %v7124 = vunpack.c.l.b16 %v6611
    %v7125 = vunpack.c.h.b16 %v6611
    %v7126 = vunpack.c.l.b16 %v6612
    %v7127 = vunpack.c.h.b16 %v6612
    %v7128 = vunpack.c.l.b16 %v6613
    %v7129 = vunpack.c.h.b16 %v6613
    %v7130 = vunpack.c.l.b16 %v6614
    %v7131 = vunpack.c.h.b16 %v6614
    %v7132 = vunpack.c.l.b16 %v6615
    %v7133 = vunpack.c.h.b16 %v6615
    %v7134 = vunpack.c.l.b16 %v6616
    %v7135 = vunpack.c.h.b16 %v6616
    %v7136 = vunpack.c.l.b16 %v6617
    %v7137 = vunpack.c.h.b16 %v6617
    %v7138 = vunpack.c.l.b16 %v6618
    %v7139 = vunpack.c.h.b16 %v6618
    %v7140 = vunpack.c.l.b16 %v6619
    %v7141 = vunpack.c.h.b16 %v6619
    %v7142 = vunpack.c.l.b16 %v6620
    %v7143 = vunpack.c.h.b16 %v6620
    %v7144 = vunpack.c.l.b16 %v6621
    %v7145 = vunpack.c.h.b16 %v6621
    %v7146 = vunpack.c.l.b16 %v6622
    %v7147 = vunpack.c.h.b16 %v6622
    %v7148 = vunpack.c.l.b16 %v6623
    %v7149 = vunpack.c.h.b16 %v6623
    %v7150 = vunpack.c.l.b16 %v6624
    %v7151 = vunpack.c.h.b16 %v6624
    %v7152 = vunpack.c.l.b16 %v6625
    %v7153 = vunpack.c.h.b16 %v6625
    %v7154 = vunpack.c.l.b16 %v6626
    %v7155 = vunpack.c.h.b16 %v6626
    %v7156 = vunpack.c.l.b16 %v6627
    %v7157 = vunpack.c.h.b16 %v6627
    %v7158 = vunpack.c.l.b16 %v6628
    %v7159 = vunpack.c.h.b16 %v6628
    %v7160 = vunpack.c.l.b16 %v6629
    %v7161 = vunpack.c.h.b16 %v6629
    %v7162 = vunpack.c.l.b16 %v6630
    %v7163 = vunpack.c.h.b16 %v6630
    %v7164 = vunpack.c.l.b16 %v6631
    %v7165 = vunpack.c.h.b16 %v6631
    %v7166 = vunpack.c.l.b16 %v6632
    %v7167 = vunpack.c.h.b16 %v6632
    %v7168 = vunpack.c.l.b16 %v6633
    %v7169 = vunpack.c.h.b16 %v6633
    %v7170 = vunpack.c.l.b16 %v6634
    %v7171 = vunpack.c.h.b16 %v6634
    %v7172 = vunpack.c.l.b16 %v6635
    %v7173 = vunpack.c.h.b16 %v6635
    %v7174 = vunpack.c.l.b16 %v6636
    %v7175 = vunpack.c.h.b16 %v6636
    %v7176 = vunpack.c.l.b16 %v6637
    %v7177 = vunpack.c.h.b16 %v6637
    %v7178 = vunpack.c.l.b16 %v6638
    %v7179 = vunpack.c.h.b16 %v6638
    %v7180 = vunpack.c.l.b16 %v6639
    %v7181 = vunpack.c.h.b16 %v6639
    %v7182 = vunpack.c.l.b16 %v6640
    %v7183 = vunpack.c.h.b16 %v6640
    %v7184 = vunpack.c.l.b16 %v6641
    %v7185 = vunpack.c.h.b16 %v6641
    %v7186 = vunpack.c.l.b16 %v6642
    %v7187 = vunpack.c.h.b16 %v6642
    %v7188 = vunpack.c.l.b16 %v6643
    %v7189 = vunpack.c.h.b16 %v6643
    %v7190 = vunpack.c.l.b16 %v6644
    %v7191 = vunpack.c.h.b16 %v6644
    %v7192 = vunpack.c.l.b16 %v6645
    %v7193 = vunpack.c.h.b16 %v6645
    %v7194 = vunpack.c.l.b16 %v6646
    %v7195 = vunpack.c.h.b16 %v6646
    %v7196 = vunpack.c.l.b16 %v6647
    %v7197 = vunpack.c.h.b16 %v6647
    %v7198 = vunpack.c.l.b16 %v6648
    %v7199 = vunpack.c.h.b16 %v6648
    %v7200 = vunpack.c.l.b16 %v6649
    %v7201 = vunpack.c.h.b16 %v6649
    %v7202 = vunpack.c.l.b16 %v6650
    %v7203 = vunpack.c.h.b16 %v6650
    %v7204 = vunpack.c.l.b16 %v6651
    %v7205 = vunpack.c.h.b16 %v6651
    %v7206 = vunpack.c.l.b16 %v6652
    %v7207 = vunpack.c.h.b16 %v6652
    %v7208 = vunpack.c.l.b16 %v6653
    %v7209 = vunpack.c.h.b16 %v6653
    %v7210 = vunpack.c.l.b16 %v6654
    %v7211 = vunpack.c.h.b16 %v6654
    %v7212 = vunpack.c.l.b16 %v6655
    %v7213 = vunpack.c.h.b16 %v6655
    %v7214 = vunpack.c.l.b16 %v6656
    %v7215 = vunpack.c.h.b16 %v6656
    %v7216 = vunpack.c.l.b16 %v6657
    %v7217 = vunpack.c.h.b16 %v6657
    %v7218 = vunpack.c.l.b16 %v6658
    %v7219 = vunpack.c.h.b16 %v6658
    %v7220 = vunpack.c.l.b16 %v6659
    %v7221 = vunpack.c.h.b16 %v6659
    %v7222 = vunpack.c.l.b16 %v6660
    %v7223 = vunpack.c.h.b16 %v6660
    %v7224 = vunpack.c.l.b16 %v6661
    %v7225 = vunpack.c.h.b16 %v6661
    %v7226 = vunpack.c.l.b16 %v6662
    %v7227 = vunpack.c.h.b16 %v6662
    %v7228 = vunpack.c.l.b16 %v6663
    %v7229 = vunpack.c.h.b16 %v6663
    %v7230 = vunpack.c.l.b16 %v6664
    %v7231 = vunpack.c.h.b16 %v6664
    %v7232 = vunpack.c.l.b16 %v6665
    %v7233 = vunpack.c.h.b16 %v6665
    %v7234 = vunpack.c.l.b16 %v6666
    %v7235 = vunpack.c.h.b16 %v6666
    %v7236 = vunpack.c.l.b16 %v6667
    %v7237 = vunpack.c.h.b16 %v6667
    %v7238 = vunpack.c.l.b16 %v6668
    %v7239 = vunpack.c.h.b16 %v6668
    %v7240 = vunpack.c.l.b16 %v6669
    %v7241 = vunpack.c.h.b16 %v6669
    %v7242 = vunpack.c.l.b16 %v6670
    %v7243 = vunpack.c.h.b16 %v6670
    %v7244 = vunpack.c.l.b16 %v6671
    %v7245 = vunpack.c.h.b16 %v6671
    %v7246 = vunpack.c.l.b16 %v6672
    %v7247 = vunpack.c.h.b16 %v6672
    %v7248 = vunpack.c.l.b16 %v6673
    %v7249 = vunpack.c.h.b16 %v6673
    %v7250 = vunpack.c.l.b16 %v6674
    %v7251 = vunpack.c.h.b16 %v6674
    %v7252 = vunpack.c.l.b16 %v6675
    %v7253 = vunpack.c.h.b16 %v6675
    %v7254 = vunpack.c.l.b16 %v6676
    %v7255 = vunpack.c.h.b16 %v6676
    %v7256 = vunpack.c.l.b16 %v6677
    %v7257 = vunpack.c.h.b16 %v6677
    %v7258 = vunpack.c.l.b16 %v6678
    %v7259 = vunpack.c.h.b16 %v6678
    %v7260 = vunpack.c.l.b16 %v6679
    %v7261 = vunpack.c.h.b16 %v6679
    %v7262 = vunpack.c.l.b16 %v6680
    %v7263 = vunpack.c.h.b16 %v6680
    %v7264 = vunpack.c.l.b16 %v6681
    %v7265 = vunpack.c.h.b16 %v6681
    %v7266 = vunpack.c.l.b16 %v6682
    %v7267 = vunpack.c.h.b16 %v6682
    %v7268 = vunpack.c.l.b16 %v6683
    %v7269 = vunpack.c.h.b16 %v6683
    %v7270 = vunpack.c.l.b16 %v6684
    %v7271 = vunpack.c.h.b16 %v6684
    %v7272 = vunpack.c.l.b16 %v6685
    %v7273 = vunpack.c.h.b16 %v6685
    %v7274 = vunpack.c.l.b16 %v6686
    %v7275 = vunpack.c.h.b16 %v6686
    %v7276 = vunpack.c.l.b16 %v6687
    %v7277 = vunpack.c.h.b16 %v6687
    %v7278 = vunpack.c.l.b16 %v6688
    %v7279 = vunpack.c.h.b16 %v6688
    %v7280 = vunpack.c.l.b16 %v6689
    %v7281 = vunpack.c.h.b16 %v6689
    %v7282 = vunpack.c.l.b16 %v6690
    %v7283 = vunpack.c.h.b16 %v6690
    %v7284 = vunpack.c.l.b16 %v6691
    %v7285 = vunpack.c.h.b16 %v6691
    %v7286 = vunpack.c.l.b16 %v6692
    %v7287 = vunpack.c.h.b16 %v6692
    %v7288 = vunpack.c.l.b16 %v6693
    %v7289 = vunpack.c.h.b16 %v6693
    %v7290 = vunpack.c.l.b16 %v6694
    %v7291 = vunpack.c.h.b16 %v6694
    %v7292 = vunpack.c.l.b16 %v6695
    %v7293 = vunpack.c.h.b16 %v6695
    %v7294 = vunpack.c.l.b16 %v6696
    %v7295 = vunpack.c.h.b16 %v6696
    %v7296 = vunpack.c.l.b16 %v6697
    %v7297 = vunpack.c.h.b16 %v6697
    %v7298 = vunpack.c.l.b16 %v6698
    %v7299 = vunpack.c.h.b16 %v6698
    %v7300 = vunpack.c.l.b16 %v6699
    %v7301 = vunpack.c.h.b16 %v6699
    %v7302 = vunpack.c.l.b16 %v6700
    %v7303 = vunpack.c.h.b16 %v6700
    %v7304 = vunpack.c.l.b16 %v6701
    %v7305 = vunpack.c.h.b16 %v6701
    %v7306 = vunpack.c.l.b16 %v6702
    %v7307 = vunpack.c.h.b16 %v6702
    %v7308 = vunpack.c.l.b16 %v6703
    %v7309 = vunpack.c.h.b16 %v6703
    %v7310 = vunpack.c.l.b16 %v6704
    %v7311 = vunpack.c.h.b16 %v6704
    %v7312 = vunpack.c.l.b16 %v6705
    %v7313 = vunpack.c.h.b16 %v6705
    %v7314 = vunpack.c.l.b16 %v6706
    %v7315 = vunpack.c.h.b16 %v6706
    %v7316 = vunpack.c.l.b16 %v6707
    %v7317 = vunpack.c.h.b16 %v6707
    %v7318 = vunpack.c.l.b16 %v6708
    %v7319 = vunpack.c.h.b16 %v6708
    %v7320 = vunpack.c.l.b16 %v6709
    %v7321 = vunpack.c.h.b16 %v6709
    %v7322 = vunpack.c.l.b16 %v6710
    %v7323 = vunpack.c.h.b16 %v6710
    %v7324 = vunpack.c.l.b16 %v6711
    %v7325 = vunpack.c.h.b16 %v6711
    %v7326 = vunpack.c.l.b16 %v6712
    %v7327 = vunpack.c.h.b16 %v6712
    %v7328 = vunpack.c.l.b16 %v6713
    %v7329 = vunpack.c.h.b16 %v6713
    %v7330 = vunpack.c.l.b16 %v6714
    %v7331 = vunpack.c.h.b16 %v6714
    %v7332 = vunpack.c.l.b16 %v6715
    %v7333 = vunpack.c.h.b16 %v6715
    %v7334 = vunpack.c.l.b16 %v6716
    %v7335 = vunpack.c.h.b16 %v6716
    %v7336 = vunpack.c.l.b16 %v6717
    %v7337 = vunpack.c.h.b16 %v6717
    %v7338 = vunpack.c.l.b16 %v6718
    %v7339 = vunpack.c.h.b16 %v6718
    %v7340 = vunpack.c.l.b16 %v6719
    %v7341 = vunpack.c.h.b16 %v6719
    %v7342 = vunpack.c.l.b16 %v6720
    %v7343 = vunpack.c.h.b16 %v6720
    %v7344 = vunpack.c.l.b16 %v6721
    %v7345 = vunpack.c.h.b16 %v6721
    %v7346 = vunpack.c.l.b16 %v6722
    %v7347 = vunpack.c.h.b16 %v6722
    %v7348 = vunpack.c.l.b16 %v6723
    %v7349 = vunpack.c.h.b16 %v6723
    %v7350 = vunpack.c.l.b16 %v6724
    %v7351 = vunpack.c.h.b16 %v6724
    %v7352 = vunpack.c.l.b16 %v6725
    %v7353 = vunpack.c.h.b16 %v6725
    %v7354 = vunpack.c.l.b16 %v6726
    %v7355 = vunpack.c.h.b16 %v6726
    %v7356 = vunpack.c.l.b16 %v6727
    %v7357 = vunpack.c.h.b16 %v6727
    %v7358 = vunpack.c.l.b16 %v6728
    %v7359 = vunpack.c.h.b16 %v6728
    %v7360 = vunpack.c.l.b16 %v6729
    %v7361 = vunpack.c.h.b16 %v6729
    %v7362 = vunpack.c.l.b16 %v6730
    %v7363 = vunpack.c.h.b16 %v6730
    %v7364 = vunpack.c.l.b16 %v6731
    %v7365 = vunpack.c.h.b16 %v6731
    %v7366 = vunpack.c.l.b16 %v6732
    %v7367 = vunpack.c.h.b16 %v6732
    %v7368 = vunpack.c.l.b16 %v6733
    %v7369 = vunpack.c.h.b16 %v6733
    %v7370 = vunpack.c.l.b16 %v6734
    %v7371 = vunpack.c.h.b16 %v6734
    %v7372 = vunpack.c.l.b16 %v6735
    %v7373 = vunpack.c.h.b16 %v6735
    %v7374 = vunpack.c.l.b16 %v6736
    %v7375 = vunpack.c.h.b16 %v6736
    %v7376 = vunpack.c.l.b16 %v6737
    %v7377 = vunpack.c.h.b16 %v6737
    %v7378 = vunpack.c.l.b16 %v6738
    %v7379 = vunpack.c.h.b16 %v6738
    %v7380 = vunpack.c.l.b16 %v6739
    %v7381 = vunpack.c.h.b16 %v6739
    %v7382 = vunpack.c.l.b16 %v6740
    %v7383 = vunpack.c.h.b16 %v6740
    %v7384 = vunpack.c.l.b16 %v6741
    %v7385 = vunpack.c.h.b16 %v6741
    %v7386 = vunpack.c.l.b16 %v6742
    %v7387 = vunpack.c.h.b16 %v6742
    %v7388 = vunpack.c.l.b16 %v6743
    %v7389 = vunpack.c.h.b16 %v6743
    %v7390 = vunpack.c.l.b16 %v6744
    %v7391 = vunpack.c.h.b16 %v6744
    %v7392 = vunpack.c.l.b16 %v6745
    %v7393 = vunpack.c.h.b16 %v6745
    %v7394 = vunpack.c.l.b16 %v6746
    %v7395 = vunpack.c.h.b16 %v6746
    %v7396 = vunpack.c.l.b16 %v6747
    %v7397 = vunpack.c.h.b16 %v6747
    %v7398 = vunpack.c.l.b16 %v6748
    %v7399 = vunpack.c.h.b16 %v6748
    %v7400 = vunpack.c.l.b16 %v6749
    %v7401 = vunpack.c.h.b16 %v6749
    %v7402 = vunpack.c.l.b16 %v6750
    %v7403 = vunpack.c.h.b16 %v6750
    %v7404 = vunpack.c.l.b16 %v6751
    %v7405 = vunpack.c.h.b16 %v6751
    %v7406 = vunpack.c.l.b16 %v6752
    %v7407 = vunpack.c.h.b16 %v6752
    %v7408 = vunpack.c.l.b16 %v6753
    %v7409 = vunpack.c.h.b16 %v6753
    %v7410 = vunpack.c.l.b16 %v6754
    %v7411 = vunpack.c.h.b16 %v6754
    %v7412 = vunpack.c.l.b16 %v6755
    %v7413 = vunpack.c.h.b16 %v6755
    %v7414 = vunpack.c.l.b16 %v6756
    %v7415 = vunpack.c.h.b16 %v6756
    %v7416 = vunpack.c.l.b16 %v6757
    %v7417 = vunpack.c.h.b16 %v6757
    %v7418 = vunpack.c.l.b16 %v6758
    %v7419 = vunpack.c.h.b16 %v6758
    %v7420 = vunpack.c.l.b16 %v6759
    %v7421 = vunpack.c.h.b16 %v6759
    %v7422 = vunpack.c.l.b16 %v6760
    %v7423 = vunpack.c.h.b16 %v6760
    %v7424 = vunpack.c.l.b16 %v6761
    %v7425 = vunpack.c.h.b16 %v6761
    %v7426 = vunpack.c.l.b16 %v6762
    %v7427 = vunpack.c.h.b16 %v6762
    %v7428 = vunpack.c.l.b16 %v6763
    %v7429 = vunpack.c.h.b16 %v6763
    %v7430 = vunpack.c.l.b16 %v6764
    %v7431 = vunpack.c.h.b16 %v6764
    %v7432 = vunpack.c.l.b16 %v6765
    %v7433 = vunpack.c.h.b16 %v6765
    %v7434 = vunpack.c.l.b16 %v6766
    %v7435 = vunpack.c.h.b16 %v6766
    %v7436 = vunpack.c.l.b16 %v6767
    %v7437 = vunpack.c.h.b16 %v6767
    %v7438 = vunpack.c.l.b16 %v6768
    %v7439 = vunpack.c.h.b16 %v6768
    %v7440 = vunpack.c.l.b16 %v6769
    %v7441 = vunpack.c.h.b16 %v6769
    %v7442 = vunpack.c.l.b16 %v6770
    %v7443 = vunpack.c.h.b16 %v6770
    %v7444 = vunpack.c.l.b16 %v6771
    %v7445 = vunpack.c.h.b16 %v6771
    %v7446 = vunpack.c.l.b16 %v6772
    %v7447 = vunpack.c.h.b16 %v6772
    %v7448 = vunpack.c.l.b16 %v6773
    %v7449 = vunpack.c.h.b16 %v6773
    %v7450 = vunpack.c.l.b16 %v6774
    %v7451 = vunpack.c.h.b16 %v6774
    %v7452 = vunpack.c.l.b16 %v6775
    %v7453 = vunpack.c.h.b16 %v6775
    %v7454 = vunpack.c.l.b16 %v6776
    %v7455 = vunpack.c.h.b16 %v6776
    %v7456 = vunpack.c.l.b16 %v6777
    %v7457 = vunpack.c.h.b16 %v6777
    %v7458 = vunpack.c.l.b16 %v6778
    %v7459 = vunpack.c.h.b16 %v6778
    %v7460 = vunpack.c.l.b16 %v6779
    %v7461 = vunpack.c.h.b16 %v6779
    %v7462 = vunpack.c.l.b16 %v6780
    %v7463 = vunpack.c.h.b16 %v6780
    %v7464 = vunpack.c.l.b16 %v6781
    %v7465 = vunpack.c.h.b16 %v6781
    %v7466 = vunpack.c.l.b16 %v6782
    %v7467 = vunpack.c.h.b16 %v6782
    %v7468 = vunpack.c.l.b16 %v6783
    %v7469 = vunpack.c.h.b16 %v6783
    %v7470 = vunpack.c.l.b16 %v6784
    %v7471 = vunpack.c.h.b16 %v6784
    %v7472 = vunpack.c.l.b16 %v6785
    %v7473 = vunpack.c.h.b16 %v6785
    %v7474 = vunpack.c.l.b16 %v6786
    %v7475 = vunpack.c.h.b16 %v6786
    %v7476 = vunpack.c.l.b16 %v6787
    %v7477 = vunpack.c.h.b16 %v6787
    %v7478 = vunpack.c.l.b16 %v6788
    %v7479 = vunpack.c.h.b16 %v6788
    %v7480 = vunpack.c.l.b16 %v6789
    %v7481 = vunpack.c.h.b16 %v6789
    %v7482 = vunpack.c.l.b16 %v6790
    %v7483 = vunpack.c.h.b16 %v6790
    %v7484 = vunpack.c.l.b16 %v6791
    %v7485 = vunpack.c.h.b16 %v6791
    %v7486 = vunpack.c.l.b16 %v6792
    %v7487 = vunpack.c.h.b16 %v6792
    %v7488 = vunpack.c.l.b16 %v6793
    %v7489 = vunpack.c.h.b16 %v6793
    %v7490 = vunpack.c.l.b16 %v6794
    %v7491 = vunpack.c.h.b16 %v6794
    %v7492 = vunpack.c.l.b16 %v6795
    %v7493 = vunpack.c.h.b16 %v6795
    %v7494 = vunpack.c.l.b16 %v6796
    %v7495 = vunpack.c.h.b16 %v6796
    %v7496 = vunpack.c.l.b16 %v6797
    %v7497 = vunpack.c.h.b16 %v6797
    %v7498 = vunpack.c.l.b16 %v6798
    %v7499 = vunpack.c.h.b16 %v6798
    %v7500 = vunpack.c.l.b16 %v6799
    %v7501 = vunpack.c.h.b16 %v6799
    %v7502 = vunpack.c.l.b16 %v6800
    %v7503 = vunpack.c.h.b16 %v6800
    %v7504 = vunpack.c.l.b16 %v6801
    %v7505 = vunpack.c.h.b16 %v6801
    %v7506 = vunpack.c.l.b16 %v6802
    %v7507 = vunpack.c.h.b16 %v6802
    %v7508 = vunpack.c.l.b16 %v6803
    %v7509 = vunpack.c.h.b16 %v6803
    %v7510 = vunpack.c.l.b16 %v6804
    %v7511 = vunpack.c.h.b16 %v6804
    %v7512 = vunpack.c.l.b16 %v6805
    %v7513 = vunpack.c.h.b16 %v6805
    %v7514 = vunpack.c.l.b16 %v6806
    %v7515 = vunpack.c.h.b16 %v6806
    %v7516 = vunpack.c.l.b16 %v6807
    %v7517 = vunpack.c.h.b16 %v6807
    %v7518 = vunpack.c.l.b16 %v6808
    %v7519 = vunpack.c.h.b16 %v6808
    %v7520 = vunpack.c.l.b16 %v6809
    %v7521 = vunpack.c.h.b16 %v6809
    %v7522 = vunpack.c.l.b16 %v6810
    %v7523 = vunpack.c.h.b16 %v6810
    %v7524 = vunpack.c.l.b16 %v6811
    %v7525 = vunpack.c.h.b16 %v6811
    %v7526 = vunpack.c.l.b16 %v6812
    %v7527 = vunpack.c.h.b16 %v6812
    %v7528 = vunpack.c.l.b16 %v6813
    %v7529 = vunpack.c.h.b16 %v6813
    %v7530 = vunpack.c.l.b16 %v6814
    %v7531 = vunpack.c.h.b16 %v6814
    %v7532 = vunpack.c.l.b16 %v6815
    %v7533 = vunpack.c.h.b16 %v6815
    %v7534 = vunpack.c.l.b16 %v6816
    %v7535 = vunpack.c.h.b16 %v6816
    %v7536 = vunpack.c.l.b16 %v6817
    %v7537 = vunpack.c.h.b16 %v6817
    %v7538 = vunpack.c.l.b16 %v6818
    %v7539 = vunpack.c.h.b16 %v6818
    %v7540 = vunpack.c.l.b16 %v6819
    %v7541 = vunpack.c.h.b16 %v6819
    %v7542 = vunpack.c.l.b16 %v6820
    %v7543 = vunpack.c.h.b16 %v6820
    %v7544 = vunpack.c.l.b16 %v6821
    %v7545 = vunpack.c.h.b16 %v6821
    %v7546 = vunpack.c.l.b16 %v6822
    %v7547 = vunpack.c.h.b16 %v6822
    %v7548 = vunpack.c.l.b16 %v6823
    %v7549 = vunpack.c.h.b16 %v6823
    %v7550 = vunpack.c.l.b16 %v6824
    %v7551 = vunpack.c.h.b16 %v6824
    %v7552 = vunpack.c.l.b16 %v6825
    %v7553 = vunpack.c.h.b16 %v6825
    %v7554 = vunpack.c.l.b16 %v6826
    %v7555 = vunpack.c.h.b16 %v6826
    %v7556 = vunpack.c.l.b16 %v6827
    %v7557 = vunpack.c.h.b16 %v6827
    %v7558 = vunpack.c.l.b16 %v6828
    %v7559 = vunpack.c.h.b16 %v6828
    %v7560 = vunpack.c.l.b16 %v6829
    %v7561 = vunpack.c.h.b16 %v6829
    %v7562 = vunpack.c.l.b16 %v6830
    %v7563 = vunpack.c.h.b16 %v6830
    %v7564 = vunpack.c.l.b16 %v6831
    %v7565 = vunpack.c.h.b16 %v6831
    %v7566 = vunpack.c.l.b16 %v6832
    %v7567 = vunpack.c.h.b16 %v6832
    %v7568 = vunpack.c.l.b16 %v6833
    %v7569 = vunpack.c.h.b16 %v6833
    %v7570 = vunpack.c.l.b16 %v6834
    %v7571 = vunpack.c.h.b16 %v6834
    %v7572 = vunpack.c.l.b16 %v6835
    %v7573 = vunpack.c.h.b16 %v6835
    %v7574 = vunpack.c.l.b16 %v6836
    %v7575 = vunpack.c.h.b16 %v6836
    %v7576 = vunpack.c.l.b16 %v6837
    %v7577 = vunpack.c.h.b16 %v6837
    %v7578 = vunpack.c.l.b16 %v6838
    %v7579 = vunpack.c.h.b16 %v6838
    %v7580 = vunpack.c.l.b16 %v6839
    %v7581 = vunpack.c.h.b16 %v6839
    %v7582 = vunpack.c.l.b16 %v6840
    %v7583 = vunpack.c.h.b16 %v6840
    %v7584 = vunpack.c.l.b16 %v6841
    %v7585 = vunpack.c.h.b16 %v6841
    %v7586 = vunpack.c.l.b16 %v6842
    %v7587 = vunpack.c.h.b16 %v6842
    %v7588 = vunpack.c.l.b16 %v6843
    %v7589 = vunpack.c.h.b16 %v6843
    %v7590 = vunpack.c.l.b16 %v6844
    %v7591 = vunpack.c.h.b16 %v6844
    %v7592 = vunpack.c.l.b16 %v6845
    %v7593 = vunpack.c.h.b16 %v6845
    %v7594 = vunpack.c.l.b16 %v6846
    %v7595 = vunpack.c.h.b16 %v6846
    %v7596 = vunpack.c.l.b16 %v6847
    %v7597 = vunpack.c.h.b16 %v6847
    %v7598 = vunpack.c.l.b16 %v6848
    %v7599 = vunpack.c.h.b16 %v6848
    %v7600 = vunpack.c.l.b16 %v6849
    %v7601 = vunpack.c.h.b16 %v6849
    %v7602 = vunpack.c.l.b16 %v6850
    %v7603 = vunpack.c.h.b16 %v6850
    %v7604 = vunpack.c.l.b16 %v6851
    %v7605 = vunpack.c.h.b16 %v6851
    %v7606 = vunpack.c.l.b16 %v6852
    %v7607 = vunpack.c.h.b16 %v6852
    %v7608 = vunpack.c.l.b16 %v6853
    %v7609 = vunpack.c.h.b16 %v6853
    %v7610 = vunpack.c.l.b16 %v6854
    %v7611 = vunpack.c.h.b16 %v6854
    %v7612 = vunpack.c.l.b16 %v6855
    %v7613 = vunpack.c.h.b16 %v6855
    %v7614 = vunpack.c.l.b16 %v6856
    %v7615 = vunpack.c.h.b16 %v6856
    %v7616 = vunpack.c.l.b16 %v6857
    %v7617 = vunpack.c.h.b16 %v6857
    %v7618 = vunpack.c.l.b16 %v6858
    %v7619 = vunpack.c.h.b16 %v6858
    %v7620 = vunpack.c.l.b16 %v6859
    %v7621 = vunpack.c.h.b16 %v6859
    %v7622 = vunpack.c.l.b16 %v6860
    %v7623 = vunpack.c.h.b16 %v6860
    %v7624 = vunpack.c.l.b16 %v6861
    %v7625 = vunpack.c.h.b16 %v6861
    %v7626 = vunpack.c.l.b16 %v6862
    %v7627 = vunpack.c.h.b16 %v6862
    %v7628 = vunpack.c.l.b16 %v6863
    %v7629 = vunpack.c.h.b16 %v6863
    %v7630 = vunpack.c.l.b16 %v6864
    %v7631 = vunpack.c.h.b16 %v6864
    %v7632 = vunpack.c.l.b16 %v6865
    %v7633 = vunpack.c.h.b16 %v6865
    %v7634 = vpack.c.b16 %v7126, %v7122
    %v7635 = vpack.c.b16 %v7127, %v7123
    %v7636 = vpack.c.b16 %v7128, %v7124
    %v7637 = vpack.c.b16 %v7129, %v7125
    %v7638 = vpack.c.b16 %v7134, %v7130
    %v7639 = vpack.c.b16 %v7135, %v7131
    %v7640 = vpack.c.b16 %v7136, %v7132
    %v7641 = vpack.c.b16 %v7137, %v7133
    %v7642 = vpack.c.b16 %v7142, %v7138
    %v7643 = vpack.c.b16 %v7143, %v7139
    %v7644 = vpack.c.b16 %v7144, %v7140
    %v7645 = vpack.c.b16 %v7145, %v7141
    %v7646 = vpack.c.b16 %v7150, %v7146
    %v7647 = vpack.c.b16 %v7151, %v7147
    %v7648 = vpack.c.b16 %v7152, %v7148
    %v7649 = vpack.c.b16 %v7153, %v7149
    %v7650 = vpack.c.b16 %v7158, %v7154
    %v7651 = vpack.c.b16 %v7159, %v7155
    %v7652 = vpack.c.b16 %v7160, %v7156
    %v7653 = vpack.c.b16 %v7161, %v7157
    %v7654 = vpack.c.b16 %v7166, %v7162
    %v7655 = vpack.c.b16 %v7167, %v7163
    %v7656 = vpack.c.b16 %v7168, %v7164
    %v7657 = vpack.c.b16 %v7169, %v7165
    %v7658 = vpack.c.b16 %v7174, %v7170
    %v7659 = vpack.c.b16 %v7175, %v7171
    %v7660 = vpack.c.b16 %v7176, %v7172
    %v7661 = vpack.c.b16 %v7177, %v7173
    %v7662 = vpack.c.b16 %v7182, %v7178
    %v7663 = vpack.c.b16 %v7183, %v7179
    %v7664 = vpack.c.b16 %v7184, %v7180
    %v7665 = vpack.c.b16 %v7185, %v7181
    %v7666 = vpack.c.b16 %v7190, %v7186
    %v7667 = vpack.c.b16 %v7191, %v7187
    %v7668 = vpack.c.b16 %v7192, %v7188
    %v7669 = vpack.c.b16 %v7193, %v7189
    %v7670 = vpack.c.b16 %v7198, %v7194
    %v7671 = vpack.c.b16 %v7199, %v7195
    %v7672 = vpack.c.b16 %v7200, %v7196
    %v7673 = vpack.c.b16 %v7201, %v7197
    %v7674 = vpack.c.b16 %v7206, %v7202
    %v7675 = vpack.c.b16 %v7207, %v7203
    %v7676 = vpack.c.b16 %v7208, %v7204
    %v7677 = vpack.c.b16 %v7209, %v7205
    %v7678 = vpack.c.b16 %v7214, %v7210
    %v7679 = vpack.c.b16 %v7215, %v7211
    %v7680 = vpack.c.b16 %v7216, %v7212
    %v7681 = vpack.c.b16 %v7217, %v7213
    %v7682 = vpack.c.b16 %v7222, %v7218
    %v7683 = vpack.c.b16 %v7223, %v7219
    %v7684 = vpack.c.b16 %v7224, %v7220
    %v7685 = vpack.c.b16 %v7225, %v7221
    %v7686 = vpack.c.b16 %v7230, %v7226
    %v7687 = vpack.c.b16 %v7231, %v7227
    %v7688 = vpack.c.b16 %v7232, %v7228
    %v7689 = vpack.c.b16 %v7233, %v7229
    %v7690 = vpack.c.b16 %v7238, %v7234
    %v7691 = vpack.c.b16 %v7239, %v7235
    %v7692 = vpack.c.b16 %v7240, %v7236
    %v7693 = vpack.c.b16 %v7241, %v7237
    %v7694 = vpack.c.b16 %v7246, %v7242
    %v7695 = vpack.c.b16 %v7247, %v7243
    %v7696 = vpack.c.b16 %v7248, %v7244
    %v7697 = vpack.c.b16 %v7249, %v7245
    %v7698 = vpack.c.b16 %v7254, %v7250
    %v7699 = vpack.c.b16 %v7255, %v7251
    %v7700 = vpack.c.b16 %v7256, %v7252
    %v7701 = vpack.c.b16 %v7257, %v7253
    %v7702 = vpack.c.b16 %v7262, %v7258
    %v7703 = vpack.c.b16 %v7263, %v7259
    %v7704 = vpack.c.b16 %v7264, %v7260
    %v7705 = vpack.c.b16 %v7265, %v7261
    %v7706 = vpack.c.b16 %v7270, %v7266
    %v7707 = vpack.c.b16 %v7271, %v7267
    %v7708 = vpack.c.b16 %v7272, %v7268
    %v7709 = vpack.c.b16 %v7273, %v7269
    %v7710 = vpack.c.b16 %v7278, %v7274
    %v7711 = vpack.c.b16 %v7279, %v7275
    %v7712 = vpack.c.b16 %v7280, %v7276
    %v7713 = vpack.c.b16 %v7281, %v7277
    %v7714 = vpack.c.b16 %v7286, %v7282
    %v7715 = vpack.c.b16 %v7287, %v7283
    %v7716 = vpack.c.b16 %v7288, %v7284
    %v7717 = vpack.c.b16 %v7289, %v7285
    %v7718 = vpack.c.b16 %v7294, %v7290
    %v7719 = vpack.c.b16 %v7295, %v7291
    %v7720 = vpack.c.b16 %v7296, %v7292
    %v7721 = vpack.c.b16 %v7297, %v7293
    %v7722 = vpack.c.b16 %v7302, %v7298
    %v7723 = vpack.c.b16 %v7303, %v7299
    %v7724 = vpack.c.b16 %v7304, %v7300
    %v7725 = vpack.c.b16 %v7305, %v7301
    %v7726 = vpack.c.b16 %v7310, %v7306
    %v7727 = vpack.c.b16 %v7311, %v7307
    %v7728 = vpack.c.b16 %v7312, %v7308
    %v7729 = vpack.c.b16 %v7313, %v7309
    %v7730 = vpack.c.b16 %v7318, %v7314
    %v7731 = vpack.c.b16 %v7319, %v7315
    %v7732 = vpack.c.b16 %v7320, %v7316
    %v7733 = vpack.c.b16 %v7321, %v7317
    %v7734 = vpack.c.b16 %v7326, %v7322
    %v7735 = vpack.c.b16 %v7327, %v7323
    %v7736 = vpack.c.b16 %v7328, %v7324
    %v7737 = vpack.c.b16 %v7329, %v7325
    %v7738 = vpack.c.b16 %v7334, %v7330
    %v7739 = vpack.c.b16 %v7335, %v7331
    %v7740 = vpack.c.b16 %v7336, %v7332
    %v7741 = vpack.c.b16 %v7337, %v7333
    %v7742 = vpack.c.b16 %v7342, %v7338
    %v7743 = vpack.c.b16 %v7343, %v7339
    %v7744 = vpack.c.b16 %v7344, %v7340
    %v7745 = vpack.c.b16 %v7345, %v7341
    %v7746 = vpack.c.b16 %v7350, %v7346
    %v7747 = vpack.c.b16 %v7351, %v7347
    %v7748 = vpack.c.b16 %v7352, %v7348
    %v7749 = vpack.c.b16 %v7353, %v7349
    %v7750 = vpack.c.b16 %v7358, %v7354
    %v7751 = vpack.c.b16 %v7359, %v7355
    %v7752 = vpack.c.b16 %v7360, %v7356
    %v7753 = vpack.c.b16 %v7361, %v7357
    %v7754 = vpack.c.b16 %v7366, %v7362
    %v7755 = vpack.c.b16 %v7367, %v7363
    %v7756 = vpack.c.b16 %v7368, %v7364
    %v7757 = vpack.c.b16 %v7369, %v7365
    %v7758 = vpack.c.b16 %v7374, %v7370
    %v7759 = vpack.c.b16 %v7375, %v7371
    %v7760 = vpack.c.b16 %v7376, %v7372
    %v7761 = vpack.c.b16 %v7377, %v7373
    %v7762 = vpack.c.b16 %v7382, %v7378
    %v7763 = vpack.c.b16 %v7383, %v7379
    %v7764 = vpack.c.b16 %v7384, %v7380
    %v7765 = vpack.c.b16 %v7385, %v7381
    %v7766 = vpack.c.b16 %v7390, %v7386
    %v7767 = vpack.c.b16 %v7391, %v7387
    %v7768 = vpack.c.b16 %v7392, %v7388
    %v7769 = vpack.c.b16 %v7393, %v7389
    %v7770 = vpack.c.b16 %v7398, %v7394
    %v7771 = vpack.c.b16 %v7399, %v7395
    %v7772 = vpack.c.b16 %v7400, %v7396
    %v7773 = vpack.c.b16 %v7401, %v7397
    %v7774 = vpack.c.b16 %v7406, %v7402
    %v7775 = vpack.c.b16 %v7407, %v7403
    %v7776 = vpack.c.b16 %v7408, %v7404
    %v7777 = vpack.c.b16 %v7409, %v7405
    %v7778 = vpack.c.b16 %v7414, %v7410
    %v7779 = vpack.c.b16 %v7415, %v7411
    %v7780 = vpack.c.b16 %v7416, %v7412
    %v7781 = vpack.c.b16 %v7417, %v7413
    %v7782 = vpack.c.b16 %v7422, %v7418
    %v7783 = vpack.c.b16 %v7423, %v7419
    %v7784 = vpack.c.b16 %v7424, %v7420
    %v7785 = vpack.c.b16 %v7425, %v7421
    %v7786 = vpack.c.b16 %v7430, %v7426
    %v7787 = vpack.c.b16 %v7431, %v7427
    %v7788 = vpack.c.b16 %v7432, %v7428
    %v7789 = vpack.c.b16 %v7433, %v7429
    %v7790 = vpack.c.b16 %v7438, %v7434
    %v7791 = vpack.c.b16 %v7439, %v7435
    %v7792 = vpack.c.b16 %v7440, %v7436
    %v7793 = vpack.c.b16 %v7441, %v7437
    %v7794 = vpack.c.b16 %v7446, %v7442
    %v7795 = vpack.c.b16 %v7447, %v7443
    %v7796 = vpack.c.b16 %v7448, %v7444
    %v7797 = vpack.c.b16 %v7449, %v7445
    %v7798 = vpack.c.b16 %v7454, %v7450
    %v7799 = vpack.c.b16 %v7455, %v7451
    %v7800 = vpack.c.b16 %v7456, %v7452
    %v7801 = vpack.c.b16 %v7457, %v7453
    %v7802 = vpack.c.b16 %v7462, %v7458
    %v7803 = vpack.c.b16 %v7463, %v7459
    %v7804 = vpack.c.b16 %v7464, %v7460
    %v7805 = vpack.c.b16 %v7465, %v7461
    %v7806 = vpack.c.b16 %v7470, %v7466
    %v7807 = vpack.c.b16 %v7471, %v7467
    %v7808 = vpack.c.b16 %v7472, %v7468
    %v7809 = vpack.c.b16 %v7473, %v7469
    %v7810 = vpack.c.b16 %v7478, %v7474
    %v7811 = vpack.c.b16 %v7479, %v7475
    %v7812 = vpack.c.b16 %v7480, %v7476
    %v7813 = vpack.c.b16 %v7481, %v7477
    %v7814 = vpack.c.b16 %v7486, %v7482
    %v7815 = vpack.c.b16 %v7487, %v7483
    %v7816 = vpack.c.b16 %v7488, %v7484
    %v7817 = vpack.c.b16 %v7489, %v7485
    %v7818 = vpack.c.b16 %v7494, %v7490
    %v7819 = vpack.c.b16 %v7495, %v7491
    %v7820 = vpack.c.b16 %v7496, %v7492
    %v7821 = vpack.c.b16 %v7497, %v7493
    %v7822 = vpack.c.b16 %v7502, %v7498
    %v7823 = vpack.c.b16 %v7503, %v7499
    %v7824 = vpack.c.b16 %v7504, %v7500
    %v7825 = vpack.c.b16 %v7505, %v7501
    %v7826 = vpack.c.b16 %v7510, %v7506
    %v7827 = vpack.c.b16 %v7511, %v7507
    %v7828 = vpack.c.b16 %v7512, %v7508
    %v7829 = vpack.c.b16 %v7513, %v7509
    %v7830 = vpack.c.b16 %v7518, %v7514
    %v7831 = vpack.c.b16 %v7519, %v7515
    %v7832 = vpack.c.b16 %v7520, %v7516
    %v7833 = vpack.c.b16 %v7521, %v7517
    %v7834 = vpack.c.b16 %v7526, %v7522
    %v7835 = vpack.c.b16 %v7527, %v7523
    %v7836 = vpack.c.b16 %v7528, %v7524
    %v7837 = vpack.c.b16 %v7529, %v7525
    %v7838 = vpack.c.b16 %v7534, %v7530
    %v7839 = vpack.c.b16 %v7535, %v7531
    %v7840 = vpack.c.b16 %v7536, %v7532
    %v7841 = vpack.c.b16 %v7537, %v7533
    %v7842 = vpack.c.b16 %v7542, %v7538
    %v7843 = vpack.c.b16 %v7543, %v7539
    %v7844 = vpack.c.b16 %v7544, %v7540
    %v7845 = vpack.c.b16 %v7545, %v7541
    %v7846 = vpack.c.b16 %v7550, %v7546
    %v7847 = vpack.c.b16 %v7551, %v7547
    %v7848 = vpack.c.b16 %v7552, %v7548
    %v7849 = vpack.c.b16 %v7553, %v7549
    %v7850 = vpack.c.b16 %v7558, %v7554
    %v7851 = vpack.c.b16 %v7559, %v7555
    %v7852 = vpack.c.b16 %v7560, %v7556
    %v7853 = vpack.c.b16 %v7561, %v7557
    %v7854 = vpack.c.b16 %v7566, %v7562
    %v7855 = vpack.c.b16 %v7567, %v7563
    %v7856 = vpack.c.b16 %v7568, %v7564
    %v7857 = vpack.c.b16 %v7569, %v7565
    %v7858 = vpack.c.b16 %v7574, %v7570
    %v7859 = vpack.c.b16 %v7575, %v7571
    %v7860 = vpack.c.b16 %v7576, %v7572
    %v7861 = vpack.c.b16 %v7577, %v7573
    %v7862 = vpack.c.b16 %v7582, %v7578
    %v7863 = vpack.c.b16 %v7583, %v7579
    %v7864 = vpack.c.b16 %v7584, %v7580
    %v7865 = vpack.c.b16 %v7585, %v7581
    %v7866 = vpack.c.b16 %v7590, %v7586
    %v7867 = vpack.c.b16 %v7591, %v7587
    %v7868 = vpack.c.b16 %v7592, %v7588
    %v7869 = vpack.c.b16 %v7593, %v7589
    %v7870 = vpack.c.b16 %v7598, %v7594
    %v7871 = vpack.c.b16 %v7599, %v7595
    %v7872 = vpack.c.b16 %v7600, %v7596
    %v7873 = vpack.c.b16 %v7601, %v7597
    %v7874 = vpack.c.b16 %v7606, %v7602
    %v7875 = vpack.c.b16 %v7607, %v7603
    %v7876 = vpack.c.b16 %v7608, %v7604
    %v7877 = vpack.c.b16 %v7609, %v7605
    %v7878 = vpack.c.b16 %v7614, %v7610
    %v7879 = vpack.c.b16 %v7615, %v7611
    %v7880 = vpack.c.b16 %v7616, %v7612
    %v7881 = vpack.c.b16 %v7617, %v7613
    %v7882 = vpack.c.b16 %v7622, %v7618
    %v7883 = vpack.c.b16 %v7623, %v7619
    %v7884 = vpack.c.b16 %v7624, %v7620
    %v7885 = vpack.c.b16 %v7625, %v7621
    %v7886 = vpack.c.b16 %v7630, %v7626
    %v7887 = vpack.c.b16 %v7631, %v7627
    %v7888 = vpack.c.b16 %v7632, %v7628
    %v7889 = vpack.c.b16 %v7633, %v7629
    %8146 = vmatprep.subr.bf16.mxu0 %v7663
    %8147 = vmatpush1.bf16.msra.mxu0 %v7662
    %8148 = vmatprep.subr.bf16.mxu0 %v7659
    %8149 = vmatpush1.bf16.msra.mxu0 %v7658
    %8150 = vmatprep.subr.bf16.mxu0 %v7655
    %8151 = vmatpush1.bf16.msra.mxu0 %v7654
    %8152 = vmatprep.subr.bf16.mxu0 %v7651
    %8153 = vmatpush1.bf16.msra.mxu0 %v7650
    %8154 = vmatprep.subr.bf16.mxu0 %v7647
    %8155 = vmatpush1.bf16.msra.mxu0 %v7646
    %8156 = vmatprep.subr.bf16.mxu0 %v7643
    %8157 = vmatpush1.bf16.msra.mxu0 %v7642
    %8158 = vmatprep.subr.bf16.mxu0 %v7639
    %8159 = vmatpush1.bf16.msra.mxu0 %v7638
    %8160 = vmatprep.subr.bf16.mxu0 %v7635
    %8161 = vmatpush1.bf16.msra.mxu0 %v7634
    %8162 = vmatprep.subr.bf16.mxu0 %v7695
    %8163 = vmatpush2.bf16.msra.mxu0 %v7694
    %8164 = vmatprep.subr.bf16.mxu0 %v7691
    %8165 = vmatpush2.bf16.msra.mxu0 %v7690
    %8166 = vmatprep.subr.bf16.mxu0 %v7687
    %8167 = vmatpush2.bf16.msra.mxu0 %v7686
    %8168 = vmatprep.subr.bf16.mxu0 %v7683
    %8169 = vmatpush2.bf16.msra.mxu0 %v7682
    %8170 = vmatprep.subr.bf16.mxu0 %v7679
    %8171 = vmatpush2.bf16.msra.mxu0 %v7678
    %8172 = vmatprep.subr.bf16.mxu0 %v7675
    %8173 = vmatpush2.bf16.msra.mxu0 %v7674
    %8174 = vmatprep.subr.bf16.mxu0 %v7671
    %8175 = vmatpush2.bf16.msra.mxu0 %v7670
    %8176 = vmatprep.subr.bf16.mxu0 %v7667
    %8177 = vmatpush2.bf16.msra.mxu0 %v7666
    %8178 = vmatprep.mubr.bf16.mxu0 %v6603
    %8179 = vmatmul.mubr.bf16.gmra.mxu0 %v6602
    %v8180 = vpop.f32.mrf.mxu0
    %v8181 = vadd.f32 0.0, %v8180
    %v8182 = vpop.f32.mrf.mxu0
    %v8183 = vadd.f32 0.0, %v8182
    %v8184 = vpop.f32.mrf.mxu0
    %v8185 = vpop.f32.mrf.mxu0
    %8186 = vdwg.mxu0
    %8187 = vmatprep.subr.bf16.mxu0 %v7727
    %8188 = vmatpush1.bf16.msra.mxu0 %v7726
    %8189 = vmatprep.subr.bf16.mxu0 %v7723
    %8190 = vmatpush1.bf16.msra.mxu0 %v7722
    %8191 = vmatprep.subr.bf16.mxu0 %v7719
    %8192 = vmatpush1.bf16.msra.mxu0 %v7718
    %8193 = vmatprep.subr.bf16.mxu0 %v7715
    %8194 = vmatpush1.bf16.msra.mxu0 %v7714
    %8195 = vmatprep.subr.bf16.mxu0 %v7711
    %8196 = vmatpush1.bf16.msra.mxu0 %v7710
    %8197 = vmatprep.subr.bf16.mxu0 %v7707
    %8198 = vmatpush1.bf16.msra.mxu0 %v7706
    %8199 = vmatprep.subr.bf16.mxu0 %v7703
    %8200 = vmatpush1.bf16.msra.mxu0 %v7702
    %8201 = vmatprep.subr.bf16.mxu0 %v7699
    %8202 = vmatpush1.bf16.msra.mxu0 %v7698
    %8203 = vmatprep.subr.bf16.mxu0 %v7759
    %8204 = vmatpush2.bf16.msra.mxu0 %v7758
    %8205 = vmatprep.subr.bf16.mxu0 %v7755
    %8206 = vmatpush2.bf16.msra.mxu0 %v7754
    %8207 = vmatprep.subr.bf16.mxu0 %v7751
    %8208 = vmatpush2.bf16.msra.mxu0 %v7750
    %8209 = vmatprep.subr.bf16.mxu0 %v7747
    %8210 = vmatpush2.bf16.msra.mxu0 %v7746
    %8211 = vmatprep.subr.bf16.mxu0 %v7743
    %8212 = vmatpush2.bf16.msra.mxu0 %v7742
    %8213 = vmatprep.subr.bf16.mxu0 %v7739
    %8214 = vmatpush2.bf16.msra.mxu0 %v7738
    %8215 = vmatprep.subr.bf16.mxu0 %v7735
    %8216 = vmatpush2.bf16.msra.mxu0 %v7734
    %8217 = vmatprep.subr.bf16.mxu0 %v7731
    %8218 = vmatpush2.bf16.msra.mxu0 %v7730
    %8219 = vmatprep.mubr.bf16.mxu0 %v6605
    %8220 = vmatmul.mubr.bf16.gmra.mxu0 %v6604
    %v8221 = vpop.f32.mrf.mxu0
    %v8222 = vadd.f32 %v8181, %v8221
    %v8223 = vpop.f32.mrf.mxu0
    %v8224 = vadd.f32 %v8183, %v8223
    %v8225 = vpop.f32.mrf.mxu0
    %v8226 = vpop.f32.mrf.mxu0
    %8227 = vdwg.mxu0
    %8228 = vmatprep.subr.bf16.mxu0 %v7791
    %8229 = vmatpush1.bf16.msra.mxu0 %v7790
    %8230 = vmatprep.subr.bf16.mxu0 %v7787
    %8231 = vmatpush1.bf16.msra.mxu0 %v7786
    %8232 = vmatprep.subr.bf16.mxu0 %v7783
    %8233 = vmatpush1.bf16.msra.mxu0 %v7782
    %8234 = vmatprep.subr.bf16.mxu0 %v7779
    %8235 = vmatpush1.bf16.msra.mxu0 %v7778
    %8236 = vmatprep.subr.bf16.mxu0 %v7775
    %8237 = vmatpush1.bf16.msra.mxu0 %v7774
    %8238 = vmatprep.subr.bf16.mxu0 %v7771
    %8239 = vmatpush1.bf16.msra.mxu0 %v7770
    %8240 = vmatprep.subr.bf16.mxu0 %v7767
    %8241 = vmatpush1.bf16.msra.mxu0 %v7766
    %8242 = vmatprep.subr.bf16.mxu0 %v7763
    %8243 = vmatpush1.bf16.msra.mxu0 %v7762
    %8244 = vmatprep.subr.bf16.mxu0 %v7823
    %8245 = vmatpush2.bf16.msra.mxu0 %v7822
    %8246 = vmatprep.subr.bf16.mxu0 %v7819
    %8247 = vmatpush2.bf16.msra.mxu0 %v7818
    %8248 = vmatprep.subr.bf16.mxu0 %v7815
    %8249 = vmatpush2.bf16.msra.mxu0 %v7814
    %8250 = vmatprep.subr.bf16.mxu0 %v7811
    %8251 = vmatpush2.bf16.msra.mxu0 %v7810
    %8252 = vmatprep.subr.bf16.mxu0 %v7807
    %8253 = vmatpush2.bf16.msra.mxu0 %v7806
    %8254 = vmatprep.subr.bf16.mxu0 %v7803
    %8255 = vmatpush2.bf16.msra.mxu0 %v7802
    %8256 = vmatprep.subr.bf16.mxu0 %v7799
    %8257 = vmatpush2.bf16.msra.mxu0 %v7798
    %8258 = vmatprep.subr.bf16.mxu0 %v7795
    %8259 = vmatpush2.bf16.msra.mxu0 %v7794
    %8260 = vmatprep.mubr.bf16.mxu0 %v6607
    %8261 = vmatmul.mubr.bf16.gmra.mxu0 %v6606
    %v8262 = vpop.f32.mrf.mxu0
    %v8263 = vadd.f32 %v8222, %v8262
    %v8264 = vpop.f32.mrf.mxu0
    %v8265 = vadd.f32 %v8224, %v8264
    %v8266 = vpop.f32.mrf.mxu0
    %v8267 = vpop.f32.mrf.mxu0
    %8268 = vdwg.mxu0
    %8269 = vmatprep.subr.bf16.mxu0 %v7855
    %8270 = vmatpush1.bf16.msra.mxu0 %v7854
    %8271 = vmatprep.subr.bf16.mxu0 %v7851
    %8272 = vmatpush1.bf16.msra.mxu0 %v7850
    %8273 = vmatprep.subr.bf16.mxu0 %v7847
    %8274 = vmatpush1.bf16.msra.mxu0 %v7846
    %8275 = vmatprep.subr.bf16.mxu0 %v7843
    %8276 = vmatpush1.bf16.msra.mxu0 %v7842
    %8277 = vmatprep.subr.bf16.mxu0 %v7839
    %8278 = vmatpush1.bf16.msra.mxu0 %v7838
    %8279 = vmatprep.subr.bf16.mxu0 %v7835
    %8280 = vmatpush1.bf16.msra.mxu0 %v7834
    %8281 = vmatprep.subr.bf16.mxu0 %v7831
    %8282 = vmatpush1.bf16.msra.mxu0 %v7830
    %8283 = vmatprep.subr.bf16.mxu0 %v7827
    %8284 = vmatpush1.bf16.msra.mxu0 %v7826
    %8285 = vmatprep.subr.bf16.mxu0 %v7887
    %8286 = vmatpush2.bf16.msra.mxu0 %v7886
    %8287 = vmatprep.subr.bf16.mxu0 %v7883
    %8288 = vmatpush2.bf16.msra.mxu0 %v7882
    %8289 = vmatprep.subr.bf16.mxu0 %v7879
    %8290 = vmatpush2.bf16.msra.mxu0 %v7878
    %8291 = vmatprep.subr.bf16.mxu0 %v7875
    %8292 = vmatpush2.bf16.msra.mxu0 %v7874
    %8293 = vmatprep.subr.bf16.mxu0 %v7871
    %8294 = vmatpush2.bf16.msra.mxu0 %v7870
    %8295 = vmatprep.subr.bf16.mxu0 %v7867
    %8296 = vmatpush2.bf16.msra.mxu0 %v7866
    %8297 = vmatprep.subr.bf16.mxu0 %v7863
    %8298 = vmatpush2.bf16.msra.mxu0 %v7862
    %8299 = vmatprep.subr.bf16.mxu0 %v7859
    %8300 = vmatpush2.bf16.msra.mxu0 %v7858
    %8301 = vmatprep.mubr.bf16.mxu0 %v6609
    %8302 = vmatmul.mubr.bf16.gmra.mxu0 %v6608
    %v8303 = vpop.f32.mrf.mxu0
    %v8304 = vadd.f32 %v8263, %v8303
    %v8305 = vpop.f32.mrf.mxu0
    %v8306 = vadd.f32 %v8265, %v8305
    %v8307 = vpop.f32.mrf.mxu0
    %v8308 = vpop.f32.mrf.mxu0
    %8309 = vdwg.mxu0
    %8310 = vmatprep.subr.bf16.mxu0 %v7665
    %8311 = vmatpush1.bf16.msra.mxu0 %v7664
    %8312 = vmatprep.subr.bf16.mxu0 %v7661
    %8313 = vmatpush1.bf16.msra.mxu0 %v7660
    %8314 = vmatprep.subr.bf16.mxu0 %v7657
    %8315 = vmatpush1.bf16.msra.mxu0 %v7656
    %8316 = vmatprep.subr.bf16.mxu0 %v7653
    %8317 = vmatpush1.bf16.msra.mxu0 %v7652
    %8318 = vmatprep.subr.bf16.mxu0 %v7649
    %8319 = vmatpush1.bf16.msra.mxu0 %v7648
    %8320 = vmatprep.subr.bf16.mxu0 %v7645
    %8321 = vmatpush1.bf16.msra.mxu0 %v7644
    %8322 = vmatprep.subr.bf16.mxu0 %v7641
    %8323 = vmatpush1.bf16.msra.mxu0 %v7640
    %8324 = vmatprep.subr.bf16.mxu0 %v7637
    %8325 = vmatpush1.bf16.msra.mxu0 %v7636
    %8326 = vmatprep.subr.bf16.mxu0 %v7697
    %8327 = vmatpush2.bf16.msra.mxu0 %v7696
    %8328 = vmatprep.subr.bf16.mxu0 %v7693
    %8329 = vmatpush2.bf16.msra.mxu0 %v7692
    %8330 = vmatprep.subr.bf16.mxu0 %v7689
    %8331 = vmatpush2.bf16.msra.mxu0 %v7688
    %8332 = vmatprep.subr.bf16.mxu0 %v7685
    %8333 = vmatpush2.bf16.msra.mxu0 %v7684
    %8334 = vmatprep.subr.bf16.mxu0 %v7681
    %8335 = vmatpush2.bf16.msra.mxu0 %v7680
    %8336 = vmatprep.subr.bf16.mxu0 %v7677
    %8337 = vmatpush2.bf16.msra.mxu0 %v7676
    %8338 = vmatprep.subr.bf16.mxu0 %v7673
    %8339 = vmatpush2.bf16.msra.mxu0 %v7672
    %8340 = vmatprep.subr.bf16.mxu0 %v7669
    %8341 = vmatpush2.bf16.msra.mxu0 %v7668
    %8342 = vmatprep.mubr.bf16.mxu0 %v6603
    %8343 = vmatmul.mubr.bf16.gmra.mxu0 %v6602
    %v8344 = vpop.f32.mrf.mxu0
    %v8345 = vadd.f32 0.0, %v8344
    %v8346 = vpop.f32.mrf.mxu0
    %v8347 = vadd.f32 0.0, %v8346
    %v8348 = vpop.f32.mrf.mxu0
    %v8349 = vpop.f32.mrf.mxu0
    %8350 = vdwg.mxu0
    %8351 = vmatprep.subr.bf16.mxu0 %v7729
    %8352 = vmatpush1.bf16.msra.mxu0 %v7728
    %8353 = vmatprep.subr.bf16.mxu0 %v7725
    %8354 = vmatpush1.bf16.msra.mxu0 %v7724
    %8355 = vmatprep.subr.bf16.mxu0 %v7721
    %8356 = vmatpush1.bf16.msra.mxu0 %v7720
    %8357 = vmatprep.subr.bf16.mxu0 %v7717
    %8358 = vmatpush1.bf16.msra.mxu0 %v7716
    %8359 = vmatprep.subr.bf16.mxu0 %v7713
    %8360 = vmatpush1.bf16.msra.mxu0 %v7712
    %8361 = vmatprep.subr.bf16.mxu0 %v7709
    %8362 = vmatpush1.bf16.msra.mxu0 %v7708
    %8363 = vmatprep.subr.bf16.mxu0 %v7705
    %8364 = vmatpush1.bf16.msra.mxu0 %v7704
    %8365 = vmatprep.subr.bf16.mxu0 %v7701
    %8366 = vmatpush1.bf16.msra.mxu0 %v7700
    %8367 = vmatprep.subr.bf16.mxu0 %v7761
    %8368 = vmatpush2.bf16.msra.mxu0 %v7760
    %8369 = vmatprep.subr.bf16.mxu0 %v7757
    %8370 = vmatpush2.bf16.msra.mxu0 %v7756
    %8371 = vmatprep.subr.bf16.mxu0 %v7753
    %8372 = vmatpush2.bf16.msra.mxu0 %v7752
    %8373 = vmatprep.subr.bf16.mxu0 %v7749
    %8374 = vmatpush2.bf16.msra.mxu0 %v7748
    %8375 = vmatprep.subr.bf16.mxu0 %v7745
    %8376 = vmatpush2.bf16.msra.mxu0 %v7744
    %8377 = vmatprep.subr.bf16.mxu0 %v7741
    %8378 = vmatpush2.bf16.msra.mxu0 %v7740
    %8379 = vmatprep.subr.bf16.mxu0 %v7737
    %8380 = vmatpush2.bf16.msra.mxu0 %v7736
    %8381 = vmatprep.subr.bf16.mxu0 %v7733
    %8382 = vmatpush2.bf16.msra.mxu0 %v7732
    %8383 = vmatprep.mubr.bf16.mxu0 %v6605
    %8384 = vmatmul.mubr.bf16.gmra.mxu0 %v6604
    %v8385 = vpop.f32.mrf.mxu0
    %v8386 = vadd.f32 %v8345, %v8385
    %v8387 = vpop.f32.mrf.mxu0
    %v8388 = vadd.f32 %v8347, %v8387
    %v8389 = vpop.f32.mrf.mxu0
    %v8390 = vpop.f32.mrf.mxu0
    %8391 = vdwg.mxu0
    %8392 = vmatprep.subr.bf16.mxu0 %v7793
    %8393 = vmatpush1.bf16.msra.mxu0 %v7792
    %8394 = vmatprep.subr.bf16.mxu0 %v7789
    %8395 = vmatpush1.bf16.msra.mxu0 %v7788
    %8396 = vmatprep.subr.bf16.mxu0 %v7785
    %8397 = vmatpush1.bf16.msra.mxu0 %v7784
    %8398 = vmatprep.subr.bf16.mxu0 %v7781
    %8399 = vmatpush1.bf16.msra.mxu0 %v7780
    %8400 = vmatprep.subr.bf16.mxu0 %v7777
    %8401 = vmatpush1.bf16.msra.mxu0 %v7776
    %8402 = vmatprep.subr.bf16.mxu0 %v7773
    %8403 = vmatpush1.bf16.msra.mxu0 %v7772
    %8404 = vmatprep.subr.bf16.mxu0 %v7769
    %8405 = vmatpush1.bf16.msra.mxu0 %v7768
    %8406 = vmatprep.subr.bf16.mxu0 %v7765
    %8407 = vmatpush1.bf16.msra.mxu0 %v7764
    %8408 = vmatprep.subr.bf16.mxu0 %v7825
    %8409 = vmatpush2.bf16.msra.mxu0 %v7824
    %8410 = vmatprep.subr.bf16.mxu0 %v7821
    %8411 = vmatpush2.bf16.msra.mxu0 %v7820
    %8412 = vmatprep.subr.bf16.mxu0 %v7817
    %8413 = vmatpush2.bf16.msra.mxu0 %v7816
    %8414 = vmatprep.subr.bf16.mxu0 %v7813
    %8415 = vmatpush2.bf16.msra.mxu0 %v7812
    %8416 = vmatprep.subr.bf16.mxu0 %v7809
    %8417 = vmatpush2.bf16.msra.mxu0 %v7808
    %8418 = vmatprep.subr.bf16.mxu0 %v7805
    %8419 = vmatpush2.bf16.msra.mxu0 %v7804
    %8420 = vmatprep.subr.bf16.mxu0 %v7801
    %8421 = vmatpush2.bf16.msra.mxu0 %v7800
    %8422 = vmatprep.subr.bf16.mxu0 %v7797
    %8423 = vmatpush2.bf16.msra.mxu0 %v7796
    %8424 = vmatprep.mubr.bf16.mxu0 %v6607
    %8425 = vmatmul.mubr.bf16.gmra.mxu0 %v6606
    %v8426 = vpop.f32.mrf.mxu0
    %v8427 = vadd.f32 %v8386, %v8426
    %v8428 = vpop.f32.mrf.mxu0
    %v8429 = vadd.f32 %v8388, %v8428
    %v8430 = vpop.f32.mrf.mxu0
    %v8431 = vpop.f32.mrf.mxu0
    %8432 = vdwg.mxu0
    %8433 = vmatprep.subr.bf16.mxu0 %v7857
    %8434 = vmatpush1.bf16.msra.mxu0 %v7856
    %8435 = vmatprep.subr.bf16.mxu0 %v7853
    %8436 = vmatpush1.bf16.msra.mxu0 %v7852
    %8437 = vmatprep.subr.bf16.mxu0 %v7849
    %8438 = vmatpush1.bf16.msra.mxu0 %v7848
    %8439 = vmatprep.subr.bf16.mxu0 %v7845
    %8440 = vmatpush1.bf16.msra.mxu0 %v7844
    %8441 = vmatprep.subr.bf16.mxu0 %v7841
    %8442 = vmatpush1.bf16.msra.mxu0 %v7840
    %8443 = vmatprep.subr.bf16.mxu0 %v7837
    %8444 = vmatpush1.bf16.msra.mxu0 %v7836
    %8445 = vmatprep.subr.bf16.mxu0 %v7833
    %8446 = vmatpush1.bf16.msra.mxu0 %v7832
    %8447 = vmatprep.subr.bf16.mxu0 %v7829
    %8448 = vmatpush1.bf16.msra.mxu0 %v7828
    %8449 = vmatprep.subr.bf16.mxu0 %v7889
    %8450 = vmatpush2.bf16.msra.mxu0 %v7888
    %8451 = vmatprep.subr.bf16.mxu0 %v7885
    %8452 = vmatpush2.bf16.msra.mxu0 %v7884
    %8453 = vmatprep.subr.bf16.mxu0 %v7881
    %8454 = vmatpush2.bf16.msra.mxu0 %v7880
    %8455 = vmatprep.subr.bf16.mxu0 %v7877
    %8456 = vmatpush2.bf16.msra.mxu0 %v7876
    %8457 = vmatprep.subr.bf16.mxu0 %v7873
    %8458 = vmatpush2.bf16.msra.mxu0 %v7872
    %8459 = vmatprep.subr.bf16.mxu0 %v7869
    %8460 = vmatpush2.bf16.msra.mxu0 %v7868
    %8461 = vmatprep.subr.bf16.mxu0 %v7865
    %8462 = vmatpush2.bf16.msra.mxu0 %v7864
    %8463 = vmatprep.subr.bf16.mxu0 %v7861
    %8464 = vmatpush2.bf16.msra.mxu0 %v7860
    %8465 = vmatprep.mubr.bf16.mxu0 %v6609
    %8466 = vmatmul.mubr.bf16.gmra.mxu0 %v6608
    %v8467 = vpop.f32.mrf.mxu0
    %v8468 = vadd.f32 %v8427, %v8467
    %v8469 = vpop.f32.mrf.mxu0
    %v8470 = vadd.f32 %v8429, %v8469
    %v8471 = vpop.f32.mrf.mxu0
    %v8472 = vpop.f32.mrf.mxu0
    %8473 = vdwg.mxu0
    %v8474 = vrot.slane %v8304, 4
    %v8475 = vadd.f32 %v8304, %v8474
    %v8476 = vrot.slane %v8475, 2
    %v8477 = vadd.f32 %v8475, %v8476
    %v8478 = vrot.slane %v8477, 1
    %v8479 = vadd.f32 %v8477, %v8478
    %v8480 = vrot.slane %v8306, 4
    %v8481 = vadd.f32 %v8306, %v8480
    %v8482 = vrot.slane %v8481, 2
    %v8483 = vadd.f32 %v8481, %v8482
    %v8484 = vrot.slane %v8483, 1
    %v8485 = vadd.f32 %v8483, %v8484
    %v8486 = vrot.slane %v8468, 4
    %v8487 = vadd.f32 %v8468, %v8486
    %v8488 = vrot.slane %v8487, 2
    %v8489 = vadd.f32 %v8487, %v8488
    %v8490 = vrot.slane %v8489, 1
    %v8491 = vadd.f32 %v8489, %v8490
    %v8492 = vrot.slane %v8470, 4
    %v8493 = vadd.f32 %v8470, %v8492
    %v8494 = vrot.slane %v8493, 2
    %v8495 = vadd.f32 %v8493, %v8494
    %v8496 = vrot.slane %v8495, 1
    %v8497 = vadd.f32 %v8495, %v8496
    %v8498 = vmul.f32 %v8479, %v2107
    %v8499 = vmul.f32 %v8485, %v2107
    %v8500 = vmul.f32 %v8491, %v2107
    %v8501 = vmul.f32 %v8497, %v2107
    %v8502 = vmul.f32 %v8304, %v8304
    %v8503 = vmul.f32 %v8306, %v8306
    %v8504 = vmul.f32 %v8468, %v8468
    %v8505 = vmul.f32 %v8470, %v8470
    %v8506 = vrot.slane %v8502, 4
    %v8507 = vadd.f32 %v8502, %v8506
    %v8508 = vrot.slane %v8507, 2
    %v8509 = vadd.f32 %v8507, %v8508
    %v8510 = vrot.slane %v8509, 1
    %v8511 = vadd.f32 %v8509, %v8510
    %v8512 = vrot.slane %v8503, 4
    %v8513 = vadd.f32 %v8503, %v8512
    %v8514 = vrot.slane %v8513, 2
    %v8515 = vadd.f32 %v8513, %v8514
    %v8516 = vrot.slane %v8515, 1
    %v8517 = vadd.f32 %v8515, %v8516
    %v8518 = vrot.slane %v8504, 4
    %v8519 = vadd.f32 %v8504, %v8518
    %v8520 = vrot.slane %v8519, 2
    %v8521 = vadd.f32 %v8519, %v8520
    %v8522 = vrot.slane %v8521, 1
    %v8523 = vadd.f32 %v8521, %v8522
    %v8524 = vrot.slane %v8505, 4
    %v8525 = vadd.f32 %v8505, %v8524
    %v8526 = vrot.slane %v8525, 2
    %v8527 = vadd.f32 %v8525, %v8526
    %v8528 = vrot.slane %v8527, 1
    %v8529 = vadd.f32 %v8527, %v8528
    %v8530 = vmul.f32 %v8511, %v2107
    %v8531 = vmul.f32 %v8517, %v2107
    %v8532 = vmul.f32 %v8523, %v2107
    %v8533 = vmul.f32 %v8529, %v2107
    %v8534 = vmul.f32 %v8498, %v8498
    %v8535 = vmul.f32 %v8499, %v8499
    %v8536 = vmul.f32 %v8500, %v8500
    %v8537 = vmul.f32 %v8501, %v8501
    %v8538 = vsub.f32 %v8530, %v8534
    %v8539 = vsub.f32 %v8531, %v8535
    %v8540 = vsub.f32 %v8532, %v8536
    %v8541 = vsub.f32 %v8533, %v8537
    %v8542 = vmax.f32 %v8538, 0.0
    %v8543 = vmax.f32 %v8539, 0.0
    %v8544 = vmax.f32 %v8540, 0.0
    %v8545 = vmax.f32 %v8541, 0.0
    %s8546 = scalar_lea.vmem [#allocation13], 4
    %v8547 = vld [vmem:[%s8546] ss:$8 sm:$0xf]
    %s8548 = scalar_lea.vmem [#allocation13], 5
    %v8549 = vld [vmem:[%s8548] ss:$8 sm:$0xf]
    %v8550 = vadd.f32 %v8542, 1e-05
    %v8551 = vadd.f32 %v8543, 1e-05
    %v8552 = vadd.f32 %v8544, 1e-05
    %v8553 = vadd.f32 %v8545, 1e-05
    %v8554 = vrsqrt.pop %v8550
    %v8555 = vrsqrt.pop %v8551
    %v8556 = vrsqrt.pop %v8552
    %v8557 = vrsqrt.pop %v8553
    %v8562 = vcombine.low %v8554, %v8555
    %v8563 = vcombine.low %v8556, %v8557
    %v8565 = vunpack.c.l.s4 1966171168
    %v8566 = vunpack.c.0.s8 %v8565
    %v8567 = vlaneseq
    %v8568 = vshrl.u32 %v8567, 7
    %v8569 = vsub.s32 %v8566, %v8568
    %v8570 = vrot.slane %v8562, %v8569
    %v8572 = vunpack.c.l.s4 1966171168
    %v8573 = vunpack.c.0.s8 %v8572
    %v8574 = vlaneseq
    %v8575 = vshrl.u32 %v8574, 7
    %v8576 = vsub.s32 %v8573, %v8575
    %v8577 = vrot.slane %v8563, %v8576
    %v8578 = vcombine.low %v8570, %v8577
    %v8580 = vunpack.c.l.s4 1966171168
    %v8581 = vunpack.c.0.s8 %v8580
    %v8582 = vlaneseq
    %v8583 = vshrl.u32 %v8582, 7
    %v8584 = vsub.s32 %v8581, %v8583
    %v8585 = vrot.slane %v8578, %v8584
    %v8587 = vmul.f32 %v8547, %v8585
    %v8589 = vlaneseq
    %v8590 = vshrl.u32 %v8589, 7
    %v8591 = vsub.s32 0, %v8590
    %v8592 = vrot.slane %v8587, %v8591
    %v8593 = vlaneseq
    %v8594 = vshrl.u32 %v8593, 7
    %v8595 = vsub.s32 1, %v8594
    %v8596 = vrot.slane %v8587, %v8595
    %v8597 = vlaneseq
    %v8598 = vshrl.u32 %v8597, 7
    %v8599 = vsub.s32 2, %v8598
    %v8600 = vrot.slane %v8587, %v8599
    %v8601 = vlaneseq
    %v8602 = vshrl.u32 %v8601, 7
    %v8603 = vsub.s32 3, %v8602
    %v8604 = vrot.slane %v8587, %v8603
    %v8609 = vmul.f32 %v8498, %v8592
    %v8610 = vmul.f32 %v8499, %v8596
    %v8611 = vmul.f32 %v8500, %v8600
    %v8612 = vmul.f32 %v8501, %v8604
    %v8617 = vcombine.low %v8609, %v8610
    %v8618 = vcombine.low %v8611, %v8612
    %v8620 = vunpack.c.l.s4 1966171168
    %v8621 = vunpack.c.0.s8 %v8620
    %v8622 = vlaneseq
    %v8623 = vshrl.u32 %v8622, 7
    %v8624 = vsub.s32 %v8621, %v8623
    %v8625 = vrot.slane %v8617, %v8624
    %v8627 = vunpack.c.l.s4 1966171168
    %v8628 = vunpack.c.0.s8 %v8627
    %v8629 = vlaneseq
    %v8630 = vshrl.u32 %v8629, 7
    %v8631 = vsub.s32 %v8628, %v8630
    %v8632 = vrot.slane %v8618, %v8631
    %v8633 = vcombine.low %v8625, %v8632
    %v8635 = vunpack.c.l.s4 1966171168
    %v8636 = vunpack.c.0.s8 %v8635
    %v8637 = vlaneseq
    %v8638 = vshrl.u32 %v8637, 7
    %v8639 = vsub.s32 %v8636, %v8638
    %v8640 = vrot.slane %v8633, %v8639
    %v8642 = vsub.f32 %v8549, %v8640
    %v8643 = vmul.f32 %v8304, %v8592
    %v8644 = vmul.f32 %v8306, %v8596
    %v8645 = vmul.f32 %v8468, %v8600
    %v8646 = vmul.f32 %v8470, %v8604
    %v8648 = vlaneseq
    %v8649 = vshrl.u32 %v8648, 7
    %v8650 = vsub.s32 0, %v8649
    %v8651 = vrot.slane %v8642, %v8650
    %v8652 = vlaneseq
    %v8653 = vshrl.u32 %v8652, 7
    %v8654 = vsub.s32 1, %v8653
    %v8655 = vrot.slane %v8642, %v8654
    %v8656 = vlaneseq
    %v8657 = vshrl.u32 %v8656, 7
    %v8658 = vsub.s32 2, %v8657
    %v8659 = vrot.slane %v8642, %v8658
    %v8660 = vlaneseq
    %v8661 = vshrl.u32 %v8660, 7
    %v8662 = vsub.s32 3, %v8661
    %v8663 = vrot.slane %v8642, %v8662
    %v8668 = vadd.f32 %v8643, %v8651
    %v8669 = vadd.f32 %v8644, %v8655
    %v8670 = vadd.f32 %v8645, %v8659
    %v8671 = vadd.f32 %v8646, %v8663
    %v8672 = vmax.f32 %v8668, 0.0
    %v8673 = vmax.f32 %v8669, 0.0
    %v8674 = vmax.f32 %v8670, 0.0
    %v8675 = vmax.f32 %v8671, 0.0
    %s8676 = smul.u32 %s177, 2
    %s8677 = sshll.u32 %s8676, 4
    %8678 = dma.done %s81, %s8677
    %v8679 = vpack.c.bf16 %v8672, %v8672
    %v8680 = vpack.c.bf16 %v8673, %v8673
    %v8681 = vpack.c.bf16 %v8674, %v8674
    %v8682 = vpack.c.bf16 %v8675, %v8675
    %v8683 = vld [vmem:[#allocation5] sm:$0xff]
    %v8684 = vld [vmem:[#allocation5 + $0x8] sm:$0xff]
    %v8685 = vld [vmem:[#allocation5 + $0x10] sm:$0xff]
    %v8686 = vld [vmem:[#allocation5 + $0x18] sm:$0xff]
    %v8687 = vld [vmem:[#allocation5 + $0x20] sm:$0xff]
    %v8688 = vld [vmem:[#allocation5 + $0x28] sm:$0xff]
    %v8689 = vld [vmem:[#allocation5 + $0x30] sm:$0xff]
    %v8690 = vld [vmem:[#allocation5 + $0x38] sm:$0xff]
    %v8691 = vld [vmem:[#allocation5 + $0x40] sm:$0xff]
    %v8692 = vld [vmem:[#allocation5 + $0x48] sm:$0xff]
    %v8693 = vld [vmem:[#allocation5 + $0x50] sm:$0xff]
    %v8694 = vld [vmem:[#allocation5 + $0x58] sm:$0xff]
    %v8695 = vld [vmem:[#allocation5 + $0x60] sm:$0xff]
    %v8696 = vld [vmem:[#allocation5 + $0x68] sm:$0xff]
    %v8697 = vld [vmem:[#allocation5 + $0x70] sm:$0xff]
    %v8698 = vld [vmem:[#allocation5 + $0x78] sm:$0xff]
    %v8699 = vld [vmem:[#allocation5 + $0x80] sm:$0xff]
    %v8700 = vld [vmem:[#allocation5 + $0x88] sm:$0xff]
    %v8701 = vld [vmem:[#allocation5 + $0x90] sm:$0xff]
    %v8702 = vld [vmem:[#allocation5 + $0x98] sm:$0xff]
    %v8703 = vld [vmem:[#allocation5 + $0xa0] sm:$0xff]
    %v8704 = vld [vmem:[#allocation5 + $0xa8] sm:$0xff]
    %v8705 = vld [vmem:[#allocation5 + $0xb0] sm:$0xff]
    %v8706 = vld [vmem:[#allocation5 + $0xb8] sm:$0xff]
    %v8707 = vld [vmem:[#allocation5 + $0xc0] sm:$0xff]
    %v8708 = vld [vmem:[#allocation5 + $0xc8] sm:$0xff]
    %v8709 = vld [vmem:[#allocation5 + $0xd0] sm:$0xff]
    %v8710 = vld [vmem:[#allocation5 + $0xd8] sm:$0xff]
    %v8711 = vld [vmem:[#allocation5 + $0xe0] sm:$0xff]
    %v8712 = vld [vmem:[#allocation5 + $0xe8] sm:$0xff]
    %v8713 = vld [vmem:[#allocation5 + $0xf0] sm:$0xff]
    %v8714 = vld [vmem:[#allocation5 + $0xf8] sm:$0xff]
    %v8715 = vld [vmem:[#allocation5 + $0x100] sm:$0xff]
    %v8716 = vld [vmem:[#allocation5 + $0x108] sm:$0xff]
    %v8717 = vld [vmem:[#allocation5 + $0x110] sm:$0xff]
    %v8718 = vld [vmem:[#allocation5 + $0x118] sm:$0xff]
    %v8719 = vld [vmem:[#allocation5 + $0x120] sm:$0xff]
    %v8720 = vld [vmem:[#allocation5 + $0x128] sm:$0xff]
    %v8721 = vld [vmem:[#allocation5 + $0x130] sm:$0xff]
    %v8722 = vld [vmem:[#allocation5 + $0x138] sm:$0xff]
    %v8723 = vld [vmem:[#allocation5 + $0x140] sm:$0xff]
    %v8724 = vld [vmem:[#allocation5 + $0x148] sm:$0xff]
    %v8725 = vld [vmem:[#allocation5 + $0x150] sm:$0xff]
    %v8726 = vld [vmem:[#allocation5 + $0x158] sm:$0xff]
    %v8727 = vld [vmem:[#allocation5 + $0x160] sm:$0xff]
    %v8728 = vld [vmem:[#allocation5 + $0x168] sm:$0xff]
    %v8729 = vld [vmem:[#allocation5 + $0x170] sm:$0xff]
    %v8730 = vld [vmem:[#allocation5 + $0x178] sm:$0xff]
    %v8731 = vld [vmem:[#allocation5 + $0x180] sm:$0xff]
    %v8732 = vld [vmem:[#allocation5 + $0x188] sm:$0xff]
    %v8733 = vld [vmem:[#allocation5 + $0x190] sm:$0xff]
    %v8734 = vld [vmem:[#allocation5 + $0x198] sm:$0xff]
    %v8735 = vld [vmem:[#allocation5 + $0x1a0] sm:$0xff]
    %v8736 = vld [vmem:[#allocation5 + $0x1a8] sm:$0xff]
    %v8737 = vld [vmem:[#allocation5 + $0x1b0] sm:$0xff]
    %v8738 = vld [vmem:[#allocation5 + $0x1b8] sm:$0xff]
    %v8739 = vld [vmem:[#allocation5 + $0x1c0] sm:$0xff]
    %v8740 = vld [vmem:[#allocation5 + $0x1c8] sm:$0xff]
    %v8741 = vld [vmem:[#allocation5 + $0x1d0] sm:$0xff]
    %v8742 = vld [vmem:[#allocation5 + $0x1d8] sm:$0xff]
    %v8743 = vld [vmem:[#allocation5 + $0x1e0] sm:$0xff]
    %v8744 = vld [vmem:[#allocation5 + $0x1e8] sm:$0xff]
    %v8745 = vld [vmem:[#allocation5 + $0x1f0] sm:$0xff]
    %v8746 = vld [vmem:[#allocation5 + $0x1f8] sm:$0xff]
    %v8811 = vunpack.c.l.b16 %v8683
    %v8812 = vunpack.c.h.b16 %v8683
    %v8813 = vunpack.c.l.b16 %v8684
    %v8814 = vunpack.c.h.b16 %v8684
    %v8815 = vunpack.c.l.b16 %v8685
    %v8816 = vunpack.c.h.b16 %v8685
    %v8817 = vunpack.c.l.b16 %v8686
    %v8818 = vunpack.c.h.b16 %v8686
    %v8819 = vunpack.c.l.b16 %v8687
    %v8820 = vunpack.c.h.b16 %v8687
    %v8821 = vunpack.c.l.b16 %v8688
    %v8822 = vunpack.c.h.b16 %v8688
    %v8823 = vunpack.c.l.b16 %v8689
    %v8824 = vunpack.c.h.b16 %v8689
    %v8825 = vunpack.c.l.b16 %v8690
    %v8826 = vunpack.c.h.b16 %v8690
    %v8827 = vunpack.c.l.b16 %v8691
    %v8828 = vunpack.c.h.b16 %v8691
    %v8829 = vunpack.c.l.b16 %v8692
    %v8830 = vunpack.c.h.b16 %v8692
    %v8831 = vunpack.c.l.b16 %v8693
    %v8832 = vunpack.c.h.b16 %v8693
    %v8833 = vunpack.c.l.b16 %v8694
    %v8834 = vunpack.c.h.b16 %v8694
    %v8835 = vunpack.c.l.b16 %v8695
    %v8836 = vunpack.c.h.b16 %v8695
    %v8837 = vunpack.c.l.b16 %v8696
    %v8838 = vunpack.c.h.b16 %v8696
    %v8839 = vunpack.c.l.b16 %v8697
    %v8840 = vunpack.c.h.b16 %v8697
    %v8841 = vunpack.c.l.b16 %v8698
    %v8842 = vunpack.c.h.b16 %v8698
    %v8843 = vunpack.c.l.b16 %v8699
    %v8844 = vunpack.c.h.b16 %v8699
    %v8845 = vunpack.c.l.b16 %v8700
    %v8846 = vunpack.c.h.b16 %v8700
    %v8847 = vunpack.c.l.b16 %v8701
    %v8848 = vunpack.c.h.b16 %v8701
    %v8849 = vunpack.c.l.b16 %v8702
    %v8850 = vunpack.c.h.b16 %v8702
    %v8851 = vunpack.c.l.b16 %v8703
    %v8852 = vunpack.c.h.b16 %v8703
    %v8853 = vunpack.c.l.b16 %v8704
    %v8854 = vunpack.c.h.b16 %v8704
    %v8855 = vunpack.c.l.b16 %v8705
    %v8856 = vunpack.c.h.b16 %v8705
    %v8857 = vunpack.c.l.b16 %v8706
    %v8858 = vunpack.c.h.b16 %v8706
    %v8859 = vunpack.c.l.b16 %v8707
    %v8860 = vunpack.c.h.b16 %v8707
    %v8861 = vunpack.c.l.b16 %v8708
    %v8862 = vunpack.c.h.b16 %v8708
    %v8863 = vunpack.c.l.b16 %v8709
    %v8864 = vunpack.c.h.b16 %v8709
    %v8865 = vunpack.c.l.b16 %v8710
    %v8866 = vunpack.c.h.b16 %v8710
    %v8867 = vunpack.c.l.b16 %v8711
    %v8868 = vunpack.c.h.b16 %v8711
    %v8869 = vunpack.c.l.b16 %v8712
    %v8870 = vunpack.c.h.b16 %v8712
    %v8871 = vunpack.c.l.b16 %v8713
    %v8872 = vunpack.c.h.b16 %v8713
    %v8873 = vunpack.c.l.b16 %v8714
    %v8874 = vunpack.c.h.b16 %v8714
    %v8875 = vunpack.c.l.b16 %v8715
    %v8876 = vunpack.c.h.b16 %v8715
    %v8877 = vunpack.c.l.b16 %v8716
    %v8878 = vunpack.c.h.b16 %v8716
    %v8879 = vunpack.c.l.b16 %v8717
    %v8880 = vunpack.c.h.b16 %v8717
    %v8881 = vunpack.c.l.b16 %v8718
    %v8882 = vunpack.c.h.b16 %v8718
    %v8883 = vunpack.c.l.b16 %v8719
    %v8884 = vunpack.c.h.b16 %v8719
    %v8885 = vunpack.c.l.b16 %v8720
    %v8886 = vunpack.c.h.b16 %v8720
    %v8887 = vunpack.c.l.b16 %v8721
    %v8888 = vunpack.c.h.b16 %v8721
    %v8889 = vunpack.c.l.b16 %v8722
    %v8890 = vunpack.c.h.b16 %v8722
    %v8891 = vunpack.c.l.b16 %v8723
    %v8892 = vunpack.c.h.b16 %v8723
    %v8893 = vunpack.c.l.b16 %v8724
    %v8894 = vunpack.c.h.b16 %v8724
    %v8895 = vunpack.c.l.b16 %v8725
    %v8896 = vunpack.c.h.b16 %v8725
    %v8897 = vunpack.c.l.b16 %v8726
    %v8898 = vunpack.c.h.b16 %v8726
    %v8899 = vunpack.c.l.b16 %v8727
    %v8900 = vunpack.c.h.b16 %v8727
    %v8901 = vunpack.c.l.b16 %v8728
    %v8902 = vunpack.c.h.b16 %v8728
    %v8903 = vunpack.c.l.b16 %v8729
    %v8904 = vunpack.c.h.b16 %v8729
    %v8905 = vunpack.c.l.b16 %v8730
    %v8906 = vunpack.c.h.b16 %v8730
    %v8907 = vunpack.c.l.b16 %v8731
    %v8908 = vunpack.c.h.b16 %v8731
    %v8909 = vunpack.c.l.b16 %v8732
    %v8910 = vunpack.c.h.b16 %v8732
    %v8911 = vunpack.c.l.b16 %v8733
    %v8912 = vunpack.c.h.b16 %v8733
    %v8913 = vunpack.c.l.b16 %v8734
    %v8914 = vunpack.c.h.b16 %v8734
    %v8915 = vunpack.c.l.b16 %v8735
    %v8916 = vunpack.c.h.b16 %v8735
    %v8917 = vunpack.c.l.b16 %v8736
    %v8918 = vunpack.c.h.b16 %v8736
    %v8919 = vunpack.c.l.b16 %v8737
    %v8920 = vunpack.c.h.b16 %v8737
    %v8921 = vunpack.c.l.b16 %v8738
    %v8922 = vunpack.c.h.b16 %v8738
    %v8923 = vunpack.c.l.b16 %v8739
    %v8924 = vunpack.c.h.b16 %v8739
    %v8925 = vunpack.c.l.b16 %v8740
    %v8926 = vunpack.c.h.b16 %v8740
    %v8927 = vunpack.c.l.b16 %v8741
    %v8928 = vunpack.c.h.b16 %v8741
    %v8929 = vunpack.c.l.b16 %v8742
    %v8930 = vunpack.c.h.b16 %v8742
    %v8931 = vunpack.c.l.b16 %v8743
    %v8932 = vunpack.c.h.b16 %v8743
    %v8933 = vunpack.c.l.b16 %v8744
    %v8934 = vunpack.c.h.b16 %v8744
    %v8935 = vunpack.c.l.b16 %v8745
    %v8936 = vunpack.c.h.b16 %v8745
    %v8937 = vunpack.c.l.b16 %v8746
    %v8938 = vunpack.c.h.b16 %v8746
    %v8939 = vpack.c.b16 %v8813, %v8811
    %v8940 = vpack.c.b16 %v8814, %v8812
    %v8941 = vpack.c.b16 %v8817, %v8815
    %v8942 = vpack.c.b16 %v8818, %v8816
    %v8943 = vpack.c.b16 %v8821, %v8819
    %v8944 = vpack.c.b16 %v8822, %v8820
    %v8945 = vpack.c.b16 %v8825, %v8823
    %v8946 = vpack.c.b16 %v8826, %v8824
    %v8947 = vpack.c.b16 %v8829, %v8827
    %v8948 = vpack.c.b16 %v8830, %v8828
    %v8949 = vpack.c.b16 %v8833, %v8831
    %v8950 = vpack.c.b16 %v8834, %v8832
    %v8951 = vpack.c.b16 %v8837, %v8835
    %v8952 = vpack.c.b16 %v8838, %v8836
    %v8953 = vpack.c.b16 %v8841, %v8839
    %v8954 = vpack.c.b16 %v8842, %v8840
    %v8955 = vpack.c.b16 %v8845, %v8843
    %v8956 = vpack.c.b16 %v8846, %v8844
    %v8957 = vpack.c.b16 %v8849, %v8847
    %v8958 = vpack.c.b16 %v8850, %v8848
    %v8959 = vpack.c.b16 %v8853, %v8851
    %v8960 = vpack.c.b16 %v8854, %v8852
    %v8961 = vpack.c.b16 %v8857, %v8855
    %v8962 = vpack.c.b16 %v8858, %v8856
    %v8963 = vpack.c.b16 %v8861, %v8859
    %v8964 = vpack.c.b16 %v8862, %v8860
    %v8965 = vpack.c.b16 %v8865, %v8863
    %v8966 = vpack.c.b16 %v8866, %v8864
    %v8967 = vpack.c.b16 %v8869, %v8867
    %v8968 = vpack.c.b16 %v8870, %v8868
    %v8969 = vpack.c.b16 %v8873, %v8871
    %v8970 = vpack.c.b16 %v8874, %v8872
    %v8971 = vpack.c.b16 %v8877, %v8875
    %v8972 = vpack.c.b16 %v8878, %v8876
    %v8973 = vpack.c.b16 %v8881, %v8879
    %v8974 = vpack.c.b16 %v8882, %v8880
    %v8975 = vpack.c.b16 %v8885, %v8883
    %v8976 = vpack.c.b16 %v8886, %v8884
    %v8977 = vpack.c.b16 %v8889, %v8887
    %v8978 = vpack.c.b16 %v8890, %v8888
    %v8979 = vpack.c.b16 %v8893, %v8891
    %v8980 = vpack.c.b16 %v8894, %v8892
    %v8981 = vpack.c.b16 %v8897, %v8895
    %v8982 = vpack.c.b16 %v8898, %v8896
    %v8983 = vpack.c.b16 %v8901, %v8899
    %v8984 = vpack.c.b16 %v8902, %v8900
    %v8985 = vpack.c.b16 %v8905, %v8903
    %v8986 = vpack.c.b16 %v8906, %v8904
    %v8987 = vpack.c.b16 %v8909, %v8907
    %v8988 = vpack.c.b16 %v8910, %v8908
    %v8989 = vpack.c.b16 %v8913, %v8911
    %v8990 = vpack.c.b16 %v8914, %v8912
    %v8991 = vpack.c.b16 %v8917, %v8915
    %v8992 = vpack.c.b16 %v8918, %v8916
    %v8993 = vpack.c.b16 %v8921, %v8919
    %v8994 = vpack.c.b16 %v8922, %v8920
    %v8995 = vpack.c.b16 %v8925, %v8923
    %v8996 = vpack.c.b16 %v8926, %v8924
    %v8997 = vpack.c.b16 %v8929, %v8927
    %v8998 = vpack.c.b16 %v8930, %v8928
    %v8999 = vpack.c.b16 %v8933, %v8931
    %v9000 = vpack.c.b16 %v8934, %v8932
    %v9001 = vpack.c.b16 %v8937, %v8935
    %v9002 = vpack.c.b16 %v8938, %v8936
    %9067 = vmatprep.subr.bf16.mxu0 %v8954
    %9068 = vmatpush1.bf16.msra.mxu0 %v8953
    %9069 = vmatprep.subr.bf16.mxu0 %v8952
    %9070 = vmatpush1.bf16.msra.mxu0 %v8951
    %9071 = vmatprep.subr.bf16.mxu0 %v8950
    %9072 = vmatpush1.bf16.msra.mxu0 %v8949
    %9073 = vmatprep.subr.bf16.mxu0 %v8948
    %9074 = vmatpush1.bf16.msra.mxu0 %v8947
    %9075 = vmatprep.subr.bf16.mxu0 %v8946
    %9076 = vmatpush1.bf16.msra.mxu0 %v8945
    %9077 = vmatprep.subr.bf16.mxu0 %v8944
    %9078 = vmatpush1.bf16.msra.mxu0 %v8943
    %9079 = vmatprep.subr.bf16.mxu0 %v8942
    %9080 = vmatpush1.bf16.msra.mxu0 %v8941
    %9081 = vmatprep.subr.bf16.mxu0 %v8940
    %9082 = vmatpush1.bf16.msra.mxu0 %v8939
    %9083 = vmatprep.subr.bf16.mxu0 %v8970
    %9084 = vmatpush2.bf16.msra.mxu0 %v8969
    %9085 = vmatprep.subr.bf16.mxu0 %v8968
    %9086 = vmatpush2.bf16.msra.mxu0 %v8967
    %9087 = vmatprep.subr.bf16.mxu0 %v8966
    %9088 = vmatpush2.bf16.msra.mxu0 %v8965
    %9089 = vmatprep.subr.bf16.mxu0 %v8964
    %9090 = vmatpush2.bf16.msra.mxu0 %v8963
    %9091 = vmatprep.subr.bf16.mxu0 %v8962
    %9092 = vmatpush2.bf16.msra.mxu0 %v8961
    %9093 = vmatprep.subr.bf16.mxu0 %v8960
    %9094 = vmatpush2.bf16.msra.mxu0 %v8959
    %9095 = vmatprep.subr.bf16.mxu0 %v8958
    %9096 = vmatpush2.bf16.msra.mxu0 %v8957
    %9097 = vmatprep.subr.bf16.mxu0 %v8956
    %9098 = vmatpush2.bf16.msra.mxu0 %v8955
    %9099 = vmatprep.mubr.bf16.mxu0 %v8680
    %9100 = vmatmul.mubr.bf16.gmra.mxu0 %v8679
    %v9101 = vpop.f32.mrf.mxu0
    %v9102 = vadd.f32 0.0, %v9101
    %v9103 = vpop.f32.mrf.mxu0
    %v9104 = vadd.f32 0.0, %v9103
    %v9105 = vpop.f32.mrf.mxu0
    %v9106 = vpop.f32.mrf.mxu0
    %9107 = vdwg.mxu0
    %9108 = vmatprep.subr.bf16.mxu0 %v8986
    %9109 = vmatpush1.bf16.msra.mxu0 %v8985
    %9110 = vmatprep.subr.bf16.mxu0 %v8984
    %9111 = vmatpush1.bf16.msra.mxu0 %v8983
    %9112 = vmatprep.subr.bf16.mxu0 %v8982
    %9113 = vmatpush1.bf16.msra.mxu0 %v8981
    %9114 = vmatprep.subr.bf16.mxu0 %v8980
    %9115 = vmatpush1.bf16.msra.mxu0 %v8979
    %9116 = vmatprep.subr.bf16.mxu0 %v8978
    %9117 = vmatpush1.bf16.msra.mxu0 %v8977
    %9118 = vmatprep.subr.bf16.mxu0 %v8976
    %9119 = vmatpush1.bf16.msra.mxu0 %v8975
    %9120 = vmatprep.subr.bf16.mxu0 %v8974
    %9121 = vmatpush1.bf16.msra.mxu0 %v8973
    %9122 = vmatprep.subr.bf16.mxu0 %v8972
    %9123 = vmatpush1.bf16.msra.mxu0 %v8971
    %9124 = vmatprep.subr.bf16.mxu0 %v9002
    %9125 = vmatpush2.bf16.msra.mxu0 %v9001
    %9126 = vmatprep.subr.bf16.mxu0 %v9000
    %9127 = vmatpush2.bf16.msra.mxu0 %v8999
    %9128 = vmatprep.subr.bf16.mxu0 %v8998
    %9129 = vmatpush2.bf16.msra.mxu0 %v8997
    %9130 = vmatprep.subr.bf16.mxu0 %v8996
    %9131 = vmatpush2.bf16.msra.mxu0 %v8995
    %9132 = vmatprep.subr.bf16.mxu0 %v8994
    %9133 = vmatpush2.bf16.msra.mxu0 %v8993
    %9134 = vmatprep.subr.bf16.mxu0 %v8992
    %9135 = vmatpush2.bf16.msra.mxu0 %v8991
    %9136 = vmatprep.subr.bf16.mxu0 %v8990
    %9137 = vmatpush2.bf16.msra.mxu0 %v8989
    %9138 = vmatprep.subr.bf16.mxu0 %v8988
    %9139 = vmatpush2.bf16.msra.mxu0 %v8987
    %9140 = vmatprep.mubr.bf16.mxu0 %v8682
    %9141 = vmatmul.mubr.bf16.gmra.mxu0 %v8681
    %v9142 = vpop.f32.mrf.mxu0
    %v9143 = vadd.f32 %v9102, %v9142
    %v9144 = vpop.f32.mrf.mxu0
    %v9145 = vadd.f32 %v9104, %v9144
    %v9146 = vpop.f32.mrf.mxu0
    %v9147 = vpop.f32.mrf.mxu0
    %9148 = vdwg.mxu0
    %v9149 = vrot.slane %v9143, 4
    %v9150 = vadd.f32 %v9143, %v9149
    %v9151 = vrot.slane %v9150, 2
    %v9152 = vadd.f32 %v9150, %v9151
    %v9153 = vrot.slane %v9152, 1
    %v9154 = vadd.f32 %v9152, %v9153
    %v9155 = vrot.slane %v9145, 4
    %v9156 = vadd.f32 %v9145, %v9155
    %v9157 = vrot.slane %v9156, 2
    %v9158 = vadd.f32 %v9156, %v9157
    %v9159 = vrot.slane %v9158, 1
    %v9160 = vadd.f32 %v9158, %v9159
    %v9161 = vmul.f32 %v9154, %v2107
    %v9162 = vmul.f32 %v9160, %v2107
    %v9163 = vmul.f32 %v9143, %v9143
    %v9164 = vmul.f32 %v9145, %v9145
    %v9165 = vrot.slane %v9163, 4
    %v9166 = vadd.f32 %v9163, %v9165
    %v9167 = vrot.slane %v9166, 2
    %v9168 = vadd.f32 %v9166, %v9167
    %v9169 = vrot.slane %v9168, 1
    %v9170 = vadd.f32 %v9168, %v9169
    %v9171 = vrot.slane %v9164, 4
    %v9172 = vadd.f32 %v9164, %v9171
    %v9173 = vrot.slane %v9172, 2
    %v9174 = vadd.f32 %v9172, %v9173
    %v9175 = vrot.slane %v9174, 1
    %v9176 = vadd.f32 %v9174, %v9175
    %v9177 = vmul.f32 %v9170, %v2107
    %v9178 = vmul.f32 %v9176, %v2107
    %v9179 = vmul.f32 %v9161, %v9161
    %v9180 = vmul.f32 %v9162, %v9162
    %v9181 = vsub.f32 %v9177, %v9179
    %v9182 = vsub.f32 %v9178, %v9180
    %v9183 = vmax.f32 %v9181, 0.0
    %v9184 = vmax.f32 %v9182, 0.0
    %s9185 = scalar_lea.vmem [#allocation13], 6
    %v9186 = vld [vmem:[%s9185] ss:$8 sm:$0x3]
    %s9187 = scalar_lea.vmem [#allocation13], 7
    %v9188 = vld [vmem:[%s9187] ss:$8 sm:$0x3]
    %v9189 = vadd.f32 %v9183, 1e-05
    %v9190 = vadd.f32 %v9184, 1e-05
    %v9191 = vrsqrt.pop %v9189
    %v9192 = vrsqrt.pop %v9190
    %v9195 = vcombine.low %v9191, %v9192
    %v9197 = vunpack.c.l.s4 1966171168
    %v9198 = vunpack.c.0.s8 %v9197
    %v9199 = vlaneseq
    %v9200 = vshrl.u32 %v9199, 7
    %v9201 = vsub.s32 %v9198, %v9200
    %v9202 = vrot.slane %v9195, %v9201
    %v9204 = vunpack.c.l.s4 1966171168
    %v9205 = vunpack.c.0.s8 %v9204
    %v9206 = vlaneseq
    %v9207 = vshrl.u32 %v9206, 7
    %v9208 = vsub.s32 %v9205, %v9207
    %v9209 = vrot.slane %v9202, %v9208
    %v9211 = vmul.f32 %v9186, %v9209
    %v9213 = vlaneseq
    %v9214 = vshrl.u32 %v9213, 7
    %v9215 = vsub.s32 0, %v9214
    %v9216 = vrot.slane %v9211, %v9215
    %v9217 = vlaneseq
    %v9218 = vshrl.u32 %v9217, 7
    %v9219 = vsub.s32 1, %v9218
    %v9220 = vrot.slane %v9211, %v9219
    %v9223 = vmul.f32 %v9161, %v9216
    %v9224 = vmul.f32 %v9162, %v9220
    %v9227 = vcombine.low %v9223, %v9224
    %v9229 = vunpack.c.l.s4 1966171168
    %v9230 = vunpack.c.0.s8 %v9229
    %v9231 = vlaneseq
    %v9232 = vshrl.u32 %v9231, 7
    %v9233 = vsub.s32 %v9230, %v9232
    %v9234 = vrot.slane %v9227, %v9233
    %v9236 = vunpack.c.l.s4 1966171168
    %v9237 = vunpack.c.0.s8 %v9236
    %v9238 = vlaneseq
    %v9239 = vshrl.u32 %v9238, 7
    %v9240 = vsub.s32 %v9237, %v9239
    %v9241 = vrot.slane %v9234, %v9240
    %v9243 = vsub.f32 %v9188, %v9241
    %v9244 = vmul.f32 %v9143, %v9216
    %v9245 = vmul.f32 %v9145, %v9220
    %v9247 = vlaneseq
    %v9248 = vshrl.u32 %v9247, 7
    %v9249 = vsub.s32 0, %v9248
    %v9250 = vrot.slane %v9243, %v9249
    %v9251 = vlaneseq
    %v9252 = vshrl.u32 %v9251, 7
    %v9253 = vsub.s32 1, %v9252
    %v9254 = vrot.slane %v9243, %v9253
    %v9257 = vadd.f32 %v9244, %v9250
    %v9258 = vadd.f32 %v9245, %v9254
    %v9259 = vmax.f32 %v9257, 0.0
    %v9260 = vmax.f32 %v9258, 0.0
    %s9261 = smul.u32 4, 32
    %s9262 = smul.u32 %s9261, 1
    %s9263 = sshll.u32 %s9262, 4
    %9264 = dma.done %s93, %s9263
    %v9265 = vpack.c.bf16 %v9259, %v9259
    %v9266 = vpack.c.bf16 %v9260, %v9260
    %v9267 = vld [vmem:[#allocation6] sm:$0xf]
    %v9268 = vld [vmem:[#allocation6 + $0x4] sm:$0xf]
    %v9269 = vld [vmem:[#allocation6 + $0x8] sm:$0xf]
    %v9270 = vld [vmem:[#allocation6 + $0xc] sm:$0xf]
    %v9271 = vld [vmem:[#allocation6 + $0x10] sm:$0xf]
    %v9272 = vld [vmem:[#allocation6 + $0x14] sm:$0xf]
    %v9273 = vld [vmem:[#allocation6 + $0x18] sm:$0xf]
    %v9274 = vld [vmem:[#allocation6 + $0x1c] sm:$0xf]
    %v9275 = vld [vmem:[#allocation6 + $0x20] sm:$0xf]
    %v9276 = vld [vmem:[#allocation6 + $0x24] sm:$0xf]
    %v9277 = vld [vmem:[#allocation6 + $0x28] sm:$0xf]
    %v9278 = vld [vmem:[#allocation6 + $0x2c] sm:$0xf]
    %v9279 = vld [vmem:[#allocation6 + $0x30] sm:$0xf]
    %v9280 = vld [vmem:[#allocation6 + $0x34] sm:$0xf]
    %v9281 = vld [vmem:[#allocation6 + $0x38] sm:$0xf]
    %v9282 = vld [vmem:[#allocation6 + $0x3c] sm:$0xf]
    %v9283 = vld [vmem:[#allocation6 + $0x40] sm:$0xf]
    %v9284 = vld [vmem:[#allocation6 + $0x44] sm:$0xf]
    %v9285 = vld [vmem:[#allocation6 + $0x48] sm:$0xf]
    %v9286 = vld [vmem:[#allocation6 + $0x4c] sm:$0xf]
    %v9287 = vld [vmem:[#allocation6 + $0x50] sm:$0xf]
    %v9288 = vld [vmem:[#allocation6 + $0x54] sm:$0xf]
    %v9289 = vld [vmem:[#allocation6 + $0x58] sm:$0xf]
    %v9290 = vld [vmem:[#allocation6 + $0x5c] sm:$0xf]
    %v9291 = vld [vmem:[#allocation6 + $0x60] sm:$0xf]
    %v9292 = vld [vmem:[#allocation6 + $0x64] sm:$0xf]
    %v9293 = vld [vmem:[#allocation6 + $0x68] sm:$0xf]
    %v9294 = vld [vmem:[#allocation6 + $0x6c] sm:$0xf]
    %v9295 = vld [vmem:[#allocation6 + $0x70] sm:$0xf]
    %v9296 = vld [vmem:[#allocation6 + $0x74] sm:$0xf]
    %v9297 = vld [vmem:[#allocation6 + $0x78] sm:$0xf]
    %v9298 = vld [vmem:[#allocation6 + $0x7c] sm:$0xf]
    %v9331 = vunpack.c.l.b16 %v9267
    %v9332 = vunpack.c.l.b16 %v9268
    %v9333 = vunpack.c.l.b16 %v9269
    %v9334 = vunpack.c.l.b16 %v9270
    %v9335 = vunpack.c.l.b16 %v9271
    %v9336 = vunpack.c.l.b16 %v9272
    %v9337 = vunpack.c.l.b16 %v9273
    %v9338 = vunpack.c.l.b16 %v9274
    %v9339 = vunpack.c.l.b16 %v9275
    %v9340 = vunpack.c.l.b16 %v9276
    %v9341 = vunpack.c.l.b16 %v9277
    %v9342 = vunpack.c.l.b16 %v9278
    %v9343 = vunpack.c.l.b16 %v9279
    %v9344 = vunpack.c.l.b16 %v9280
    %v9345 = vunpack.c.l.b16 %v9281
    %v9346 = vunpack.c.l.b16 %v9282
    %v9347 = vunpack.c.l.b16 %v9283
    %v9348 = vunpack.c.l.b16 %v9284
    %v9349 = vunpack.c.l.b16 %v9285
    %v9350 = vunpack.c.l.b16 %v9286
    %v9351 = vunpack.c.l.b16 %v9287
    %v9352 = vunpack.c.l.b16 %v9288
    %v9353 = vunpack.c.l.b16 %v9289
    %v9354 = vunpack.c.l.b16 %v9290
    %v9355 = vunpack.c.l.b16 %v9291
    %v9356 = vunpack.c.l.b16 %v9292
    %v9357 = vunpack.c.l.b16 %v9293
    %v9358 = vunpack.c.l.b16 %v9294
    %v9359 = vunpack.c.l.b16 %v9295
    %v9360 = vunpack.c.l.b16 %v9296
    %v9361 = vunpack.c.l.b16 %v9297
    %v9362 = vunpack.c.l.b16 %v9298
    %v9363 = vpack.c.b16 %v9332, %v9331
    %v9364 = vpack.c.b16 %v9334, %v9333
    %v9365 = vpack.c.b16 %v9336, %v9335
    %v9366 = vpack.c.b16 %v9338, %v9337
    %v9367 = vpack.c.b16 %v9340, %v9339
    %v9368 = vpack.c.b16 %v9342, %v9341
    %v9369 = vpack.c.b16 %v9344, %v9343
    %v9370 = vpack.c.b16 %v9346, %v9345
    %v9371 = vpack.c.b16 %v9348, %v9347
    %v9372 = vpack.c.b16 %v9350, %v9349
    %v9373 = vpack.c.b16 %v9352, %v9351
    %v9374 = vpack.c.b16 %v9354, %v9353
    %v9375 = vpack.c.b16 %v9356, %v9355
    %v9376 = vpack.c.b16 %v9358, %v9357
    %v9377 = vpack.c.b16 %v9360, %v9359
    %v9378 = vpack.c.b16 %v9362, %v9361
    %9395 = vmatprep.subr.bf16.mxu0 0
    %9396 = vmatpush1.bf16.msra.mxu0 %v9370
    %9397 = vmatprep.subr.bf16.mxu0 0
    %9398 = vmatpush1.bf16.msra.mxu0 %v9369
    %9399 = vmatprep.subr.bf16.mxu0 0
    %9400 = vmatpush1.bf16.msra.mxu0 %v9368
    %9401 = vmatprep.subr.bf16.mxu0 0
    %9402 = vmatpush1.bf16.msra.mxu0 %v9367
    %9403 = vmatprep.subr.bf16.mxu0 0
    %9404 = vmatpush1.bf16.msra.mxu0 %v9366
    %9405 = vmatprep.subr.bf16.mxu0 0
    %9406 = vmatpush1.bf16.msra.mxu0 %v9365
    %9407 = vmatprep.subr.bf16.mxu0 0
    %9408 = vmatpush1.bf16.msra.mxu0 %v9364
    %9409 = vmatprep.subr.bf16.mxu0 0
    %9410 = vmatpush1.bf16.msra.mxu0 %v9363
    %9411 = vmatprep.subr.bf16.mxu0 0
    %9412 = vmatpush2.bf16.msra.mxu0 %v9378
    %9413 = vmatprep.subr.bf16.mxu0 0
    %9414 = vmatpush2.bf16.msra.mxu0 %v9377
    %9415 = vmatprep.subr.bf16.mxu0 0
    %9416 = vmatpush2.bf16.msra.mxu0 %v9376
    %9417 = vmatprep.subr.bf16.mxu0 0
    %9418 = vmatpush2.bf16.msra.mxu0 %v9375
    %9419 = vmatprep.subr.bf16.mxu0 0
    %9420 = vmatpush2.bf16.msra.mxu0 %v9374
    %9421 = vmatprep.subr.bf16.mxu0 0
    %9422 = vmatpush2.bf16.msra.mxu0 %v9373
    %9423 = vmatprep.subr.bf16.mxu0 0
    %9424 = vmatpush2.bf16.msra.mxu0 %v9372
    %9425 = vmatprep.subr.bf16.mxu0 0
    %9426 = vmatpush2.bf16.msra.mxu0 %v9371
    %9427 = vmatprep.mubr.bf16.mxu0 %v9266
    %9428 = vmatmul.mubr.bf16.gmra.mxu0 %v9265
    %v9429 = vpop.f32.mrf.mxu0
    %v9430 = vadd.f32 0.0, %v9429
    %v9431 = vpop.f32.mrf.mxu0
    %v9432 = vpop.f32.mrf.mxu0
    %v9433 = vpop.f32.mrf.mxu0
    %9434 = vdwg.mxu0
    %v9435 = vrot.slane %v9430, 4
    %v9436 = vadd.f32 %v9430, %v9435
    %v9437 = vrot.slane %v9436, 2
    %v9438 = vadd.f32 %v9436, %v9437
    %v9439 = vrot.slane %v9438, 1
    %v9440 = vadd.f32 %v9438, %v9439
    %v9441 = vmul.f32 %v9440, %v2107
    %v9442 = vmul.f32 %v9430, %v9430
    %v9443 = vrot.slane %v9442, 4
    %v9444 = vadd.f32 %v9442, %v9443
    %v9445 = vrot.slane %v9444, 2
    %v9446 = vadd.f32 %v9444, %v9445
    %v9447 = vrot.slane %v9446, 1
    %v9448 = vadd.f32 %v9446, %v9447
    %v9449 = vmul.f32 %v9448, %v2107
    %v9450 = vmul.f32 %v9441, %v9441
    %v9451 = vsub.f32 %v9449, %v9450
    %v9452 = vmax.f32 %v9451, 0.0
    %v9453 = vld [vmem:[#allocation13 + $0x40] ss:$0 sm:$0xff]
    %v9454 = vld [vmem:[#allocation13 + $0x41] ss:$0 sm:$0xff]
    %v9455 = vadd.f32 %v9452, 1e-05
    %v9456 = vrsqrt.pop %v9455
    %v9457 = vmul.f32 %v9453, %v9456
    %v9458 = vmul.f32 %v9441, %v9457
    %v9459 = vsub.f32 %v9454, %v9458
    %v9460 = vmul.f32 %v9430, %v9457
    %v9461 = vadd.f32 %v9460, %v9459
    %v9462 = vmax.f32 %v9461, 0.0
    %s9463 = smul.u32 4, 16
    %s9464 = smul.u32 %s9463, 1
    %s9465 = sshll.u32 %s9464, 4
    %9466 = dma.done %s105, %s9465
    %v9467 = vpack.c.bf16 %v9462, %v9462
    %v9468 = vld [vmem:[#allocation7] sm:$0xf]
    %v9469 = vld [vmem:[#allocation7 + $0x4] sm:$0xf]
    %v9470 = vld [vmem:[#allocation7 + $0x8] sm:$0xf]
    %v9471 = vld [vmem:[#allocation7 + $0xc] sm:$0xf]
    %v9472 = vld [vmem:[#allocation7 + $0x10] sm:$0xf]
    %v9473 = vld [vmem:[#allocation7 + $0x14] sm:$0xf]
    %v9474 = vld [vmem:[#allocation7 + $0x18] sm:$0xf]
    %v9475 = vld [vmem:[#allocation7 + $0x1c] sm:$0xf]
    %v9476 = vld [vmem:[#allocation7 + $0x20] sm:$0xf]
    %v9477 = vld [vmem:[#allocation7 + $0x24] sm:$0xf]
    %v9478 = vld [vmem:[#allocation7 + $0x28] sm:$0xf]
    %v9479 = vld [vmem:[#allocation7 + $0x2c] sm:$0xf]
    %v9480 = vld [vmem:[#allocation7 + $0x30] sm:$0xf]
    %v9481 = vld [vmem:[#allocation7 + $0x34] sm:$0xf]
    %v9482 = vld [vmem:[#allocation7 + $0x38] sm:$0xf]
    %v9483 = vld [vmem:[#allocation7 + $0x3c] sm:$0xf]
    %v9500 = vunpack.c.l.b16 %v9468
    %v9501 = vunpack.c.l.b16 %v9469
    %v9502 = vunpack.c.l.b16 %v9470
    %v9503 = vunpack.c.l.b16 %v9471
    %v9504 = vunpack.c.l.b16 %v9472
    %v9505 = vunpack.c.l.b16 %v9473
    %v9506 = vunpack.c.l.b16 %v9474
    %v9507 = vunpack.c.l.b16 %v9475
    %v9508 = vunpack.c.l.b16 %v9476
    %v9509 = vunpack.c.l.b16 %v9477
    %v9510 = vunpack.c.l.b16 %v9478
    %v9511 = vunpack.c.l.b16 %v9479
    %v9512 = vunpack.c.l.b16 %v9480
    %v9513 = vunpack.c.l.b16 %v9481
    %v9514 = vunpack.c.l.b16 %v9482
    %v9515 = vunpack.c.l.b16 %v9483
    %v9516 = vpack.c.b16 %v9501, %v9500
    %v9517 = vpack.c.b16 %v9503, %v9502
    %v9518 = vpack.c.b16 %v9505, %v9504
    %v9519 = vpack.c.b16 %v9507, %v9506
    %v9520 = vpack.c.b16 %v9509, %v9508
    %v9521 = vpack.c.b16 %v9511, %v9510
    %v9522 = vpack.c.b16 %v9513, %v9512
    %v9523 = vpack.c.b16 %v9515, %v9514
    %9532 = vmatprep.subr.bf16.mxu0 0
    %9533 = vmatpush1.bf16.msra.mxu0 %v9523
    %9534 = vmatprep.subr.bf16.mxu0 0
    %9535 = vmatpush1.bf16.msra.mxu0 %v9522
    %9536 = vmatprep.subr.bf16.mxu0 0
    %9537 = vmatpush1.bf16.msra.mxu0 %v9521
    %9538 = vmatprep.subr.bf16.mxu0 0
    %9539 = vmatpush1.bf16.msra.mxu0 %v9520
    %9540 = vmatprep.subr.bf16.mxu0 0
    %9541 = vmatpush1.bf16.msra.mxu0 %v9519
    %9542 = vmatprep.subr.bf16.mxu0 0
    %9543 = vmatpush1.bf16.msra.mxu0 %v9518
    %9544 = vmatprep.subr.bf16.mxu0 0
    %9545 = vmatpush1.bf16.msra.mxu0 %v9517
    %9546 = vmatprep.subr.bf16.mxu0 0
    %9547 = vmatpush1.bf16.msra.mxu0 %v9516
    %9548 = vmatprep.subr.bf16.mxu0 0
    %9549 = vmatpush2.bf16.msra.mxu0 0
    %9550 = vmatprep.subr.bf16.mxu0 0
    %9551 = vmatpush2.bf16.msra.mxu0 0
    %9552 = vmatprep.subr.bf16.mxu0 0
    %9553 = vmatpush2.bf16.msra.mxu0 0
    %9554 = vmatprep.subr.bf16.mxu0 0
    %9555 = vmatpush2.bf16.msra.mxu0 0
    %9556 = vmatprep.subr.bf16.mxu0 0
    %9557 = vmatpush2.bf16.msra.mxu0 0
    %9558 = vmatprep.subr.bf16.mxu0 0
    %9559 = vmatpush2.bf16.msra.mxu0 0
    %9560 = vmatprep.subr.bf16.mxu0 0
    %9561 = vmatpush2.bf16.msra.mxu0 0
    %9562 = vmatprep.subr.bf16.mxu0 0
    %9563 = vmatpush2.bf16.msra.mxu0 0
    %9564 = vmatprep.mubr.bf16.mxu0 0
    %9565 = vmatmul.mubr.bf16.gmra.mxu0 %v9467
    %v9566 = vpop.f32.mrf.mxu0
    %v9567 = vadd.f32 0.0, %v9566
    %v9568 = vpop.f32.mrf.mxu0
    %v9569 = vpop.f32.mrf.mxu0
    %v9570 = vpop.f32.mrf.mxu0
    %9571 = vdwg.mxu0
    %vm9572 = vcmask 523264
    %v9573 = vsel %vm9572, %v9567, 0.0
    %v9574 = vrot.slane %v9573, 4
    %v9575 = vadd.f32 %v9573, %v9574
    %v9576 = vrot.slane %v9575, 2
    %v9577 = vadd.f32 %v9575, %v9576
    %v9578 = vrot.slane %v9577, 1
    %v9579 = vadd.f32 %v9577, %v9578
    %v9580 = vmul.f32 %v9579, %v2107
    %v9581 = vmul.f32 %v9567, %v9567
    %v9582 = vsel %vm9572, %v9581, 0.0
    %v9583 = vrot.slane %v9582, 4
    %v9584 = vadd.f32 %v9582, %v9583
    %v9585 = vrot.slane %v9584, 2
    %v9586 = vadd.f32 %v9584, %v9585
    %v9587 = vrot.slane %v9586, 1
    %v9588 = vadd.f32 %v9586, %v9587
    %v9589 = vmul.f32 %v9588, %v2107
    %v9590 = vmul.f32 %v9580, %v9580
    %v9591 = vsub.f32 %v9589, %v9590
    %v9592 = vmax.f32 %v9591, 0.0
    %v9593 = vld [vmem:[#allocation13 + $0x42] ss:$0 sm:$0xff]
    %v9594 = vld [vmem:[#allocation13 + $0x43] ss:$0 sm:$0xff]
    %v9595 = vadd.f32 %v9592, 1e-05
    %v9596 = vrsqrt.pop %v9595
    %v9597 = vmul.f32 %v9593, %v9596
    %v9598 = vmul.f32 %v9580, %v9597
    %v9599 = vsub.f32 %v9594, %v9598
    %v9600 = vmul.f32 %v9567, %v9597
    %v9601 = vadd.f32 %v9600, %v9599
    %v9602 = vmax.f32 %v9601, 0.0
    %s9603 = smul.u32 4, 8
    %s9604 = smul.u32 %s9603, 1
    %s9605 = sshll.u32 %s9604, 4
    %9606 = dma.done %s163, %s9605
    %v9607 = vld [vmem:[#allocation13 + $0x44] ss:$0 sm:$0xff]
    %v9608 = vpack.c.bf16 %v9602, %v9602
    %v9609 = vld [vmem:[#allocation8] sm:$0xf]
    %v9610 = vld [vmem:[#allocation8 + $0x4] sm:$0xf]
    %v9611 = vld [vmem:[#allocation8 + $0x8] sm:$0xf]
    %v9612 = vld [vmem:[#allocation8 + $0xc] sm:$0xf]
    %v9613 = vld [vmem:[#allocation8 + $0x10] sm:$0xf]
    %v9614 = vld [vmem:[#allocation8 + $0x14] sm:$0xf]
    %v9615 = vld [vmem:[#allocation8 + $0x18] sm:$0xf]
    %v9616 = vld [vmem:[#allocation8 + $0x1c] sm:$0xf]
    %v9625 = vunpack.c.l.b16 %v9609
    %v9626 = vunpack.c.l.b16 %v9610
    %v9627 = vunpack.c.l.b16 %v9611
    %v9628 = vunpack.c.l.b16 %v9612
    %v9629 = vunpack.c.l.b16 %v9613
    %v9630 = vunpack.c.l.b16 %v9614
    %v9631 = vunpack.c.l.b16 %v9615
    %v9632 = vunpack.c.l.b16 %v9616
    %v9633 = vpack.c.b16 %v9626, %v9625
    %v9634 = vpack.c.b16 %v9628, %v9627
    %v9635 = vpack.c.b16 %v9630, %v9629
    %v9636 = vpack.c.b16 %v9632, %v9631
    %v9642 = vsel %vm9572, %v9608, 0
    %9644 = vmatprep.subr.bf16.mxu0 0
    %9645 = vmatpush1.bf16.msra.mxu0 0
    %9646 = vmatprep.subr.bf16.mxu0 0
    %9647 = vmatpush1.bf16.msra.mxu0 0
    %9648 = vmatprep.subr.bf16.mxu0 0
    %9649 = vmatpush1.bf16.msra.mxu0 0
    %9650 = vmatprep.subr.bf16.mxu0 0
    %9651 = vmatpush1.bf16.msra.mxu0 0
    %9652 = vmatprep.subr.bf16.mxu0 0
    %9653 = vmatpush1.bf16.msra.mxu0 %v9636
    %9654 = vmatprep.subr.bf16.mxu0 0
    %9655 = vmatpush1.bf16.msra.mxu0 %v9635
    %9656 = vmatprep.subr.bf16.mxu0 0
    %9657 = vmatpush1.bf16.msra.mxu0 %v9634
    %9658 = vmatprep.subr.bf16.mxu0 0
    %9659 = vmatpush1.bf16.msra.mxu0 %v9633
    %9660 = vmatprep.subr.bf16.mxu0 0
    %9661 = vmatpush2.bf16.msra.mxu0 0
    %9662 = vmatprep.subr.bf16.mxu0 0
    %9663 = vmatpush2.bf16.msra.mxu0 0
    %9664 = vmatprep.subr.bf16.mxu0 0
    %9665 = vmatpush2.bf16.msra.mxu0 0
    %9666 = vmatprep.subr.bf16.mxu0 0
    %9667 = vmatpush2.bf16.msra.mxu0 0
    %9668 = vmatprep.subr.bf16.mxu0 0
    %9669 = vmatpush2.bf16.msra.mxu0 0
    %9670 = vmatprep.subr.bf16.mxu0 0
    %9671 = vmatpush2.bf16.msra.mxu0 0
    %9672 = vmatprep.subr.bf16.mxu0 0
    %9673 = vmatpush2.bf16.msra.mxu0 0
    %9674 = vmatprep.subr.bf16.mxu0 0
    %9675 = vmatpush2.bf16.msra.mxu0 0
    %9676 = vmatprep.mubr.bf16.mxu0 0
    %9677 = vmatmul.mubr.bf16.gmra.mxu0 %v9642
    %v9678 = vpop.f32.mrf.mxu0
    %v9679 = vadd.f32 %v9607, %v9678
    %v9680 = vpop.f32.mrf.mxu0
    %v9681 = vpop.f32.mrf.mxu0
    %v9682 = vpop.f32.mrf.mxu0
    %9683 = vdwg.mxu0
    %9684 = vst [vmem:[#allocation15] sm:$0xff] %v9679
    // Predicated region
    $region76: #{tpu_custom_call.1} parent=1 // pred_check
      _
    $region77: #{tpu_custom_call.1} parent=1 // pred_check_branch
      %9686 = sbr.rel (0) target = $region79
    $region78: #{tpu_custom_call.1} parent=1 // pred_region
      %s9688 = ssub.s32 128, 128
      %9689 = vsyncadd [#allocation12], %s9688
      %s9691 = sshll.u32 [#allocation15], 4
      %s9692 = int_to_ptr.vmem [resolvable:$true] %s9691
      %9694 = dma.vmem_to_hbm [thread:$0]  %s9692, 128, %s9, [#allocation12]
    $region79: #{tpu_custom_call.1} parent=1 // pred_fallthru
      _
    // Predicated region
    $region80: #{tpu_custom_call.1} parent=1 // pred_check
      _
    $region81: #{tpu_custom_call.1} parent=1 // pred_check_branch
      %9696 = sbr.rel (0) target = $region83
    $region82: #{tpu_custom_call.1} parent=1 // pred_region
      %9697 = dma.done [#allocation12], 128
    $region83: #{tpu_custom_call.1} parent=1 // pred_fallthru
      _
    %9698 = vsyncpa [#allocation11], 1
    %9699 = vsyncpa [#allocation14], 1
    %9700 = vsyncpa [#allocation12], 1
  %9701 = vsyncmov [#allocation9]
  %s9702 = vpop.sfrf %9701
  %p9703 = scmp.eq.s32.totalorder %s9702, 0
  %p9704 = pneg %p9703
  %9706 = shalt.err (%p9704)
  %s9707 = scalar_lea.sflag [#allocation9], 1
  %9708 = vsyncmov %s9707
  %s9709 = vpop.sfrf %9708
  %p9710 = scmp.eq.s32.totalorder %s9709, 0
  %p9711 = pneg %p9710
  %9713 = shalt.err (%p9711)
  %s9714 = scalar_lea.sflag [#allocation9], 2
  %9715 = vsyncmov %s9714
  %s9716 = vpop.sfrf %9715
  %p9717 = scmp.eq.s32.totalorder %s9716, 0
  %p9718 = pneg %p9717
  %9720 = shalt.err (%p9718)
  %s9721 = scalar_lea.sflag [#allocation9], 3
  %9722 = vsyncmov %s9721
  %s9723 = vpop.sfrf %9722
  %p9724 = scmp.eq.s32.totalorder %s9723, 0
  %p9725 = pneg %p9724
  %9727 = shalt.err (%p9725)
  %s9728 = scalar_lea.sflag [#allocation9], 4
  %9729 = vsyncmov %s9728
  %s9730 = vpop.sfrf %9729
  %p9731 = scmp.eq.s32.totalorder %s9730, 0
  %p9732 = pneg %p9731
  %9734 = shalt.err (%p9732)
  %s9735 = scalar_lea.sflag [#allocation9], 5
  %9736 = vsyncmov %s9735
  %s9737 = vpop.sfrf %9736
  %p9738 = scmp.eq.s32.totalorder %s9737, 0
  %p9739 = pneg %p9738
  %9741 = shalt.err (%p9739)
  %s9742 = scalar_lea.sflag [#allocation9], 6
  %9743 = vsyncmov %s9742
  %s9744 = vpop.sfrf %9743
  %p9745 = scmp.eq.s32.totalorder %s9744, 0
  %p9746 = pneg %p9745
  %9748 = shalt.err (%p9746)

</llo_original>
